<compile_context>
chip_gen: v6e
topology: v6e:2x2x1
jax: 0.10.0
libtpu: 0.0.40
codegen_flags: <defaults>
</compile_context>

<pallas_src>
import functools

import jax
import jax.numpy as jnp
from jax.experimental import pallas as pl
from jax.experimental.pallas import tpu as pltpu

_LANE = 128          # lane padding for output channels
_FRONT = 8           # front/tail slack rows of the flat window scratch (>=1)
_EPS = 1e-5          # BatchNorm2d default eps
_MAX_ROWS = 1024     # target pixels (incl. W-pad cols) per matmul tile

_CPARAMS = pltpu.CompilerParams(
    dimension_semantics=("parallel", "parallel"),
    vmem_limit_bytes=64 * 1024 * 1024,   # <= physical on v5e/v6e (128 MiB) and v7x (64 MiB)
)


def _round_up(x, m):
    return (x + m - 1) // m * m


def _pick_tile_h(h, wp, max_rows=_MAX_ROWS):
    """Largest divisor of H whose flattened row block stays <= max_rows pixels."""
    best = 1
    for t in range(1, h + 1):
        if h % t == 0 and t * wp <= max_rows:
            best = t
    return best


# ---------------------------------------------------------------------------
# Kernels
# ---------------------------------------------------------------------------
def _conv_stage_kernel(*refs, apply_act):
    """3x3 conv (pad=1) on one flattened row block of one image.

    Window layout (VMEM scratch, f32):
      [ FRONT zero slack | top halo row (wp) | tile_h*wp main rows | bottom halo row (wp) | FRONT zero slack ]
    With this flat layout every conv tap (dy, dx) is the contiguous slice starting
    at FRONT-1 + dy*wp + dx, so no in-kernel reshapes/transposes are needed.
    Junk only lands in the W-pad columns, which are masked out of the BN stats and
    re-zeroed when the next stage stages its window.
    """
    if apply_act:
        (mask_ref, top_ref, mid_ref, bot_ref, w_ref, sc_ref, sh_ref,
         out_ref, st_ref, win_ref) = refs
    else:
        (mask_ref, top_ref, mid_ref, bot_ref, w_ref,
         out_ref, st_ref, win_ref) = refs
        sc_ref = sh_ref = None

    r = pl.program_id(1)
    last_r = pl.num_programs(1) - 1

    wp = top_ref.shape[2]            # W + 2
    rows = mid_ref.shape[2]          # tile_h * wp
    cp = out_ref.shape[3]

    valid_mid = mask_ref[...] != 0.0            # (rows, 1): real pixels (not W-pad cols)
    valid_row = mask_ref[0:wp, :] != 0.0        # (wp, 1)

    def prep(x, valid):
        x = x.astype(jnp.float32)
        if apply_act:                            # fused previous-stage BN scale/shift + ReLU
            x = jnp.maximum(x * sc_ref[...] + sh_ref[...], 0.0)
        return jnp.where(valid, x, 0.0)          # conv zero-padding columns

    top = prep(top_ref[0, 0], valid_row)
    top = jnp.where(r == 0, jnp.zeros_like(top), top)        # conv zero-padding row above
    bot = prep(bot_ref[0, 0], valid_row)
    bot = jnp.where(r == last_r, jnp.zeros_like(bot), bot)   # conv zero-padding row below
    mid = prep(mid_ref[0, 0], valid_mid)

    zeros_slack = jnp.zeros((_FRONT, win_ref.shape[1]), jnp.float32)
    win_ref[0:_FRONT, :] = zeros_slack
    win_ref[_FRONT:_FRONT + wp, :] = top
    win_ref[_FRONT + wp:_FRONT + wp + rows, :] = mid
    win_ref[_FRONT + wp + rows:_FRONT + 2 * wp + rows, :] = bot
    tail = _FRONT + 2 * wp + rows
    win_ref[tail:tail + _FRONT, :] = zeros_slack

    acc = jnp.zeros((rows, cp), jnp.float32)
    for dy in range(3):
        for dx in range(3):
            start = _FRONT - 1 + dy * wp + dx
            lhs = win_ref[start:start + rows, :].astype(jnp.bfloat16)
            acc = acc + jnp.dot(lhs, w_ref[dy * 3 + dx],
                                preferred_element_type=jnp.float32)

    out_ref[0, 0] = acc.astype(out_ref.dtype)                # bf16 intermediate

    # Per-tile BatchNorm partial sums over valid pixels (from the f32 accumulator).
    masked = jnp.where(valid_mid, acc, 0.0)
    st_ref[0, 0, 0:1, :] = jnp.sum(masked, axis=0, keepdims=True)
    st_ref[0, 0, 1:2, :] = jnp.sum(masked * masked, axis=0, keepdims=True)


def _bn_relu_kernel(x_ref, sc_ref, sh_ref, o_ref):
    x = x_ref[0, 0].astype(jnp.float32)
    o_ref[0, 0] = jnp.maximum(x * sc_ref[...] + sh_ref[...], 0.0)


# ---------------------------------------------------------------------------
# Pallas call wrappers
# ---------------------------------------------------------------------------
def _conv_stage(x_ch, top, bot, colmask, wmat, scale_in=None, shift_in=None):
    apply_act = scale_in is not None
    n, nr, rows, cin = x_ch.shape
    wp = top.shape[2]
    cp = wmat.shape[2]
    win_rows = 2 * _FRONT + 2 * wp + rows

    ins = [colmask, top, x_ch, bot, wmat]
    in_specs = [
        pl.BlockSpec((rows, 1), lambda n_, r_: (0, 0)),
        pl.BlockSpec((1, 1, wp, cin), lambda n_, r_: (n_, r_, 0, 0)),
        pl.BlockSpec((1, 1, rows, cin), lambda n_, r_: (n_, r_, 0, 0)),
        pl.BlockSpec((1, 1, wp, cin), lambda n_, r_: (n_, r_, 0, 0)),
        # constant index_map -> never re-fetched after the first grid step
        pl.BlockSpec((9, cin, cp), lambda n_, r_: (0, 0, 0)),
    ]
    if apply_act:
        ins += [scale_in, shift_in]
        in_specs += [pl.BlockSpec((1, cin), lambda n_, r_: (0, 0)),
                     pl.BlockSpec((1, cin), lambda n_, r_: (0, 0))]

    conv, stats = pl.pallas_call(
        functools.partial(_conv_stage_kernel, apply_act=apply_act),
        out_shape=(jax.ShapeDtypeStruct((n, nr, rows, cp), jnp.bfloat16),
                   jax.ShapeDtypeStruct((n, nr, 2, cp), jnp.float32)),
        grid=(n, nr),
        in_specs=in_specs,
        out_specs=(pl.BlockSpec((1, 1, rows, cp), lambda n_, r_: (n_, r_, 0, 0)),
                   pl.BlockSpec((1, 1, 2, cp), lambda n_, r_: (n_, r_, 0, 0))),
        scratch_shapes=[pltpu.VMEM((win_rows, cin), jnp.float32)],
        compiler_params=_CPARAMS,
    )(*ins)
    return conv, stats


def _bn_relu_apply(x_ch, scale, shift):
    n, nr, rows, cp = x_ch.shape
    return pl.pallas_call(
        _bn_relu_kernel,
        out_shape=jax.ShapeDtypeStruct((n, nr, rows, cp), jnp.float32),
        grid=(n, nr),
        in_specs=[pl.BlockSpec((1, 1, rows, cp), lambda n_, r_: (n_, r_, 0, 0)),
                  pl.BlockSpec((1, cp), lambda n_, r_: (0, 0)),
                  pl.BlockSpec((1, cp), lambda n_, r_: (0, 0))],
        out_specs=pl.BlockSpec((1, 1, rows, cp), lambda n_, r_: (n_, r_, 0, 0)),
        compiler_params=_CPARAMS,
    )(x_ch, scale, shift)


# ---------------------------------------------------------------------------
# Glue (XLA): upsample, pad/concat, weight prep, halo extraction, BN finalize
# ---------------------------------------------------------------------------
def _bn_scale_shift(stats, gamma, beta, m_valid, cp):
    tot = jnp.sum(stats, axis=(0, 1))                  # (2, cp)
    mean = tot[0] / m_valid
    var = jnp.maximum(tot[1] / m_valid - mean * mean, 0.0)
    inv = jax.lax.rsqrt(var + _EPS)
    g = jnp.pad(gamma.astype(jnp.float32), (0, cp - gamma.shape[0]))
    b = jnp.pad(beta.astype(jnp.float32), (0, cp - beta.shape[0]))
    scale = g * inv
    shift = b - mean * scale
    return scale.reshape(1, cp), shift.reshape(1, cp)


def _prep_weights(w_oihw, cin_pad, cp):
    cout, cin = w_oihw.shape[0], w_oihw.shape[1]
    w = jnp.transpose(w_oihw, (2, 3, 1, 0)).reshape(9, cin, cout)
    w = jnp.pad(w, ((0, 0), (0, cin_pad - cin), (0, cp - cout)))
    return w.astype(jnp.bfloat16)


def _make_halos(x_ch, wp):
    """Top/bottom one-row halos per chunk (tiny: ~2/tile_h of the tensor)."""
    n, r, rows, c = x_ch.shape
    z = jnp.zeros((n, 1, wp, c), x_ch.dtype)
    top = jnp.concatenate([z, x_ch[:, :r - 1, rows - wp:, :]], axis=1)
    bot = jnp.concatenate([x_ch[:, 1:, :wp, :], z], axis=1)
    return top, bot


def _interp_matrix(n_in, n_out):
    if n_in == 1 or n_out == 1:
        return jnp.zeros((n_out, n_in), jnp.float32).at[:, 0].set(1.0)
    src = jnp.arange(n_out, dtype=jnp.float32) * ((n_in - 1) / (n_out - 1))
    i0 = jnp.floor(src).astype(jnp.int32)
    i1 = jnp.minimum(i0 + 1, n_in - 1)
    f = src - i0.astype(jnp.float32)
    rr = jnp.arange(n_out)
    m = jnp.zeros((n_out, n_in), jnp.float32)
    m = m.at[rr, i0].add(1.0 - f)
    m = m.at[rr, i1].add(f)
    return m


def _upsample_bilinear_x2(x_nhwc):
    """nn.Upsample(scale=2, bilinear, align_corners=True) as two small matmuls."""
    n, h, w, c = x_nhwc.shape
    mh = _interp_matrix(h, 2 * h).astype(x_nhwc.dtype)
    mw = _interp_matrix(w, 2 * w).astype(x_nhwc.dtype)
    y = jnp.einsum('oh,nhwc->nowc', mh, x_nhwc)
    return jnp.einsum('pw,nowc->nopc', mw, y)


# ---------------------------------------------------------------------------
# Forward pass of `Up` (bilinear=True).  NCHW in / NCHW out (PyTorch layout).
# ---------------------------------------------------------------------------
def up_forward(params, x1_nchw, x2_nchw):
    x1 = jnp.transpose(x1_nchw, (0, 2, 3, 1)).astype(jnp.bfloat16)
    x2 = jnp.transpose(x2_nchw, (0, 2, 3, 1)).astype(jnp.bfloat16)

    x1 = _upsample_bilinear_x2(x1)
    dy = x2.shape[1] - x1.shape[1]
    dx = x2.shape[2] - x1.shape[2]
    x1 = jnp.pad(x1, ((0, 0), (dy // 2, dy - dy // 2),
                      (dx // 2, dx - dx // 2), (0, 0)))
    x = jnp.concatenate([x2, x1], axis=-1)                 # torch.cat([x2, x1], dim=1)

    n, h, w, cin = x.shape
    wp = w + 2
    tile_h = _pick_tile_h(h, wp)
    nr = h // tile_h
    rows = tile_h * wp
    m_valid = n * h * w

    col = jnp.arange(rows) % wp
    colmask = ((col != 0) & (col != wp - 1)).astype(jnp.float32).reshape(rows, 1)

    # W-pad with zeros (conv padding columns) and chunk into flattened row blocks.
    xw = jnp.pad(x, ((0, 0), (0, 0), (1, 1), (0, 0)))      # (n, h, wp, cin)
    x_ch = xw.reshape(n, nr, rows, cin)
    top1, bot1 = _make_halos(x_ch, wp)

    # Conv biases b1/b2 are exactly cancelled by training-mode BatchNorm -> dropped.
    cp1 = _round_up(params["w1"].shape[0], _LANE)
    cp2 = _round_up(params["w2"].shape[0], _LANE)
    w1 = _prep_weights(params["w1"], cin, cp1)
    w2 = _prep_weights(params["w2"], cp1, cp2)

    # Stage 1: conv + BN partial stats (raw input, no fused activation).
    conv1, st1 = _conv_stage(x_ch, top1, bot1, colmask, w1)
    sc1, sh1 = _bn_scale_shift(st1, params["g1"], params["be1"], m_valid, cp1)

    # Stage 2: BN1+ReLU fused into the window staging, then conv + stats.
    top2, bot2 = _make_halos(conv1, wp)
    conv2, st2 = _conv_stage(conv1, top2, bot2, colmask, w2, sc1, sh1)
    sc2, sh2 = _bn_scale_shift(st2, params["g2"], params["be2"], m_valid, cp2)

    # Final standalone BN2 + ReLU apply.
    out = _bn_relu_apply(conv2, sc2, sh2)                  # (n, nr, rows, cp2) f32

    cout = params["w2"].shape[0]
    out = out.reshape(n, h, wp, cp2)[:, :, 1:w + 1, :cout]
    return jnp.transpose(out, (0, 3, 1, 2))                # back to NCHW


# ---------------------------------------------------------------------------
# Pure-JAX f32 reference (mirrors the PyTorch module, including conv biases)
# ---------------------------------------------------------------------------
def _reference(params, x1_nchw, x2_nchw):
    def upsample(x):
        n, c, h, w = x.shape
        ho, wo = 2 * h, 2 * w

        def grid_idx(n_in, n_out):
            if n_in == 1 or n_out == 1:
                z = jnp.zeros((n_out,), jnp.int32)
                return z, z, jnp.zeros((n_out,), jnp.float32)
            src = jnp.arange(n_out, dtype=jnp.float32) * ((n_in - 1) / (n_out - 1))
            i0 = jnp.floor(src).astype(jnp.int32)
            i1 = jnp.minimum(i0 + 1, n_in - 1)
            return i0, i1, src - i0.astype(jnp.float32)

        y0, y1, fy = grid_idx(h, ho)
        c0, c1, fx = grid_idx(w, wo)
        r = x[:, :, y0, :] * (1 - fy)[None, None, :, None] + x[:, :, y1, :] * fy[None, None, :, None]
        return r[:, :, :, c0] * (1 - fx)[None, None, None, :] + r[:, :, :, c1] * fx[None, None, None, :]

    def conv_bn_relu(x, w, b, g, be):
        y = jax.lax.conv_general_dilated(
            x, w, (1, 1), ((1, 1), (1, 1)),
            dimension_numbers=('NCHW', 'OIHW', 'NCHW'))
        y = y + b[None, :, None, None]
        mean = jnp.mean(y, axis=(0, 2, 3))
        var = jnp.var(y, axis=(0, 2, 3))
        y = (y - mean[None, :, None, None]) * jax.lax.rsqrt(var + _EPS)[None, :, None, None]
        y = y * g[None, :, None, None] + be[None, :, None, None]
        return jnp.maximum(y, 0.0)

    u = upsample(x1_nchw)
    dy = x2_nchw.shape[2] - u.shape[2]
    dx = x2_nchw.shape[3] - u.shape[3]
    u = jnp.pad(u, ((0, 0), (0, 0), (dy // 2, dy - dy // 2), (dx // 2, dx - dx // 2)))
    x = jnp.concatenate([x2_nchw, u], axis=1)
    hmid = conv_bn_relu(x, params["w1"], params["b1"], params["g1"], params["be1"])
    return conv_bn_relu(hmid, params["w2"], params["b2"], params["g2"], params["be2"])


if __name__ == "__main__":
    key = jax.random.PRNGKey(0)
    k = jax.random.split(key, 10)

    N = 2
    in_ch, out_ch = 8, 4
    mid = in_ch // 2          # DoubleConv mid_channels = in_channels // 2
    c1 = in_ch // 2           # channels of x1 (upsampled feature)
    c2 = in_ch - c1           # channels of x2 (skip connection)

    # x1 spatial 7x7 -> upsampled to 14x14, x2 is 16x16 -> exercises the F.pad path
    x1 = jax.random.normal(k[0], (N, c1, 7, 7), jnp.float32)
    x2 = jax.random.normal(k[1], (N, c2, 16, 16), jnp.float32)

    params = dict(
        w1=0.1 * jax.random.normal(k[2], (mid, in_ch, 3, 3), jnp.float32),
        b1=0.1 * jax.random.normal(k[3], (mid,), jnp.float32),
        g1=1.0 + 0.1 * jax.random.normal(k[4], (mid,), jnp.float32),
        be1=0.1 * jax.random.normal(k[5], (mid,), jnp.float32),
        w2=0.1 * jax.random.normal(k[6], (out_ch, mid, 3, 3), jnp.float32),
        b2=0.1 * jax.random.normal(k[7], (out_ch,), jnp.float32),
        g2=1.0 + 0.1 * jax.random.normal(k[8], (out_ch,), jnp.float32),
        be2=0.1 * jax.random.normal(k[9], (out_ch,), jnp.float32),
    )

    out = jax.block_until_ready(jax.jit(up_forward)(params, x1, x2))
    assert out.shape == (N, out_ch, 16, 16), out.shape
    assert bool(jnp.all(jnp.isfinite(out)))

    ref = jax.block_until_ready(jax.jit(_reference)(params, x1, x2))
    err = float(jnp.max(jnp.abs(out - ref)))
    assert err < 0.2, f"max abs err vs f32 reference too large: {err}"

    print("KERNEL_OK")
</pallas_src>

<mosaic_0001>
module attributes {stable_mosaic.version = 11 : i64} {
  func.func @_conv_stage_kernel(%arg0: i32, %arg1: i32, %arg2: memref<288x1xf32, #tpu.memory_space<vmem>>, %arg3: memref<1x1x18x8xbf16, #tpu.memory_space<vmem>>, %arg4: memref<1x1x288x8xbf16, #tpu.memory_space<vmem>>, %arg5: memref<1x1x18x8xbf16, #tpu.memory_space<vmem>>, %arg6: memref<9x8x128xbf16, #tpu.memory_space<vmem>>, %arg7: memref<1x1x288x128xbf16, #tpu.memory_space<vmem>>, %arg8: memref<1x1x2x128xf32, #tpu.memory_space<vmem>>, %arg9: memref<340x8xf32, #tpu.memory_space<vmem>>) attributes {dimension_semantics = [#tpu.dimension_semantics<parallel>, #tpu.dimension_semantics<parallel>], iteration_bounds = array<i64: 2, 1>, scalar_prefetch = 0 : i64, scratch_operands = 1 : i64, tpu.core_type = #tpu.core_type<tc>, window_params = [{pipeline_mode = #tpu.pipeline_mode<synchronous>, transform_indices = @transform_0, window_bounds = array<i64: 288, 1>}, {transform_indices = @transform_1, window_bounds = array<i64: 1, 1, 18, 8>}, {transform_indices = @transform_2, window_bounds = array<i64: 1, 1, 288, 8>}, {transform_indices = @transform_3, window_bounds = array<i64: 1, 1, 18, 8>}, {pipeline_mode = #tpu.pipeline_mode<synchronous>, transform_indices = @transform_4, window_bounds = array<i64: 9, 8, 128>}, {transform_indices = @transform_5, window_bounds = array<i64: 1, 1, 288, 128>}, {transform_indices = @transform_6, window_bounds = array<i64: 1, 1, 2, 128>}]} {
    %c0 = arith.constant 0 : index
    %c0_0 = arith.constant 0 : index
    %0 = vector.load %arg2[%c0, %c0_0] : memref<288x1xf32, #tpu.memory_space<vmem>>, vector<288x1xf32>
    %cst = arith.constant 0.000000e+00 : f32
    %1 = vector.broadcast %cst : f32 to vector<288x1xf32>
    %2 = arith.cmpf one, %0, %1 : vector<288x1xf32>
    %c0_1 = arith.constant 0 : index
    %c0_2 = arith.constant 0 : index
    %3 = vector.load %arg2[%c0_1, %c0_2] : memref<288x1xf32, #tpu.memory_space<vmem>>, vector<18x1xf32>
    %cst_3 = arith.constant 0.000000e+00 : f32
    %4 = vector.broadcast %cst_3 : f32 to vector<18x1xf32>
    %5 = arith.cmpf one, %3, %4 : vector<18x1xf32>
    %c0_4 = arith.constant 0 : index
    %c0_5 = arith.constant 0 : index
    %c0_6 = arith.constant 0 : index
    %c0_7 = arith.constant 0 : index
    %6 = vector.load %arg3[%c0_4, %c0_5, %c0_6, %c0_7] : memref<1x1x18x8xbf16, #tpu.memory_space<vmem>>, vector<1x1x18x8xbf16>
    %7 = vector.shape_cast %6 : vector<1x1x18x8xbf16> to vector<18x8xbf16>
    %8 = arith.extf %7 : vector<18x8xbf16> to vector<18x8xf32>
    %cst_8 = arith.constant 0.000000e+00 : f32
    %9 = vector.shape_cast %5 : vector<18x1xi1> to vector<18x1xi1>
    %10 = vector.broadcast %9 : vector<18x1xi1> to vector<18x8xi1>
    %11 = vector.broadcast %cst_8 : f32 to vector<18x8xf32>
    %12 = arith.select %10, %8, %11 : vector<18x8xi1>, vector<18x8xf32>
    %c0_i32 = arith.constant 0 : i32
    %13 = arith.cmpi eq, %arg1, %c0_i32 : i32
    %cst_9 = arith.constant 0.000000e+00 : f32
    %14 = vector.broadcast %cst_9 : f32 to vector<18x8xf32>
    %15 = arith.select %13, %14, %12 : vector<18x8xf32>
    %c0_10 = arith.constant 0 : index
    %c0_11 = arith.constant 0 : index
    %c0_12 = arith.constant 0 : index
    %c0_13 = arith.constant 0 : index
    %16 = vector.load %arg5[%c0_10, %c0_11, %c0_12, %c0_13] : memref<1x1x18x8xbf16, #tpu.memory_space<vmem>>, vector<1x1x18x8xbf16>
    %17 = vector.shape_cast %16 : vector<1x1x18x8xbf16> to vector<18x8xbf16>
    %18 = arith.extf %17 : vector<18x8xbf16> to vector<18x8xf32>
    %cst_14 = arith.constant 0.000000e+00 : f32
    %19 = vector.shape_cast %5 : vector<18x1xi1> to vector<18x1xi1>
    %20 = vector.broadcast %19 : vector<18x1xi1> to vector<18x8xi1>
    %21 = vector.broadcast %cst_14 : f32 to vector<18x8xf32>
    %22 = arith.select %20, %18, %21 : vector<18x8xi1>, vector<18x8xf32>
    %c0_i32_15 = arith.constant 0 : i32
    %23 = arith.cmpi eq, %arg1, %c0_i32_15 : i32
    %cst_16 = arith.constant 0.000000e+00 : f32
    %24 = vector.broadcast %cst_16 : f32 to vector<18x8xf32>
    %25 = arith.select %23, %24, %22 : vector<18x8xf32>
    %c0_17 = arith.constant 0 : index
    %c0_18 = arith.constant 0 : index
    %c0_19 = arith.constant 0 : index
    %c0_20 = arith.constant 0 : index
    %26 = vector.load %arg4[%c0_17, %c0_18, %c0_19, %c0_20] : memref<1x1x288x8xbf16, #tpu.memory_space<vmem>>, vector<1x1x288x8xbf16>
    %27 = vector.shape_cast %26 : vector<1x1x288x8xbf16> to vector<288x8xbf16>
    %28 = arith.extf %27 : vector<288x8xbf16> to vector<288x8xf32>
    %cst_21 = arith.constant 0.000000e+00 : f32
    %29 = vector.shape_cast %2 : vector<288x1xi1> to vector<288x1xi1>
    %30 = vector.broadcast %29 : vector<288x1xi1> to vector<288x8xi1>
    %31 = vector.broadcast %cst_21 : f32 to vector<288x8xf32>
    %32 = arith.select %30, %28, %31 : vector<288x8xi1>, vector<288x8xf32>
    %cst_22 = arith.constant 0.000000e+00 : f32
    %33 = vector.broadcast %cst_22 : f32 to vector<8x8xf32>
    %c0_23 = arith.constant 0 : index
    %c0_24 = arith.constant 0 : index
    %34 = vector.load %arg9[%c0_23, %c0_24] : memref<340x8xf32, #tpu.memory_space<vmem>>, vector<8x8xf32>
    tpu.vector_store %arg9[%c0_23, %c0_24], %33 {strides = array<i32>} : memref<340x8xf32, #tpu.memory_space<vmem>>, vector<8x8xf32>,
    %c8 = arith.constant 8 : index
    %c0_25 = arith.constant 0 : index
    %35 = vector.load %arg9[%c8, %c0_25] : memref<340x8xf32, #tpu.memory_space<vmem>>, vector<18x8xf32>
    tpu.vector_store %arg9[%c8, %c0_25], %15 {strides = array<i32>} : memref<340x8xf32, #tpu.memory_space<vmem>>, vector<18x8xf32>,
    %c26 = arith.constant 26 : index
    %c0_26 = arith.constant 0 : index
    %36 = vector.load %arg9[%c26, %c0_26] : memref<340x8xf32, #tpu.memory_space<vmem>>, vector<288x8xf32>
    tpu.vector_store %arg9[%c26, %c0_26], %32 {strides = array<i32>} : memref<340x8xf32, #tpu.memory_space<vmem>>, vector<288x8xf32>,
    %c314 = arith.constant 314 : index
    %c0_27 = arith.constant 0 : index
    %37 = vector.load %arg9[%c314, %c0_27] : memref<340x8xf32, #tpu.memory_space<vmem>>, vector<18x8xf32>
    tpu.vector_store %arg9[%c314, %c0_27], %25 {strides = array<i32>} : memref<340x8xf32, #tpu.memory_space<vmem>>, vector<18x8xf32>,
    %c332 = arith.constant 332 : index
    %c0_28 = arith.constant 0 : index
    %38 = vector.load %arg9[%c332, %c0_28] : memref<340x8xf32, #tpu.memory_space<vmem>>, vector<8x8xf32>
    tpu.vector_store %arg9[%c332, %c0_28], %33 {strides = array<i32>} : memref<340x8xf32, #tpu.memory_space<vmem>>, vector<8x8xf32>,
    %cst_29 = arith.constant 0.000000e+00 : f32
    %39 = vector.broadcast %cst_29 : f32 to vector<288x128xf32>
    %c7 = arith.constant 7 : index
    %c0_30 = arith.constant 0 : index
    %40 = vector.load %arg9[%c7, %c0_30] : memref<340x8xf32, #tpu.memory_space<vmem>>, vector<288x8xf32>
    %41 = arith.truncf %40 : vector<288x8xf32> to vector<288x8xbf16>
    %c0_31 = arith.constant 0 : index
    %c0_32 = arith.constant 0 : index
    %c0_33 = arith.constant 0 : index
    %42 = vector.load %arg6[%c0_31, %c0_32, %c0_33] : memref<9x8x128xbf16, #tpu.memory_space<vmem>>, vector<1x8x128xbf16>
    %43 = vector.shape_cast %42 : vector<1x8x128xbf16> to vector<8x128xbf16>
    %cst_34 = arith.constant dense<0.000000e+00> : vector<288x128xf32>
    %44 = tpu.matmul %41, %43, %cst_34 {dimension_numbers = #tpu.dot_dimension_numbers<[1], [0], [0], [1], [0, 0, 1, 1], [], []>} : vector<288x8xbf16>, vector<8x128xbf16>, vector<288x128xf32> -> vector<288x128xf32>
    %45 = arith.addf %39, %44 : vector<288x128xf32>
    %c8_35 = arith.constant 8 : index
    %c0_36 = arith.constant 0 : index
    %46 = vector.load %arg9[%c8_35, %c0_36] : memref<340x8xf32, #tpu.memory_space<vmem>>, vector<288x8xf32>
    %47 = arith.truncf %46 : vector<288x8xf32> to vector<288x8xbf16>
    %c1 = arith.constant 1 : index
    %c0_37 = arith.constant 0 : index
    %c0_38 = arith.constant 0 : index
    %48 = vector.load %arg6[%c1, %c0_37, %c0_38] : memref<9x8x128xbf16, #tpu.memory_space<vmem>>, vector<1x8x128xbf16>
    %49 = vector.shape_cast %48 : vector<1x8x128xbf16> to vector<8x128xbf16>
    %cst_39 = arith.constant dense<0.000000e+00> : vector<288x128xf32>
    %50 = tpu.matmul %47, %49, %cst_39 {dimension_numbers = #tpu.dot_dimension_numbers<[1], [0], [0], [1], [0, 0, 1, 1], [], []>} : vector<288x8xbf16>, vector<8x128xbf16>, vector<288x128xf32> -> vector<288x128xf32>
    %51 = arith.addf %45, %50 : vector<288x128xf32>
    %c9 = arith.constant 9 : index
    %c0_40 = arith.constant 0 : index
    %52 = vector.load %arg9[%c9, %c0_40] : memref<340x8xf32, #tpu.memory_space<vmem>>, vector<288x8xf32>
    %53 = arith.truncf %52 : vector<288x8xf32> to vector<288x8xbf16>
    %c2 = arith.constant 2 : index
    %c0_41 = arith.constant 0 : index
    %c0_42 = arith.constant 0 : index
    %54 = vector.load %arg6[%c2, %c0_41, %c0_42] : memref<9x8x128xbf16, #tpu.memory_space<vmem>>, vector<1x8x128xbf16>
    %55 = vector.shape_cast %54 : vector<1x8x128xbf16> to vector<8x128xbf16>
    %cst_43 = arith.constant dense<0.000000e+00> : vector<288x128xf32>
    %56 = tpu.matmul %53, %55, %cst_43 {dimension_numbers = #tpu.dot_dimension_numbers<[1], [0], [0], [1], [0, 0, 1, 1], [], []>} : vector<288x8xbf16>, vector<8x128xbf16>, vector<288x128xf32> -> vector<288x128xf32>
    %57 = arith.addf %51, %56 : vector<288x128xf32>
    %c25 = arith.constant 25 : index
    %c0_44 = arith.constant 0 : index
    %58 = vector.load %arg9[%c25, %c0_44] : memref<340x8xf32, #tpu.memory_space<vmem>>, vector<288x8xf32>
    %59 = arith.truncf %58 : vector<288x8xf32> to vector<288x8xbf16>
    %c3 = arith.constant 3 : index
    %c0_45 = arith.constant 0 : index
    %c0_46 = arith.constant 0 : index
    %60 = vector.load %arg6[%c3, %c0_45, %c0_46] : memref<9x8x128xbf16, #tpu.memory_space<vmem>>, vector<1x8x128xbf16>
    %61 = vector.shape_cast %60 : vector<1x8x128xbf16> to vector<8x128xbf16>
    %cst_47 = arith.constant dense<0.000000e+00> : vector<288x128xf32>
    %62 = tpu.matmul %59, %61, %cst_47 {dimension_numbers = #tpu.dot_dimension_numbers<[1], [0], [0], [1], [0, 0, 1, 1], [], []>} : vector<288x8xbf16>, vector<8x128xbf16>, vector<288x128xf32> -> vector<288x128xf32>
    %63 = arith.addf %57, %62 : vector<288x128xf32>
    %c26_48 = arith.constant 26 : index
    %c0_49 = arith.constant 0 : index
    %64 = vector.load %arg9[%c26_48, %c0_49] : memref<340x8xf32, #tpu.memory_space<vmem>>, vector<288x8xf32>
    %65 = arith.truncf %64 : vector<288x8xf32> to vector<288x8xbf16>
    %c4 = arith.constant 4 : index
    %c0_50 = arith.constant 0 : index
    %c0_51 = arith.constant 0 : index
    %66 = vector.load %arg6[%c4, %c0_50, %c0_51] : memref<9x8x128xbf16, #tpu.memory_space<vmem>>, vector<1x8x128xbf16>
    %67 = vector.shape_cast %66 : vector<1x8x128xbf16> to vector<8x128xbf16>
    %cst_52 = arith.constant dense<0.000000e+00> : vector<288x128xf32>
    %68 = tpu.matmul %65, %67, %cst_52 {dimension_numbers = #tpu.dot_dimension_numbers<[1], [0], [0], [1], [0, 0, 1, 1], [], []>} : vector<288x8xbf16>, vector<8x128xbf16>, vector<288x128xf32> -> vector<288x128xf32>
    %69 = arith.addf %63, %68 : vector<288x128xf32>
    %c27 = arith.constant 27 : index
    %c0_53 = arith.constant 0 : index
    %70 = vector.load %arg9[%c27, %c0_53] : memref<340x8xf32, #tpu.memory_space<vmem>>, vector<288x8xf32>
    %71 = arith.truncf %70 : vector<288x8xf32> to vector<288x8xbf16>
    %c5 = arith.constant 5 : index
    %c0_54 = arith.constant 0 : index
    %c0_55 = arith.constant 0 : index
    %72 = vector.load %arg6[%c5, %c0_54, %c0_55] : memref<9x8x128xbf16, #tpu.memory_space<vmem>>, vector<1x8x128xbf16>
    %73 = vector.shape_cast %72 : vector<1x8x128xbf16> to vector<8x128xbf16>
    %cst_56 = arith.constant dense<0.000000e+00> : vector<288x128xf32>
    %74 = tpu.matmul %71, %73, %cst_56 {dimension_numbers = #tpu.dot_dimension_numbers<[1], [0], [0], [1], [0, 0, 1, 1], [], []>} : vector<288x8xbf16>, vector<8x128xbf16>, vector<288x128xf32> -> vector<288x128xf32>
    %75 = arith.addf %69, %74 : vector<288x128xf32>
    %c43 = arith.constant 43 : index
    %c0_57 = arith.constant 0 : index
    %76 = vector.load %arg9[%c43, %c0_57] : memref<340x8xf32, #tpu.memory_space<vmem>>, vector<288x8xf32>
    %77 = arith.truncf %76 : vector<288x8xf32> to vector<288x8xbf16>
    %c6 = arith.constant 6 : index
    %c0_58 = arith.constant 0 : index
    %c0_59 = arith.constant 0 : index
    %78 = vector.load %arg6[%c6, %c0_58, %c0_59] : memref<9x8x128xbf16, #tpu.memory_space<vmem>>, vector<1x8x128xbf16>
    %79 = vector.shape_cast %78 : vector<1x8x128xbf16> to vector<8x128xbf16>
    %cst_60 = arith.constant dense<0.000000e+00> : vector<288x128xf32>
    %80 = tpu.matmul %77, %79, %cst_60 {dimension_numbers = #tpu.dot_dimension_numbers<[1], [0], [0], [1], [0, 0, 1, 1], [], []>} : vector<288x8xbf16>, vector<8x128xbf16>, vector<288x128xf32> -> vector<288x128xf32>
    %81 = arith.addf %75, %80 : vector<288x128xf32>
    %c44 = arith.constant 44 : index
    %c0_61 = arith.constant 0 : index
    %82 = vector.load %arg9[%c44, %c0_61] : memref<340x8xf32, #tpu.memory_space<vmem>>, vector<288x8xf32>
    %83 = arith.truncf %82 : vector<288x8xf32> to vector<288x8xbf16>
    %c7_62 = arith.constant 7 : index
    %c0_63 = arith.constant 0 : index
    %c0_64 = arith.constant 0 : index
    %84 = vector.load %arg6[%c7_62, %c0_63, %c0_64] : memref<9x8x128xbf16, #tpu.memory_space<vmem>>, vector<1x8x128xbf16>
    %85 = vector.shape_cast %84 : vector<1x8x128xbf16> to vector<8x128xbf16>
    %cst_65 = arith.constant dense<0.000000e+00> : vector<288x128xf32>
    %86 = tpu.matmul %83, %85, %cst_65 {dimension_numbers = #tpu.dot_dimension_numbers<[1], [0], [0], [1], [0, 0, 1, 1], [], []>} : vector<288x8xbf16>, vector<8x128xbf16>, vector<288x128xf32> -> vector<288x128xf32>
    %87 = arith.addf %81, %86 : vector<288x128xf32>
    %c45 = arith.constant 45 : index
    %c0_66 = arith.constant 0 : index
    %88 = vector.load %arg9[%c45, %c0_66] : memref<340x8xf32, #tpu.memory_space<vmem>>, vector<288x8xf32>
    %89 = arith.truncf %88 : vector<288x8xf32> to vector<288x8xbf16>
    %c8_67 = arith.constant 8 : index
    %c0_68 = arith.constant 0 : index
    %c0_69 = arith.constant 0 : index
    %90 = vector.load %arg6[%c8_67, %c0_68, %c0_69] : memref<9x8x128xbf16, #tpu.memory_space<vmem>>, vector<1x8x128xbf16>
    %91 = vector.shape_cast %90 : vector<1x8x128xbf16> to vector<8x128xbf16>
    %cst_70 = arith.constant dense<0.000000e+00> : vector<288x128xf32>
    %92 = tpu.matmul %89, %91, %cst_70 {dimension_numbers = #tpu.dot_dimension_numbers<[1], [0], [0], [1], [0, 0, 1, 1], [], []>} : vector<288x8xbf16>, vector<8x128xbf16>, vector<288x128xf32> -> vector<288x128xf32>
    %93 = arith.addf %87, %92 : vector<288x128xf32>
    %94 = arith.truncf %93 : vector<288x128xf32> to vector<288x128xbf16>
    %c0_71 = arith.constant 0 : index
    %c0_72 = arith.constant 0 : index
    %c0_73 = arith.constant 0 : index
    %c0_74 = arith.constant 0 : index
    %95 = vector.load %arg7[%c0_71, %c0_72, %c0_73, %c0_74] : memref<1x1x288x128xbf16, #tpu.memory_space<vmem>>, vector<1x1x288x128xbf16>
    %96 = vector.shape_cast %95 : vector<1x1x288x128xbf16> to vector<288x128xbf16>
    %97 = vector.shape_cast %94 : vector<288x128xbf16> to vector<1x1x288x128xbf16>
    tpu.vector_store %arg7[%c0_71, %c0_72, %c0_73, %c0_74], %97 {strides = array<i32>} : memref<1x1x288x128xbf16, #tpu.memory_space<vmem>>, vector<1x1x288x128xbf16>,
    %cst_75 = arith.constant 0.000000e+00 : f32
    %98 = vector.shape_cast %2 : vector<288x1xi1> to vector<288x1xi1>
    %99 = vector.broadcast %98 : vector<288x1xi1> to vector<288x128xi1>
    %100 = vector.broadcast %cst_75 : f32 to vector<288x128xf32>
    %101 = arith.select %99, %93, %100 : vector<288x128xi1>, vector<288x128xf32>
    %cst_76 = arith.constant dense<0.000000e+00> : vector<128xf32>
    %102 = vector.multi_reduction <add>, %101, %cst_76 [0] : vector<288x128xf32> to vector<128xf32>
    %103 = vector.shape_cast %102 : vector<128xf32> to vector<1x128xf32>
    %c0_77 = arith.constant 0 : index
    %c0_78 = arith.constant 0 : index
    %c0_79 = arith.constant 0 : index
    %c0_80 = arith.constant 0 : index
    %104 = vector.load %arg8[%c0_77, %c0_78, %c0_79, %c0_80] : memref<1x1x2x128xf32, #tpu.memory_space<vmem>>, vector<1x1x1x128xf32>
    %105 = vector.shape_cast %104 : vector<1x1x1x128xf32> to vector<1x128xf32>
    %106 = vector.shape_cast %103 : vector<1x128xf32> to vector<1x1x1x128xf32>
    tpu.vector_store %arg8[%c0_77, %c0_78, %c0_79, %c0_80], %106 {strides = array<i32>} : memref<1x1x2x128xf32, #tpu.memory_space<vmem>>, vector<1x1x1x128xf32>,
    %107 = arith.mulf %101, %101 : vector<288x128xf32>
    %cst_81 = arith.constant dense<0.000000e+00> : vector<128xf32>
    %108 = vector.multi_reduction <add>, %107, %cst_81 [0] : vector<288x128xf32> to vector<128xf32>
    %109 = vector.shape_cast %108 : vector<128xf32> to vector<1x128xf32>
    %c0_82 = arith.constant 0 : index
    %c0_83 = arith.constant 0 : index
    %c1_84 = arith.constant 1 : index
    %c0_85 = arith.constant 0 : index
    %110 = vector.load %arg8[%c0_82, %c0_83, %c1_84, %c0_85] : memref<1x1x2x128xf32, #tpu.memory_space<vmem>>, vector<1x1x1x128xf32>
    %111 = vector.shape_cast %110 : vector<1x1x1x128xf32> to vector<1x128xf32>
    %112 = vector.shape_cast %109 : vector<1x128xf32> to vector<1x1x1x128xf32>
    tpu.vector_store %arg8[%c0_82, %c0_83, %c1_84, %c0_85], %112 {strides = array<i32>} : memref<1x1x2x128xf32, #tpu.memory_space<vmem>>, vector<1x1x1x128xf32>,
    return
  }
  func.func @transform_0(%arg0: i32, %arg1: i32) -> (i32, i32) {
    %c0_i32 = arith.constant 0 : i32
    %c0_i32_0 = arith.constant 0 : i32
    %c0_i32_1 = arith.constant 0 : i32
    return %c0_i32, %c0_i32_0 : i32, i32
  }
  func.func @transform_1(%arg0: i32, %arg1: i32) -> (i32, i32, i32, i32) {
    %c0_i32 = arith.constant 0 : i32
    %c0_i32_0 = arith.constant 0 : i32
    %c0_i32_1 = arith.constant 0 : i32
    return %arg0, %arg1, %c0_i32, %c0_i32_0 : i32, i32, i32, i32
  }
  func.func @transform_2(%arg0: i32, %arg1: i32) -> (i32, i32, i32, i32) {
    %c0_i32 = arith.constant 0 : i32
    %c0_i32_0 = arith.constant 0 : i32
    %c0_i32_1 = arith.constant 0 : i32
    return %arg0, %arg1, %c0_i32, %c0_i32_0 : i32, i32, i32, i32
  }
  func.func @transform_3(%arg0: i32, %arg1: i32) -> (i32, i32, i32, i32) {
    %c0_i32 = arith.constant 0 : i32
    %c0_i32_0 = arith.constant 0 : i32
    %c0_i32_1 = arith.constant 0 : i32
    return %arg0, %arg1, %c0_i32, %c0_i32_0 : i32, i32, i32, i32
  }
  func.func @transform_4(%arg0: i32, %arg1: i32) -> (i32, i32, i32) {
    %c0_i32 = arith.constant 0 : i32
    %c0_i32_0 = arith.constant 0 : i32
    %c0_i32_1 = arith.constant 0 : i32
    %c0_i32_2 = arith.constant 0 : i32
    return %c0_i32, %c0_i32_0, %c0_i32_1 : i32, i32, i32
  }
  func.func @transform_5(%arg0: i32, %arg1: i32) -> (i32, i32, i32, i32) {
    %c0_i32 = arith.constant 0 : i32
    %c0_i32_0 = arith.constant 0 : i32
    %c0_i32_1 = arith.constant 0 : i32
    return %arg0, %arg1, %c0_i32, %c0_i32_0 : i32, i32, i32, i32
  }
  func.func @transform_6(%arg0: i32, %arg1: i32) -> (i32, i32, i32, i32) {
    %c0_i32 = arith.constant 0 : i32
    %c0_i32_0 = arith.constant 0 : i32
    %c0_i32_1 = arith.constant 0 : i32
    return %arg0, %arg1, %c0_i32, %c0_i32_0 : i32, i32, i32, i32
  }
}

module attributes {stable_mosaic.version = 11 : i64} {
  func.func @_conv_stage_kernel(%arg0: i32, %arg1: i32, %arg2: memref<288x1xf32, #tpu.memory_space<vmem>>, %arg3: memref<1x1x18x128xbf16, #tpu.memory_space<vmem>>, %arg4: memref<1x1x288x128xbf16, #tpu.memory_space<vmem>>, %arg5: memref<1x1x18x128xbf16, #tpu.memory_space<vmem>>, %arg6: memref<9x128x128xbf16, #tpu.memory_space<vmem>>, %arg7: memref<1x128xf32, #tpu.memory_space<vmem>>, %arg8: memref<1x128xf32, #tpu.memory_space<vmem>>, %arg9: memref<1x1x288x128xbf16, #tpu.memory_space<vmem>>, %arg10: memref<1x1x2x128xf32, #tpu.memory_space<vmem>>, %arg11: memref<340x128xf32, #tpu.memory_space<vmem>>) attributes {dimension_semantics = [#tpu.dimension_semantics<parallel>, #tpu.dimension_semantics<parallel>], iteration_bounds = array<i64: 2, 1>, scalar_prefetch = 0 : i64, scratch_operands = 1 : i64, tpu.core_type = #tpu.core_type<tc>, window_params = [{pipeline_mode = #tpu.pipeline_mode<synchronous>, transform_indices = @transform_0, window_bounds = array<i64: 288, 1>}, {transform_indices = @transform_1, window_bounds = array<i64: 1, 1, 18, 128>}, {transform_indices = @transform_2, window_bounds = array<i64: 1, 1, 288, 128>}, {transform_indices = @transform_3, window_bounds = array<i64: 1, 1, 18, 128>}, {pipeline_mode = #tpu.pipeline_mode<synchronous>, transform_indices = @transform_4, window_bounds = array<i64: 9, 128, 128>}, {pipeline_mode = #tpu.pipeline_mode<synchronous>, transform_indices = @transform_5, window_bounds = array<i64: 1, 128>}, {pipeline_mode = #tpu.pipeline_mode<synchronous>, transform_indices = @transform_6, window_bounds = array<i64: 1, 128>}, {transform_indices = @transform_7, window_bounds = array<i64: 1, 1, 288, 128>}, {transform_indices = @transform_8, window_bounds = array<i64: 1, 1, 2, 128>}]} {
    %c0 = arith.constant 0 : index
    %c0_0 = arith.constant 0 : index
    %0 = vector.load %arg2[%c0, %c0_0] : memref<288x1xf32, #tpu.memory_space<vmem>>, vector<288x1xf32>
    %cst = arith.constant 0.000000e+00 : f32
    %1 = vector.broadcast %cst : f32 to vector<288x1xf32>
    %2 = arith.cmpf one, %0, %1 : vector<288x1xf32>
    %c0_1 = arith.constant 0 : index
    %c0_2 = arith.constant 0 : index
    %3 = vector.load %arg2[%c0_1, %c0_2] : memref<288x1xf32, #tpu.memory_space<vmem>>, vector<18x1xf32>
    %cst_3 = arith.constant 0.000000e+00 : f32
    %4 = vector.broadcast %cst_3 : f32 to vector<18x1xf32>
    %5 = arith.cmpf one, %3, %4 : vector<18x1xf32>
    %c0_4 = arith.constant 0 : index
    %c0_5 = arith.constant 0 : index
    %c0_6 = arith.constant 0 : index
    %c0_7 = arith.constant 0 : index
    %6 = vector.load %arg3[%c0_4, %c0_5, %c0_6, %c0_7] : memref<1x1x18x128xbf16, #tpu.memory_space<vmem>>, vector<1x1x18x128xbf16>
    %7 = vector.shape_cast %6 : vector<1x1x18x128xbf16> to vector<18x128xbf16>
    %8 = arith.extf %7 : vector<18x128xbf16> to vector<18x128xf32>
    %c0_8 = arith.constant 0 : index
    %c0_9 = arith.constant 0 : index
    %9 = vector.load %arg7[%c0_8, %c0_9] : memref<1x128xf32, #tpu.memory_space<vmem>>, vector<1x128xf32>
    %10 = vector.broadcast %9 : vector<1x128xf32> to vector<18x128xf32>
    %11 = arith.mulf %8, %10 : vector<18x128xf32>
    %c0_10 = arith.constant 0 : index
    %c0_11 = arith.constant 0 : index
    %12 = vector.load %arg8[%c0_10, %c0_11] : memref<1x128xf32, #tpu.memory_space<vmem>>, vector<1x128xf32>
    %13 = vector.broadcast %12 : vector<1x128xf32> to vector<18x128xf32>
    %14 = arith.addf %11, %13 : vector<18x128xf32>
    %cst_12 = arith.constant 0.000000e+00 : f32
    %15 = vector.broadcast %cst_12 : f32 to vector<18x128xf32>
    %16 = arith.maximumf %14, %15 : vector<18x128xf32>
    %cst_13 = arith.constant 0.000000e+00 : f32
    %17 = vector.shape_cast %5 : vector<18x1xi1> to vector<18x1xi1>
    %18 = vector.broadcast %17 : vector<18x1xi1> to vector<18x128xi1>
    %19 = vector.broadcast %cst_13 : f32 to vector<18x128xf32>
    %20 = arith.select %18, %16, %19 : vector<18x128xi1>, vector<18x128xf32>
    %c0_i32 = arith.constant 0 : i32
    %21 = arith.cmpi eq, %arg1, %c0_i32 : i32
    %cst_14 = arith.constant 0.000000e+00 : f32
    %22 = vector.broadcast %cst_14 : f32 to vector<18x128xf32>
    %23 = arith.select %21, %22, %20 : vector<18x128xf32>
    %c0_15 = arith.constant 0 : index
    %c0_16 = arith.constant 0 : index
    %c0_17 = arith.constant 0 : index
    %c0_18 = arith.constant 0 : index
    %24 = vector.load %arg5[%c0_15, %c0_16, %c0_17, %c0_18] : memref<1x1x18x128xbf16, #tpu.memory_space<vmem>>, vector<1x1x18x128xbf16>
    %25 = vector.shape_cast %24 : vector<1x1x18x128xbf16> to vector<18x128xbf16>
    %26 = arith.extf %25 : vector<18x128xbf16> to vector<18x128xf32>
    %c0_19 = arith.constant 0 : index
    %c0_20 = arith.constant 0 : index
    %27 = vector.load %arg7[%c0_19, %c0_20] : memref<1x128xf32, #tpu.memory_space<vmem>>, vector<1x128xf32>
    %28 = vector.broadcast %27 : vector<1x128xf32> to vector<18x128xf32>
    %29 = arith.mulf %26, %28 : vector<18x128xf32>
    %c0_21 = arith.constant 0 : index
    %c0_22 = arith.constant 0 : index
    %30 = vector.load %arg8[%c0_21, %c0_22] : memref<1x128xf32, #tpu.memory_space<vmem>>, vector<1x128xf32>
    %31 = vector.broadcast %30 : vector<1x128xf32> to vector<18x128xf32>
    %32 = arith.addf %29, %31 : vector<18x128xf32>
    %cst_23 = arith.constant 0.000000e+00 : f32
    %33 = vector.broadcast %cst_23 : f32 to vector<18x128xf32>
    %34 = arith.maximumf %32, %33 : vector<18x128xf32>
    %cst_24 = arith.constant 0.000000e+00 : f32
    %35 = vector.shape_cast %5 : vector<18x1xi1> to vector<18x1xi1>
    %36 = vector.broadcast %35 : vector<18x1xi1> to vector<18x128xi1>
    %37 = vector.broadcast %cst_24 : f32 to vector<18x128xf32>
    %38 = arith.select %36, %34, %37 : vector<18x128xi1>, vector<18x128xf32>
    %c0_i32_25 = arith.constant 0 : i32
    %39 = arith.cmpi eq, %arg1, %c0_i32_25 : i32
    %cst_26 = arith.constant 0.000000e+00 : f32
    %40 = vector.broadcast %cst_26 : f32 to vector<18x128xf32>
    %41 = arith.select %39, %40, %38 : vector<18x128xf32>
    %c0_27 = arith.constant 0 : index
    %c0_28 = arith.constant 0 : index
    %c0_29 = arith.constant 0 : index
    %c0_30 = arith.constant 0 : index
    %42 = vector.load %arg4[%c0_27, %c0_28, %c0_29, %c0_30] : memref<1x1x288x128xbf16, #tpu.memory_space<vmem>>, vector<1x1x288x128xbf16>
    %43 = vector.shape_cast %42 : vector<1x1x288x128xbf16> to vector<288x128xbf16>
    %44 = arith.extf %43 : vector<288x128xbf16> to vector<288x128xf32>
    %c0_31 = arith.constant 0 : index
    %c0_32 = arith.constant 0 : index
    %45 = vector.load %arg7[%c0_31, %c0_32] : memref<1x128xf32, #tpu.memory_space<vmem>>, vector<1x128xf32>
    %46 = vector.broadcast %45 : vector<1x128xf32> to vector<288x128xf32>
    %47 = arith.mulf %44, %46 : vector<288x128xf32>
    %c0_33 = arith.constant 0 : index
    %c0_34 = arith.constant 0 : index
    %48 = vector.load %arg8[%c0_33, %c0_34] : memref<1x128xf32, #tpu.memory_space<vmem>>, vector<1x128xf32>
    %49 = vector.broadcast %48 : vector<1x128xf32> to vector<288x128xf32>
    %50 = arith.addf %47, %49 : vector<288x128xf32>
    %cst_35 = arith.constant 0.000000e+00 : f32
    %51 = vector.broadcast %cst_35 : f32 to vector<288x128xf32>
    %52 = arith.maximumf %50, %51 : vector<288x128xf32>
    %cst_36 = arith.constant 0.000000e+00 : f32
    %53 = vector.shape_cast %2 : vector<288x1xi1> to vector<288x1xi1>
    %54 = vector.broadcast %53 : vector<288x1xi1> to vector<288x128xi1>
    %55 = vector.broadcast %cst_36 : f32 to vector<288x128xf32>
    %56 = arith.select %54, %52, %55 : vector<288x128xi1>, vector<288x128xf32>
    %cst_37 = arith.constant 0.000000e+00 : f32
    %57 = vector.broadcast %cst_37 : f32 to vector<8x128xf32>
    %c0_38 = arith.constant 0 : index
    %c0_39 = arith.constant 0 : index
    %58 = vector.load %arg11[%c0_38, %c0_39] : memref<340x128xf32, #tpu.memory_space<vmem>>, vector<8x128xf32>
    tpu.vector_store %arg11[%c0_38, %c0_39], %57 {strides = array<i32>} : memref<340x128xf32, #tpu.memory_space<vmem>>, vector<8x128xf32>,
    %c8 = arith.constant 8 : index
    %c0_40 = arith.constant 0 : index
    %59 = vector.load %arg11[%c8, %c0_40] : memref<340x128xf32, #tpu.memory_space<vmem>>, vector<18x128xf32>
    tpu.vector_store %arg11[%c8, %c0_40], %23 {strides = array<i32>} : memref<340x128xf32, #tpu.memory_space<vmem>>, vector<18x128xf32>,
    %c26 = arith.constant 26 : index
    %c0_41 = arith.constant 0 : index
    %60 = vector.load %arg11[%c26, %c0_41] : memref<340x128xf32, #tpu.memory_space<vmem>>, vector<288x128xf32>
    tpu.vector_store %arg11[%c26, %c0_41], %56 {strides = array<i32>} : memref<340x128xf32, #tpu.memory_space<vmem>>, vector<288x128xf32>,
    %c314 = arith.constant 314 : index
    %c0_42 = arith.constant 0 : index
    %61 = vector.load %arg11[%c314, %c0_42] : memref<340x128xf32, #tpu.memory_space<vmem>>, vector<18x128xf32>
    tpu.vector_store %arg11[%c314, %c0_42], %41 {strides = array<i32>} : memref<340x128xf32, #tpu.memory_space<vmem>>, vector<18x128xf32>,
    %c332 = arith.constant 332 : index
    %c0_43 = arith.constant 0 : index
    %62 = vector.load %arg11[%c332, %c0_43] : memref<340x128xf32, #tpu.memory_space<vmem>>, vector<8x128xf32>
    tpu.vector_store %arg11[%c332, %c0_43], %57 {strides = array<i32>} : memref<340x128xf32, #tpu.memory_space<vmem>>, vector<8x128xf32>,
    %cst_44 = arith.constant 0.000000e+00 : f32
    %63 = vector.broadcast %cst_44 : f32 to vector<288x128xf32>
    %c7 = arith.constant 7 : index
    %c0_45 = arith.constant 0 : index
    %64 = vector.load %arg11[%c7, %c0_45] : memref<340x128xf32, #tpu.memory_space<vmem>>, vector<288x128xf32>
    %65 = arith.truncf %64 : vector<288x128xf32> to vector<288x128xbf16>
    %c0_46 = arith.constant 0 : index
    %c0_47 = arith.constant 0 : index
    %c0_48 = arith.constant 0 : index
    %66 = vector.load %arg6[%c0_46, %c0_47, %c0_48] : memref<9x128x128xbf16, #tpu.memory_space<vmem>>, vector<1x128x128xbf16>
    %67 = vector.shape_cast %66 : vector<1x128x128xbf16> to vector<128x128xbf16>
    %cst_49 = arith.constant dense<0.000000e+00> : vector<288x128xf32>
    %68 = tpu.matmul %65, %67, %cst_49 {dimension_numbers = #tpu.dot_dimension_numbers<[1], [0], [0], [1], [0, 0, 1, 1], [], []>} : vector<288x128xbf16>, vector<128x128xbf16>, vector<288x128xf32> -> vector<288x128xf32>
    %69 = arith.addf %63, %68 : vector<288x128xf32>
    %c8_50 = arith.constant 8 : index
    %c0_51 = arith.constant 0 : index
    %70 = vector.load %arg11[%c8_50, %c0_51] : memref<340x128xf32, #tpu.memory_space<vmem>>, vector<288x128xf32>
    %71 = arith.truncf %70 : vector<288x128xf32> to vector<288x128xbf16>
    %c1 = arith.constant 1 : index
    %c0_52 = arith.constant 0 : index
    %c0_53 = arith.constant 0 : index
    %72 = vector.load %arg6[%c1, %c0_52, %c0_53] : memref<9x128x128xbf16, #tpu.memory_space<vmem>>, vector<1x128x128xbf16>
    %73 = vector.shape_cast %72 : vector<1x128x128xbf16> to vector<128x128xbf16>
    %cst_54 = arith.constant dense<0.000000e+00> : vector<288x128xf32>
    %74 = tpu.matmul %71, %73, %cst_54 {dimension_numbers = #tpu.dot_dimension_numbers<[1], [0], [0], [1], [0, 0, 1, 1], [], []>} : vector<288x128xbf16>, vector<128x128xbf16>, vector<288x128xf32> -> vector<288x128xf32>
    %75 = arith.addf %69, %74 : vector<288x128xf32>
    %c9 = arith.constant 9 : index
    %c0_55 = arith.constant 0 : index
    %76 = vector.load %arg11[%c9, %c0_55] : memref<340x128xf32, #tpu.memory_space<vmem>>, vector<288x128xf32>
    %77 = arith.truncf %76 : vector<288x128xf32> to vector<288x128xbf16>
    %c2 = arith.constant 2 : index
    %c0_56 = arith.constant 0 : index
    %c0_57 = arith.constant 0 : index
    %78 = vector.load %arg6[%c2, %c0_56, %c0_57] : memref<9x128x128xbf16, #tpu.memory_space<vmem>>, vector<1x128x128xbf16>
    %79 = vector.shape_cast %78 : vector<1x128x128xbf16> to vector<128x128xbf16>
    %cst_58 = arith.constant dense<0.000000e+00> : vector<288x128xf32>
    %80 = tpu.matmul %77, %79, %cst_58 {dimension_numbers = #tpu.dot_dimension_numbers<[1], [0], [0], [1], [0, 0, 1, 1], [], []>} : vector<288x128xbf16>, vector<128x128xbf16>, vector<288x128xf32> -> vector<288x128xf32>
    %81 = arith.addf %75, %80 : vector<288x128xf32>
    %c25 = arith.constant 25 : index
    %c0_59 = arith.constant 0 : index
    %82 = vector.load %arg11[%c25, %c0_59] : memref<340x128xf32, #tpu.memory_space<vmem>>, vector<288x128xf32>
    %83 = arith.truncf %82 : vector<288x128xf32> to vector<288x128xbf16>
    %c3 = arith.constant 3 : index
    %c0_60 = arith.constant 0 : index
    %c0_61 = arith.constant 0 : index
    %84 = vector.load %arg6[%c3, %c0_60, %c0_61] : memref<9x128x128xbf16, #tpu.memory_space<vmem>>, vector<1x128x128xbf16>
    %85 = vector.shape_cast %84 : vector<1x128x128xbf16> to vector<128x128xbf16>
    %cst_62 = arith.constant dense<0.000000e+00> : vector<288x128xf32>
    %86 = tpu.matmul %83, %85, %cst_62 {dimension_numbers = #tpu.dot_dimension_numbers<[1], [0], [0], [1], [0, 0, 1, 1], [], []>} : vector<288x128xbf16>, vector<128x128xbf16>, vector<288x128xf32> -> vector<288x128xf32>
    %87 = arith.addf %81, %86 : vector<288x128xf32>
    %c26_63 = arith.constant 26 : index
    %c0_64 = arith.constant 0 : index
    %88 = vector.load %arg11[%c26_63, %c0_64] : memref<340x128xf32, #tpu.memory_space<vmem>>, vector<288x128xf32>
    %89 = arith.truncf %88 : vector<288x128xf32> to vector<288x128xbf16>
    %c4 = arith.constant 4 : index
    %c0_65 = arith.constant 0 : index
    %c0_66 = arith.constant 0 : index
    %90 = vector.load %arg6[%c4, %c0_65, %c0_66] : memref<9x128x128xbf16, #tpu.memory_space<vmem>>, vector<1x128x128xbf16>
    %91 = vector.shape_cast %90 : vector<1x128x128xbf16> to vector<128x128xbf16>
    %cst_67 = arith.constant dense<0.000000e+00> : vector<288x128xf32>
    %92 = tpu.matmul %89, %91, %cst_67 {dimension_numbers = #tpu.dot_dimension_numbers<[1], [0], [0], [1], [0, 0, 1, 1], [], []>} : vector<288x128xbf16>, vector<128x128xbf16>, vector<288x128xf32> -> vector<288x128xf32>
    %93 = arith.addf %87, %92 : vector<288x128xf32>
    %c27 = arith.constant 27 : index
    %c0_68 = arith.constant 0 : index
    %94 = vector.load %arg11[%c27, %c0_68] : memref<340x128xf32, #tpu.memory_space<vmem>>, vector<288x128xf32>
    %95 = arith.truncf %94 : vector<288x128xf32> to vector<288x128xbf16>
    %c5 = arith.constant 5 : index
    %c0_69 = arith.constant 0 : index
    %c0_70 = arith.constant 0 : index
    %96 = vector.load %arg6[%c5, %c0_69, %c0_70] : memref<9x128x128xbf16, #tpu.memory_space<vmem>>, vector<1x128x128xbf16>
    %97 = vector.shape_cast %96 : vector<1x128x128xbf16> to vector<128x128xbf16>
    %cst_71 = arith.constant dense<0.000000e+00> : vector<288x128xf32>
    %98 = tpu.matmul %95, %97, %cst_71 {dimension_numbers = #tpu.dot_dimension_numbers<[1], [0], [0], [1], [0, 0, 1, 1], [], []>} : vector<288x128xbf16>, vector<128x128xbf16>, vector<288x128xf32> -> vector<288x128xf32>
    %99 = arith.addf %93, %98 : vector<288x128xf32>
    %c43 = arith.constant 43 : index
    %c0_72 = arith.constant 0 : index
    %100 = vector.load %arg11[%c43, %c0_72] : memref<340x128xf32, #tpu.memory_space<vmem>>, vector<288x128xf32>
    %101 = arith.truncf %100 : vector<288x128xf32> to vector<288x128xbf16>
    %c6 = arith.constant 6 : index
    %c0_73 = arith.constant 0 : index
    %c0_74 = arith.constant 0 : index
    %102 = vector.load %arg6[%c6, %c0_73, %c0_74] : memref<9x128x128xbf16, #tpu.memory_space<vmem>>, vector<1x128x128xbf16>
    %103 = vector.shape_cast %102 : vector<1x128x128xbf16> to vector<128x128xbf16>
    %cst_75 = arith.constant dense<0.000000e+00> : vector<288x128xf32>
    %104 = tpu.matmul %101, %103, %cst_75 {dimension_numbers = #tpu.dot_dimension_numbers<[1], [0], [0], [1], [0, 0, 1, 1], [], []>} : vector<288x128xbf16>, vector<128x128xbf16>, vector<288x128xf32> -> vector<288x128xf32>
    %105 = arith.addf %99, %104 : vector<288x128xf32>
    %c44 = arith.constant 44 : index
    %c0_76 = arith.constant 0 : index
    %106 = vector.load %arg11[%c44, %c0_76] : memref<340x128xf32, #tpu.memory_space<vmem>>, vector<288x128xf32>
    %107 = arith.truncf %106 : vector<288x128xf32> to vector<288x128xbf16>
    %c7_77 = arith.constant 7 : index
    %c0_78 = arith.constant 0 : index
    %c0_79 = arith.constant 0 : index
    %108 = vector.load %arg6[%c7_77, %c0_78, %c0_79] : memref<9x128x128xbf16, #tpu.memory_space<vmem>>, vector<1x128x128xbf16>
    %109 = vector.shape_cast %108 : vector<1x128x128xbf16> to vector<128x128xbf16>
    %cst_80 = arith.constant dense<0.000000e+00> : vector<288x128xf32>
    %110 = tpu.matmul %107, %109, %cst_80 {dimension_numbers = #tpu.dot_dimension_numbers<[1], [0], [0], [1], [0, 0, 1, 1], [], []>} : vector<288x128xbf16>, vector<128x128xbf16>, vector<288x128xf32> -> vector<288x128xf32>
    %111 = arith.addf %105, %110 : vector<288x128xf32>
    %c45 = arith.constant 45 : index
    %c0_81 = arith.constant 0 : index
    %112 = vector.load %arg11[%c45, %c0_81] : memref<340x128xf32, #tpu.memory_space<vmem>>, vector<288x128xf32>
    %113 = arith.truncf %112 : vector<288x128xf32> to vector<288x128xbf16>
    %c8_82 = arith.constant 8 : index
    %c0_83 = arith.constant 0 : index
    %c0_84 = arith.constant 0 : index
    %114 = vector.load %arg6[%c8_82, %c0_83, %c0_84] : memref<9x128x128xbf16, #tpu.memory_space<vmem>>, vector<1x128x128xbf16>
    %115 = vector.shape_cast %114 : vector<1x128x128xbf16> to vector<128x128xbf16>
    %cst_85 = arith.constant dense<0.000000e+00> : vector<288x128xf32>
    %116 = tpu.matmul %113, %115, %cst_85 {dimension_numbers = #tpu.dot_dimension_numbers<[1], [0], [0], [1], [0, 0, 1, 1], [], []>} : vector<288x128xbf16>, vector<128x128xbf16>, vector<288x128xf32> -> vector<288x128xf32>
    %117 = arith.addf %111, %116 : vector<288x128xf32>
    %118 = arith.truncf %117 : vector<288x128xf32> to vector<288x128xbf16>
    %c0_86 = arith.constant 0 : index
    %c0_87 = arith.constant 0 : index
    %c0_88 = arith.constant 0 : index
    %c0_89 = arith.constant 0 : index
    %119 = vector.load %arg9[%c0_86, %c0_87, %c0_88, %c0_89] : memref<1x1x288x128xbf16, #tpu.memory_space<vmem>>, vector<1x1x288x128xbf16>
    %120 = vector.shape_cast %119 : vector<1x1x288x128xbf16> to vector<288x128xbf16>
    %121 = vector.shape_cast %118 : vector<288x128xbf16> to vector<1x1x288x128xbf16>
    tpu.vector_store %arg9[%c0_86, %c0_87, %c0_88, %c0_89], %121 {strides = array<i32>} : memref<1x1x288x128xbf16, #tpu.memory_space<vmem>>, vector<1x1x288x128xbf16>,
    %cst_90 = arith.constant 0.000000e+00 : f32
    %122 = vector.shape_cast %2 : vector<288x1xi1> to vector<288x1xi1>
    %123 = vector.broadcast %122 : vector<288x1xi1> to vector<288x128xi1>
    %124 = vector.broadcast %cst_90 : f32 to vector<288x128xf32>
    %125 = arith.select %123, %117, %124 : vector<288x128xi1>, vector<288x128xf32>
    %cst_91 = arith.constant dense<0.000000e+00> : vector<128xf32>
    %126 = vector.multi_reduction <add>, %125, %cst_91 [0] : vector<288x128xf32> to vector<128xf32>
    %127 = vector.shape_cast %126 : vector<128xf32> to vector<1x128xf32>
    %c0_92 = arith.constant 0 : index
    %c0_93 = arith.constant 0 : index
    %c0_94 = arith.constant 0 : index
    %c0_95 = arith.constant 0 : index
    %128 = vector.load %arg10[%c0_92, %c0_93, %c0_94, %c0_95] : memref<1x1x2x128xf32, #tpu.memory_space<vmem>>, vector<1x1x1x128xf32>
    %129 = vector.shape_cast %128 : vector<1x1x1x128xf32> to vector<1x128xf32>
    %130 = vector.shape_cast %127 : vector<1x128xf32> to vector<1x1x1x128xf32>
    tpu.vector_store %arg10[%c0_92, %c0_93, %c0_94, %c0_95], %130 {strides = array<i32>} : memref<1x1x2x128xf32, #tpu.memory_space<vmem>>, vector<1x1x1x128xf32>,
    %131 = arith.mulf %125, %125 : vector<288x128xf32>
    %cst_96 = arith.constant dense<0.000000e+00> : vector<128xf32>
    %132 = vector.multi_reduction <add>, %131, %cst_96 [0] : vector<288x128xf32> to vector<128xf32>
    %133 = vector.shape_cast %132 : vector<128xf32> to vector<1x128xf32>
    %c0_97 = arith.constant 0 : index
    %c0_98 = arith.constant 0 : index
    %c1_99 = arith.constant 1 : index
    %c0_100 = arith.constant 0 : index
    %134 = vector.load %arg10[%c0_97, %c0_98, %c1_99, %c0_100] : memref<1x1x2x128xf32, #tpu.memory_space<vmem>>, vector<1x1x1x128xf32>
    %135 = vector.shape_cast %134 : vector<1x1x1x128xf32> to vector<1x128xf32>
    %136 = vector.shape_cast %133 : vector<1x128xf32> to vector<1x1x1x128xf32>
    tpu.vector_store %arg10[%c0_97, %c0_98, %c1_99, %c0_100], %136 {strides = array<i32>} : memref<1x1x2x128xf32, #tpu.memory_space<vmem>>, vector<1x1x1x128xf32>,
    return
  }
  func.func @transform_0(%arg0: i32, %arg1: i32) -> (i32, i32) {
    %c0_i32 = arith.constant 0 : i32
    %c0_i32_0 = arith.constant 0 : i32
    %c0_i32_1 = arith.constant 0 : i32
    return %c0_i32, %c0_i32_0 : i32, i32
  }
  func.func @transform_1(%arg0: i32, %arg1: i32) -> (i32, i32, i32, i32) {
    %c0_i32 = arith.constant 0 : i32
    %c0_i32_0 = arith.constant 0 : i32
    %c0_i32_1 = arith.constant 0 : i32
    return %arg0, %arg1, %c0_i32, %c0_i32_0 : i32, i32, i32, i32
  }
  func.func @transform_2(%arg0: i32, %arg1: i32) -> (i32, i32, i32, i32) {
    %c0_i32 = arith.constant 0 : i32
    %c0_i32_0 = arith.constant 0 : i32
    %c0_i32_1 = arith.constant 0 : i32
    return %arg0, %arg1, %c0_i32, %c0_i32_0 : i32, i32, i32, i32
  }
  func.func @transform_3(%arg0: i32, %arg1: i32) -> (i32, i32, i32, i32) {
    %c0_i32 = arith.constant 0 : i32
    %c0_i32_0 = arith.constant 0 : i32
    %c0_i32_1 = arith.constant 0 : i32
    return %arg0, %arg1, %c0_i32, %c0_i32_0 : i32, i32, i32, i32
  }
  func.func @transform_4(%arg0: i32, %arg1: i32) -> (i32, i32, i32) {
    %c0_i32 = arith.constant 0 : i32
    %c0_i32_0 = arith.constant 0 : i32
    %c0_i32_1 = arith.constant 0 : i32
    %c0_i32_2 = arith.constant 0 : i32
    return %c0_i32, %c0_i32_0, %c0_i32_1 : i32, i32, i32
  }
  func.func @transform_5(%arg0: i32, %arg1: i32) -> (i32, i32) {
    %c0_i32 = arith.constant 0 : i32
    %c0_i32_0 = arith.constant 0 : i32
    %c0_i32_1 = arith.constant 0 : i32
    return %c0_i32, %c0_i32_0 : i32, i32
  }
  func.func @transform_6(%arg0: i32, %arg1: i32) -> (i32, i32) {
    %c0_i32 = arith.constant 0 : i32
    %c0_i32_0 = arith.constant 0 : i32
    %c0_i32_1 = arith.constant 0 : i32
    return %c0_i32, %c0_i32_0 : i32, i32
  }
  func.func @transform_7(%arg0: i32, %arg1: i32) -> (i32, i32, i32, i32) {
    %c0_i32 = arith.constant 0 : i32
    %c0_i32_0 = arith.constant 0 : i32
    %c0_i32_1 = arith.constant 0 : i32
    return %arg0, %arg1, %c0_i32, %c0_i32_0 : i32, i32, i32, i32
  }
  func.func @transform_8(%arg0: i32, %arg1: i32) -> (i32, i32, i32, i32) {
    %c0_i32 = arith.constant 0 : i32
    %c0_i32_0 = arith.constant 0 : i32
    %c0_i32_1 = arith.constant 0 : i32
    return %arg0, %arg1, %c0_i32, %c0_i32_0 : i32, i32, i32, i32
  }
}

module attributes {stable_mosaic.version = 11 : i64} {
  func.func @_bn_relu_kernel(%arg0: i32, %arg1: i32, %arg2: memref<1x1x288x128xbf16, #tpu.memory_space<vmem>>, %arg3: memref<1x128xf32, #tpu.memory_space<vmem>>, %arg4: memref<1x128xf32, #tpu.memory_space<vmem>>, %arg5: memref<1x1x288x128xf32, #tpu.memory_space<vmem>>) attributes {dimension_semantics = [#tpu.dimension_semantics<parallel>, #tpu.dimension_semantics<parallel>], iteration_bounds = array<i64: 2, 1>, scalar_prefetch = 0 : i64, scratch_operands = 0 : i64, tpu.core_type = #tpu.core_type<tc>, window_params = [{transform_indices = @transform_0, window_bounds = array<i64: 1, 1, 288, 128>}, {pipeline_mode = #tpu.pipeline_mode<synchronous>, transform_indices = @transform_1, window_bounds = array<i64: 1, 128>}, {pipeline_mode = #tpu.pipeline_mode<synchronous>, transform_indices = @transform_2, window_bounds = array<i64: 1, 128>}, {transform_indices = @transform_3, window_bounds = array<i64: 1, 1, 288, 128>}]} {
    %c0 = arith.constant 0 : index
    %c0_0 = arith.constant 0 : index
    %c0_1 = arith.constant 0 : index
    %c0_2 = arith.constant 0 : index
    %0 = vector.load %arg2[%c0, %c0_0, %c0_1, %c0_2] : memref<1x1x288x128xbf16, #tpu.memory_space<vmem>>, vector<1x1x288x128xbf16>
    %1 = vector.shape_cast %0 : vector<1x1x288x128xbf16> to vector<288x128xbf16>
    %2 = arith.extf %1 : vector<288x128xbf16> to vector<288x128xf32>
    %c0_3 = arith.constant 0 : index
    %c0_4 = arith.constant 0 : index
    %3 = vector.load %arg3[%c0_3, %c0_4] : memref<1x128xf32, #tpu.memory_space<vmem>>, vector<1x128xf32>
    %4 = vector.broadcast %3 : vector<1x128xf32> to vector<288x128xf32>
    %5 = arith.mulf %2, %4 : vector<288x128xf32>
    %c0_5 = arith.constant 0 : index
    %c0_6 = arith.constant 0 : index
    %6 = vector.load %arg4[%c0_5, %c0_6] : memref<1x128xf32, #tpu.memory_space<vmem>>, vector<1x128xf32>
    %7 = vector.broadcast %6 : vector<1x128xf32> to vector<288x128xf32>
    %8 = arith.addf %5, %7 : vector<288x128xf32>
    %cst = arith.constant 0.000000e+00 : f32
    %9 = vector.broadcast %cst : f32 to vector<288x128xf32>
    %10 = arith.maximumf %8, %9 : vector<288x128xf32>
    %c0_7 = arith.constant 0 : index
    %c0_8 = arith.constant 0 : index
    %c0_9 = arith.constant 0 : index
    %c0_10 = arith.constant 0 : index
    %11 = vector.load %arg5[%c0_7, %c0_8, %c0_9, %c0_10] : memref<1x1x288x128xf32, #tpu.memory_space<vmem>>, vector<1x1x288x128xf32>
    %12 = vector.shape_cast %11 : vector<1x1x288x128xf32> to vector<288x128xf32>
    %13 = vector.shape_cast %10 : vector<288x128xf32> to vector<1x1x288x128xf32>
    tpu.vector_store %arg5[%c0_7, %c0_8, %c0_9, %c0_10], %13 {strides = array<i32>} : memref<1x1x288x128xf32, #tpu.memory_space<vmem>>, vector<1x1x288x128xf32>,
    return
  }
  func.func @transform_0(%arg0: i32, %arg1: i32) -> (i32, i32, i32, i32) {
    %c0_i32 = arith.constant 0 : i32
    %c0_i32_0 = arith.constant 0 : i32
    %c0_i32_1 = arith.constant 0 : i32
    return %arg0, %arg1, %c0_i32, %c0_i32_0 : i32, i32, i32, i32
  }
  func.func @transform_1(%arg0: i32, %arg1: i32) -> (i32, i32) {
    %c0_i32 = arith.constant 0 : i32
    %c0_i32_0 = arith.constant 0 : i32
    %c0_i32_1 = arith.constant 0 : i32
    return %c0_i32, %c0_i32_0 : i32, i32
  }
  func.func @transform_2(%arg0: i32, %arg1: i32) -> (i32, i32) {
    %c0_i32 = arith.constant 0 : i32
    %c0_i32_0 = arith.constant 0 : i32
    %c0_i32_1 = arith.constant 0 : i32
    return %c0_i32, %c0_i32_0 : i32, i32
  }
  func.func @transform_3(%arg0: i32, %arg1: i32) -> (i32, i32, i32, i32) {
    %c0_i32 = arith.constant 0 : i32
    %c0_i32_0 = arith.constant 0 : i32
    %c0_i32_1 = arith.constant 0 : i32
    return %arg0, %arg1, %c0_i32, %c0_i32_0 : i32, i32, i32, i32
  }
}

</mosaic_0001>

<llo_original>
// kernel: up_forward.5
$region0: #{up_forward.5}
  #allocation0 [shape = 'u32[]', space=smem, size = 0x4, offset = 0x4, fixed_abs, tag = 'smem constant byte address 0x4 - core index']
  #allocation1 [shape = 'u32[144,128]{1,0:T(1,128)}', space=vmem, size = 0x12000, scoped, tag = 'internal scratch']
  %s0 = inlined_call_operand.vmem [shape: bf16[2,1,288,128], index: 0, kind: input, shape index: {}]
  %s1 = inlined_call_operand.vmem [shape: f32[1,128], index: 1, kind: input, shape index: {}]
  %s2 = inlined_call_operand.vmem [shape: f32[1,128], index: 2, kind: input, shape index: {}]
  %s3 = inlined_call_operand.vmem [shape: f32[2,1,288,128], index: 3, kind: output, shape index: {}]
  %s4 = sld [smem:[#allocation0]]
  $region45: #{up_forward.5} parent=0
    _
  %s6 = ssub.s32 1, %s4
  %s7 = scalar_select 0, %s6, %s4
  loop: start=0, step=1, limit=4
  $region2: #{up_forward.5} parent=0 // loop_pre_header
    _
  $region3: #{up_forward.5} parent=0 // loop_header
    %s9 = sphi 0, %s13
    %p10 = scmp.ge.s32.totalorder %s9, 4
    %s16 = sphi 0, %s28
    %s17 = sphi 0, %s24
    %s18 = sphi 0, %s16
    %s19 = sphi 0, %s17
    %s20 = sphi 0, %s18
    %s21 = sphi 0, %s19
    %s33 = sphi 0, %s35
    %s36 = sphi 0, %s33
    %s37 = sphi 0, %s36
    %s53 = sphi 0, %s37
    %s57 = sphi 0, %s57
    %s59 = sphi 0, %s57
    %s60 = sphi 0, %s59
    %s74 = sphi 0, %s60
    %s78 = sphi 0, %s78
    %s80 = sphi 0, %s78
    %s81 = sphi 0, %s80
    %s95 = sphi 0, %s81
    %s103 = sphi 0, %s105
    %s106 = sphi 0, %s103
    %s107 = sphi 0, %s106
    %s123 = sphi 0, %s107
  $region4: #{up_forward.5} parent=0 // loop_header_branch
    %12 = sbr.rel (%p10) target = $region8
  $region5: #{up_forward.5} parent=0 // loop_body
    %s14 = ssub.s32 %s9, 1
    %s15 = ssub.s32 %s9, 2
    %s22 = sadd.s32 1, %s17
    %p23 = scmp.ge.s32.totalorder %s22, 1
    %s24 = scalar_select %p23, 0, %s22
    %s25 = sadd.s32 1, %s16
    %s26 = scalar_select %p23, %s25, %s16
    %p27 = scmp.ge.s32.totalorder %s26, 2
    %s28 = scalar_select %p27, 0, %s26
    %s29 = ssub.s32 %s16, %s28
    %s30 = ssub.s32 %s17, %s24
    %s31 = sor.u32 %s29, %s30
    %p32 = scmp.eq.s32.totalorder %s31, 0
    %s34 = sadd.s32 %s33, 1
    %s35 = scalar_select %p32, %s33, %s34
    %p38 = pneg %p32
    %p39 = scmp.eq.s32.totalorder %s9, 1
    %p40 = por %p38, %p39
    %p41 = scmp.ne.s32.totalorder %s33, %s36
    %p42 = scmp.eq.s32.totalorder %s9, 0
    %p43 = por %p41, %p42
    %p44 = scmp.ne.s32.totalorder %s33, %s36
    %p45 = scmp.eq.s32.totalorder %s14, 1
    %p46 = por %p44, %p45
    %p47 = scmp.ne.s32.totalorder %s36, %s37
    %p48 = scmp.eq.s32.totalorder %s14, 0
    %p49 = por %p47, %p48
    %p50 = scmp.ne.s32.totalorder %s36, %s37
    %p51 = scmp.eq.s32.totalorder %s15, 1
    %p52 = por %p50, %p51
    %p54 = scmp.ne.s32.totalorder %s37, %s53
    %p55 = scmp.eq.s32.totalorder %s15, 0
    %p56 = por %p54, %p55
    %s58 = sadd.s32 %s57, 1
    %p61 = scmp.eq.s32.totalorder %s9, 1
    %p62 = scmp.ne.s32.totalorder %s57, %s59
    %p63 = scmp.eq.s32.totalorder %s9, 0
    %p64 = por %p62, %p63
    %p65 = scmp.ne.s32.totalorder %s57, %s59
    %p66 = scmp.eq.s32.totalorder %s14, 1
    %p67 = por %p65, %p66
    %p68 = scmp.ne.s32.totalorder %s59, %s60
    %p69 = scmp.eq.s32.totalorder %s14, 0
    %p70 = por %p68, %p69
    %p71 = scmp.ne.s32.totalorder %s59, %s60
    %p72 = scmp.eq.s32.totalorder %s15, 1
    %p73 = por %p71, %p72
    %p75 = scmp.ne.s32.totalorder %s60, %s74
    %p76 = scmp.eq.s32.totalorder %s15, 0
    %p77 = por %p75, %p76
    %s79 = sadd.s32 %s78, 1
    %p82 = scmp.eq.s32.totalorder %s9, 1
    %p83 = scmp.ne.s32.totalorder %s78, %s80
    %p84 = scmp.eq.s32.totalorder %s9, 0
    %p85 = por %p83, %p84
    %p86 = scmp.ne.s32.totalorder %s78, %s80
    %p87 = scmp.eq.s32.totalorder %s14, 1
    %p88 = por %p86, %p87
    %p89 = scmp.ne.s32.totalorder %s80, %s81
    %p90 = scmp.eq.s32.totalorder %s14, 0
    %p91 = por %p89, %p90
    %p92 = scmp.ne.s32.totalorder %s80, %s81
    %p93 = scmp.eq.s32.totalorder %s15, 1
    %p94 = por %p92, %p93
    %p96 = scmp.ne.s32.totalorder %s81, %s95
    %p97 = scmp.eq.s32.totalorder %s15, 0
    %p98 = por %p96, %p97
    %s99 = ssub.s32 %s16, %s28
    %s100 = ssub.s32 %s17, %s24
    %s101 = sor.u32 %s99, %s100
    %p102 = scmp.eq.s32.totalorder %s101, 0
    %s104 = sadd.s32 %s103, 1
    %s105 = scalar_select %p102, %s103, %s104
    %p108 = pneg %p102
    %p109 = scmp.eq.s32.totalorder %s9, 1
    %p110 = por %p108, %p109
    %p111 = scmp.ne.s32.totalorder %s103, %s106
    %p112 = scmp.eq.s32.totalorder %s9, 0
    %p113 = por %p111, %p112
    %p114 = scmp.ne.s32.totalorder %s103, %s106
    %p115 = scmp.eq.s32.totalorder %s14, 1
    %p116 = por %p114, %p115
    %p117 = scmp.ne.s32.totalorder %s106, %s107
    %p118 = scmp.eq.s32.totalorder %s14, 0
    %p119 = por %p117, %p118
    %p120 = scmp.ne.s32.totalorder %s106, %s107
    %p121 = scmp.eq.s32.totalorder %s15, 1
    %p122 = por %p120, %p121
    %p124 = scmp.ne.s32.totalorder %s107, %s123
    %p125 = scmp.eq.s32.totalorder %s15, 0
    %p126 = por %p124, %p125
    %p127 = scmp.le.s32.totalorder 1, %s9
    %p128 = scmp.lt.s32.totalorder %s9, 3
    %p129 = pnand %p127, %p128
    %p130 = pneg %p129
    // Predicated region
    $region9: #{up_forward.5} parent=5 // pred_check
      _
    $region10: #{up_forward.5} parent=5 // pred_check_branch
      %132 = sbr.rel (%p129) target = $region12
    $region11: #{up_forward.5} parent=5 // pred_region
      %s133 = ssub.s32 %s9, 1
      // Predicated region
      $region13: #{up_forward.5} parent=11 // pred_check
        %p134 = pneg %p70
      $region14: #{up_forward.5} parent=11 // pred_check_branch
        %136 = sbr.rel (%p134) target = $region16
      $region15: #{up_forward.5} parent=11 // pred_region
        _
      $region16: #{up_forward.5} parent=11 // pred_fallthru
        _
      // Predicated region
      $region17: #{up_forward.5} parent=11 // pred_check
        %p137 = pneg %p91
      $region18: #{up_forward.5} parent=11 // pred_check_branch
        %139 = sbr.rel (%p137) target = $region20
      $region19: #{up_forward.5} parent=11 // pred_region
        _
      $region20: #{up_forward.5} parent=11 // pred_fallthru
        _
    $region12: #{up_forward.5} parent=5 // pred_fallthru
      _
    %p140 = scmp.lt.s32.totalorder %s9, 2
    // Predicated region
    $region21: #{up_forward.5} parent=5 // pred_check
      %p141 = pneg %p140
    $region22: #{up_forward.5} parent=5 // pred_check_branch
      %143 = sbr.rel (%p141) target = $region24
    $region23: #{up_forward.5} parent=5 // pred_region
      // Predicated region
      $region25: #{up_forward.5} parent=23 // pred_check
        %p144 = pneg %p43
      $region26: #{up_forward.5} parent=23 // pred_check_branch
        %146 = sbr.rel (%p144) target = $region28
      $region27: #{up_forward.5} parent=23 // pred_region
        %p147 = scmp.lt.s32.totalorder %s16, 1
        %s148 = scalar_select %p147, %s16, 1
        %p149 = scmp.lt.s32.totalorder %s17, 0
        %s150 = scalar_select %p149, %s17, 0
        %s151 = smul.addr %s150, 36
        %s152 = smul.addr %s148, 36
        %s153 = sadd.s32 %s151, %s152
        %s154 = smul.addr %s153, 4
        %s155 = scalar_lea.vmem %s0, %s154
      $region28: #{up_forward.5} parent=23 // pred_fallthru
        _
    $region24: #{up_forward.5} parent=5 // pred_fallthru
      _
    %p156 = scmp.le.s32.totalorder 1, %s9
    %p157 = scmp.lt.s32.totalorder %s9, 3
    %p158 = pnand %p156, %p157
    %p159 = pneg %p158
    // Predicated region
    $region29: #{up_forward.5} parent=5 // pred_check
      _
    $region30: #{up_forward.5} parent=5 // pred_check_branch
      %161 = sbr.rel (%p158) target = $region32
    $region31: #{up_forward.5} parent=5 // pred_region
      %s162 = ssub.s32 %s9, 1
      %p163 = scmp.lt.s32.totalorder %s18, 1
      %s164 = scalar_select %p163, %s18, 1
      %p165 = scmp.lt.s32.totalorder %s19, 0
      %s166 = scalar_select %p165, %s19, 0
      %s167 = smul.addr %s166, 36
      %s168 = smul.addr %s164, 36
      %s169 = sadd.s32 %s167, %s168
      %s170 = smul.addr %s169, 4
      %s171 = scalar_lea.vmem %s0, %s170
      %p172 = pneg %p49
      %p173 = pneg %p46
      %p174 = pneg %p70
      %p175 = pneg %p67
      %p176 = pneg %p91
      %p177 = pneg %p88
      %p178 = pneg %p119
      %p179 = pneg %p116
      %p180 = scmp.lt.s32.totalorder %s18, 1
      %s181 = scalar_select %p180, %s18, 1
      %p182 = scmp.lt.s32.totalorder %s19, 0
      %s183 = scalar_select %p182, %s19, 0
      %s184 = smul.addr %s183, 36
      %s185 = smul.addr %s181, 36
      %s186 = sadd.s32 %s184, %s185
      %s187 = smul.addr %s186, 8
      %s188 = scalar_lea.vmem %s3, %s187
      %p189 = scmp.lt.s32.totalorder %s18, 1
      %s190 = scalar_select %p189, %s18, 1
      %p191 = scmp.lt.s32.totalorder %s19, 0
      %s192 = scalar_select %p191, %s19, 0
      %s193 = smul.addr %s192, 36
      %s194 = smul.addr %s190, 36
      %s195 = sadd.s32 %s193, %s194
      %s196 = smul.addr %s195, 4
      %s197 = scalar_lea.vmem %s0, %s196
      %p198 = scmp.lt.s32.totalorder %s18, 1
      %s199 = scalar_select %p198, %s18, 1
      %p200 = scmp.lt.s32.totalorder %s19, 0
      %s201 = scalar_select %p200, %s19, 0
      %s202 = smul.addr %s201, 36
      %s203 = smul.addr %s199, 36
      %s204 = sadd.s32 %s202, %s203
      %s205 = smul.addr %s204, 8
      %s206 = scalar_lea.vmem %s3, %s205
      %v207 = vld [vmem:[%s197] sm:$0xf]
      %v208 = vld [vmem:[%s197 + $0x4] sm:$0xf]
      %v209 = vld [vmem:[%s197 + $0x8] sm:$0xf]
      %v210 = vld [vmem:[%s197 + $0xc] sm:$0xf]
      %v211 = vld [vmem:[%s197 + $0x10] sm:$0xf]
      %v212 = vld [vmem:[%s197 + $0x14] sm:$0xf]
      %v213 = vld [vmem:[%s197 + $0x18] sm:$0xf]
      %v214 = vld [vmem:[%s197 + $0x1c] sm:$0xf]
      %v215 = vld [vmem:[%s197 + $0x20] sm:$0xf]
      %v216 = vld [vmem:[%s197 + $0x24] sm:$0xf]
      %v217 = vld [vmem:[%s197 + $0x28] sm:$0xf]
      %v218 = vld [vmem:[%s197 + $0x2c] sm:$0xf]
      %v219 = vld [vmem:[%s197 + $0x30] sm:$0xf]
      %v220 = vld [vmem:[%s197 + $0x34] sm:$0xf]
      %v221 = vld [vmem:[%s197 + $0x38] sm:$0xf]
      %v222 = vld [vmem:[%s197 + $0x3c] sm:$0xf]
      %v223 = vld [vmem:[%s197 + $0x40] sm:$0xf]
      %v224 = vld [vmem:[%s197 + $0x44] sm:$0xf]
      %v225 = vld [vmem:[%s197 + $0x48] sm:$0xf]
      %v226 = vld [vmem:[%s197 + $0x4c] sm:$0xf]
      %v227 = vld [vmem:[%s197 + $0x50] sm:$0xf]
      %v228 = vld [vmem:[%s197 + $0x54] sm:$0xf]
      %v229 = vld [vmem:[%s197 + $0x58] sm:$0xf]
      %v230 = vld [vmem:[%s197 + $0x5c] sm:$0xf]
      %v231 = vld [vmem:[%s197 + $0x60] sm:$0xf]
      %v232 = vld [vmem:[%s197 + $0x64] sm:$0xf]
      %v233 = vld [vmem:[%s197 + $0x68] sm:$0xf]
      %v234 = vld [vmem:[%s197 + $0x6c] sm:$0xf]
      %v235 = vld [vmem:[%s197 + $0x70] sm:$0xf]
      %v236 = vld [vmem:[%s197 + $0x74] sm:$0xf]
      %v237 = vld [vmem:[%s197 + $0x78] sm:$0xf]
      %v238 = vld [vmem:[%s197 + $0x7c] sm:$0xf]
      %v239 = vld [vmem:[%s197 + $0x80] sm:$0xf]
      %v240 = vld [vmem:[%s197 + $0x84] sm:$0xf]
      %v241 = vld [vmem:[%s197 + $0x88] sm:$0xf]
      %v242 = vld [vmem:[%s197 + $0x8c] sm:$0xf]
      %v243 = vunpack.c.l.bf16 %v207
      %v244 = vunpack.c.l.bf16 %v208
      %v245 = vunpack.c.l.bf16 %v209
      %v246 = vunpack.c.l.bf16 %v210
      %v247 = vunpack.c.l.bf16 %v211
      %v248 = vunpack.c.l.bf16 %v212
      %v249 = vunpack.c.l.bf16 %v213
      %v250 = vunpack.c.l.bf16 %v214
      %v251 = vunpack.c.l.bf16 %v215
      %v252 = vunpack.c.l.bf16 %v216
      %v253 = vunpack.c.l.bf16 %v217
      %v254 = vunpack.c.l.bf16 %v218
      %v255 = vunpack.c.l.bf16 %v219
      %v256 = vunpack.c.l.bf16 %v220
      %v257 = vunpack.c.l.bf16 %v221
      %v258 = vunpack.c.l.bf16 %v222
      %v259 = vunpack.c.l.bf16 %v223
      %v260 = vunpack.c.l.bf16 %v224
      %v261 = vunpack.c.l.bf16 %v225
      %v262 = vunpack.c.l.bf16 %v226
      %v263 = vunpack.c.l.bf16 %v227
      %v264 = vunpack.c.l.bf16 %v228
      %v265 = vunpack.c.l.bf16 %v229
      %v266 = vunpack.c.l.bf16 %v230
      %v267 = vunpack.c.l.bf16 %v231
      %v268 = vunpack.c.l.bf16 %v232
      %v269 = vunpack.c.l.bf16 %v233
      %v270 = vunpack.c.l.bf16 %v234
      %v271 = vunpack.c.l.bf16 %v235
      %v272 = vunpack.c.l.bf16 %v236
      %v273 = vunpack.c.l.bf16 %v237
      %v274 = vunpack.c.l.bf16 %v238
      %v275 = vunpack.c.l.bf16 %v239
      %v276 = vunpack.c.l.bf16 %v240
      %v277 = vunpack.c.l.bf16 %v241
      %v278 = vunpack.c.l.bf16 %v242
      %v279 = vld [vmem:[%s1] sm:$0x1]
      %v281 = vlaneseq
      %v282 = vshrl.u32 %v281, 7
      %v283 = vsub.s32 0, %v282
      %v284 = vrot.slane %v279, %v283
      %v286 = vmul.f32 %v243, %v284
      %v287 = vmul.f32 %v244, %v284
      %v288 = vmul.f32 %v245, %v284
      %v289 = vmul.f32 %v246, %v284
      %v290 = vmul.f32 %v247, %v284
      %v291 = vmul.f32 %v248, %v284
      %v292 = vmul.f32 %v249, %v284
      %v293 = vmul.f32 %v250, %v284
      %v294 = vmul.f32 %v251, %v284
      %v295 = vmul.f32 %v252, %v284
      %v296 = vmul.f32 %v253, %v284
      %v297 = vmul.f32 %v254, %v284
      %v298 = vmul.f32 %v255, %v284
      %v299 = vmul.f32 %v256, %v284
      %v300 = vmul.f32 %v257, %v284
      %v301 = vmul.f32 %v258, %v284
      %v302 = vmul.f32 %v259, %v284
      %v303 = vmul.f32 %v260, %v284
      %v304 = vmul.f32 %v261, %v284
      %v305 = vmul.f32 %v262, %v284
      %v306 = vmul.f32 %v263, %v284
      %v307 = vmul.f32 %v264, %v284
      %v308 = vmul.f32 %v265, %v284
      %v309 = vmul.f32 %v266, %v284
      %v310 = vmul.f32 %v267, %v284
      %v311 = vmul.f32 %v268, %v284
      %v312 = vmul.f32 %v269, %v284
      %v313 = vmul.f32 %v270, %v284
      %v314 = vmul.f32 %v271, %v284
      %v315 = vmul.f32 %v272, %v284
      %v316 = vmul.f32 %v273, %v284
      %v317 = vmul.f32 %v274, %v284
      %v318 = vmul.f32 %v275, %v284
      %v319 = vmul.f32 %v276, %v284
      %v320 = vmul.f32 %v277, %v284
      %v321 = vmul.f32 %v278, %v284
      %v322 = vld [vmem:[%s2] sm:$0x1]
      %v324 = vlaneseq
      %v325 = vshrl.u32 %v324, 7
      %v326 = vsub.s32 0, %v325
      %v327 = vrot.slane %v322, %v326
      %v329 = vadd.f32 %v286, %v327
      %v330 = vadd.f32 %v287, %v327
      %v331 = vadd.f32 %v288, %v327
      %v332 = vadd.f32 %v289, %v327
      %v333 = vadd.f32 %v290, %v327
      %v334 = vadd.f32 %v291, %v327
      %v335 = vadd.f32 %v292, %v327
      %v336 = vadd.f32 %v293, %v327
      %v337 = vadd.f32 %v294, %v327
      %v338 = vadd.f32 %v295, %v327
      %v339 = vadd.f32 %v296, %v327
      %v340 = vadd.f32 %v297, %v327
      %v341 = vadd.f32 %v298, %v327
      %v342 = vadd.f32 %v299, %v327
      %v343 = vadd.f32 %v300, %v327
      %v344 = vadd.f32 %v301, %v327
      %v345 = vadd.f32 %v302, %v327
      %v346 = vadd.f32 %v303, %v327
      %v347 = vadd.f32 %v304, %v327
      %v348 = vadd.f32 %v305, %v327
      %v349 = vadd.f32 %v306, %v327
      %v350 = vadd.f32 %v307, %v327
      %v351 = vadd.f32 %v308, %v327
      %v352 = vadd.f32 %v309, %v327
      %v353 = vadd.f32 %v310, %v327
      %v354 = vadd.f32 %v311, %v327
      %v355 = vadd.f32 %v312, %v327
      %v356 = vadd.f32 %v313, %v327
      %v357 = vadd.f32 %v314, %v327
      %v358 = vadd.f32 %v315, %v327
      %v359 = vadd.f32 %v316, %v327
      %v360 = vadd.f32 %v317, %v327
      %v361 = vadd.f32 %v318, %v327
      %v362 = vadd.f32 %v319, %v327
      %v363 = vadd.f32 %v320, %v327
      %v364 = vadd.f32 %v321, %v327
      %v365 = vmax.f32 %v329, 0.0
      %v366 = vmax.f32 %v330, 0.0
      %v367 = vmax.f32 %v331, 0.0
      %v368 = vmax.f32 %v332, 0.0
      %v369 = vmax.f32 %v333, 0.0
      %v370 = vmax.f32 %v334, 0.0
      %v371 = vmax.f32 %v335, 0.0
      %v372 = vmax.f32 %v336, 0.0
      %v373 = vmax.f32 %v337, 0.0
      %v374 = vmax.f32 %v338, 0.0
      %v375 = vmax.f32 %v339, 0.0
      %v376 = vmax.f32 %v340, 0.0
      %v377 = vmax.f32 %v341, 0.0
      %v378 = vmax.f32 %v342, 0.0
      %v379 = vmax.f32 %v343, 0.0
      %v380 = vmax.f32 %v344, 0.0
      %v381 = vmax.f32 %v345, 0.0
      %v382 = vmax.f32 %v346, 0.0
      %v383 = vmax.f32 %v347, 0.0
      %v384 = vmax.f32 %v348, 0.0
      %v385 = vmax.f32 %v349, 0.0
      %v386 = vmax.f32 %v350, 0.0
      %v387 = vmax.f32 %v351, 0.0
      %v388 = vmax.f32 %v352, 0.0
      %v389 = vmax.f32 %v353, 0.0
      %v390 = vmax.f32 %v354, 0.0
      %v391 = vmax.f32 %v355, 0.0
      %v392 = vmax.f32 %v356, 0.0
      %v393 = vmax.f32 %v357, 0.0
      %v394 = vmax.f32 %v358, 0.0
      %v395 = vmax.f32 %v359, 0.0
      %v396 = vmax.f32 %v360, 0.0
      %v397 = vmax.f32 %v361, 0.0
      %v398 = vmax.f32 %v362, 0.0
      %v399 = vmax.f32 %v363, 0.0
      %v400 = vmax.f32 %v364, 0.0
      %401 = vst [vmem:[%s206] sm:$0xff] %v365
      %402 = vst [vmem:[%s206 + $0x8] sm:$0xff] %v366
      %403 = vst [vmem:[%s206 + $0x10] sm:$0xff] %v367
      %404 = vst [vmem:[%s206 + $0x18] sm:$0xff] %v368
      %405 = vst [vmem:[%s206 + $0x20] sm:$0xff] %v369
      %406 = vst [vmem:[%s206 + $0x28] sm:$0xff] %v370
      %407 = vst [vmem:[%s206 + $0x30] sm:$0xff] %v371
      %408 = vst [vmem:[%s206 + $0x38] sm:$0xff] %v372
      %409 = vst [vmem:[%s206 + $0x40] sm:$0xff] %v373
      %410 = vst [vmem:[%s206 + $0x48] sm:$0xff] %v374
      %411 = vst [vmem:[%s206 + $0x50] sm:$0xff] %v375
      %412 = vst [vmem:[%s206 + $0x58] sm:$0xff] %v376
      %413 = vst [vmem:[%s206 + $0x60] sm:$0xff] %v377
      %414 = vst [vmem:[%s206 + $0x68] sm:$0xff] %v378
      %415 = vst [vmem:[%s206 + $0x70] sm:$0xff] %v379
      %416 = vst [vmem:[%s206 + $0x78] sm:$0xff] %v380
      %417 = vst [vmem:[%s206 + $0x80] sm:$0xff] %v381
      %418 = vst [vmem:[%s206 + $0x88] sm:$0xff] %v382
      %419 = vst [vmem:[%s206 + $0x90] sm:$0xff] %v383
      %420 = vst [vmem:[%s206 + $0x98] sm:$0xff] %v384
      %421 = vst [vmem:[%s206 + $0xa0] sm:$0xff] %v385
      %422 = vst [vmem:[%s206 + $0xa8] sm:$0xff] %v386
      %423 = vst [vmem:[%s206 + $0xb0] sm:$0xff] %v387
      %424 = vst [vmem:[%s206 + $0xb8] sm:$0xff] %v388
      %425 = vst [vmem:[%s206 + $0xc0] sm:$0xff] %v389
      %426 = vst [vmem:[%s206 + $0xc8] sm:$0xff] %v390
      %427 = vst [vmem:[%s206 + $0xd0] sm:$0xff] %v391
      %428 = vst [vmem:[%s206 + $0xd8] sm:$0xff] %v392
      %429 = vst [vmem:[%s206 + $0xe0] sm:$0xff] %v393
      %430 = vst [vmem:[%s206 + $0xe8] sm:$0xff] %v394
      %431 = vst [vmem:[%s206 + $0xf0] sm:$0xff] %v395
      %432 = vst [vmem:[%s206 + $0xf8] sm:$0xff] %v396
      %433 = vst [vmem:[%s206 + $0x100] sm:$0xff] %v397
      %434 = vst [vmem:[%s206 + $0x108] sm:$0xff] %v398
      %435 = vst [vmem:[%s206 + $0x110] sm:$0xff] %v399
      %436 = vst [vmem:[%s206 + $0x118] sm:$0xff] %v400
      %p437 = scmp.lt.s32.totalorder %s18, 1
      %s438 = scalar_select %p437, %s18, 1
      %p439 = scmp.lt.s32.totalorder %s19, 0
      %s440 = scalar_select %p439, %s19, 0
      %s441 = smul.addr %s440, 36
      %s442 = smul.addr %s438, 36
      %s443 = sadd.s32 %s441, %s442
      %s444 = smul.addr %s443, 8
      %s445 = scalar_lea.vmem %s3, %s444
      // Predicated region
      $region33: #{up_forward.5} parent=31 // pred_check
        %p446 = pneg %p116
      $region34: #{up_forward.5} parent=31 // pred_check_branch
        %448 = sbr.rel (%p446) target = $region36
      $region35: #{up_forward.5} parent=31 // pred_region
        _
      $region36: #{up_forward.5} parent=31 // pred_fallthru
        _
    $region32: #{up_forward.5} parent=5 // pred_fallthru
      _
    %p449 = scmp.le.s32.totalorder 2, %s9
    // Predicated region
    $region37: #{up_forward.5} parent=5 // pred_check
      %p450 = pneg %p449
    $region38: #{up_forward.5} parent=5 // pred_check_branch
      %452 = sbr.rel (%p450) target = $region40
    $region39: #{up_forward.5} parent=5 // pred_region
      %s453 = ssub.s32 %s9, 2
      // Predicated region
      $region41: #{up_forward.5} parent=39 // pred_check
        %p454 = pneg %p122
      $region42: #{up_forward.5} parent=39 // pred_check_branch
        %456 = sbr.rel (%p454) target = $region44
      $region43: #{up_forward.5} parent=39 // pred_region
        %p457 = scmp.lt.s32.totalorder %s20, 1
        %s458 = scalar_select %p457, %s20, 1
        %p459 = scmp.lt.s32.totalorder %s21, 0
        %s460 = scalar_select %p459, %s21, 0
        %s461 = smul.addr %s460, 36
        %s462 = smul.addr %s458, 36
        %s463 = sadd.s32 %s461, %s462
        %s464 = smul.addr %s463, 8
        %s465 = scalar_lea.vmem %s3, %s464
      $region44: #{up_forward.5} parent=39 // pred_fallthru
        _
    $region40: #{up_forward.5} parent=5 // pred_fallthru
      _
  $region6: #{up_forward.5} parent=0 // loop_footer
    %s13 = sadd.s32 1, %s9
  $region7: #{up_forward.5} parent=0 // loop_footer_branch
    %8 = sbr.rel target = $region3
  $region8: #{up_forward.5} parent=0 // loop_exit
    _

// kernel: up_forward.3
$region0: #{up_forward.3}
  #allocation0 [shape = 'u32[]', space=smem, size = 0x4, offset = 0x4, fixed_abs, tag = 'smem constant byte address 0x4 - core index']
  #allocation1 [shape = 'u32[144,128]{1,0:T(1,128)}', space=vmem, size = 0x12000, scoped, tag = 'internal scratch']
  #allocation2 [shape = 'f32[340,8]{1,0:T(8,128)}', space=vmem, size = 0x2b000, scoped, tag = 'scratch operand']
  %s0 = inlined_call_operand.vmem [shape: f32[288,1], index: 0, kind: input, shape index: {}]
  %s1 = inlined_call_operand.vmem [shape: bf16[2,1,18,8], index: 1, kind: input, shape index: {}, may-alias: {1,3}]
  %s2 = inlined_call_operand.vmem [shape: bf16[2,1,288,8], index: 2, kind: input, shape index: {}]
  %s3 = inlined_call_operand.vmem [shape: bf16[2,1,18,8], index: 3, kind: input, shape index: {}, may-alias: {1,3}]
  %s4 = inlined_call_operand.vmem [shape: bf16[9,8,128], index: 4, kind: input, shape index: {}]
  %s5 = inlined_call_operand.vmem [shape: bf16[2,1,288,128], index: 5, kind: output, shape index: {0}]
  %s6 = inlined_call_operand.vmem [shape: f32[2,1,2,128], index: 6, kind: output, shape index: {1}]
  %7 = xla_tuple %s5, %s6
  %s8 = sld [smem:[#allocation0]]
  $region61: #{up_forward.3} parent=0
    _
  %s10 = ssub.s32 1, %s8
  %s11 = scalar_select 0, %s10, %s8
  loop: start=0, step=1, limit=4
  $region2: #{up_forward.3} parent=0 // loop_pre_header
    _
  $region3: #{up_forward.3} parent=0 // loop_header
    %s13 = sphi 0, %s17
    %p14 = scmp.ge.s32.totalorder %s13, 4
    %s20 = sphi 0, %s32
    %s21 = sphi 0, %s28
    %s22 = sphi 0, %s20
    %s23 = sphi 0, %s21
    %s24 = sphi 0, %s22
    %s25 = sphi 0, %s23
    %s33 = sphi 0, %s33
    %s35 = sphi 0, %s33
    %s36 = sphi 0, %s35
    %s50 = sphi 0, %s36
    %s58 = sphi 0, %s60
    %s61 = sphi 0, %s58
    %s62 = sphi 0, %s61
    %s78 = sphi 0, %s62
    %s86 = sphi 0, %s88
    %s89 = sphi 0, %s86
    %s90 = sphi 0, %s89
    %s106 = sphi 0, %s90
    %s114 = sphi 0, %s116
    %s117 = sphi 0, %s114
    %s118 = sphi 0, %s117
    %s134 = sphi 0, %s118
    %s138 = sphi 0, %s138
    %s140 = sphi 0, %s138
    %s141 = sphi 0, %s140
    %s155 = sphi 0, %s141
    %s163 = sphi 0, %s165
    %s166 = sphi 0, %s163
    %s167 = sphi 0, %s166
    %s183 = sphi 0, %s167
    %s191 = sphi 0, %s193
    %s194 = sphi 0, %s191
    %s195 = sphi 0, %s194
    %s211 = sphi 0, %s195
  $region4: #{up_forward.3} parent=0 // loop_header_branch
    %16 = sbr.rel (%p14) target = $region8
  $region5: #{up_forward.3} parent=0 // loop_body
    %s18 = ssub.s32 %s13, 1
    %s19 = ssub.s32 %s13, 2
    %s26 = sadd.s32 1, %s21
    %p27 = scmp.ge.s32.totalorder %s26, 1
    %s28 = scalar_select %p27, 0, %s26
    %s29 = sadd.s32 1, %s20
    %s30 = scalar_select %p27, %s29, %s20
    %p31 = scmp.ge.s32.totalorder %s30, 2
    %s32 = scalar_select %p31, 0, %s30
    %s34 = sadd.s32 %s33, 1
    %p37 = scmp.eq.s32.totalorder %s13, 1
    %p38 = scmp.ne.s32.totalorder %s33, %s35
    %p39 = scmp.eq.s32.totalorder %s13, 0
    %p40 = por %p38, %p39
    %p41 = scmp.ne.s32.totalorder %s33, %s35
    %p42 = scmp.eq.s32.totalorder %s18, 1
    %p43 = por %p41, %p42
    %p44 = scmp.ne.s32.totalorder %s35, %s36
    %p45 = scmp.eq.s32.totalorder %s18, 0
    %p46 = por %p44, %p45
    %p47 = scmp.ne.s32.totalorder %s35, %s36
    %p48 = scmp.eq.s32.totalorder %s19, 1
    %p49 = por %p47, %p48
    %p51 = scmp.ne.s32.totalorder %s36, %s50
    %p52 = scmp.eq.s32.totalorder %s19, 0
    %p53 = por %p51, %p52
    %s54 = ssub.s32 %s20, %s32
    %s55 = ssub.s32 %s21, %s28
    %s56 = sor.u32 %s54, %s55
    %p57 = scmp.eq.s32.totalorder %s56, 0
    %s59 = sadd.s32 %s58, 1
    %s60 = scalar_select %p57, %s58, %s59
    %p63 = pneg %p57
    %p64 = scmp.eq.s32.totalorder %s13, 1
    %p65 = por %p63, %p64
    %p66 = scmp.ne.s32.totalorder %s58, %s61
    %p67 = scmp.eq.s32.totalorder %s13, 0
    %p68 = por %p66, %p67
    %p69 = scmp.ne.s32.totalorder %s58, %s61
    %p70 = scmp.eq.s32.totalorder %s18, 1
    %p71 = por %p69, %p70
    %p72 = scmp.ne.s32.totalorder %s61, %s62
    %p73 = scmp.eq.s32.totalorder %s18, 0
    %p74 = por %p72, %p73
    %p75 = scmp.ne.s32.totalorder %s61, %s62
    %p76 = scmp.eq.s32.totalorder %s19, 1
    %p77 = por %p75, %p76
    %p79 = scmp.ne.s32.totalorder %s62, %s78
    %p80 = scmp.eq.s32.totalorder %s19, 0
    %p81 = por %p79, %p80
    %s82 = ssub.s32 %s20, %s32
    %s83 = ssub.s32 %s21, %s28
    %s84 = sor.u32 %s82, %s83
    %p85 = scmp.eq.s32.totalorder %s84, 0
    %s87 = sadd.s32 %s86, 1
    %s88 = scalar_select %p85, %s86, %s87
    %p91 = pneg %p85
    %p92 = scmp.eq.s32.totalorder %s13, 1
    %p93 = por %p91, %p92
    %p94 = scmp.ne.s32.totalorder %s86, %s89
    %p95 = scmp.eq.s32.totalorder %s13, 0
    %p96 = por %p94, %p95
    %p97 = scmp.ne.s32.totalorder %s86, %s89
    %p98 = scmp.eq.s32.totalorder %s18, 1
    %p99 = por %p97, %p98
    %p100 = scmp.ne.s32.totalorder %s89, %s90
    %p101 = scmp.eq.s32.totalorder %s18, 0
    %p102 = por %p100, %p101
    %p103 = scmp.ne.s32.totalorder %s89, %s90
    %p104 = scmp.eq.s32.totalorder %s19, 1
    %p105 = por %p103, %p104
    %p107 = scmp.ne.s32.totalorder %s90, %s106
    %p108 = scmp.eq.s32.totalorder %s19, 0
    %p109 = por %p107, %p108
    %s110 = ssub.s32 %s20, %s32
    %s111 = ssub.s32 %s21, %s28
    %s112 = sor.u32 %s110, %s111
    %p113 = scmp.eq.s32.totalorder %s112, 0
    %s115 = sadd.s32 %s114, 1
    %s116 = scalar_select %p113, %s114, %s115
    %p119 = pneg %p113
    %p120 = scmp.eq.s32.totalorder %s13, 1
    %p121 = por %p119, %p120
    %p122 = scmp.ne.s32.totalorder %s114, %s117
    %p123 = scmp.eq.s32.totalorder %s13, 0
    %p124 = por %p122, %p123
    %p125 = scmp.ne.s32.totalorder %s114, %s117
    %p126 = scmp.eq.s32.totalorder %s18, 1
    %p127 = por %p125, %p126
    %p128 = scmp.ne.s32.totalorder %s117, %s118
    %p129 = scmp.eq.s32.totalorder %s18, 0
    %p130 = por %p128, %p129
    %p131 = scmp.ne.s32.totalorder %s117, %s118
    %p132 = scmp.eq.s32.totalorder %s19, 1
    %p133 = por %p131, %p132
    %p135 = scmp.ne.s32.totalorder %s118, %s134
    %p136 = scmp.eq.s32.totalorder %s19, 0
    %p137 = por %p135, %p136
    %s139 = sadd.s32 %s138, 1
    %p142 = scmp.eq.s32.totalorder %s13, 1
    %p143 = scmp.ne.s32.totalorder %s138, %s140
    %p144 = scmp.eq.s32.totalorder %s13, 0
    %p145 = por %p143, %p144
    %p146 = scmp.ne.s32.totalorder %s138, %s140
    %p147 = scmp.eq.s32.totalorder %s18, 1
    %p148 = por %p146, %p147
    %p149 = scmp.ne.s32.totalorder %s140, %s141
    %p150 = scmp.eq.s32.totalorder %s18, 0
    %p151 = por %p149, %p150
    %p152 = scmp.ne.s32.totalorder %s140, %s141
    %p153 = scmp.eq.s32.totalorder %s19, 1
    %p154 = por %p152, %p153
    %p156 = scmp.ne.s32.totalorder %s141, %s155
    %p157 = scmp.eq.s32.totalorder %s19, 0
    %p158 = por %p156, %p157
    %s159 = ssub.s32 %s20, %s32
    %s160 = ssub.s32 %s21, %s28
    %s161 = sor.u32 %s159, %s160
    %p162 = scmp.eq.s32.totalorder %s161, 0
    %s164 = sadd.s32 %s163, 1
    %s165 = scalar_select %p162, %s163, %s164
    %p168 = pneg %p162
    %p169 = scmp.eq.s32.totalorder %s13, 1
    %p170 = por %p168, %p169
    %p171 = scmp.ne.s32.totalorder %s163, %s166
    %p172 = scmp.eq.s32.totalorder %s13, 0
    %p173 = por %p171, %p172
    %p174 = scmp.ne.s32.totalorder %s163, %s166
    %p175 = scmp.eq.s32.totalorder %s18, 1
    %p176 = por %p174, %p175
    %p177 = scmp.ne.s32.totalorder %s166, %s167
    %p178 = scmp.eq.s32.totalorder %s18, 0
    %p179 = por %p177, %p178
    %p180 = scmp.ne.s32.totalorder %s166, %s167
    %p181 = scmp.eq.s32.totalorder %s19, 1
    %p182 = por %p180, %p181
    %p184 = scmp.ne.s32.totalorder %s167, %s183
    %p185 = scmp.eq.s32.totalorder %s19, 0
    %p186 = por %p184, %p185
    %s187 = ssub.s32 %s20, %s32
    %s188 = ssub.s32 %s21, %s28
    %s189 = sor.u32 %s187, %s188
    %p190 = scmp.eq.s32.totalorder %s189, 0
    %s192 = sadd.s32 %s191, 1
    %s193 = scalar_select %p190, %s191, %s192
    %p196 = pneg %p190
    %p197 = scmp.eq.s32.totalorder %s13, 1
    %p198 = por %p196, %p197
    %p199 = scmp.ne.s32.totalorder %s191, %s194
    %p200 = scmp.eq.s32.totalorder %s13, 0
    %p201 = por %p199, %p200
    %p202 = scmp.ne.s32.totalorder %s191, %s194
    %p203 = scmp.eq.s32.totalorder %s18, 1
    %p204 = por %p202, %p203
    %p205 = scmp.ne.s32.totalorder %s194, %s195
    %p206 = scmp.eq.s32.totalorder %s18, 0
    %p207 = por %p205, %p206
    %p208 = scmp.ne.s32.totalorder %s194, %s195
    %p209 = scmp.eq.s32.totalorder %s19, 1
    %p210 = por %p208, %p209
    %p212 = scmp.ne.s32.totalorder %s195, %s211
    %p213 = scmp.eq.s32.totalorder %s19, 0
    %p214 = por %p212, %p213
    %p215 = scmp.le.s32.totalorder 1, %s13
    %p216 = scmp.lt.s32.totalorder %s13, 3
    %p217 = pnand %p215, %p216
    %p218 = pneg %p217
    // Predicated region
    $region9: #{up_forward.3} parent=5 // pred_check
      _
    $region10: #{up_forward.3} parent=5 // pred_check_branch
      %220 = sbr.rel (%p217) target = $region12
    $region11: #{up_forward.3} parent=5 // pred_region
      %s221 = ssub.s32 %s13, 1
      // Predicated region
      $region13: #{up_forward.3} parent=11 // pred_check
        %p222 = pneg %p46
      $region14: #{up_forward.3} parent=11 // pred_check_branch
        %224 = sbr.rel (%p222) target = $region16
      $region15: #{up_forward.3} parent=11 // pred_region
        _
      $region16: #{up_forward.3} parent=11 // pred_fallthru
        _
      // Predicated region
      $region17: #{up_forward.3} parent=11 // pred_check
        %p225 = pneg %p151
      $region18: #{up_forward.3} parent=11 // pred_check_branch
        %227 = sbr.rel (%p225) target = $region20
      $region19: #{up_forward.3} parent=11 // pred_region
        _
      $region20: #{up_forward.3} parent=11 // pred_fallthru
        _
    $region12: #{up_forward.3} parent=5 // pred_fallthru
      _
    %p228 = scmp.lt.s32.totalorder %s13, 2
    // Predicated region
    $region21: #{up_forward.3} parent=5 // pred_check
      %p229 = pneg %p228
    $region22: #{up_forward.3} parent=5 // pred_check_branch
      %231 = sbr.rel (%p229) target = $region24
    $region23: #{up_forward.3} parent=5 // pred_region
      // Predicated region
      $region25: #{up_forward.3} parent=23 // pred_check
        %p232 = pneg %p68
      $region26: #{up_forward.3} parent=23 // pred_check_branch
        %234 = sbr.rel (%p232) target = $region28
      $region27: #{up_forward.3} parent=23 // pred_region
        %p235 = scmp.lt.s32.totalorder %s20, 1
        %s236 = scalar_select %p235, %s20, 1
        %p237 = scmp.lt.s32.totalorder %s21, 0
        %s238 = scalar_select %p237, %s21, 0
        %s239 = smul.addr %s238, 3
        %s240 = smul.addr %s236, 3
        %s241 = sadd.s32 %s239, %s240
        %s242 = smul.addr %s241, 4
        %s243 = scalar_lea.vmem %s1, %s242
      $region28: #{up_forward.3} parent=23 // pred_fallthru
        _
      // Predicated region
      $region29: #{up_forward.3} parent=23 // pred_check
        %p244 = pneg %p96
      $region30: #{up_forward.3} parent=23 // pred_check_branch
        %246 = sbr.rel (%p244) target = $region32
      $region31: #{up_forward.3} parent=23 // pred_region
        %p247 = scmp.lt.s32.totalorder %s20, 1
        %s248 = scalar_select %p247, %s20, 1
        %p249 = scmp.lt.s32.totalorder %s21, 0
        %s250 = scalar_select %p249, %s21, 0
        %s251 = smul.addr %s250, 36
        %s252 = smul.addr %s248, 36
        %s253 = sadd.s32 %s251, %s252
        %s254 = smul.addr %s253, 4
        %s255 = scalar_lea.vmem %s2, %s254
      $region32: #{up_forward.3} parent=23 // pred_fallthru
        _
      // Predicated region
      $region33: #{up_forward.3} parent=23 // pred_check
        %p256 = pneg %p124
      $region34: #{up_forward.3} parent=23 // pred_check_branch
        %258 = sbr.rel (%p256) target = $region36
      $region35: #{up_forward.3} parent=23 // pred_region
        %p259 = scmp.lt.s32.totalorder %s20, 1
        %s260 = scalar_select %p259, %s20, 1
        %p261 = scmp.lt.s32.totalorder %s21, 0
        %s262 = scalar_select %p261, %s21, 0
        %s263 = smul.addr %s262, 3
        %s264 = smul.addr %s260, 3
        %s265 = sadd.s32 %s263, %s264
        %s266 = smul.addr %s265, 4
        %s267 = scalar_lea.vmem %s3, %s266
      $region36: #{up_forward.3} parent=23 // pred_fallthru
        _
    $region24: #{up_forward.3} parent=5 // pred_fallthru
      _
    %p268 = scmp.le.s32.totalorder 1, %s13
    %p269 = scmp.lt.s32.totalorder %s13, 3
    %p270 = pnand %p268, %p269
    %p271 = pneg %p270
    // Predicated region
    $region37: #{up_forward.3} parent=5 // pred_check
      _
    $region38: #{up_forward.3} parent=5 // pred_check_branch
      %273 = sbr.rel (%p270) target = $region40
    $region39: #{up_forward.3} parent=5 // pred_region
      %s274 = ssub.s32 %s13, 1
      %p275 = pneg %p46
      %p276 = pneg %p43
      %p277 = scmp.lt.s32.totalorder %s22, 1
      %s278 = scalar_select %p277, %s22, 1
      %p279 = scmp.lt.s32.totalorder %s23, 0
      %s280 = scalar_select %p279, %s23, 0
      %s281 = smul.addr %s280, 3
      %s282 = smul.addr %s278, 3
      %s283 = sadd.s32 %s281, %s282
      %s284 = smul.addr %s283, 4
      %s285 = scalar_lea.vmem %s1, %s284
      %p286 = pneg %p74
      %p287 = pneg %p71
      %p288 = scmp.lt.s32.totalorder %s22, 1
      %s289 = scalar_select %p288, %s22, 1
      %p290 = scmp.lt.s32.totalorder %s23, 0
      %s291 = scalar_select %p290, %s23, 0
      %s292 = smul.addr %s291, 36
      %s293 = smul.addr %s289, 36
      %s294 = sadd.s32 %s292, %s293
      %s295 = smul.addr %s294, 4
      %s296 = scalar_lea.vmem %s2, %s295
      %p297 = pneg %p102
      %p298 = pneg %p99
      %p299 = scmp.lt.s32.totalorder %s22, 1
      %s300 = scalar_select %p299, %s22, 1
      %p301 = scmp.lt.s32.totalorder %s23, 0
      %s302 = scalar_select %p301, %s23, 0
      %s303 = smul.addr %s302, 3
      %s304 = smul.addr %s300, 3
      %s305 = sadd.s32 %s303, %s304
      %s306 = smul.addr %s305, 4
      %s307 = scalar_lea.vmem %s3, %s306
      %p308 = pneg %p130
      %p309 = pneg %p127
      %p310 = pneg %p151
      %p311 = pneg %p148
      %p312 = pneg %p179
      %p313 = pneg %p176
      %p314 = scmp.lt.s32.totalorder %s22, 1
      %s315 = scalar_select %p314, %s22, 1
      %p316 = scmp.lt.s32.totalorder %s23, 0
      %s317 = scalar_select %p316, %s23, 0
      %s318 = smul.addr %s317, 36
      %s319 = smul.addr %s315, 36
      %s320 = sadd.s32 %s318, %s319
      %s321 = smul.addr %s320, 4
      %s322 = scalar_lea.vmem %s5, %s321
      %p323 = pneg %p207
      %p324 = pneg %p204
      %p325 = scmp.lt.s32.totalorder %s22, 1
      %s326 = scalar_select %p325, %s22, 1
      %p327 = scmp.lt.s32.totalorder %s23, 0
      %s328 = scalar_select %p327, %s23, 0
      %s329 = sadd.s32 %s328, %s326
      %s330 = smul.addr %s329, 2
      %s331 = scalar_lea.vmem %s6, %s330
      %p332 = scmp.lt.s32.totalorder %s22, 1
      %s333 = scalar_select %p332, %s22, 1
      %p334 = scmp.lt.s32.totalorder %s23, 0
      %s335 = scalar_select %p334, %s23, 0
      %s336 = smul.addr %s335, 3
      %s337 = smul.addr %s333, 3
      %s338 = sadd.s32 %s336, %s337
      %s339 = smul.addr %s338, 4
      %s340 = scalar_lea.vmem %s1, %s339
      %p341 = scmp.lt.s32.totalorder %s22, 1
      %s342 = scalar_select %p341, %s22, 1
      %p343 = scmp.lt.s32.totalorder %s23, 0
      %s344 = scalar_select %p343, %s23, 0
      %s345 = smul.addr %s344, 36
      %s346 = smul.addr %s342, 36
      %s347 = sadd.s32 %s345, %s346
      %s348 = smul.addr %s347, 4
      %s349 = scalar_lea.vmem %s2, %s348
      %p350 = scmp.lt.s32.totalorder %s22, 1
      %s351 = scalar_select %p350, %s22, 1
      %p352 = scmp.lt.s32.totalorder %s23, 0
      %s353 = scalar_select %p352, %s23, 0
      %s354 = smul.addr %s353, 3
      %s355 = smul.addr %s351, 3
      %s356 = sadd.s32 %s354, %s355
      %s357 = smul.addr %s356, 4
      %s358 = scalar_lea.vmem %s3, %s357
      %p359 = scmp.lt.s32.totalorder %s22, 1
      %s360 = scalar_select %p359, %s22, 1
      %p361 = scmp.lt.s32.totalorder %s23, 0
      %s362 = scalar_select %p361, %s23, 0
      %s363 = smul.addr %s362, 36
      %s364 = smul.addr %s360, 36
      %s365 = sadd.s32 %s363, %s364
      %s366 = smul.addr %s365, 4
      %s367 = scalar_lea.vmem %s5, %s366
      %p368 = scmp.lt.s32.totalorder %s22, 1
      %s369 = scalar_select %p368, %s22, 1
      %p370 = scmp.lt.s32.totalorder %s23, 0
      %s371 = scalar_select %p370, %s23, 0
      %s372 = sadd.s32 %s371, %s369
      %s373 = smul.addr %s372, 2
      %s374 = scalar_lea.vmem %s6, %s373
      %v376 = vld [vmem:[%s0] sm:$0xff]
      %v377 = vld [vmem:[%s0 + $0x8] sm:$0xff]
      %v378 = vld [vmem:[%s0 + $0x10] sm:$0xff]
      %v379 = vld [vmem:[%s0 + $0x18] sm:$0xff]
      %v380 = vld [vmem:[%s0 + $0x20] sm:$0xff]
      %v381 = vld [vmem:[%s0 + $0x28] sm:$0xff]
      %v382 = vld [vmem:[%s0 + $0x30] sm:$0xff]
      %v383 = vld [vmem:[%s0 + $0x38] sm:$0xff]
      %v384 = vld [vmem:[%s0 + $0x40] sm:$0xff]
      %v385 = vld [vmem:[%s0 + $0x48] sm:$0xff]
      %v386 = vld [vmem:[%s0 + $0x50] sm:$0xff]
      %v387 = vld [vmem:[%s0 + $0x58] sm:$0xff]
      %v388 = vld [vmem:[%s0 + $0x60] sm:$0xff]
      %v389 = vld [vmem:[%s0 + $0x68] sm:$0xff]
      %v390 = vld [vmem:[%s0 + $0x70] sm:$0xff]
      %v391 = vld [vmem:[%s0 + $0x78] sm:$0xff]
      %v392 = vld [vmem:[%s0 + $0x80] sm:$0xff]
      %v393 = vld [vmem:[%s0 + $0x88] sm:$0xff]
      %v394 = vld [vmem:[%s0 + $0x90] sm:$0xff]
      %v395 = vld [vmem:[%s0 + $0x98] sm:$0xff]
      %v396 = vld [vmem:[%s0 + $0xa0] sm:$0xff]
      %v397 = vld [vmem:[%s0 + $0xa8] sm:$0xff]
      %v398 = vld [vmem:[%s0 + $0xb0] sm:$0xff]
      %v399 = vld [vmem:[%s0 + $0xb8] sm:$0xff]
      %v400 = vld [vmem:[%s0 + $0xc0] sm:$0xff]
      %v401 = vld [vmem:[%s0 + $0xc8] sm:$0xff]
      %v402 = vld [vmem:[%s0 + $0xd0] sm:$0xff]
      %v403 = vld [vmem:[%s0 + $0xd8] sm:$0xff]
      %v404 = vld [vmem:[%s0 + $0xe0] sm:$0xff]
      %v405 = vld [vmem:[%s0 + $0xe8] sm:$0xff]
      %v406 = vld [vmem:[%s0 + $0xf0] sm:$0xff]
      %v407 = vld [vmem:[%s0 + $0xf8] sm:$0xff]
      %v408 = vld [vmem:[%s0 + $0x100] sm:$0xff]
      %v409 = vld [vmem:[%s0 + $0x108] sm:$0xff]
      %v410 = vld [vmem:[%s0 + $0x110] sm:$0xff]
      %v411 = vld [vmem:[%s0 + $0x118] sm:$0xff]
      %vm412 = vcmp.ne.f32.partialorder %v376, 0.0
      %vm413 = vcmp.ne.f32.partialorder %v377, 0.0
      %vm414 = vcmp.ne.f32.partialorder %v378, 0.0
      %vm415 = vcmp.ne.f32.partialorder %v379, 0.0
      %vm416 = vcmp.ne.f32.partialorder %v380, 0.0
      %vm417 = vcmp.ne.f32.partialorder %v381, 0.0
      %vm418 = vcmp.ne.f32.partialorder %v382, 0.0
      %vm419 = vcmp.ne.f32.partialorder %v383, 0.0
      %vm420 = vcmp.ne.f32.partialorder %v384, 0.0
      %vm421 = vcmp.ne.f32.partialorder %v385, 0.0
      %vm422 = vcmp.ne.f32.partialorder %v386, 0.0
      %vm423 = vcmp.ne.f32.partialorder %v387, 0.0
      %vm424 = vcmp.ne.f32.partialorder %v388, 0.0
      %vm425 = vcmp.ne.f32.partialorder %v389, 0.0
      %vm426 = vcmp.ne.f32.partialorder %v390, 0.0
      %vm427 = vcmp.ne.f32.partialorder %v391, 0.0
      %vm428 = vcmp.ne.f32.partialorder %v392, 0.0
      %vm429 = vcmp.ne.f32.partialorder %v393, 0.0
      %vm430 = vcmp.ne.f32.partialorder %v394, 0.0
      %vm431 = vcmp.ne.f32.partialorder %v395, 0.0
      %vm432 = vcmp.ne.f32.partialorder %v396, 0.0
      %vm433 = vcmp.ne.f32.partialorder %v397, 0.0
      %vm434 = vcmp.ne.f32.partialorder %v398, 0.0
      %vm435 = vcmp.ne.f32.partialorder %v399, 0.0
      %vm436 = vcmp.ne.f32.partialorder %v400, 0.0
      %vm437 = vcmp.ne.f32.partialorder %v401, 0.0
      %vm438 = vcmp.ne.f32.partialorder %v402, 0.0
      %vm439 = vcmp.ne.f32.partialorder %v403, 0.0
      %vm440 = vcmp.ne.f32.partialorder %v404, 0.0
      %vm441 = vcmp.ne.f32.partialorder %v405, 0.0
      %vm442 = vcmp.ne.f32.partialorder %v406, 0.0
      %vm443 = vcmp.ne.f32.partialorder %v407, 0.0
      %vm444 = vcmp.ne.f32.partialorder %v408, 0.0
      %vm445 = vcmp.ne.f32.partialorder %v409, 0.0
      %vm446 = vcmp.ne.f32.partialorder %v410, 0.0
      %vm447 = vcmp.ne.f32.partialorder %v411, 0.0
      %v448 = vld [vmem:[%s0 + $0x10] sm:$0x3]
      %vm449 = vcmp.ne.f32.partialorder %v448, 0.0
      %v450 = vld [vmem:[%s340] sm:$0xf]
      %v451 = vld [vmem:[%s340 + $0x4] sm:$0xf]
      %v452 = vld [vmem:[%s340 + $0x8] sm:$0x1]
      %v453 = vunpack.c.l.bf16 %v450
      %v454 = vunpack.c.l.bf16 %v451
      %v455 = vunpack.c.l.bf16 %v452
      %v456 = vsel %vm412, 1, 0
      %v457 = vsel %vm413, 1, 0
      %v458 = vsel %vm449, 1, 0
      %459 = vset.pattern.permute.xlu0 0
      %460 = vperm.xlu0 %459, %v456
      %v461 = vpop.permute.xlu0 %460
      %462 = vset.pattern.permute.xlu0 0
      %463 = vperm.xlu0 %462, %v457
      %v464 = vpop.permute.xlu0 %463
      %465 = vset.pattern.permute.xlu0 0
      %466 = vperm.xlu0 %465, %v458
      %v467 = vpop.permute.xlu0 %466
      %vm468 = vcmp.eq.s32.totalorder %v461, 1
      %vm469 = vcmp.eq.s32.totalorder %v464, 1
      %vm470 = vcmp.eq.s32.totalorder %v467, 1
      %v471 = vsel %vm468, %v453, 0.0
      %v472 = vsel %vm469, %v454, 0.0
      %v473 = vsel %vm470, %v455, 0.0
      %p474 = scmp.eq.s32.totalorder %s23, 0
      %s475 = scalar_select %p474, 1, 0
      %v476 = vstv %s475
      %vm477 = vcmp.eq.s32.totalorder %v476, 1
      %v478 = vsel %vm477, 0.0, %v471
      %v479 = vsel %vm477, 0.0, %v472
      %v480 = vsel %vm477, 0.0, %v473
      %v481 = vld [vmem:[%s358] sm:$0xf]
      %v482 = vld [vmem:[%s358 + $0x4] sm:$0xf]
      %v483 = vld [vmem:[%s358 + $0x8] sm:$0x1]
      %v484 = vunpack.c.l.bf16 %v481
      %v485 = vunpack.c.l.bf16 %v482
      %v486 = vunpack.c.l.bf16 %v483
      %v487 = vsel %vm468, %v484, 0.0
      %v488 = vsel %vm469, %v485, 0.0
      %v489 = vsel %vm470, %v486, 0.0
      %v490 = vsel %vm477, 0.0, %v487
      %v491 = vsel %vm477, 0.0, %v488
      %v492 = vsel %vm477, 0.0, %v489
      %v493 = vld [vmem:[%s349] sm:$0xf]
      %v494 = vld [vmem:[%s349 + $0x4] sm:$0xf]
      %v495 = vld [vmem:[%s349 + $0x8] sm:$0xf]
      %v496 = vld [vmem:[%s349 + $0xc] sm:$0xf]
      %v497 = vld [vmem:[%s349 + $0x10] sm:$0xf]
      %v498 = vld [vmem:[%s349 + $0x14] sm:$0xf]
      %v499 = vld [vmem:[%s349 + $0x18] sm:$0xf]
      %v500 = vld [vmem:[%s349 + $0x1c] sm:$0xf]
      %v501 = vld [vmem:[%s349 + $0x20] sm:$0xf]
      %v502 = vld [vmem:[%s349 + $0x24] sm:$0xf]
      %v503 = vld [vmem:[%s349 + $0x28] sm:$0xf]
      %v504 = vld [vmem:[%s349 + $0x2c] sm:$0xf]
      %v505 = vld [vmem:[%s349 + $0x30] sm:$0xf]
      %v506 = vld [vmem:[%s349 + $0x34] sm:$0xf]
      %v507 = vld [vmem:[%s349 + $0x38] sm:$0xf]
      %v508 = vld [vmem:[%s349 + $0x3c] sm:$0xf]
      %v509 = vld [vmem:[%s349 + $0x40] sm:$0xf]
      %v510 = vld [vmem:[%s349 + $0x44] sm:$0xf]
      %v511 = vld [vmem:[%s349 + $0x48] sm:$0xf]
      %v512 = vld [vmem:[%s349 + $0x4c] sm:$0xf]
      %v513 = vld [vmem:[%s349 + $0x50] sm:$0xf]
      %v514 = vld [vmem:[%s349 + $0x54] sm:$0xf]
      %v515 = vld [vmem:[%s349 + $0x58] sm:$0xf]
      %v516 = vld [vmem:[%s349 + $0x5c] sm:$0xf]
      %v517 = vld [vmem:[%s349 + $0x60] sm:$0xf]
      %v518 = vld [vmem:[%s349 + $0x64] sm:$0xf]
      %v519 = vld [vmem:[%s349 + $0x68] sm:$0xf]
      %v520 = vld [vmem:[%s349 + $0x6c] sm:$0xf]
      %v521 = vld [vmem:[%s349 + $0x70] sm:$0xf]
      %v522 = vld [vmem:[%s349 + $0x74] sm:$0xf]
      %v523 = vld [vmem:[%s349 + $0x78] sm:$0xf]
      %v524 = vld [vmem:[%s349 + $0x7c] sm:$0xf]
      %v525 = vld [vmem:[%s349 + $0x80] sm:$0xf]
      %v526 = vld [vmem:[%s349 + $0x84] sm:$0xf]
      %v527 = vld [vmem:[%s349 + $0x88] sm:$0xf]
      %v528 = vld [vmem:[%s349 + $0x8c] sm:$0xf]
      %v529 = vunpack.c.l.bf16 %v493
      %v530 = vunpack.c.l.bf16 %v494
      %v531 = vunpack.c.l.bf16 %v495
      %v532 = vunpack.c.l.bf16 %v496
      %v533 = vunpack.c.l.bf16 %v497
      %v534 = vunpack.c.l.bf16 %v498
      %v535 = vunpack.c.l.bf16 %v499
      %v536 = vunpack.c.l.bf16 %v500
      %v537 = vunpack.c.l.bf16 %v501
      %v538 = vunpack.c.l.bf16 %v502
      %v539 = vunpack.c.l.bf16 %v503
      %v540 = vunpack.c.l.bf16 %v504
      %v541 = vunpack.c.l.bf16 %v505
      %v542 = vunpack.c.l.bf16 %v506
      %v543 = vunpack.c.l.bf16 %v507
      %v544 = vunpack.c.l.bf16 %v508
      %v545 = vunpack.c.l.bf16 %v509
      %v546 = vunpack.c.l.bf16 %v510
      %v547 = vunpack.c.l.bf16 %v511
      %v548 = vunpack.c.l.bf16 %v512
      %v549 = vunpack.c.l.bf16 %v513
      %v550 = vunpack.c.l.bf16 %v514
      %v551 = vunpack.c.l.bf16 %v515
      %v552 = vunpack.c.l.bf16 %v516
      %v553 = vunpack.c.l.bf16 %v517
      %v554 = vunpack.c.l.bf16 %v518
      %v555 = vunpack.c.l.bf16 %v519
      %v556 = vunpack.c.l.bf16 %v520
      %v557 = vunpack.c.l.bf16 %v521
      %v558 = vunpack.c.l.bf16 %v522
      %v559 = vunpack.c.l.bf16 %v523
      %v560 = vunpack.c.l.bf16 %v524
      %v561 = vunpack.c.l.bf16 %v525
      %v562 = vunpack.c.l.bf16 %v526
      %v563 = vunpack.c.l.bf16 %v527
      %v564 = vunpack.c.l.bf16 %v528
      %v565 = vsel %vm414, 1, 0
      %v566 = vsel %vm415, 1, 0
      %v567 = vsel %vm416, 1, 0
      %v568 = vsel %vm417, 1, 0
      %v569 = vsel %vm418, 1, 0
      %v570 = vsel %vm419, 1, 0
      %v571 = vsel %vm420, 1, 0
      %v572 = vsel %vm421, 1, 0
      %v573 = vsel %vm422, 1, 0
      %v574 = vsel %vm423, 1, 0
      %v575 = vsel %vm424, 1, 0
      %v576 = vsel %vm425, 1, 0
      %v577 = vsel %vm426, 1, 0
      %v578 = vsel %vm427, 1, 0
      %v579 = vsel %vm428, 1, 0
      %v580 = vsel %vm429, 1, 0
      %v581 = vsel %vm430, 1, 0
      %v582 = vsel %vm431, 1, 0
      %v583 = vsel %vm432, 1, 0
      %v584 = vsel %vm433, 1, 0
      %v585 = vsel %vm434, 1, 0
      %v586 = vsel %vm435, 1, 0
      %v587 = vsel %vm436, 1, 0
      %v588 = vsel %vm437, 1, 0
      %v589 = vsel %vm438, 1, 0
      %v590 = vsel %vm439, 1, 0
      %v591 = vsel %vm440, 1, 0
      %v592 = vsel %vm441, 1, 0
      %v593 = vsel %vm442, 1, 0
      %v594 = vsel %vm443, 1, 0
      %v595 = vsel %vm444, 1, 0
      %v596 = vsel %vm445, 1, 0
      %v597 = vsel %vm446, 1, 0
      %v598 = vsel %vm447, 1, 0
      %599 = vset.pattern.permute.xlu0 0
      %600 = vperm.xlu0 %599, %v456
      %v601 = vpop.permute.xlu0 %600
      %602 = vset.pattern.permute.xlu0 0
      %603 = vperm.xlu0 %602, %v457
      %v604 = vpop.permute.xlu0 %603
      %605 = vset.pattern.permute.xlu0 0
      %606 = vperm.xlu0 %605, %v565
      %v607 = vpop.permute.xlu0 %606
      %608 = vset.pattern.permute.xlu0 0
      %609 = vperm.xlu0 %608, %v566
      %v610 = vpop.permute.xlu0 %609
      %611 = vset.pattern.permute.xlu0 0
      %612 = vperm.xlu0 %611, %v567
      %v613 = vpop.permute.xlu0 %612
      %614 = vset.pattern.permute.xlu0 0
      %615 = vperm.xlu0 %614, %v568
      %v616 = vpop.permute.xlu0 %615
      %617 = vset.pattern.permute.xlu0 0
      %618 = vperm.xlu0 %617, %v569
      %v619 = vpop.permute.xlu0 %618
      %620 = vset.pattern.permute.xlu0 0
      %621 = vperm.xlu0 %620, %v570
      %v622 = vpop.permute.xlu0 %621
      %623 = vset.pattern.permute.xlu0 0
      %624 = vperm.xlu0 %623, %v571
      %v625 = vpop.permute.xlu0 %624
      %626 = vset.pattern.permute.xlu0 0
      %627 = vperm.xlu0 %626, %v572
      %v628 = vpop.permute.xlu0 %627
      %629 = vset.pattern.permute.xlu0 0
      %630 = vperm.xlu0 %629, %v573
      %v631 = vpop.permute.xlu0 %630
      %632 = vset.pattern.permute.xlu0 0
      %633 = vperm.xlu0 %632, %v574
      %v634 = vpop.permute.xlu0 %633
      %635 = vset.pattern.permute.xlu0 0
      %636 = vperm.xlu0 %635, %v575
      %v637 = vpop.permute.xlu0 %636
      %638 = vset.pattern.permute.xlu0 0
      %639 = vperm.xlu0 %638, %v576
      %v640 = vpop.permute.xlu0 %639
      %641 = vset.pattern.permute.xlu0 0
      %642 = vperm.xlu0 %641, %v577
      %v643 = vpop.permute.xlu0 %642
      %644 = vset.pattern.permute.xlu0 0
      %645 = vperm.xlu0 %644, %v578
      %v646 = vpop.permute.xlu0 %645
      %647 = vset.pattern.permute.xlu0 0
      %648 = vperm.xlu0 %647, %v579
      %v649 = vpop.permute.xlu0 %648
      %650 = vset.pattern.permute.xlu0 0
      %651 = vperm.xlu0 %650, %v580
      %v652 = vpop.permute.xlu0 %651
      %653 = vset.pattern.permute.xlu0 0
      %654 = vperm.xlu0 %653, %v581
      %v655 = vpop.permute.xlu0 %654
      %656 = vset.pattern.permute.xlu0 0
      %657 = vperm.xlu0 %656, %v582
      %v658 = vpop.permute.xlu0 %657
      %659 = vset.pattern.permute.xlu0 0
      %660 = vperm.xlu0 %659, %v583
      %v661 = vpop.permute.xlu0 %660
      %662 = vset.pattern.permute.xlu0 0
      %663 = vperm.xlu0 %662, %v584
      %v664 = vpop.permute.xlu0 %663
      %665 = vset.pattern.permute.xlu0 0
      %666 = vperm.xlu0 %665, %v585
      %v667 = vpop.permute.xlu0 %666
      %668 = vset.pattern.permute.xlu0 0
      %669 = vperm.xlu0 %668, %v586
      %v670 = vpop.permute.xlu0 %669
      %671 = vset.pattern.permute.xlu0 0
      %672 = vperm.xlu0 %671, %v587
      %v673 = vpop.permute.xlu0 %672
      %674 = vset.pattern.permute.xlu0 0
      %675 = vperm.xlu0 %674, %v588
      %v676 = vpop.permute.xlu0 %675
      %677 = vset.pattern.permute.xlu0 0
      %678 = vperm.xlu0 %677, %v589
      %v679 = vpop.permute.xlu0 %678
      %680 = vset.pattern.permute.xlu0 0
      %681 = vperm.xlu0 %680, %v590
      %v682 = vpop.permute.xlu0 %681
      %683 = vset.pattern.permute.xlu0 0
      %684 = vperm.xlu0 %683, %v591
      %v685 = vpop.permute.xlu0 %684
      %686 = vset.pattern.permute.xlu0 0
      %687 = vperm.xlu0 %686, %v592
      %v688 = vpop.permute.xlu0 %687
      %689 = vset.pattern.permute.xlu0 0
      %690 = vperm.xlu0 %689, %v593
      %v691 = vpop.permute.xlu0 %690
      %692 = vset.pattern.permute.xlu0 0
      %693 = vperm.xlu0 %692, %v594
      %v694 = vpop.permute.xlu0 %693
      %695 = vset.pattern.permute.xlu0 0
      %696 = vperm.xlu0 %695, %v595
      %v697 = vpop.permute.xlu0 %696
      %698 = vset.pattern.permute.xlu0 0
      %699 = vperm.xlu0 %698, %v596
      %v700 = vpop.permute.xlu0 %699
      %701 = vset.pattern.permute.xlu0 0
      %702 = vperm.xlu0 %701, %v597
      %v703 = vpop.permute.xlu0 %702
      %704 = vset.pattern.permute.xlu0 0
      %705 = vperm.xlu0 %704, %v598
      %v706 = vpop.permute.xlu0 %705
      %vm707 = vcmp.eq.s32.totalorder %v601, 1
      %vm708 = vcmp.eq.s32.totalorder %v604, 1
      %vm709 = vcmp.eq.s32.totalorder %v607, 1
      %vm710 = vcmp.eq.s32.totalorder %v610, 1
      %vm711 = vcmp.eq.s32.totalorder %v613, 1
      %vm712 = vcmp.eq.s32.totalorder %v616, 1
      %vm713 = vcmp.eq.s32.totalorder %v619, 1
      %vm714 = vcmp.eq.s32.totalorder %v622, 1
      %vm715 = vcmp.eq.s32.totalorder %v625, 1
      %vm716 = vcmp.eq.s32.totalorder %v628, 1
      %vm717 = vcmp.eq.s32.totalorder %v631, 1
      %vm718 = vcmp.eq.s32.totalorder %v634, 1
      %vm719 = vcmp.eq.s32.totalorder %v637, 1
      %vm720 = vcmp.eq.s32.totalorder %v640, 1
      %vm721 = vcmp.eq.s32.totalorder %v643, 1
      %vm722 = vcmp.eq.s32.totalorder %v646, 1
      %vm723 = vcmp.eq.s32.totalorder %v649, 1
      %vm724 = vcmp.eq.s32.totalorder %v652, 1
      %vm725 = vcmp.eq.s32.totalorder %v655, 1
      %vm726 = vcmp.eq.s32.totalorder %v658, 1
      %vm727 = vcmp.eq.s32.totalorder %v661, 1
      %vm728 = vcmp.eq.s32.totalorder %v664, 1
      %vm729 = vcmp.eq.s32.totalorder %v667, 1
      %vm730 = vcmp.eq.s32.totalorder %v670, 1
      %vm731 = vcmp.eq.s32.totalorder %v673, 1
      %vm732 = vcmp.eq.s32.totalorder %v676, 1
      %vm733 = vcmp.eq.s32.totalorder %v679, 1
      %vm734 = vcmp.eq.s32.totalorder %v682, 1
      %vm735 = vcmp.eq.s32.totalorder %v685, 1
      %vm736 = vcmp.eq.s32.totalorder %v688, 1
      %vm737 = vcmp.eq.s32.totalorder %v691, 1
      %vm738 = vcmp.eq.s32.totalorder %v694, 1
      %vm739 = vcmp.eq.s32.totalorder %v697, 1
      %vm740 = vcmp.eq.s32.totalorder %v700, 1
      %vm741 = vcmp.eq.s32.totalorder %v703, 1
      %vm742 = vcmp.eq.s32.totalorder %v706, 1
      %v743 = vsel %vm707, %v529, 0.0
      %v744 = vsel %vm708, %v530, 0.0
      %v745 = vsel %vm709, %v531, 0.0
      %v746 = vsel %vm710, %v532, 0.0
      %v747 = vsel %vm711, %v533, 0.0
      %v748 = vsel %vm712, %v534, 0.0
      %v749 = vsel %vm713, %v535, 0.0
      %v750 = vsel %vm714, %v536, 0.0
      %v751 = vsel %vm715, %v537, 0.0
      %v752 = vsel %vm716, %v538, 0.0
      %v753 = vsel %vm717, %v539, 0.0
      %v754 = vsel %vm718, %v540, 0.0
      %v755 = vsel %vm719, %v541, 0.0
      %v756 = vsel %vm720, %v542, 0.0
      %v757 = vsel %vm721, %v543, 0.0
      %v758 = vsel %vm722, %v544, 0.0
      %v759 = vsel %vm723, %v545, 0.0
      %v760 = vsel %vm724, %v546, 0.0
      %v761 = vsel %vm725, %v547, 0.0
      %v762 = vsel %vm726, %v548, 0.0
      %v763 = vsel %vm727, %v549, 0.0
      %v764 = vsel %vm728, %v550, 0.0
      %v765 = vsel %vm729, %v551, 0.0
      %v766 = vsel %vm730, %v552, 0.0
      %v767 = vsel %vm731, %v553, 0.0
      %v768 = vsel %vm732, %v554, 0.0
      %v769 = vsel %vm733, %v555, 0.0
      %v770 = vsel %vm734, %v556, 0.0
      %v771 = vsel %vm735, %v557, 0.0
      %v772 = vsel %vm736, %v558, 0.0
      %v773 = vsel %vm737, %v559, 0.0
      %v774 = vsel %vm738, %v560, 0.0
      %v775 = vsel %vm739, %v561, 0.0
      %v776 = vsel %vm740, %v562, 0.0
      %v777 = vsel %vm741, %v563, 0.0
      %v778 = vsel %vm742, %v564, 0.0
      %vm779 = vcmask 64512
      %780 = vst.msk [vmem:[#allocation2] sm:$0xff] %vm779, 0.0
      %781 = vst.msk [vmem:[#allocation2 + $0x8] sm:$0xff] %vm779, %v478
      %782 = vst.msk [vmem:[#allocation2 + $0x10] sm:$0xff] %vm779, %v479
      %vm783 = vcmask 58368
      %784 = vst.msk [vmem:[#allocation2 + $0x18] sm:$0x3] %vm783, %v480
      %785 = vst.msk [vmem:[#allocation2 + $0x1a] sm:$0xff] %vm779, %v743
      %786 = vst.msk [vmem:[#allocation2 + $0x22] sm:$0xff] %vm779, %v744
      %787 = vst.msk [vmem:[#allocation2 + $0x2a] sm:$0xff] %vm779, %v745
      %788 = vst.msk [vmem:[#allocation2 + $0x32] sm:$0xff] %vm779, %v746
      %789 = vst.msk [vmem:[#allocation2 + $0x3a] sm:$0xff] %vm779, %v747
      %790 = vst.msk [vmem:[#allocation2 + $0x42] sm:$0xff] %vm779, %v748
      %791 = vst.msk [vmem:[#allocation2 + $0x4a] sm:$0xff] %vm779, %v749
      %792 = vst.msk [vmem:[#allocation2 + $0x52] sm:$0xff] %vm779, %v750
      %793 = vst.msk [vmem:[#allocation2 + $0x5a] sm:$0xff] %vm779, %v751
      %794 = vst.msk [vmem:[#allocation2 + $0x62] sm:$0xff] %vm779, %v752
      %795 = vst.msk [vmem:[#allocation2 + $0x6a] sm:$0xff] %vm779, %v753
      %796 = vst.msk [vmem:[#allocation2 + $0x72] sm:$0xff] %vm779, %v754
      %797 = vst.msk [vmem:[#allocation2 + $0x7a] sm:$0xff] %vm779, %v755
      %798 = vst.msk [vmem:[#allocation2 + $0x82] sm:$0xff] %vm779, %v756
      %799 = vst.msk [vmem:[#allocation2 + $0x8a] sm:$0xff] %vm779, %v757
      %800 = vst.msk [vmem:[#allocation2 + $0x92] sm:$0xff] %vm779, %v758
      %801 = vst.msk [vmem:[#allocation2 + $0x9a] sm:$0xff] %vm779, %v759
      %802 = vst.msk [vmem:[#allocation2 + $0xa2] sm:$0xff] %vm779, %v760
      %803 = vst.msk [vmem:[#allocation2 + $0xaa] sm:$0xff] %vm779, %v761
      %804 = vst.msk [vmem:[#allocation2 + $0xb2] sm:$0xff] %vm779, %v762
      %805 = vst.msk [vmem:[#allocation2 + $0xba] sm:$0xff] %vm779, %v763
      %806 = vst.msk [vmem:[#allocation2 + $0xc2] sm:$0xff] %vm779, %v764
      %807 = vst.msk [vmem:[#allocation2 + $0xca] sm:$0xff] %vm779, %v765
      %808 = vst.msk [vmem:[#allocation2 + $0xd2] sm:$0xff] %vm779, %v766
      %809 = vst.msk [vmem:[#allocation2 + $0xda] sm:$0xff] %vm779, %v767
      %810 = vst.msk [vmem:[#allocation2 + $0xe2] sm:$0xff] %vm779, %v768
      %811 = vst.msk [vmem:[#allocation2 + $0xea] sm:$0xff] %vm779, %v769
      %812 = vst.msk [vmem:[#allocation2 + $0xf2] sm:$0xff] %vm779, %v770
      %813 = vst.msk [vmem:[#allocation2 + $0xfa] sm:$0xff] %vm779, %v771
      %814 = vst.msk [vmem:[#allocation2 + $0x102] sm:$0xff] %vm779, %v772
      %815 = vst.msk [vmem:[#allocation2 + $0x10a] sm:$0xff] %vm779, %v773
      %816 = vst.msk [vmem:[#allocation2 + $0x112] sm:$0xff] %vm779, %v774
      %817 = vst.msk [vmem:[#allocation2 + $0x11a] sm:$0xff] %vm779, %v775
      %818 = vst.msk [vmem:[#allocation2 + $0x122] sm:$0xff] %vm779, %v776
      %819 = vst.msk [vmem:[#allocation2 + $0x12a] sm:$0xff] %vm779, %v777
      %820 = vst.msk [vmem:[#allocation2 + $0x132] sm:$0xff] %vm779, %v778
      %821 = vst.msk [vmem:[#allocation2 + $0x13a] sm:$0xff] %vm779, %v490
      %822 = vst.msk [vmem:[#allocation2 + $0x142] sm:$0xff] %vm779, %v491
      %823 = vst.msk [vmem:[#allocation2 + $0x14a] sm:$0x3] %vm783, %v492
      %824 = vst.msk [vmem:[#allocation2 + $0x14c] sm:$0xff] %vm779, 0.0
      %v825 = vld [vmem:[#allocation2 + $0x7] sm:$0xff]
      %v826 = vld [vmem:[#allocation2 + $0xf] sm:$0xff]
      %v827 = vld [vmem:[#allocation2 + $0x17] sm:$0xff]
      %v828 = vld [vmem:[#allocation2 + $0x1f] sm:$0xff]
      %v829 = vld [vmem:[#allocation2 + $0x27] sm:$0xff]
      %v830 = vld [vmem:[#allocation2 + $0x2f] sm:$0xff]
      %v831 = vld [vmem:[#allocation2 + $0x37] sm:$0xff]
      %v832 = vld [vmem:[#allocation2 + $0x3f] sm:$0xff]
      %v833 = vld [vmem:[#allocation2 + $0x47] sm:$0xff]
      %v834 = vld [vmem:[#allocation2 + $0x4f] sm:$0xff]
      %v835 = vld [vmem:[#allocation2 + $0x57] sm:$0xff]
      %v836 = vld [vmem:[#allocation2 + $0x5f] sm:$0xff]
      %v837 = vld [vmem:[#allocation2 + $0x67] sm:$0xff]
      %v838 = vld [vmem:[#allocation2 + $0x6f] sm:$0xff]
      %v839 = vld [vmem:[#allocation2 + $0x77] sm:$0xff]
      %v840 = vld [vmem:[#allocation2 + $0x7f] sm:$0xff]
      %v841 = vld [vmem:[#allocation2 + $0x87] sm:$0xff]
      %v842 = vld [vmem:[#allocation2 + $0x8f] sm:$0xff]
      %v843 = vld [vmem:[#allocation2 + $0x97] sm:$0xff]
      %v844 = vld [vmem:[#allocation2 + $0x9f] sm:$0xff]
      %v845 = vld [vmem:[#allocation2 + $0xa7] sm:$0xff]
      %v846 = vld [vmem:[#allocation2 + $0xaf] sm:$0xff]
      %v847 = vld [vmem:[#allocation2 + $0xb7] sm:$0xff]
      %v848 = vld [vmem:[#allocation2 + $0xbf] sm:$0xff]
      %v849 = vld [vmem:[#allocation2 + $0xc7] sm:$0xff]
      %v850 = vld [vmem:[#allocation2 + $0xcf] sm:$0xff]
      %v851 = vld [vmem:[#allocation2 + $0xd7] sm:$0xff]
      %v852 = vld [vmem:[#allocation2 + $0xdf] sm:$0xff]
      %v853 = vld [vmem:[#allocation2 + $0xe7] sm:$0xff]
      %v854 = vld [vmem:[#allocation2 + $0xef] sm:$0xff]
      %v855 = vld [vmem:[#allocation2 + $0xf7] sm:$0xff]
      %v856 = vld [vmem:[#allocation2 + $0xff] sm:$0xff]
      %v857 = vld [vmem:[#allocation2 + $0x107] sm:$0xff]
      %v858 = vld [vmem:[#allocation2 + $0x10f] sm:$0xff]
      %v859 = vld [vmem:[#allocation2 + $0x117] sm:$0xff]
      %v860 = vld [vmem:[#allocation2 + $0x11f] sm:$0xff]
      %v861 = vpack.c.bf16 %v826, %v825
      %v862 = vpack.c.bf16 %v828, %v827
      %v863 = vpack.c.bf16 %v830, %v829
      %v864 = vpack.c.bf16 %v832, %v831
      %v865 = vpack.c.bf16 %v834, %v833
      %v866 = vpack.c.bf16 %v836, %v835
      %v867 = vpack.c.bf16 %v838, %v837
      %v868 = vpack.c.bf16 %v840, %v839
      %v869 = vpack.c.bf16 %v842, %v841
      %v870 = vpack.c.bf16 %v844, %v843
      %v871 = vpack.c.bf16 %v846, %v845
      %v872 = vpack.c.bf16 %v848, %v847
      %v873 = vpack.c.bf16 %v850, %v849
      %v874 = vpack.c.bf16 %v852, %v851
      %v875 = vpack.c.bf16 %v854, %v853
      %v876 = vpack.c.bf16 %v856, %v855
      %v877 = vpack.c.bf16 %v858, %v857
      %v878 = vpack.c.bf16 %v860, %v859
      %v879 = vld [vmem:[%s4] sm:$0xf]
      %v880 = vld [vmem:[#allocation2 + $0x8] sm:$0xff]
      %v881 = vld [vmem:[#allocation2 + $0x10] sm:$0xff]
      %v882 = vld [vmem:[#allocation2 + $0x18] sm:$0xff]
      %v883 = vld [vmem:[#allocation2 + $0x20] sm:$0xff]
      %v884 = vld [vmem:[#allocation2 + $0x28] sm:$0xff]
      %v885 = vld [vmem:[#allocation2 + $0x30] sm:$0xff]
      %v886 = vld [vmem:[#allocation2 + $0x38] sm:$0xff]
      %v887 = vld [vmem:[#allocation2 + $0x40] sm:$0xff]
      %v888 = vld [vmem:[#allocation2 + $0x48] sm:$0xff]
      %v889 = vld [vmem:[#allocation2 + $0x50] sm:$0xff]
      %v890 = vld [vmem:[#allocation2 + $0x58] sm:$0xff]
      %v891 = vld [vmem:[#allocation2 + $0x60] sm:$0xff]
      %v892 = vld [vmem:[#allocation2 + $0x68] sm:$0xff]
      %v893 = vld [vmem:[#allocation2 + $0x70] sm:$0xff]
      %v894 = vld [vmem:[#allocation2 + $0x78] sm:$0xff]
      %v895 = vld [vmem:[#allocation2 + $0x80] sm:$0xff]
      %v896 = vld [vmem:[#allocation2 + $0x88] sm:$0xff]
      %v897 = vld [vmem:[#allocation2 + $0x90] sm:$0xff]
      %v898 = vld [vmem:[#allocation2 + $0x98] sm:$0xff]
      %v899 = vld [vmem:[#allocation2 + $0xa0] sm:$0xff]
      %v900 = vld [vmem:[#allocation2 + $0xa8] sm:$0xff]
      %v901 = vld [vmem:[#allocation2 + $0xb0] sm:$0xff]
      %v902 = vld [vmem:[#allocation2 + $0xb8] sm:$0xff]
      %v903 = vld [vmem:[#allocation2 + $0xc0] sm:$0xff]
      %v904 = vld [vmem:[#allocation2 + $0xc8] sm:$0xff]
      %v905 = vld [vmem:[#allocation2 + $0xd0] sm:$0xff]
      %v906 = vld [vmem:[#allocation2 + $0xd8] sm:$0xff]
      %v907 = vld [vmem:[#allocation2 + $0xe0] sm:$0xff]
      %v908 = vld [vmem:[#allocation2 + $0xe8] sm:$0xff]
      %v909 = vld [vmem:[#allocation2 + $0xf0] sm:$0xff]
      %v910 = vld [vmem:[#allocation2 + $0xf8] sm:$0xff]
      %v911 = vld [vmem:[#allocation2 + $0x100] sm:$0xff]
      %v912 = vld [vmem:[#allocation2 + $0x108] sm:$0xff]
      %v913 = vld [vmem:[#allocation2 + $0x110] sm:$0xff]
      %v914 = vld [vmem:[#allocation2 + $0x118] sm:$0xff]
      %v915 = vld [vmem:[#allocation2 + $0x120] sm:$0xff]
      %v916 = vpack.c.bf16 %v881, %v880
      %v917 = vpack.c.bf16 %v883, %v882
      %v918 = vpack.c.bf16 %v885, %v884
      %v919 = vpack.c.bf16 %v887, %v886
      %v920 = vpack.c.bf16 %v889, %v888
      %v921 = vpack.c.bf16 %v891, %v890
      %v922 = vpack.c.bf16 %v893, %v892
      %v923 = vpack.c.bf16 %v895, %v894
      %v924 = vpack.c.bf16 %v897, %v896
      %v925 = vpack.c.bf16 %v899, %v898
      %v926 = vpack.c.bf16 %v901, %v900
      %v927 = vpack.c.bf16 %v903, %v902
      %v928 = vpack.c.bf16 %v905, %v904
      %v929 = vpack.c.bf16 %v907, %v906
      %v930 = vpack.c.bf16 %v909, %v908
      %v931 = vpack.c.bf16 %v911, %v910
      %v932 = vpack.c.bf16 %v913, %v912
      %v933 = vpack.c.bf16 %v915, %v914
      %s934 = scalar_lea.vmem %s4, 4
      %v935 = vld [vmem:[%s934] sm:$0xf]
      %v937 = vsel %vm779, %v916, 0
      %v940 = vsel %vm779, %v917, 0
      %v943 = vsel %vm779, %v918, 0
      %v946 = vsel %vm779, %v919, 0
      %v949 = vsel %vm779, %v920, 0
      %v952 = vsel %vm779, %v921, 0
      %v955 = vsel %vm779, %v922, 0
      %v958 = vsel %vm779, %v923, 0
      %v961 = vsel %vm779, %v924, 0
      %v964 = vsel %vm779, %v925, 0
      %v967 = vsel %vm779, %v926, 0
      %v970 = vsel %vm779, %v927, 0
      %v973 = vsel %vm779, %v928, 0
      %v976 = vsel %vm779, %v929, 0
      %v979 = vsel %vm779, %v930, 0
      %v982 = vsel %vm779, %v931, 0
      %v985 = vsel %vm779, %v932, 0
      %v988 = vsel %vm779, %v933, 0
      %vm990 = vcmask 1043456
      %v992 = vsel %vm990, %v935, 0
      %994 = vmatprep.subr.bf16.mxu0 0
      %995 = vmatpush1.bf16.msra.mxu0 0
      %996 = vmatprep.subr.bf16.mxu0 0
      %997 = vmatpush1.bf16.msra.mxu0 0
      %998 = vmatprep.subr.bf16.mxu0 0
      %999 = vmatpush1.bf16.msra.mxu0 0
      %1000 = vmatprep.subr.bf16.mxu0 0
      %1001 = vmatpush1.bf16.msra.mxu0 0
      %1002 = vmatprep.subr.bf16.mxu0 0
      %1003 = vmatpush1.bf16.msra.mxu0 0
      %1004 = vmatprep.subr.bf16.mxu0 0
      %1005 = vmatpush1.bf16.msra.mxu0 0
      %1006 = vmatprep.subr.bf16.mxu0 0
      %1007 = vmatpush1.bf16.msra.mxu0 0
      %1008 = vmatprep.subr.bf16.mxu0 0
      %1009 = vmatpush1.bf16.msra.mxu0 %v992
      %1010 = vmatprep.subr.bf16.mxu0 0
      %1011 = vmatpush2.bf16.msra.mxu0 0
      %1012 = vmatprep.subr.bf16.mxu0 0
      %1013 = vmatpush2.bf16.msra.mxu0 0
      %1014 = vmatprep.subr.bf16.mxu0 0
      %1015 = vmatpush2.bf16.msra.mxu0 0
      %1016 = vmatprep.subr.bf16.mxu0 0
      %1017 = vmatpush2.bf16.msra.mxu0 0
      %1018 = vmatprep.subr.bf16.mxu0 0
      %1019 = vmatpush2.bf16.msra.mxu0 0
      %1020 = vmatprep.subr.bf16.mxu0 0
      %1021 = vmatpush2.bf16.msra.mxu0 0
      %1022 = vmatprep.subr.bf16.mxu0 0
      %1023 = vmatpush2.bf16.msra.mxu0 0
      %1024 = vmatprep.subr.bf16.mxu0 0
      %1025 = vmatpush2.bf16.msra.mxu0 0
      %1026 = vmatprep.mubr.bf16.mxu0 0
      %1027 = vmatmul.mubr.bf16.gmra.mxu0 %v937
      %v1028 = vpop.f32.mrf.mxu0
      %v1029 = vadd.f32 0.0, %v1028
      %v1030 = vpop.f32.mrf.mxu0
      %v1031 = vpop.f32.mrf.mxu0
      %v1032 = vadd.f32 0.0, %v1031
      %v1033 = vpop.f32.mrf.mxu0
      %1034 = vmatprep.mubr.bf16.mxu0 0
      %1035 = vmatmul.mubr.bf16.gmra.mxu0 %v940
      %v1036 = vpop.f32.mrf.mxu0
      %v1037 = vadd.f32 0.0, %v1036
      %v1038 = vpop.f32.mrf.mxu0
      %v1039 = vpop.f32.mrf.mxu0
      %v1040 = vadd.f32 0.0, %v1039
      %v1041 = vpop.f32.mrf.mxu0
      %1042 = vmatprep.mubr.bf16.mxu0 0
      %1043 = vmatmul.mubr.bf16.gmra.mxu0 %v943
      %v1044 = vpop.f32.mrf.mxu0
      %v1045 = vadd.f32 0.0, %v1044
      %v1046 = vpop.f32.mrf.mxu0
      %v1047 = vpop.f32.mrf.mxu0
      %v1048 = vadd.f32 0.0, %v1047
      %v1049 = vpop.f32.mrf.mxu0
      %1050 = vmatprep.mubr.bf16.mxu0 0
      %1051 = vmatmul.mubr.bf16.gmra.mxu0 %v946
      %v1052 = vpop.f32.mrf.mxu0
      %v1053 = vadd.f32 0.0, %v1052
      %v1054 = vpop.f32.mrf.mxu0
      %v1055 = vpop.f32.mrf.mxu0
      %v1056 = vadd.f32 0.0, %v1055
      %v1057 = vpop.f32.mrf.mxu0
      %1058 = vmatprep.mubr.bf16.mxu0 0
      %1059 = vmatmul.mubr.bf16.gmra.mxu0 %v949
      %v1060 = vpop.f32.mrf.mxu0
      %v1061 = vadd.f32 0.0, %v1060
      %v1062 = vpop.f32.mrf.mxu0
      %v1063 = vpop.f32.mrf.mxu0
      %v1064 = vadd.f32 0.0, %v1063
      %v1065 = vpop.f32.mrf.mxu0
      %1066 = vmatprep.mubr.bf16.mxu0 0
      %1067 = vmatmul.mubr.bf16.gmra.mxu0 %v952
      %v1068 = vpop.f32.mrf.mxu0
      %v1069 = vadd.f32 0.0, %v1068
      %v1070 = vpop.f32.mrf.mxu0
      %v1071 = vpop.f32.mrf.mxu0
      %v1072 = vadd.f32 0.0, %v1071
      %v1073 = vpop.f32.mrf.mxu0
      %1074 = vmatprep.mubr.bf16.mxu0 0
      %1075 = vmatmul.mubr.bf16.gmra.mxu0 %v955
      %v1076 = vpop.f32.mrf.mxu0
      %v1077 = vadd.f32 0.0, %v1076
      %v1078 = vpop.f32.mrf.mxu0
      %v1079 = vpop.f32.mrf.mxu0
      %v1080 = vadd.f32 0.0, %v1079
      %v1081 = vpop.f32.mrf.mxu0
      %1082 = vmatprep.mubr.bf16.mxu0 0
      %1083 = vmatmul.mubr.bf16.gmra.mxu0 %v958
      %v1084 = vpop.f32.mrf.mxu0
      %v1085 = vadd.f32 0.0, %v1084
      %v1086 = vpop.f32.mrf.mxu0
      %v1087 = vpop.f32.mrf.mxu0
      %v1088 = vadd.f32 0.0, %v1087
      %v1089 = vpop.f32.mrf.mxu0
      %1090 = vmatprep.mubr.bf16.mxu0 0
      %1091 = vmatmul.mubr.bf16.gmra.mxu0 %v961
      %v1092 = vpop.f32.mrf.mxu0
      %v1093 = vadd.f32 0.0, %v1092
      %v1094 = vpop.f32.mrf.mxu0
      %v1095 = vpop.f32.mrf.mxu0
      %v1096 = vadd.f32 0.0, %v1095
      %v1097 = vpop.f32.mrf.mxu0
      %1098 = vmatprep.mubr.bf16.mxu0 0
      %1099 = vmatmul.mubr.bf16.gmra.mxu0 %v964
      %v1100 = vpop.f32.mrf.mxu0
      %v1101 = vadd.f32 0.0, %v1100
      %v1102 = vpop.f32.mrf.mxu0
      %v1103 = vpop.f32.mrf.mxu0
      %v1104 = vadd.f32 0.0, %v1103
      %v1105 = vpop.f32.mrf.mxu0
      %1106 = vmatprep.mubr.bf16.mxu0 0
      %1107 = vmatmul.mubr.bf16.gmra.mxu0 %v967
      %v1108 = vpop.f32.mrf.mxu0
      %v1109 = vadd.f32 0.0, %v1108
      %v1110 = vpop.f32.mrf.mxu0
      %v1111 = vpop.f32.mrf.mxu0
      %v1112 = vadd.f32 0.0, %v1111
      %v1113 = vpop.f32.mrf.mxu0
      %1114 = vmatprep.mubr.bf16.mxu0 0
      %1115 = vmatmul.mubr.bf16.gmra.mxu0 %v970
      %v1116 = vpop.f32.mrf.mxu0
      %v1117 = vadd.f32 0.0, %v1116
      %v1118 = vpop.f32.mrf.mxu0
      %v1119 = vpop.f32.mrf.mxu0
      %v1120 = vadd.f32 0.0, %v1119
      %v1121 = vpop.f32.mrf.mxu0
      %1122 = vmatprep.mubr.bf16.mxu0 0
      %1123 = vmatmul.mubr.bf16.gmra.mxu0 %v973
      %v1124 = vpop.f32.mrf.mxu0
      %v1125 = vadd.f32 0.0, %v1124
      %v1126 = vpop.f32.mrf.mxu0
      %v1127 = vpop.f32.mrf.mxu0
      %v1128 = vadd.f32 0.0, %v1127
      %v1129 = vpop.f32.mrf.mxu0
      %1130 = vmatprep.mubr.bf16.mxu0 0
      %1131 = vmatmul.mubr.bf16.gmra.mxu0 %v976
      %v1132 = vpop.f32.mrf.mxu0
      %v1133 = vadd.f32 0.0, %v1132
      %v1134 = vpop.f32.mrf.mxu0
      %v1135 = vpop.f32.mrf.mxu0
      %v1136 = vadd.f32 0.0, %v1135
      %v1137 = vpop.f32.mrf.mxu0
      %1138 = vmatprep.mubr.bf16.mxu0 0
      %1139 = vmatmul.mubr.bf16.gmra.mxu0 %v979
      %v1140 = vpop.f32.mrf.mxu0
      %v1141 = vadd.f32 0.0, %v1140
      %v1142 = vpop.f32.mrf.mxu0
      %v1143 = vpop.f32.mrf.mxu0
      %v1144 = vadd.f32 0.0, %v1143
      %v1145 = vpop.f32.mrf.mxu0
      %1146 = vmatprep.mubr.bf16.mxu0 0
      %1147 = vmatmul.mubr.bf16.gmra.mxu0 %v982
      %v1148 = vpop.f32.mrf.mxu0
      %v1149 = vadd.f32 0.0, %v1148
      %v1150 = vpop.f32.mrf.mxu0
      %v1151 = vpop.f32.mrf.mxu0
      %v1152 = vadd.f32 0.0, %v1151
      %v1153 = vpop.f32.mrf.mxu0
      %1154 = vmatprep.mubr.bf16.mxu0 0
      %1155 = vmatmul.mubr.bf16.gmra.mxu0 %v985
      %v1156 = vpop.f32.mrf.mxu0
      %v1157 = vadd.f32 0.0, %v1156
      %v1158 = vpop.f32.mrf.mxu0
      %v1159 = vpop.f32.mrf.mxu0
      %v1160 = vadd.f32 0.0, %v1159
      %v1161 = vpop.f32.mrf.mxu0
      %1162 = vmatprep.mubr.bf16.mxu0 0
      %1163 = vmatmul.mubr.bf16.gmra.mxu0 %v988
      %v1164 = vpop.f32.mrf.mxu0
      %v1165 = vadd.f32 0.0, %v1164
      %v1166 = vpop.f32.mrf.mxu0
      %v1167 = vpop.f32.mrf.mxu0
      %v1168 = vadd.f32 0.0, %v1167
      %v1169 = vpop.f32.mrf.mxu0
      %1170 = vdwg.mxu0
      %v1172 = vsel %vm779, %v861, 0
      %v1175 = vsel %vm779, %v862, 0
      %v1178 = vsel %vm779, %v863, 0
      %v1181 = vsel %vm779, %v864, 0
      %v1184 = vsel %vm779, %v865, 0
      %v1187 = vsel %vm779, %v866, 0
      %v1190 = vsel %vm779, %v867, 0
      %v1193 = vsel %vm779, %v868, 0
      %v1196 = vsel %vm779, %v869, 0
      %v1199 = vsel %vm779, %v870, 0
      %v1202 = vsel %vm779, %v871, 0
      %v1205 = vsel %vm779, %v872, 0
      %v1208 = vsel %vm779, %v873, 0
      %v1211 = vsel %vm779, %v874, 0
      %v1214 = vsel %vm779, %v875, 0
      %v1217 = vsel %vm779, %v876, 0
      %v1220 = vsel %vm779, %v877, 0
      %v1223 = vsel %vm779, %v878, 0
      %v1226 = vsel %vm990, %v879, 0
      %1228 = vmatprep.subr.bf16.mxu0 0
      %1229 = vmatpush1.bf16.msra.mxu0 0
      %1230 = vmatprep.subr.bf16.mxu0 0
      %1231 = vmatpush1.bf16.msra.mxu0 0
      %1232 = vmatprep.subr.bf16.mxu0 0
      %1233 = vmatpush1.bf16.msra.mxu0 0
      %1234 = vmatprep.subr.bf16.mxu0 0
      %1235 = vmatpush1.bf16.msra.mxu0 0
      %1236 = vmatprep.subr.bf16.mxu0 0
      %1237 = vmatpush1.bf16.msra.mxu0 0
      %1238 = vmatprep.subr.bf16.mxu0 0
      %1239 = vmatpush1.bf16.msra.mxu0 0
      %1240 = vmatprep.subr.bf16.mxu0 0
      %1241 = vmatpush1.bf16.msra.mxu0 0
      %1242 = vmatprep.subr.bf16.mxu0 0
      %1243 = vmatpush1.bf16.msra.mxu0 %v1226
      %1244 = vmatprep.subr.bf16.mxu0 0
      %1245 = vmatpush2.bf16.msra.mxu0 0
      %1246 = vmatprep.subr.bf16.mxu0 0
      %1247 = vmatpush2.bf16.msra.mxu0 0
      %1248 = vmatprep.subr.bf16.mxu0 0
      %1249 = vmatpush2.bf16.msra.mxu0 0
      %1250 = vmatprep.subr.bf16.mxu0 0
      %1251 = vmatpush2.bf16.msra.mxu0 0
      %1252 = vmatprep.subr.bf16.mxu0 0
      %1253 = vmatpush2.bf16.msra.mxu0 0
      %1254 = vmatprep.subr.bf16.mxu0 0
      %1255 = vmatpush2.bf16.msra.mxu0 0
      %1256 = vmatprep.subr.bf16.mxu0 0
      %1257 = vmatpush2.bf16.msra.mxu0 0
      %1258 = vmatprep.subr.bf16.mxu0 0
      %1259 = vmatpush2.bf16.msra.mxu0 0
      %1260 = vmatprep.mubr.bf16.mxu0 0
      %1261 = vmatmul.mubr.bf16.gmra.mxu0 %v1172
      %v1262 = vpop.f32.mrf.mxu0
      %v1263 = vadd.f32 %v1029, %v1262
      %v1264 = vpop.f32.mrf.mxu0
      %v1265 = vpop.f32.mrf.mxu0
      %v1266 = vadd.f32 %v1032, %v1265
      %v1267 = vpop.f32.mrf.mxu0
      %1268 = vmatprep.mubr.bf16.mxu0 0
      %1269 = vmatmul.mubr.bf16.gmra.mxu0 %v1175
      %v1270 = vpop.f32.mrf.mxu0
      %v1271 = vadd.f32 %v1037, %v1270
      %v1272 = vpop.f32.mrf.mxu0
      %v1273 = vpop.f32.mrf.mxu0
      %v1274 = vadd.f32 %v1040, %v1273
      %v1275 = vpop.f32.mrf.mxu0
      %1276 = vmatprep.mubr.bf16.mxu0 0
      %1277 = vmatmul.mubr.bf16.gmra.mxu0 %v1178
      %v1278 = vpop.f32.mrf.mxu0
      %v1279 = vadd.f32 %v1045, %v1278
      %v1280 = vpop.f32.mrf.mxu0
      %v1281 = vpop.f32.mrf.mxu0
      %v1282 = vadd.f32 %v1048, %v1281
      %v1283 = vpop.f32.mrf.mxu0
      %1284 = vmatprep.mubr.bf16.mxu0 0
      %1285 = vmatmul.mubr.bf16.gmra.mxu0 %v1181
      %v1286 = vpop.f32.mrf.mxu0
      %v1287 = vadd.f32 %v1053, %v1286
      %v1288 = vpop.f32.mrf.mxu0
      %v1289 = vpop.f32.mrf.mxu0
      %v1290 = vadd.f32 %v1056, %v1289
      %v1291 = vpop.f32.mrf.mxu0
      %1292 = vmatprep.mubr.bf16.mxu0 0
      %1293 = vmatmul.mubr.bf16.gmra.mxu0 %v1184
      %v1294 = vpop.f32.mrf.mxu0
      %v1295 = vadd.f32 %v1061, %v1294
      %v1296 = vpop.f32.mrf.mxu0
      %v1297 = vpop.f32.mrf.mxu0
      %v1298 = vadd.f32 %v1064, %v1297
      %v1299 = vpop.f32.mrf.mxu0
      %1300 = vmatprep.mubr.bf16.mxu0 0
      %1301 = vmatmul.mubr.bf16.gmra.mxu0 %v1187
      %v1302 = vpop.f32.mrf.mxu0
      %v1303 = vadd.f32 %v1069, %v1302
      %v1304 = vpop.f32.mrf.mxu0
      %v1305 = vpop.f32.mrf.mxu0
      %v1306 = vadd.f32 %v1072, %v1305
      %v1307 = vpop.f32.mrf.mxu0
      %1308 = vmatprep.mubr.bf16.mxu0 0
      %1309 = vmatmul.mubr.bf16.gmra.mxu0 %v1190
      %v1310 = vpop.f32.mrf.mxu0
      %v1311 = vadd.f32 %v1077, %v1310
      %v1312 = vpop.f32.mrf.mxu0
      %v1313 = vpop.f32.mrf.mxu0
      %v1314 = vadd.f32 %v1080, %v1313
      %v1315 = vpop.f32.mrf.mxu0
      %1316 = vmatprep.mubr.bf16.mxu0 0
      %1317 = vmatmul.mubr.bf16.gmra.mxu0 %v1193
      %v1318 = vpop.f32.mrf.mxu0
      %v1319 = vadd.f32 %v1085, %v1318
      %v1320 = vpop.f32.mrf.mxu0
      %v1321 = vpop.f32.mrf.mxu0
      %v1322 = vadd.f32 %v1088, %v1321
      %v1323 = vpop.f32.mrf.mxu0
      %1324 = vmatprep.mubr.bf16.mxu0 0
      %1325 = vmatmul.mubr.bf16.gmra.mxu0 %v1196
      %v1326 = vpop.f32.mrf.mxu0
      %v1327 = vadd.f32 %v1093, %v1326
      %v1328 = vpop.f32.mrf.mxu0
      %v1329 = vpop.f32.mrf.mxu0
      %v1330 = vadd.f32 %v1096, %v1329
      %v1331 = vpop.f32.mrf.mxu0
      %1332 = vmatprep.mubr.bf16.mxu0 0
      %1333 = vmatmul.mubr.bf16.gmra.mxu0 %v1199
      %v1334 = vpop.f32.mrf.mxu0
      %v1335 = vadd.f32 %v1101, %v1334
      %v1336 = vpop.f32.mrf.mxu0
      %v1337 = vpop.f32.mrf.mxu0
      %v1338 = vadd.f32 %v1104, %v1337
      %v1339 = vpop.f32.mrf.mxu0
      %1340 = vmatprep.mubr.bf16.mxu0 0
      %1341 = vmatmul.mubr.bf16.gmra.mxu0 %v1202
      %v1342 = vpop.f32.mrf.mxu0
      %v1343 = vadd.f32 %v1109, %v1342
      %v1344 = vpop.f32.mrf.mxu0
      %v1345 = vpop.f32.mrf.mxu0
      %v1346 = vadd.f32 %v1112, %v1345
      %v1347 = vpop.f32.mrf.mxu0
      %1348 = vmatprep.mubr.bf16.mxu0 0
      %1349 = vmatmul.mubr.bf16.gmra.mxu0 %v1205
      %v1350 = vpop.f32.mrf.mxu0
      %v1351 = vadd.f32 %v1117, %v1350
      %v1352 = vpop.f32.mrf.mxu0
      %v1353 = vpop.f32.mrf.mxu0
      %v1354 = vadd.f32 %v1120, %v1353
      %v1355 = vpop.f32.mrf.mxu0
      %1356 = vmatprep.mubr.bf16.mxu0 0
      %1357 = vmatmul.mubr.bf16.gmra.mxu0 %v1208
      %v1358 = vpop.f32.mrf.mxu0
      %v1359 = vadd.f32 %v1125, %v1358
      %v1360 = vpop.f32.mrf.mxu0
      %v1361 = vpop.f32.mrf.mxu0
      %v1362 = vadd.f32 %v1128, %v1361
      %v1363 = vpop.f32.mrf.mxu0
      %1364 = vmatprep.mubr.bf16.mxu0 0
      %1365 = vmatmul.mubr.bf16.gmra.mxu0 %v1211
      %v1366 = vpop.f32.mrf.mxu0
      %v1367 = vadd.f32 %v1133, %v1366
      %v1368 = vpop.f32.mrf.mxu0
      %v1369 = vpop.f32.mrf.mxu0
      %v1370 = vadd.f32 %v1136, %v1369
      %v1371 = vpop.f32.mrf.mxu0
      %1372 = vmatprep.mubr.bf16.mxu0 0
      %1373 = vmatmul.mubr.bf16.gmra.mxu0 %v1214
      %v1374 = vpop.f32.mrf.mxu0
      %v1375 = vadd.f32 %v1141, %v1374
      %v1376 = vpop.f32.mrf.mxu0
      %v1377 = vpop.f32.mrf.mxu0
      %v1378 = vadd.f32 %v1144, %v1377
      %v1379 = vpop.f32.mrf.mxu0
      %1380 = vmatprep.mubr.bf16.mxu0 0
      %1381 = vmatmul.mubr.bf16.gmra.mxu0 %v1217
      %v1382 = vpop.f32.mrf.mxu0
      %v1383 = vadd.f32 %v1149, %v1382
      %v1384 = vpop.f32.mrf.mxu0
      %v1385 = vpop.f32.mrf.mxu0
      %v1386 = vadd.f32 %v1152, %v1385
      %v1387 = vpop.f32.mrf.mxu0
      %1388 = vmatprep.mubr.bf16.mxu0 0
      %1389 = vmatmul.mubr.bf16.gmra.mxu0 %v1220
      %v1390 = vpop.f32.mrf.mxu0
      %v1391 = vadd.f32 %v1157, %v1390
      %v1392 = vpop.f32.mrf.mxu0
      %v1393 = vpop.f32.mrf.mxu0
      %v1394 = vadd.f32 %v1160, %v1393
      %v1395 = vpop.f32.mrf.mxu0
      %1396 = vmatprep.mubr.bf16.mxu0 0
      %1397 = vmatmul.mubr.bf16.gmra.mxu0 %v1223
      %v1398 = vpop.f32.mrf.mxu0
      %v1399 = vadd.f32 %v1165, %v1398
      %v1400 = vpop.f32.mrf.mxu0
      %v1401 = vpop.f32.mrf.mxu0
      %v1402 = vadd.f32 %v1168, %v1401
      %v1403 = vpop.f32.mrf.mxu0
      %1404 = vdwg.mxu0
      %v1405 = vld [vmem:[#allocation2 + $0x9] sm:$0xff]
      %v1406 = vld [vmem:[#allocation2 + $0x11] sm:$0xff]
      %v1407 = vld [vmem:[#allocation2 + $0x19] sm:$0xff]
      %v1408 = vld [vmem:[#allocation2 + $0x21] sm:$0xff]
      %v1409 = vld [vmem:[#allocation2 + $0x29] sm:$0xff]
      %v1410 = vld [vmem:[#allocation2 + $0x31] sm:$0xff]
      %v1411 = vld [vmem:[#allocation2 + $0x39] sm:$0xff]
      %v1412 = vld [vmem:[#allocation2 + $0x41] sm:$0xff]
      %v1413 = vld [vmem:[#allocation2 + $0x49] sm:$0xff]
      %v1414 = vld [vmem:[#allocation2 + $0x51] sm:$0xff]
      %v1415 = vld [vmem:[#allocation2 + $0x59] sm:$0xff]
      %v1416 = vld [vmem:[#allocation2 + $0x61] sm:$0xff]
      %v1417 = vld [vmem:[#allocation2 + $0x69] sm:$0xff]
      %v1418 = vld [vmem:[#allocation2 + $0x71] sm:$0xff]
      %v1419 = vld [vmem:[#allocation2 + $0x79] sm:$0xff]
      %v1420 = vld [vmem:[#allocation2 + $0x81] sm:$0xff]
      %v1421 = vld [vmem:[#allocation2 + $0x89] sm:$0xff]
      %v1422 = vld [vmem:[#allocation2 + $0x91] sm:$0xff]
      %v1423 = vld [vmem:[#allocation2 + $0x99] sm:$0xff]
      %v1424 = vld [vmem:[#allocation2 + $0xa1] sm:$0xff]
      %v1425 = vld [vmem:[#allocation2 + $0xa9] sm:$0xff]
      %v1426 = vld [vmem:[#allocation2 + $0xb1] sm:$0xff]
      %v1427 = vld [vmem:[#allocation2 + $0xb9] sm:$0xff]
      %v1428 = vld [vmem:[#allocation2 + $0xc1] sm:$0xff]
      %v1429 = vld [vmem:[#allocation2 + $0xc9] sm:$0xff]
      %v1430 = vld [vmem:[#allocation2 + $0xd1] sm:$0xff]
      %v1431 = vld [vmem:[#allocation2 + $0xd9] sm:$0xff]
      %v1432 = vld [vmem:[#allocation2 + $0xe1] sm:$0xff]
      %v1433 = vld [vmem:[#allocation2 + $0xe9] sm:$0xff]
      %v1434 = vld [vmem:[#allocation2 + $0xf1] sm:$0xff]
      %v1435 = vld [vmem:[#allocation2 + $0xf9] sm:$0xff]
      %v1436 = vld [vmem:[#allocation2 + $0x101] sm:$0xff]
      %v1437 = vld [vmem:[#allocation2 + $0x109] sm:$0xff]
      %v1438 = vld [vmem:[#allocation2 + $0x111] sm:$0xff]
      %v1439 = vld [vmem:[#allocation2 + $0x119] sm:$0xff]
      %v1440 = vld [vmem:[#allocation2 + $0x121] sm:$0xff]
      %v1441 = vpack.c.bf16 %v1406, %v1405
      %v1442 = vpack.c.bf16 %v1408, %v1407
      %v1443 = vpack.c.bf16 %v1410, %v1409
      %v1444 = vpack.c.bf16 %v1412, %v1411
      %v1445 = vpack.c.bf16 %v1414, %v1413
      %v1446 = vpack.c.bf16 %v1416, %v1415
      %v1447 = vpack.c.bf16 %v1418, %v1417
      %v1448 = vpack.c.bf16 %v1420, %v1419
      %v1449 = vpack.c.bf16 %v1422, %v1421
      %v1450 = vpack.c.bf16 %v1424, %v1423
      %v1451 = vpack.c.bf16 %v1426, %v1425
      %v1452 = vpack.c.bf16 %v1428, %v1427
      %v1453 = vpack.c.bf16 %v1430, %v1429
      %v1454 = vpack.c.bf16 %v1432, %v1431
      %v1455 = vpack.c.bf16 %v1434, %v1433
      %v1456 = vpack.c.bf16 %v1436, %v1435
      %v1457 = vpack.c.bf16 %v1438, %v1437
      %v1458 = vpack.c.bf16 %v1440, %v1439
      %s1459 = scalar_lea.vmem %s4, 8
      %v1460 = vld [vmem:[%s1459] sm:$0xf]
      %v1462 = vsel %vm779, %v1441, 0
      %v1465 = vsel %vm779, %v1442, 0
      %v1468 = vsel %vm779, %v1443, 0
      %v1471 = vsel %vm779, %v1444, 0
      %v1474 = vsel %vm779, %v1445, 0
      %v1477 = vsel %vm779, %v1446, 0
      %v1480 = vsel %vm779, %v1447, 0
      %v1483 = vsel %vm779, %v1448, 0
      %v1486 = vsel %vm779, %v1449, 0
      %v1489 = vsel %vm779, %v1450, 0
      %v1492 = vsel %vm779, %v1451, 0
      %v1495 = vsel %vm779, %v1452, 0
      %v1498 = vsel %vm779, %v1453, 0
      %v1501 = vsel %vm779, %v1454, 0
      %v1504 = vsel %vm779, %v1455, 0
      %v1507 = vsel %vm779, %v1456, 0
      %v1510 = vsel %vm779, %v1457, 0
      %v1513 = vsel %vm779, %v1458, 0
      %v1516 = vsel %vm990, %v1460, 0
      %1518 = vmatprep.subr.bf16.mxu0 0
      %1519 = vmatpush1.bf16.msra.mxu0 0
      %1520 = vmatprep.subr.bf16.mxu0 0
      %1521 = vmatpush1.bf16.msra.mxu0 0
      %1522 = vmatprep.subr.bf16.mxu0 0
      %1523 = vmatpush1.bf16.msra.mxu0 0
      %1524 = vmatprep.subr.bf16.mxu0 0
      %1525 = vmatpush1.bf16.msra.mxu0 0
      %1526 = vmatprep.subr.bf16.mxu0 0
      %1527 = vmatpush1.bf16.msra.mxu0 0
      %1528 = vmatprep.subr.bf16.mxu0 0
      %1529 = vmatpush1.bf16.msra.mxu0 0
      %1530 = vmatprep.subr.bf16.mxu0 0
      %1531 = vmatpush1.bf16.msra.mxu0 0
      %1532 = vmatprep.subr.bf16.mxu0 0
      %1533 = vmatpush1.bf16.msra.mxu0 %v1516
      %1534 = vmatprep.subr.bf16.mxu0 0
      %1535 = vmatpush2.bf16.msra.mxu0 0
      %1536 = vmatprep.subr.bf16.mxu0 0
      %1537 = vmatpush2.bf16.msra.mxu0 0
      %1538 = vmatprep.subr.bf16.mxu0 0
      %1539 = vmatpush2.bf16.msra.mxu0 0
      %1540 = vmatprep.subr.bf16.mxu0 0
      %1541 = vmatpush2.bf16.msra.mxu0 0
      %1542 = vmatprep.subr.bf16.mxu0 0
      %1543 = vmatpush2.bf16.msra.mxu0 0
      %1544 = vmatprep.subr.bf16.mxu0 0
      %1545 = vmatpush2.bf16.msra.mxu0 0
      %1546 = vmatprep.subr.bf16.mxu0 0
      %1547 = vmatpush2.bf16.msra.mxu0 0
      %1548 = vmatprep.subr.bf16.mxu0 0
      %1549 = vmatpush2.bf16.msra.mxu0 0
      %1550 = vmatprep.mubr.bf16.mxu0 0
      %1551 = vmatmul.mubr.bf16.gmra.mxu0 %v1462
      %v1552 = vpop.f32.mrf.mxu0
      %v1553 = vadd.f32 0.0, %v1552
      %v1554 = vpop.f32.mrf.mxu0
      %v1555 = vpop.f32.mrf.mxu0
      %v1556 = vadd.f32 0.0, %v1555
      %v1557 = vpop.f32.mrf.mxu0
      %1558 = vmatprep.mubr.bf16.mxu0 0
      %1559 = vmatmul.mubr.bf16.gmra.mxu0 %v1465
      %v1560 = vpop.f32.mrf.mxu0
      %v1561 = vadd.f32 0.0, %v1560
      %v1562 = vpop.f32.mrf.mxu0
      %v1563 = vpop.f32.mrf.mxu0
      %v1564 = vadd.f32 0.0, %v1563
      %v1565 = vpop.f32.mrf.mxu0
      %1566 = vmatprep.mubr.bf16.mxu0 0
      %1567 = vmatmul.mubr.bf16.gmra.mxu0 %v1468
      %v1568 = vpop.f32.mrf.mxu0
      %v1569 = vadd.f32 0.0, %v1568
      %v1570 = vpop.f32.mrf.mxu0
      %v1571 = vpop.f32.mrf.mxu0
      %v1572 = vadd.f32 0.0, %v1571
      %v1573 = vpop.f32.mrf.mxu0
      %1574 = vmatprep.mubr.bf16.mxu0 0
      %1575 = vmatmul.mubr.bf16.gmra.mxu0 %v1471
      %v1576 = vpop.f32.mrf.mxu0
      %v1577 = vadd.f32 0.0, %v1576
      %v1578 = vpop.f32.mrf.mxu0
      %v1579 = vpop.f32.mrf.mxu0
      %v1580 = vadd.f32 0.0, %v1579
      %v1581 = vpop.f32.mrf.mxu0
      %1582 = vmatprep.mubr.bf16.mxu0 0
      %1583 = vmatmul.mubr.bf16.gmra.mxu0 %v1474
      %v1584 = vpop.f32.mrf.mxu0
      %v1585 = vadd.f32 0.0, %v1584
      %v1586 = vpop.f32.mrf.mxu0
      %v1587 = vpop.f32.mrf.mxu0
      %v1588 = vadd.f32 0.0, %v1587
      %v1589 = vpop.f32.mrf.mxu0
      %1590 = vmatprep.mubr.bf16.mxu0 0
      %1591 = vmatmul.mubr.bf16.gmra.mxu0 %v1477
      %v1592 = vpop.f32.mrf.mxu0
      %v1593 = vadd.f32 0.0, %v1592
      %v1594 = vpop.f32.mrf.mxu0
      %v1595 = vpop.f32.mrf.mxu0
      %v1596 = vadd.f32 0.0, %v1595
      %v1597 = vpop.f32.mrf.mxu0
      %1598 = vmatprep.mubr.bf16.mxu0 0
      %1599 = vmatmul.mubr.bf16.gmra.mxu0 %v1480
      %v1600 = vpop.f32.mrf.mxu0
      %v1601 = vadd.f32 0.0, %v1600
      %v1602 = vpop.f32.mrf.mxu0
      %v1603 = vpop.f32.mrf.mxu0
      %v1604 = vadd.f32 0.0, %v1603
      %v1605 = vpop.f32.mrf.mxu0
      %1606 = vmatprep.mubr.bf16.mxu0 0
      %1607 = vmatmul.mubr.bf16.gmra.mxu0 %v1483
      %v1608 = vpop.f32.mrf.mxu0
      %v1609 = vadd.f32 0.0, %v1608
      %v1610 = vpop.f32.mrf.mxu0
      %v1611 = vpop.f32.mrf.mxu0
      %v1612 = vadd.f32 0.0, %v1611
      %v1613 = vpop.f32.mrf.mxu0
      %1614 = vmatprep.mubr.bf16.mxu0 0
      %1615 = vmatmul.mubr.bf16.gmra.mxu0 %v1486
      %v1616 = vpop.f32.mrf.mxu0
      %v1617 = vadd.f32 0.0, %v1616
      %v1618 = vpop.f32.mrf.mxu0
      %v1619 = vpop.f32.mrf.mxu0
      %v1620 = vadd.f32 0.0, %v1619
      %v1621 = vpop.f32.mrf.mxu0
      %1622 = vmatprep.mubr.bf16.mxu0 0
      %1623 = vmatmul.mubr.bf16.gmra.mxu0 %v1489
      %v1624 = vpop.f32.mrf.mxu0
      %v1625 = vadd.f32 0.0, %v1624
      %v1626 = vpop.f32.mrf.mxu0
      %v1627 = vpop.f32.mrf.mxu0
      %v1628 = vadd.f32 0.0, %v1627
      %v1629 = vpop.f32.mrf.mxu0
      %1630 = vmatprep.mubr.bf16.mxu0 0
      %1631 = vmatmul.mubr.bf16.gmra.mxu0 %v1492
      %v1632 = vpop.f32.mrf.mxu0
      %v1633 = vadd.f32 0.0, %v1632
      %v1634 = vpop.f32.mrf.mxu0
      %v1635 = vpop.f32.mrf.mxu0
      %v1636 = vadd.f32 0.0, %v1635
      %v1637 = vpop.f32.mrf.mxu0
      %1638 = vmatprep.mubr.bf16.mxu0 0
      %1639 = vmatmul.mubr.bf16.gmra.mxu0 %v1495
      %v1640 = vpop.f32.mrf.mxu0
      %v1641 = vadd.f32 0.0, %v1640
      %v1642 = vpop.f32.mrf.mxu0
      %v1643 = vpop.f32.mrf.mxu0
      %v1644 = vadd.f32 0.0, %v1643
      %v1645 = vpop.f32.mrf.mxu0
      %1646 = vmatprep.mubr.bf16.mxu0 0
      %1647 = vmatmul.mubr.bf16.gmra.mxu0 %v1498
      %v1648 = vpop.f32.mrf.mxu0
      %v1649 = vadd.f32 0.0, %v1648
      %v1650 = vpop.f32.mrf.mxu0
      %v1651 = vpop.f32.mrf.mxu0
      %v1652 = vadd.f32 0.0, %v1651
      %v1653 = vpop.f32.mrf.mxu0
      %1654 = vmatprep.mubr.bf16.mxu0 0
      %1655 = vmatmul.mubr.bf16.gmra.mxu0 %v1501
      %v1656 = vpop.f32.mrf.mxu0
      %v1657 = vadd.f32 0.0, %v1656
      %v1658 = vpop.f32.mrf.mxu0
      %v1659 = vpop.f32.mrf.mxu0
      %v1660 = vadd.f32 0.0, %v1659
      %v1661 = vpop.f32.mrf.mxu0
      %1662 = vmatprep.mubr.bf16.mxu0 0
      %1663 = vmatmul.mubr.bf16.gmra.mxu0 %v1504
      %v1664 = vpop.f32.mrf.mxu0
      %v1665 = vadd.f32 0.0, %v1664
      %v1666 = vpop.f32.mrf.mxu0
      %v1667 = vpop.f32.mrf.mxu0
      %v1668 = vadd.f32 0.0, %v1667
      %v1669 = vpop.f32.mrf.mxu0
      %1670 = vmatprep.mubr.bf16.mxu0 0
      %1671 = vmatmul.mubr.bf16.gmra.mxu0 %v1507
      %v1672 = vpop.f32.mrf.mxu0
      %v1673 = vadd.f32 0.0, %v1672
      %v1674 = vpop.f32.mrf.mxu0
      %v1675 = vpop.f32.mrf.mxu0
      %v1676 = vadd.f32 0.0, %v1675
      %v1677 = vpop.f32.mrf.mxu0
      %1678 = vmatprep.mubr.bf16.mxu0 0
      %1679 = vmatmul.mubr.bf16.gmra.mxu0 %v1510
      %v1680 = vpop.f32.mrf.mxu0
      %v1681 = vadd.f32 0.0, %v1680
      %v1682 = vpop.f32.mrf.mxu0
      %v1683 = vpop.f32.mrf.mxu0
      %v1684 = vadd.f32 0.0, %v1683
      %v1685 = vpop.f32.mrf.mxu0
      %1686 = vmatprep.mubr.bf16.mxu0 0
      %1687 = vmatmul.mubr.bf16.gmra.mxu0 %v1513
      %v1688 = vpop.f32.mrf.mxu0
      %v1689 = vadd.f32 0.0, %v1688
      %v1690 = vpop.f32.mrf.mxu0
      %v1691 = vpop.f32.mrf.mxu0
      %v1692 = vadd.f32 0.0, %v1691
      %v1693 = vpop.f32.mrf.mxu0
      %1694 = vdwg.mxu0
      %v1695 = vadd.f32 %v1263, %v1553
      %v1696 = vadd.f32 %v1266, %v1556
      %v1697 = vadd.f32 %v1271, %v1561
      %v1698 = vadd.f32 %v1274, %v1564
      %v1699 = vadd.f32 %v1279, %v1569
      %v1700 = vadd.f32 %v1282, %v1572
      %v1701 = vadd.f32 %v1287, %v1577
      %v1702 = vadd.f32 %v1290, %v1580
      %v1703 = vadd.f32 %v1295, %v1585
      %v1704 = vadd.f32 %v1298, %v1588
      %v1705 = vadd.f32 %v1303, %v1593
      %v1706 = vadd.f32 %v1306, %v1596
      %v1707 = vadd.f32 %v1311, %v1601
      %v1708 = vadd.f32 %v1314, %v1604
      %v1709 = vadd.f32 %v1319, %v1609
      %v1710 = vadd.f32 %v1322, %v1612
      %v1711 = vadd.f32 %v1327, %v1617
      %v1712 = vadd.f32 %v1330, %v1620
      %v1713 = vadd.f32 %v1335, %v1625
      %v1714 = vadd.f32 %v1338, %v1628
      %v1715 = vadd.f32 %v1343, %v1633
      %v1716 = vadd.f32 %v1346, %v1636
      %v1717 = vadd.f32 %v1351, %v1641
      %v1718 = vadd.f32 %v1354, %v1644
      %v1719 = vadd.f32 %v1359, %v1649
      %v1720 = vadd.f32 %v1362, %v1652
      %v1721 = vadd.f32 %v1367, %v1657
      %v1722 = vadd.f32 %v1370, %v1660
      %v1723 = vadd.f32 %v1375, %v1665
      %v1724 = vadd.f32 %v1378, %v1668
      %v1725 = vadd.f32 %v1383, %v1673
      %v1726 = vadd.f32 %v1386, %v1676
      %v1727 = vadd.f32 %v1391, %v1681
      %v1728 = vadd.f32 %v1394, %v1684
      %v1729 = vadd.f32 %v1399, %v1689
      %v1730 = vadd.f32 %v1402, %v1692
      %v1731 = vld [vmem:[#allocation2 + $0x19] sm:$0xff]
      %v1732 = vld [vmem:[#allocation2 + $0x21] sm:$0xff]
      %v1733 = vld [vmem:[#allocation2 + $0x29] sm:$0xff]
      %v1734 = vld [vmem:[#allocation2 + $0x31] sm:$0xff]
      %v1735 = vld [vmem:[#allocation2 + $0x39] sm:$0xff]
      %v1736 = vld [vmem:[#allocation2 + $0x41] sm:$0xff]
      %v1737 = vld [vmem:[#allocation2 + $0x49] sm:$0xff]
      %v1738 = vld [vmem:[#allocation2 + $0x51] sm:$0xff]
      %v1739 = vld [vmem:[#allocation2 + $0x59] sm:$0xff]
      %v1740 = vld [vmem:[#allocation2 + $0x61] sm:$0xff]
      %v1741 = vld [vmem:[#allocation2 + $0x69] sm:$0xff]
      %v1742 = vld [vmem:[#allocation2 + $0x71] sm:$0xff]
      %v1743 = vld [vmem:[#allocation2 + $0x79] sm:$0xff]
      %v1744 = vld [vmem:[#allocation2 + $0x81] sm:$0xff]
      %v1745 = vld [vmem:[#allocation2 + $0x89] sm:$0xff]
      %v1746 = vld [vmem:[#allocation2 + $0x91] sm:$0xff]
      %v1747 = vld [vmem:[#allocation2 + $0x99] sm:$0xff]
      %v1748 = vld [vmem:[#allocation2 + $0xa1] sm:$0xff]
      %v1749 = vld [vmem:[#allocation2 + $0xa9] sm:$0xff]
      %v1750 = vld [vmem:[#allocation2 + $0xb1] sm:$0xff]
      %v1751 = vld [vmem:[#allocation2 + $0xb9] sm:$0xff]
      %v1752 = vld [vmem:[#allocation2 + $0xc1] sm:$0xff]
      %v1753 = vld [vmem:[#allocation2 + $0xc9] sm:$0xff]
      %v1754 = vld [vmem:[#allocation2 + $0xd1] sm:$0xff]
      %v1755 = vld [vmem:[#allocation2 + $0xd9] sm:$0xff]
      %v1756 = vld [vmem:[#allocation2 + $0xe1] sm:$0xff]
      %v1757 = vld [vmem:[#allocation2 + $0xe9] sm:$0xff]
      %v1758 = vld [vmem:[#allocation2 + $0xf1] sm:$0xff]
      %v1759 = vld [vmem:[#allocation2 + $0xf9] sm:$0xff]
      %v1760 = vld [vmem:[#allocation2 + $0x101] sm:$0xff]
      %v1761 = vld [vmem:[#allocation2 + $0x109] sm:$0xff]
      %v1762 = vld [vmem:[#allocation2 + $0x111] sm:$0xff]
      %v1763 = vld [vmem:[#allocation2 + $0x119] sm:$0xff]
      %v1764 = vld [vmem:[#allocation2 + $0x121] sm:$0xff]
      %v1765 = vld [vmem:[#allocation2 + $0x129] sm:$0xff]
      %v1766 = vld [vmem:[#allocation2 + $0x131] sm:$0xff]
      %v1767 = vpack.c.bf16 %v1732, %v1731
      %v1768 = vpack.c.bf16 %v1734, %v1733
      %v1769 = vpack.c.bf16 %v1736, %v1735
      %v1770 = vpack.c.bf16 %v1738, %v1737
      %v1771 = vpack.c.bf16 %v1740, %v1739
      %v1772 = vpack.c.bf16 %v1742, %v1741
      %v1773 = vpack.c.bf16 %v1744, %v1743
      %v1774 = vpack.c.bf16 %v1746, %v1745
      %v1775 = vpack.c.bf16 %v1748, %v1747
      %v1776 = vpack.c.bf16 %v1750, %v1749
      %v1777 = vpack.c.bf16 %v1752, %v1751
      %v1778 = vpack.c.bf16 %v1754, %v1753
      %v1779 = vpack.c.bf16 %v1756, %v1755
      %v1780 = vpack.c.bf16 %v1758, %v1757
      %v1781 = vpack.c.bf16 %v1760, %v1759
      %v1782 = vpack.c.bf16 %v1762, %v1761
      %v1783 = vpack.c.bf16 %v1764, %v1763
      %v1784 = vpack.c.bf16 %v1766, %v1765
      %s1785 = scalar_lea.vmem %s4, 12
      %v1786 = vld [vmem:[%s1785] sm:$0xf]
      %v1788 = vsel %vm779, %v1767, 0
      %v1791 = vsel %vm779, %v1768, 0
      %v1794 = vsel %vm779, %v1769, 0
      %v1797 = vsel %vm779, %v1770, 0
      %v1800 = vsel %vm779, %v1771, 0
      %v1803 = vsel %vm779, %v1772, 0
      %v1806 = vsel %vm779, %v1773, 0
      %v1809 = vsel %vm779, %v1774, 0
      %v1812 = vsel %vm779, %v1775, 0
      %v1815 = vsel %vm779, %v1776, 0
      %v1818 = vsel %vm779, %v1777, 0
      %v1821 = vsel %vm779, %v1778, 0
      %v1824 = vsel %vm779, %v1779, 0
      %v1827 = vsel %vm779, %v1780, 0
      %v1830 = vsel %vm779, %v1781, 0
      %v1833 = vsel %vm779, %v1782, 0
      %v1836 = vsel %vm779, %v1783, 0
      %v1839 = vsel %vm779, %v1784, 0
      %v1842 = vsel %vm990, %v1786, 0
      %1844 = vmatprep.subr.bf16.mxu0 0
      %1845 = vmatpush1.bf16.msra.mxu0 0
      %1846 = vmatprep.subr.bf16.mxu0 0
      %1847 = vmatpush1.bf16.msra.mxu0 0
      %1848 = vmatprep.subr.bf16.mxu0 0
      %1849 = vmatpush1.bf16.msra.mxu0 0
      %1850 = vmatprep.subr.bf16.mxu0 0
      %1851 = vmatpush1.bf16.msra.mxu0 0
      %1852 = vmatprep.subr.bf16.mxu0 0
      %1853 = vmatpush1.bf16.msra.mxu0 0
      %1854 = vmatprep.subr.bf16.mxu0 0
      %1855 = vmatpush1.bf16.msra.mxu0 0
      %1856 = vmatprep.subr.bf16.mxu0 0
      %1857 = vmatpush1.bf16.msra.mxu0 0
      %1858 = vmatprep.subr.bf16.mxu0 0
      %1859 = vmatpush1.bf16.msra.mxu0 %v1842
      %1860 = vmatprep.subr.bf16.mxu0 0
      %1861 = vmatpush2.bf16.msra.mxu0 0
      %1862 = vmatprep.subr.bf16.mxu0 0
      %1863 = vmatpush2.bf16.msra.mxu0 0
      %1864 = vmatprep.subr.bf16.mxu0 0
      %1865 = vmatpush2.bf16.msra.mxu0 0
      %1866 = vmatprep.subr.bf16.mxu0 0
      %1867 = vmatpush2.bf16.msra.mxu0 0
      %1868 = vmatprep.subr.bf16.mxu0 0
      %1869 = vmatpush2.bf16.msra.mxu0 0
      %1870 = vmatprep.subr.bf16.mxu0 0
      %1871 = vmatpush2.bf16.msra.mxu0 0
      %1872 = vmatprep.subr.bf16.mxu0 0
      %1873 = vmatpush2.bf16.msra.mxu0 0
      %1874 = vmatprep.subr.bf16.mxu0 0
      %1875 = vmatpush2.bf16.msra.mxu0 0
      %1876 = vmatprep.mubr.bf16.mxu0 0
      %1877 = vmatmul.mubr.bf16.gmra.mxu0 %v1788
      %v1878 = vpop.f32.mrf.mxu0
      %v1879 = vadd.f32 0.0, %v1878
      %v1880 = vpop.f32.mrf.mxu0
      %v1881 = vpop.f32.mrf.mxu0
      %v1882 = vadd.f32 0.0, %v1881
      %v1883 = vpop.f32.mrf.mxu0
      %1884 = vmatprep.mubr.bf16.mxu0 0
      %1885 = vmatmul.mubr.bf16.gmra.mxu0 %v1791
      %v1886 = vpop.f32.mrf.mxu0
      %v1887 = vadd.f32 0.0, %v1886
      %v1888 = vpop.f32.mrf.mxu0
      %v1889 = vpop.f32.mrf.mxu0
      %v1890 = vadd.f32 0.0, %v1889
      %v1891 = vpop.f32.mrf.mxu0
      %1892 = vmatprep.mubr.bf16.mxu0 0
      %1893 = vmatmul.mubr.bf16.gmra.mxu0 %v1794
      %v1894 = vpop.f32.mrf.mxu0
      %v1895 = vadd.f32 0.0, %v1894
      %v1896 = vpop.f32.mrf.mxu0
      %v1897 = vpop.f32.mrf.mxu0
      %v1898 = vadd.f32 0.0, %v1897
      %v1899 = vpop.f32.mrf.mxu0
      %1900 = vmatprep.mubr.bf16.mxu0 0
      %1901 = vmatmul.mubr.bf16.gmra.mxu0 %v1797
      %v1902 = vpop.f32.mrf.mxu0
      %v1903 = vadd.f32 0.0, %v1902
      %v1904 = vpop.f32.mrf.mxu0
      %v1905 = vpop.f32.mrf.mxu0
      %v1906 = vadd.f32 0.0, %v1905
      %v1907 = vpop.f32.mrf.mxu0
      %1908 = vmatprep.mubr.bf16.mxu0 0
      %1909 = vmatmul.mubr.bf16.gmra.mxu0 %v1800
      %v1910 = vpop.f32.mrf.mxu0
      %v1911 = vadd.f32 0.0, %v1910
      %v1912 = vpop.f32.mrf.mxu0
      %v1913 = vpop.f32.mrf.mxu0
      %v1914 = vadd.f32 0.0, %v1913
      %v1915 = vpop.f32.mrf.mxu0
      %1916 = vmatprep.mubr.bf16.mxu0 0
      %1917 = vmatmul.mubr.bf16.gmra.mxu0 %v1803
      %v1918 = vpop.f32.mrf.mxu0
      %v1919 = vadd.f32 0.0, %v1918
      %v1920 = vpop.f32.mrf.mxu0
      %v1921 = vpop.f32.mrf.mxu0
      %v1922 = vadd.f32 0.0, %v1921
      %v1923 = vpop.f32.mrf.mxu0
      %1924 = vmatprep.mubr.bf16.mxu0 0
      %1925 = vmatmul.mubr.bf16.gmra.mxu0 %v1806
      %v1926 = vpop.f32.mrf.mxu0
      %v1927 = vadd.f32 0.0, %v1926
      %v1928 = vpop.f32.mrf.mxu0
      %v1929 = vpop.f32.mrf.mxu0
      %v1930 = vadd.f32 0.0, %v1929
      %v1931 = vpop.f32.mrf.mxu0
      %1932 = vmatprep.mubr.bf16.mxu0 0
      %1933 = vmatmul.mubr.bf16.gmra.mxu0 %v1809
      %v1934 = vpop.f32.mrf.mxu0
      %v1935 = vadd.f32 0.0, %v1934
      %v1936 = vpop.f32.mrf.mxu0
      %v1937 = vpop.f32.mrf.mxu0
      %v1938 = vadd.f32 0.0, %v1937
      %v1939 = vpop.f32.mrf.mxu0
      %1940 = vmatprep.mubr.bf16.mxu0 0
      %1941 = vmatmul.mubr.bf16.gmra.mxu0 %v1812
      %v1942 = vpop.f32.mrf.mxu0
      %v1943 = vadd.f32 0.0, %v1942
      %v1944 = vpop.f32.mrf.mxu0
      %v1945 = vpop.f32.mrf.mxu0
      %v1946 = vadd.f32 0.0, %v1945
      %v1947 = vpop.f32.mrf.mxu0
      %1948 = vmatprep.mubr.bf16.mxu0 0
      %1949 = vmatmul.mubr.bf16.gmra.mxu0 %v1815
      %v1950 = vpop.f32.mrf.mxu0
      %v1951 = vadd.f32 0.0, %v1950
      %v1952 = vpop.f32.mrf.mxu0
      %v1953 = vpop.f32.mrf.mxu0
      %v1954 = vadd.f32 0.0, %v1953
      %v1955 = vpop.f32.mrf.mxu0
      %1956 = vmatprep.mubr.bf16.mxu0 0
      %1957 = vmatmul.mubr.bf16.gmra.mxu0 %v1818
      %v1958 = vpop.f32.mrf.mxu0
      %v1959 = vadd.f32 0.0, %v1958
      %v1960 = vpop.f32.mrf.mxu0
      %v1961 = vpop.f32.mrf.mxu0
      %v1962 = vadd.f32 0.0, %v1961
      %v1963 = vpop.f32.mrf.mxu0
      %1964 = vmatprep.mubr.bf16.mxu0 0
      %1965 = vmatmul.mubr.bf16.gmra.mxu0 %v1821
      %v1966 = vpop.f32.mrf.mxu0
      %v1967 = vadd.f32 0.0, %v1966
      %v1968 = vpop.f32.mrf.mxu0
      %v1969 = vpop.f32.mrf.mxu0
      %v1970 = vadd.f32 0.0, %v1969
      %v1971 = vpop.f32.mrf.mxu0
      %1972 = vmatprep.mubr.bf16.mxu0 0
      %1973 = vmatmul.mubr.bf16.gmra.mxu0 %v1824
      %v1974 = vpop.f32.mrf.mxu0
      %v1975 = vadd.f32 0.0, %v1974
      %v1976 = vpop.f32.mrf.mxu0
      %v1977 = vpop.f32.mrf.mxu0
      %v1978 = vadd.f32 0.0, %v1977
      %v1979 = vpop.f32.mrf.mxu0
      %1980 = vmatprep.mubr.bf16.mxu0 0
      %1981 = vmatmul.mubr.bf16.gmra.mxu0 %v1827
      %v1982 = vpop.f32.mrf.mxu0
      %v1983 = vadd.f32 0.0, %v1982
      %v1984 = vpop.f32.mrf.mxu0
      %v1985 = vpop.f32.mrf.mxu0
      %v1986 = vadd.f32 0.0, %v1985
      %v1987 = vpop.f32.mrf.mxu0
      %1988 = vmatprep.mubr.bf16.mxu0 0
      %1989 = vmatmul.mubr.bf16.gmra.mxu0 %v1830
      %v1990 = vpop.f32.mrf.mxu0
      %v1991 = vadd.f32 0.0, %v1990
      %v1992 = vpop.f32.mrf.mxu0
      %v1993 = vpop.f32.mrf.mxu0
      %v1994 = vadd.f32 0.0, %v1993
      %v1995 = vpop.f32.mrf.mxu0
      %1996 = vmatprep.mubr.bf16.mxu0 0
      %1997 = vmatmul.mubr.bf16.gmra.mxu0 %v1833
      %v1998 = vpop.f32.mrf.mxu0
      %v1999 = vadd.f32 0.0, %v1998
      %v2000 = vpop.f32.mrf.mxu0
      %v2001 = vpop.f32.mrf.mxu0
      %v2002 = vadd.f32 0.0, %v2001
      %v2003 = vpop.f32.mrf.mxu0
      %2004 = vmatprep.mubr.bf16.mxu0 0
      %2005 = vmatmul.mubr.bf16.gmra.mxu0 %v1836
      %v2006 = vpop.f32.mrf.mxu0
      %v2007 = vadd.f32 0.0, %v2006
      %v2008 = vpop.f32.mrf.mxu0
      %v2009 = vpop.f32.mrf.mxu0
      %v2010 = vadd.f32 0.0, %v2009
      %v2011 = vpop.f32.mrf.mxu0
      %2012 = vmatprep.mubr.bf16.mxu0 0
      %2013 = vmatmul.mubr.bf16.gmra.mxu0 %v1839
      %v2014 = vpop.f32.mrf.mxu0
      %v2015 = vadd.f32 0.0, %v2014
      %v2016 = vpop.f32.mrf.mxu0
      %v2017 = vpop.f32.mrf.mxu0
      %v2018 = vadd.f32 0.0, %v2017
      %v2019 = vpop.f32.mrf.mxu0
      %2020 = vdwg.mxu0
      %v2021 = vadd.f32 %v1695, %v1879
      %v2022 = vadd.f32 %v1696, %v1882
      %v2023 = vadd.f32 %v1697, %v1887
      %v2024 = vadd.f32 %v1698, %v1890
      %v2025 = vadd.f32 %v1699, %v1895
      %v2026 = vadd.f32 %v1700, %v1898
      %v2027 = vadd.f32 %v1701, %v1903
      %v2028 = vadd.f32 %v1702, %v1906
      %v2029 = vadd.f32 %v1703, %v1911
      %v2030 = vadd.f32 %v1704, %v1914
      %v2031 = vadd.f32 %v1705, %v1919
      %v2032 = vadd.f32 %v1706, %v1922
      %v2033 = vadd.f32 %v1707, %v1927
      %v2034 = vadd.f32 %v1708, %v1930
      %v2035 = vadd.f32 %v1709, %v1935
      %v2036 = vadd.f32 %v1710, %v1938
      %v2037 = vadd.f32 %v1711, %v1943
      %v2038 = vadd.f32 %v1712, %v1946
      %v2039 = vadd.f32 %v1713, %v1951
      %v2040 = vadd.f32 %v1714, %v1954
      %v2041 = vadd.f32 %v1715, %v1959
      %v2042 = vadd.f32 %v1716, %v1962
      %v2043 = vadd.f32 %v1717, %v1967
      %v2044 = vadd.f32 %v1718, %v1970
      %v2045 = vadd.f32 %v1719, %v1975
      %v2046 = vadd.f32 %v1720, %v1978
      %v2047 = vadd.f32 %v1721, %v1983
      %v2048 = vadd.f32 %v1722, %v1986
      %v2049 = vadd.f32 %v1723, %v1991
      %v2050 = vadd.f32 %v1724, %v1994
      %v2051 = vadd.f32 %v1725, %v1999
      %v2052 = vadd.f32 %v1726, %v2002
      %v2053 = vadd.f32 %v1727, %v2007
      %v2054 = vadd.f32 %v1728, %v2010
      %v2055 = vadd.f32 %v1729, %v2015
      %v2056 = vadd.f32 %v1730, %v2018
      %v2057 = vld [vmem:[#allocation2 + $0x1a] sm:$0xff]
      %v2058 = vld [vmem:[#allocation2 + $0x22] sm:$0xff]
      %v2059 = vld [vmem:[#allocation2 + $0x2a] sm:$0xff]
      %v2060 = vld [vmem:[#allocation2 + $0x32] sm:$0xff]
      %v2061 = vld [vmem:[#allocation2 + $0x3a] sm:$0xff]
      %v2062 = vld [vmem:[#allocation2 + $0x42] sm:$0xff]
      %v2063 = vld [vmem:[#allocation2 + $0x4a] sm:$0xff]
      %v2064 = vld [vmem:[#allocation2 + $0x52] sm:$0xff]
      %v2065 = vld [vmem:[#allocation2 + $0x5a] sm:$0xff]
      %v2066 = vld [vmem:[#allocation2 + $0x62] sm:$0xff]
      %v2067 = vld [vmem:[#allocation2 + $0x6a] sm:$0xff]
      %v2068 = vld [vmem:[#allocation2 + $0x72] sm:$0xff]
      %v2069 = vld [vmem:[#allocation2 + $0x7a] sm:$0xff]
      %v2070 = vld [vmem:[#allocation2 + $0x82] sm:$0xff]
      %v2071 = vld [vmem:[#allocation2 + $0x8a] sm:$0xff]
      %v2072 = vld [vmem:[#allocation2 + $0x92] sm:$0xff]
      %v2073 = vld [vmem:[#allocation2 + $0x9a] sm:$0xff]
      %v2074 = vld [vmem:[#allocation2 + $0xa2] sm:$0xff]
      %v2075 = vld [vmem:[#allocation2 + $0xaa] sm:$0xff]
      %v2076 = vld [vmem:[#allocation2 + $0xb2] sm:$0xff]
      %v2077 = vld [vmem:[#allocation2 + $0xba] sm:$0xff]
      %v2078 = vld [vmem:[#allocation2 + $0xc2] sm:$0xff]
      %v2079 = vld [vmem:[#allocation2 + $0xca] sm:$0xff]
      %v2080 = vld [vmem:[#allocation2 + $0xd2] sm:$0xff]
      %v2081 = vld [vmem:[#allocation2 + $0xda] sm:$0xff]
      %v2082 = vld [vmem:[#allocation2 + $0xe2] sm:$0xff]
      %v2083 = vld [vmem:[#allocation2 + $0xea] sm:$0xff]
      %v2084 = vld [vmem:[#allocation2 + $0xf2] sm:$0xff]
      %v2085 = vld [vmem:[#allocation2 + $0xfa] sm:$0xff]
      %v2086 = vld [vmem:[#allocation2 + $0x102] sm:$0xff]
      %v2087 = vld [vmem:[#allocation2 + $0x10a] sm:$0xff]
      %v2088 = vld [vmem:[#allocation2 + $0x112] sm:$0xff]
      %v2089 = vld [vmem:[#allocation2 + $0x11a] sm:$0xff]
      %v2090 = vld [vmem:[#allocation2 + $0x122] sm:$0xff]
      %v2091 = vld [vmem:[#allocation2 + $0x12a] sm:$0xff]
      %v2092 = vld [vmem:[#allocation2 + $0x132] sm:$0xff]
      %v2093 = vpack.c.bf16 %v2058, %v2057
      %v2094 = vpack.c.bf16 %v2060, %v2059
      %v2095 = vpack.c.bf16 %v2062, %v2061
      %v2096 = vpack.c.bf16 %v2064, %v2063
      %v2097 = vpack.c.bf16 %v2066, %v2065
      %v2098 = vpack.c.bf16 %v2068, %v2067
      %v2099 = vpack.c.bf16 %v2070, %v2069
      %v2100 = vpack.c.bf16 %v2072, %v2071
      %v2101 = vpack.c.bf16 %v2074, %v2073
      %v2102 = vpack.c.bf16 %v2076, %v2075
      %v2103 = vpack.c.bf16 %v2078, %v2077
      %v2104 = vpack.c.bf16 %v2080, %v2079
      %v2105 = vpack.c.bf16 %v2082, %v2081
      %v2106 = vpack.c.bf16 %v2084, %v2083
      %v2107 = vpack.c.bf16 %v2086, %v2085
      %v2108 = vpack.c.bf16 %v2088, %v2087
      %v2109 = vpack.c.bf16 %v2090, %v2089
      %v2110 = vpack.c.bf16 %v2092, %v2091
      %s2111 = scalar_lea.vmem %s4, 16
      %v2112 = vld [vmem:[%s2111] sm:$0xf]
      %v2114 = vsel %vm779, %v2093, 0
      %v2117 = vsel %vm779, %v2094, 0
      %v2120 = vsel %vm779, %v2095, 0
      %v2123 = vsel %vm779, %v2096, 0
      %v2126 = vsel %vm779, %v2097, 0
      %v2129 = vsel %vm779, %v2098, 0
      %v2132 = vsel %vm779, %v2099, 0
      %v2135 = vsel %vm779, %v2100, 0
      %v2138 = vsel %vm779, %v2101, 0
      %v2141 = vsel %vm779, %v2102, 0
      %v2144 = vsel %vm779, %v2103, 0
      %v2147 = vsel %vm779, %v2104, 0
      %v2150 = vsel %vm779, %v2105, 0
      %v2153 = vsel %vm779, %v2106, 0
      %v2156 = vsel %vm779, %v2107, 0
      %v2159 = vsel %vm779, %v2108, 0
      %v2162 = vsel %vm779, %v2109, 0
      %v2165 = vsel %vm779, %v2110, 0
      %v2168 = vsel %vm990, %v2112, 0
      %2170 = vmatprep.subr.bf16.mxu0 0
      %2171 = vmatpush1.bf16.msra.mxu0 0
      %2172 = vmatprep.subr.bf16.mxu0 0
      %2173 = vmatpush1.bf16.msra.mxu0 0
      %2174 = vmatprep.subr.bf16.mxu0 0
      %2175 = vmatpush1.bf16.msra.mxu0 0
      %2176 = vmatprep.subr.bf16.mxu0 0
      %2177 = vmatpush1.bf16.msra.mxu0 0
      %2178 = vmatprep.subr.bf16.mxu0 0
      %2179 = vmatpush1.bf16.msra.mxu0 0
      %2180 = vmatprep.subr.bf16.mxu0 0
      %2181 = vmatpush1.bf16.msra.mxu0 0
      %2182 = vmatprep.subr.bf16.mxu0 0
      %2183 = vmatpush1.bf16.msra.mxu0 0
      %2184 = vmatprep.subr.bf16.mxu0 0
      %2185 = vmatpush1.bf16.msra.mxu0 %v2168
      %2186 = vmatprep.subr.bf16.mxu0 0
      %2187 = vmatpush2.bf16.msra.mxu0 0
      %2188 = vmatprep.subr.bf16.mxu0 0
      %2189 = vmatpush2.bf16.msra.mxu0 0
      %2190 = vmatprep.subr.bf16.mxu0 0
      %2191 = vmatpush2.bf16.msra.mxu0 0
      %2192 = vmatprep.subr.bf16.mxu0 0
      %2193 = vmatpush2.bf16.msra.mxu0 0
      %2194 = vmatprep.subr.bf16.mxu0 0
      %2195 = vmatpush2.bf16.msra.mxu0 0
      %2196 = vmatprep.subr.bf16.mxu0 0
      %2197 = vmatpush2.bf16.msra.mxu0 0
      %2198 = vmatprep.subr.bf16.mxu0 0
      %2199 = vmatpush2.bf16.msra.mxu0 0
      %2200 = vmatprep.subr.bf16.mxu0 0
      %2201 = vmatpush2.bf16.msra.mxu0 0
      %2202 = vmatprep.mubr.bf16.mxu0 0
      %2203 = vmatmul.mubr.bf16.gmra.mxu0 %v2114
      %v2204 = vpop.f32.mrf.mxu0
      %v2205 = vadd.f32 0.0, %v2204
      %v2206 = vpop.f32.mrf.mxu0
      %v2207 = vpop.f32.mrf.mxu0
      %v2208 = vadd.f32 0.0, %v2207
      %v2209 = vpop.f32.mrf.mxu0
      %2210 = vmatprep.mubr.bf16.mxu0 0
      %2211 = vmatmul.mubr.bf16.gmra.mxu0 %v2117
      %v2212 = vpop.f32.mrf.mxu0
      %v2213 = vadd.f32 0.0, %v2212
      %v2214 = vpop.f32.mrf.mxu0
      %v2215 = vpop.f32.mrf.mxu0
      %v2216 = vadd.f32 0.0, %v2215
      %v2217 = vpop.f32.mrf.mxu0
      %2218 = vmatprep.mubr.bf16.mxu0 0
      %2219 = vmatmul.mubr.bf16.gmra.mxu0 %v2120
      %v2220 = vpop.f32.mrf.mxu0
      %v2221 = vadd.f32 0.0, %v2220
      %v2222 = vpop.f32.mrf.mxu0
      %v2223 = vpop.f32.mrf.mxu0
      %v2224 = vadd.f32 0.0, %v2223
      %v2225 = vpop.f32.mrf.mxu0
      %2226 = vmatprep.mubr.bf16.mxu0 0
      %2227 = vmatmul.mubr.bf16.gmra.mxu0 %v2123
      %v2228 = vpop.f32.mrf.mxu0
      %v2229 = vadd.f32 0.0, %v2228
      %v2230 = vpop.f32.mrf.mxu0
      %v2231 = vpop.f32.mrf.mxu0
      %v2232 = vadd.f32 0.0, %v2231
      %v2233 = vpop.f32.mrf.mxu0
      %2234 = vmatprep.mubr.bf16.mxu0 0
      %2235 = vmatmul.mubr.bf16.gmra.mxu0 %v2126
      %v2236 = vpop.f32.mrf.mxu0
      %v2237 = vadd.f32 0.0, %v2236
      %v2238 = vpop.f32.mrf.mxu0
      %v2239 = vpop.f32.mrf.mxu0
      %v2240 = vadd.f32 0.0, %v2239
      %v2241 = vpop.f32.mrf.mxu0
      %2242 = vmatprep.mubr.bf16.mxu0 0
      %2243 = vmatmul.mubr.bf16.gmra.mxu0 %v2129
      %v2244 = vpop.f32.mrf.mxu0
      %v2245 = vadd.f32 0.0, %v2244
      %v2246 = vpop.f32.mrf.mxu0
      %v2247 = vpop.f32.mrf.mxu0
      %v2248 = vadd.f32 0.0, %v2247
      %v2249 = vpop.f32.mrf.mxu0
      %2250 = vmatprep.mubr.bf16.mxu0 0
      %2251 = vmatmul.mubr.bf16.gmra.mxu0 %v2132
      %v2252 = vpop.f32.mrf.mxu0
      %v2253 = vadd.f32 0.0, %v2252
      %v2254 = vpop.f32.mrf.mxu0
      %v2255 = vpop.f32.mrf.mxu0
      %v2256 = vadd.f32 0.0, %v2255
      %v2257 = vpop.f32.mrf.mxu0
      %2258 = vmatprep.mubr.bf16.mxu0 0
      %2259 = vmatmul.mubr.bf16.gmra.mxu0 %v2135
      %v2260 = vpop.f32.mrf.mxu0
      %v2261 = vadd.f32 0.0, %v2260
      %v2262 = vpop.f32.mrf.mxu0
      %v2263 = vpop.f32.mrf.mxu0
      %v2264 = vadd.f32 0.0, %v2263
      %v2265 = vpop.f32.mrf.mxu0
      %2266 = vmatprep.mubr.bf16.mxu0 0
      %2267 = vmatmul.mubr.bf16.gmra.mxu0 %v2138
      %v2268 = vpop.f32.mrf.mxu0
      %v2269 = vadd.f32 0.0, %v2268
      %v2270 = vpop.f32.mrf.mxu0
      %v2271 = vpop.f32.mrf.mxu0
      %v2272 = vadd.f32 0.0, %v2271
      %v2273 = vpop.f32.mrf.mxu0
      %2274 = vmatprep.mubr.bf16.mxu0 0
      %2275 = vmatmul.mubr.bf16.gmra.mxu0 %v2141
      %v2276 = vpop.f32.mrf.mxu0
      %v2277 = vadd.f32 0.0, %v2276
      %v2278 = vpop.f32.mrf.mxu0
      %v2279 = vpop.f32.mrf.mxu0
      %v2280 = vadd.f32 0.0, %v2279
      %v2281 = vpop.f32.mrf.mxu0
      %2282 = vmatprep.mubr.bf16.mxu0 0
      %2283 = vmatmul.mubr.bf16.gmra.mxu0 %v2144
      %v2284 = vpop.f32.mrf.mxu0
      %v2285 = vadd.f32 0.0, %v2284
      %v2286 = vpop.f32.mrf.mxu0
      %v2287 = vpop.f32.mrf.mxu0
      %v2288 = vadd.f32 0.0, %v2287
      %v2289 = vpop.f32.mrf.mxu0
      %2290 = vmatprep.mubr.bf16.mxu0 0
      %2291 = vmatmul.mubr.bf16.gmra.mxu0 %v2147
      %v2292 = vpop.f32.mrf.mxu0
      %v2293 = vadd.f32 0.0, %v2292
      %v2294 = vpop.f32.mrf.mxu0
      %v2295 = vpop.f32.mrf.mxu0
      %v2296 = vadd.f32 0.0, %v2295
      %v2297 = vpop.f32.mrf.mxu0
      %2298 = vmatprep.mubr.bf16.mxu0 0
      %2299 = vmatmul.mubr.bf16.gmra.mxu0 %v2150
      %v2300 = vpop.f32.mrf.mxu0
      %v2301 = vadd.f32 0.0, %v2300
      %v2302 = vpop.f32.mrf.mxu0
      %v2303 = vpop.f32.mrf.mxu0
      %v2304 = vadd.f32 0.0, %v2303
      %v2305 = vpop.f32.mrf.mxu0
      %2306 = vmatprep.mubr.bf16.mxu0 0
      %2307 = vmatmul.mubr.bf16.gmra.mxu0 %v2153
      %v2308 = vpop.f32.mrf.mxu0
      %v2309 = vadd.f32 0.0, %v2308
      %v2310 = vpop.f32.mrf.mxu0
      %v2311 = vpop.f32.mrf.mxu0
      %v2312 = vadd.f32 0.0, %v2311
      %v2313 = vpop.f32.mrf.mxu0
      %2314 = vmatprep.mubr.bf16.mxu0 0
      %2315 = vmatmul.mubr.bf16.gmra.mxu0 %v2156
      %v2316 = vpop.f32.mrf.mxu0
      %v2317 = vadd.f32 0.0, %v2316
      %v2318 = vpop.f32.mrf.mxu0
      %v2319 = vpop.f32.mrf.mxu0
      %v2320 = vadd.f32 0.0, %v2319
      %v2321 = vpop.f32.mrf.mxu0
      %2322 = vmatprep.mubr.bf16.mxu0 0
      %2323 = vmatmul.mubr.bf16.gmra.mxu0 %v2159
      %v2324 = vpop.f32.mrf.mxu0
      %v2325 = vadd.f32 0.0, %v2324
      %v2326 = vpop.f32.mrf.mxu0
      %v2327 = vpop.f32.mrf.mxu0
      %v2328 = vadd.f32 0.0, %v2327
      %v2329 = vpop.f32.mrf.mxu0
      %2330 = vmatprep.mubr.bf16.mxu0 0
      %2331 = vmatmul.mubr.bf16.gmra.mxu0 %v2162
      %v2332 = vpop.f32.mrf.mxu0
      %v2333 = vadd.f32 0.0, %v2332
      %v2334 = vpop.f32.mrf.mxu0
      %v2335 = vpop.f32.mrf.mxu0
      %v2336 = vadd.f32 0.0, %v2335
      %v2337 = vpop.f32.mrf.mxu0
      %2338 = vmatprep.mubr.bf16.mxu0 0
      %2339 = vmatmul.mubr.bf16.gmra.mxu0 %v2165
      %v2340 = vpop.f32.mrf.mxu0
      %v2341 = vadd.f32 0.0, %v2340
      %v2342 = vpop.f32.mrf.mxu0
      %v2343 = vpop.f32.mrf.mxu0
      %v2344 = vadd.f32 0.0, %v2343
      %v2345 = vpop.f32.mrf.mxu0
      %2346 = vdwg.mxu0
      %v2347 = vadd.f32 %v2021, %v2205
      %v2348 = vadd.f32 %v2022, %v2208
      %v2349 = vadd.f32 %v2023, %v2213
      %v2350 = vadd.f32 %v2024, %v2216
      %v2351 = vadd.f32 %v2025, %v2221
      %v2352 = vadd.f32 %v2026, %v2224
      %v2353 = vadd.f32 %v2027, %v2229
      %v2354 = vadd.f32 %v2028, %v2232
      %v2355 = vadd.f32 %v2029, %v2237
      %v2356 = vadd.f32 %v2030, %v2240
      %v2357 = vadd.f32 %v2031, %v2245
      %v2358 = vadd.f32 %v2032, %v2248
      %v2359 = vadd.f32 %v2033, %v2253
      %v2360 = vadd.f32 %v2034, %v2256
      %v2361 = vadd.f32 %v2035, %v2261
      %v2362 = vadd.f32 %v2036, %v2264
      %v2363 = vadd.f32 %v2037, %v2269
      %v2364 = vadd.f32 %v2038, %v2272
      %v2365 = vadd.f32 %v2039, %v2277
      %v2366 = vadd.f32 %v2040, %v2280
      %v2367 = vadd.f32 %v2041, %v2285
      %v2368 = vadd.f32 %v2042, %v2288
      %v2369 = vadd.f32 %v2043, %v2293
      %v2370 = vadd.f32 %v2044, %v2296
      %v2371 = vadd.f32 %v2045, %v2301
      %v2372 = vadd.f32 %v2046, %v2304
      %v2373 = vadd.f32 %v2047, %v2309
      %v2374 = vadd.f32 %v2048, %v2312
      %v2375 = vadd.f32 %v2049, %v2317
      %v2376 = vadd.f32 %v2050, %v2320
      %v2377 = vadd.f32 %v2051, %v2325
      %v2378 = vadd.f32 %v2052, %v2328
      %v2379 = vadd.f32 %v2053, %v2333
      %v2380 = vadd.f32 %v2054, %v2336
      %v2381 = vadd.f32 %v2055, %v2341
      %v2382 = vadd.f32 %v2056, %v2344
      %v2383 = vld [vmem:[#allocation2 + $0x1b] sm:$0xff]
      %v2384 = vld [vmem:[#allocation2 + $0x23] sm:$0xff]
      %v2385 = vld [vmem:[#allocation2 + $0x2b] sm:$0xff]
      %v2386 = vld [vmem:[#allocation2 + $0x33] sm:$0xff]
      %v2387 = vld [vmem:[#allocation2 + $0x3b] sm:$0xff]
      %v2388 = vld [vmem:[#allocation2 + $0x43] sm:$0xff]
      %v2389 = vld [vmem:[#allocation2 + $0x4b] sm:$0xff]
      %v2390 = vld [vmem:[#allocation2 + $0x53] sm:$0xff]
      %v2391 = vld [vmem:[#allocation2 + $0x5b] sm:$0xff]
      %v2392 = vld [vmem:[#allocation2 + $0x63] sm:$0xff]
      %v2393 = vld [vmem:[#allocation2 + $0x6b] sm:$0xff]
      %v2394 = vld [vmem:[#allocation2 + $0x73] sm:$0xff]
      %v2395 = vld [vmem:[#allocation2 + $0x7b] sm:$0xff]
      %v2396 = vld [vmem:[#allocation2 + $0x83] sm:$0xff]
      %v2397 = vld [vmem:[#allocation2 + $0x8b] sm:$0xff]
      %v2398 = vld [vmem:[#allocation2 + $0x93] sm:$0xff]
      %v2399 = vld [vmem:[#allocation2 + $0x9b] sm:$0xff]
      %v2400 = vld [vmem:[#allocation2 + $0xa3] sm:$0xff]
      %v2401 = vld [vmem:[#allocation2 + $0xab] sm:$0xff]
      %v2402 = vld [vmem:[#allocation2 + $0xb3] sm:$0xff]
      %v2403 = vld [vmem:[#allocation2 + $0xbb] sm:$0xff]
      %v2404 = vld [vmem:[#allocation2 + $0xc3] sm:$0xff]
      %v2405 = vld [vmem:[#allocation2 + $0xcb] sm:$0xff]
      %v2406 = vld [vmem:[#allocation2 + $0xd3] sm:$0xff]
      %v2407 = vld [vmem:[#allocation2 + $0xdb] sm:$0xff]
      %v2408 = vld [vmem:[#allocation2 + $0xe3] sm:$0xff]
      %v2409 = vld [vmem:[#allocation2 + $0xeb] sm:$0xff]
      %v2410 = vld [vmem:[#allocation2 + $0xf3] sm:$0xff]
      %v2411 = vld [vmem:[#allocation2 + $0xfb] sm:$0xff]
      %v2412 = vld [vmem:[#allocation2 + $0x103] sm:$0xff]
      %v2413 = vld [vmem:[#allocation2 + $0x10b] sm:$0xff]
      %v2414 = vld [vmem:[#allocation2 + $0x113] sm:$0xff]
      %v2415 = vld [vmem:[#allocation2 + $0x11b] sm:$0xff]
      %v2416 = vld [vmem:[#allocation2 + $0x123] sm:$0xff]
      %v2417 = vld [vmem:[#allocation2 + $0x12b] sm:$0xff]
      %v2418 = vld [vmem:[#allocation2 + $0x133] sm:$0xff]
      %v2419 = vpack.c.bf16 %v2384, %v2383
      %v2420 = vpack.c.bf16 %v2386, %v2385
      %v2421 = vpack.c.bf16 %v2388, %v2387
      %v2422 = vpack.c.bf16 %v2390, %v2389
      %v2423 = vpack.c.bf16 %v2392, %v2391
      %v2424 = vpack.c.bf16 %v2394, %v2393
      %v2425 = vpack.c.bf16 %v2396, %v2395
      %v2426 = vpack.c.bf16 %v2398, %v2397
      %v2427 = vpack.c.bf16 %v2400, %v2399
      %v2428 = vpack.c.bf16 %v2402, %v2401
      %v2429 = vpack.c.bf16 %v2404, %v2403
      %v2430 = vpack.c.bf16 %v2406, %v2405
      %v2431 = vpack.c.bf16 %v2408, %v2407
      %v2432 = vpack.c.bf16 %v2410, %v2409
      %v2433 = vpack.c.bf16 %v2412, %v2411
      %v2434 = vpack.c.bf16 %v2414, %v2413
      %v2435 = vpack.c.bf16 %v2416, %v2415
      %v2436 = vpack.c.bf16 %v2418, %v2417
      %s2437 = scalar_lea.vmem %s4, 20
      %v2438 = vld [vmem:[%s2437] sm:$0xf]
      %v2440 = vsel %vm779, %v2419, 0
      %v2443 = vsel %vm779, %v2420, 0
      %v2446 = vsel %vm779, %v2421, 0
      %v2449 = vsel %vm779, %v2422, 0
      %v2452 = vsel %vm779, %v2423, 0
      %v2455 = vsel %vm779, %v2424, 0
      %v2458 = vsel %vm779, %v2425, 0
      %v2461 = vsel %vm779, %v2426, 0
      %v2464 = vsel %vm779, %v2427, 0
      %v2467 = vsel %vm779, %v2428, 0
      %v2470 = vsel %vm779, %v2429, 0
      %v2473 = vsel %vm779, %v2430, 0
      %v2476 = vsel %vm779, %v2431, 0
      %v2479 = vsel %vm779, %v2432, 0
      %v2482 = vsel %vm779, %v2433, 0
      %v2485 = vsel %vm779, %v2434, 0
      %v2488 = vsel %vm779, %v2435, 0
      %v2491 = vsel %vm779, %v2436, 0
      %v2494 = vsel %vm990, %v2438, 0
      %2496 = vmatprep.subr.bf16.mxu0 0
      %2497 = vmatpush1.bf16.msra.mxu0 0
      %2498 = vmatprep.subr.bf16.mxu0 0
      %2499 = vmatpush1.bf16.msra.mxu0 0
      %2500 = vmatprep.subr.bf16.mxu0 0
      %2501 = vmatpush1.bf16.msra.mxu0 0
      %2502 = vmatprep.subr.bf16.mxu0 0
      %2503 = vmatpush1.bf16.msra.mxu0 0
      %2504 = vmatprep.subr.bf16.mxu0 0
      %2505 = vmatpush1.bf16.msra.mxu0 0
      %2506 = vmatprep.subr.bf16.mxu0 0
      %2507 = vmatpush1.bf16.msra.mxu0 0
      %2508 = vmatprep.subr.bf16.mxu0 0
      %2509 = vmatpush1.bf16.msra.mxu0 0
      %2510 = vmatprep.subr.bf16.mxu0 0
      %2511 = vmatpush1.bf16.msra.mxu0 %v2494
      %2512 = vmatprep.subr.bf16.mxu0 0
      %2513 = vmatpush2.bf16.msra.mxu0 0
      %2514 = vmatprep.subr.bf16.mxu0 0
      %2515 = vmatpush2.bf16.msra.mxu0 0
      %2516 = vmatprep.subr.bf16.mxu0 0
      %2517 = vmatpush2.bf16.msra.mxu0 0
      %2518 = vmatprep.subr.bf16.mxu0 0
      %2519 = vmatpush2.bf16.msra.mxu0 0
      %2520 = vmatprep.subr.bf16.mxu0 0
      %2521 = vmatpush2.bf16.msra.mxu0 0
      %2522 = vmatprep.subr.bf16.mxu0 0
      %2523 = vmatpush2.bf16.msra.mxu0 0
      %2524 = vmatprep.subr.bf16.mxu0 0
      %2525 = vmatpush2.bf16.msra.mxu0 0
      %2526 = vmatprep.subr.bf16.mxu0 0
      %2527 = vmatpush2.bf16.msra.mxu0 0
      %2528 = vmatprep.mubr.bf16.mxu0 0
      %2529 = vmatmul.mubr.bf16.gmra.mxu0 %v2440
      %v2530 = vpop.f32.mrf.mxu0
      %v2531 = vadd.f32 0.0, %v2530
      %v2532 = vpop.f32.mrf.mxu0
      %v2533 = vpop.f32.mrf.mxu0
      %v2534 = vadd.f32 0.0, %v2533
      %v2535 = vpop.f32.mrf.mxu0
      %2536 = vmatprep.mubr.bf16.mxu0 0
      %2537 = vmatmul.mubr.bf16.gmra.mxu0 %v2443
      %v2538 = vpop.f32.mrf.mxu0
      %v2539 = vadd.f32 0.0, %v2538
      %v2540 = vpop.f32.mrf.mxu0
      %v2541 = vpop.f32.mrf.mxu0
      %v2542 = vadd.f32 0.0, %v2541
      %v2543 = vpop.f32.mrf.mxu0
      %2544 = vmatprep.mubr.bf16.mxu0 0
      %2545 = vmatmul.mubr.bf16.gmra.mxu0 %v2446
      %v2546 = vpop.f32.mrf.mxu0
      %v2547 = vadd.f32 0.0, %v2546
      %v2548 = vpop.f32.mrf.mxu0
      %v2549 = vpop.f32.mrf.mxu0
      %v2550 = vadd.f32 0.0, %v2549
      %v2551 = vpop.f32.mrf.mxu0
      %2552 = vmatprep.mubr.bf16.mxu0 0
      %2553 = vmatmul.mubr.bf16.gmra.mxu0 %v2449
      %v2554 = vpop.f32.mrf.mxu0
      %v2555 = vadd.f32 0.0, %v2554
      %v2556 = vpop.f32.mrf.mxu0
      %v2557 = vpop.f32.mrf.mxu0
      %v2558 = vadd.f32 0.0, %v2557
      %v2559 = vpop.f32.mrf.mxu0
      %2560 = vmatprep.mubr.bf16.mxu0 0
      %2561 = vmatmul.mubr.bf16.gmra.mxu0 %v2452
      %v2562 = vpop.f32.mrf.mxu0
      %v2563 = vadd.f32 0.0, %v2562
      %v2564 = vpop.f32.mrf.mxu0
      %v2565 = vpop.f32.mrf.mxu0
      %v2566 = vadd.f32 0.0, %v2565
      %v2567 = vpop.f32.mrf.mxu0
      %2568 = vmatprep.mubr.bf16.mxu0 0
      %2569 = vmatmul.mubr.bf16.gmra.mxu0 %v2455
      %v2570 = vpop.f32.mrf.mxu0
      %v2571 = vadd.f32 0.0, %v2570
      %v2572 = vpop.f32.mrf.mxu0
      %v2573 = vpop.f32.mrf.mxu0
      %v2574 = vadd.f32 0.0, %v2573
      %v2575 = vpop.f32.mrf.mxu0
      %2576 = vmatprep.mubr.bf16.mxu0 0
      %2577 = vmatmul.mubr.bf16.gmra.mxu0 %v2458
      %v2578 = vpop.f32.mrf.mxu0
      %v2579 = vadd.f32 0.0, %v2578
      %v2580 = vpop.f32.mrf.mxu0
      %v2581 = vpop.f32.mrf.mxu0
      %v2582 = vadd.f32 0.0, %v2581
      %v2583 = vpop.f32.mrf.mxu0
      %2584 = vmatprep.mubr.bf16.mxu0 0
      %2585 = vmatmul.mubr.bf16.gmra.mxu0 %v2461
      %v2586 = vpop.f32.mrf.mxu0
      %v2587 = vadd.f32 0.0, %v2586
      %v2588 = vpop.f32.mrf.mxu0
      %v2589 = vpop.f32.mrf.mxu0
      %v2590 = vadd.f32 0.0, %v2589
      %v2591 = vpop.f32.mrf.mxu0
      %2592 = vmatprep.mubr.bf16.mxu0 0
      %2593 = vmatmul.mubr.bf16.gmra.mxu0 %v2464
      %v2594 = vpop.f32.mrf.mxu0
      %v2595 = vadd.f32 0.0, %v2594
      %v2596 = vpop.f32.mrf.mxu0
      %v2597 = vpop.f32.mrf.mxu0
      %v2598 = vadd.f32 0.0, %v2597
      %v2599 = vpop.f32.mrf.mxu0
      %2600 = vmatprep.mubr.bf16.mxu0 0
      %2601 = vmatmul.mubr.bf16.gmra.mxu0 %v2467
      %v2602 = vpop.f32.mrf.mxu0
      %v2603 = vadd.f32 0.0, %v2602
      %v2604 = vpop.f32.mrf.mxu0
      %v2605 = vpop.f32.mrf.mxu0
      %v2606 = vadd.f32 0.0, %v2605
      %v2607 = vpop.f32.mrf.mxu0
      %2608 = vmatprep.mubr.bf16.mxu0 0
      %2609 = vmatmul.mubr.bf16.gmra.mxu0 %v2470
      %v2610 = vpop.f32.mrf.mxu0
      %v2611 = vadd.f32 0.0, %v2610
      %v2612 = vpop.f32.mrf.mxu0
      %v2613 = vpop.f32.mrf.mxu0
      %v2614 = vadd.f32 0.0, %v2613
      %v2615 = vpop.f32.mrf.mxu0
      %2616 = vmatprep.mubr.bf16.mxu0 0
      %2617 = vmatmul.mubr.bf16.gmra.mxu0 %v2473
      %v2618 = vpop.f32.mrf.mxu0
      %v2619 = vadd.f32 0.0, %v2618
      %v2620 = vpop.f32.mrf.mxu0
      %v2621 = vpop.f32.mrf.mxu0
      %v2622 = vadd.f32 0.0, %v2621
      %v2623 = vpop.f32.mrf.mxu0
      %2624 = vmatprep.mubr.bf16.mxu0 0
      %2625 = vmatmul.mubr.bf16.gmra.mxu0 %v2476
      %v2626 = vpop.f32.mrf.mxu0
      %v2627 = vadd.f32 0.0, %v2626
      %v2628 = vpop.f32.mrf.mxu0
      %v2629 = vpop.f32.mrf.mxu0
      %v2630 = vadd.f32 0.0, %v2629
      %v2631 = vpop.f32.mrf.mxu0
      %2632 = vmatprep.mubr.bf16.mxu0 0
      %2633 = vmatmul.mubr.bf16.gmra.mxu0 %v2479
      %v2634 = vpop.f32.mrf.mxu0
      %v2635 = vadd.f32 0.0, %v2634
      %v2636 = vpop.f32.mrf.mxu0
      %v2637 = vpop.f32.mrf.mxu0
      %v2638 = vadd.f32 0.0, %v2637
      %v2639 = vpop.f32.mrf.mxu0
      %2640 = vmatprep.mubr.bf16.mxu0 0
      %2641 = vmatmul.mubr.bf16.gmra.mxu0 %v2482
      %v2642 = vpop.f32.mrf.mxu0
      %v2643 = vadd.f32 0.0, %v2642
      %v2644 = vpop.f32.mrf.mxu0
      %v2645 = vpop.f32.mrf.mxu0
      %v2646 = vadd.f32 0.0, %v2645
      %v2647 = vpop.f32.mrf.mxu0
      %2648 = vmatprep.mubr.bf16.mxu0 0
      %2649 = vmatmul.mubr.bf16.gmra.mxu0 %v2485
      %v2650 = vpop.f32.mrf.mxu0
      %v2651 = vadd.f32 0.0, %v2650
      %v2652 = vpop.f32.mrf.mxu0
      %v2653 = vpop.f32.mrf.mxu0
      %v2654 = vadd.f32 0.0, %v2653
      %v2655 = vpop.f32.mrf.mxu0
      %2656 = vmatprep.mubr.bf16.mxu0 0
      %2657 = vmatmul.mubr.bf16.gmra.mxu0 %v2488
      %v2658 = vpop.f32.mrf.mxu0
      %v2659 = vadd.f32 0.0, %v2658
      %v2660 = vpop.f32.mrf.mxu0
      %v2661 = vpop.f32.mrf.mxu0
      %v2662 = vadd.f32 0.0, %v2661
      %v2663 = vpop.f32.mrf.mxu0
      %2664 = vmatprep.mubr.bf16.mxu0 0
      %2665 = vmatmul.mubr.bf16.gmra.mxu0 %v2491
      %v2666 = vpop.f32.mrf.mxu0
      %v2667 = vadd.f32 0.0, %v2666
      %v2668 = vpop.f32.mrf.mxu0
      %v2669 = vpop.f32.mrf.mxu0
      %v2670 = vadd.f32 0.0, %v2669
      %v2671 = vpop.f32.mrf.mxu0
      %2672 = vdwg.mxu0
      %v2673 = vadd.f32 %v2347, %v2531
      %v2674 = vadd.f32 %v2348, %v2534
      %v2675 = vadd.f32 %v2349, %v2539
      %v2676 = vadd.f32 %v2350, %v2542
      %v2677 = vadd.f32 %v2351, %v2547
      %v2678 = vadd.f32 %v2352, %v2550
      %v2679 = vadd.f32 %v2353, %v2555
      %v2680 = vadd.f32 %v2354, %v2558
      %v2681 = vadd.f32 %v2355, %v2563
      %v2682 = vadd.f32 %v2356, %v2566
      %v2683 = vadd.f32 %v2357, %v2571
      %v2684 = vadd.f32 %v2358, %v2574
      %v2685 = vadd.f32 %v2359, %v2579
      %v2686 = vadd.f32 %v2360, %v2582
      %v2687 = vadd.f32 %v2361, %v2587
      %v2688 = vadd.f32 %v2362, %v2590
      %v2689 = vadd.f32 %v2363, %v2595
      %v2690 = vadd.f32 %v2364, %v2598
      %v2691 = vadd.f32 %v2365, %v2603
      %v2692 = vadd.f32 %v2366, %v2606
      %v2693 = vadd.f32 %v2367, %v2611
      %v2694 = vadd.f32 %v2368, %v2614
      %v2695 = vadd.f32 %v2369, %v2619
      %v2696 = vadd.f32 %v2370, %v2622
      %v2697 = vadd.f32 %v2371, %v2627
      %v2698 = vadd.f32 %v2372, %v2630
      %v2699 = vadd.f32 %v2373, %v2635
      %v2700 = vadd.f32 %v2374, %v2638
      %v2701 = vadd.f32 %v2375, %v2643
      %v2702 = vadd.f32 %v2376, %v2646
      %v2703 = vadd.f32 %v2377, %v2651
      %v2704 = vadd.f32 %v2378, %v2654
      %v2705 = vadd.f32 %v2379, %v2659
      %v2706 = vadd.f32 %v2380, %v2662
      %v2707 = vadd.f32 %v2381, %v2667
      %v2708 = vadd.f32 %v2382, %v2670
      %v2709 = vld [vmem:[#allocation2 + $0x2b] sm:$0xff]
      %v2710 = vld [vmem:[#allocation2 + $0x33] sm:$0xff]
      %v2711 = vld [vmem:[#allocation2 + $0x3b] sm:$0xff]
      %v2712 = vld [vmem:[#allocation2 + $0x43] sm:$0xff]
      %v2713 = vld [vmem:[#allocation2 + $0x4b] sm:$0xff]
      %v2714 = vld [vmem:[#allocation2 + $0x53] sm:$0xff]
      %v2715 = vld [vmem:[#allocation2 + $0x5b] sm:$0xff]
      %v2716 = vld [vmem:[#allocation2 + $0x63] sm:$0xff]
      %v2717 = vld [vmem:[#allocation2 + $0x6b] sm:$0xff]
      %v2718 = vld [vmem:[#allocation2 + $0x73] sm:$0xff]
      %v2719 = vld [vmem:[#allocation2 + $0x7b] sm:$0xff]
      %v2720 = vld [vmem:[#allocation2 + $0x83] sm:$0xff]
      %v2721 = vld [vmem:[#allocation2 + $0x8b] sm:$0xff]
      %v2722 = vld [vmem:[#allocation2 + $0x93] sm:$0xff]
      %v2723 = vld [vmem:[#allocation2 + $0x9b] sm:$0xff]
      %v2724 = vld [vmem:[#allocation2 + $0xa3] sm:$0xff]
      %v2725 = vld [vmem:[#allocation2 + $0xab] sm:$0xff]
      %v2726 = vld [vmem:[#allocation2 + $0xb3] sm:$0xff]
      %v2727 = vld [vmem:[#allocation2 + $0xbb] sm:$0xff]
      %v2728 = vld [vmem:[#allocation2 + $0xc3] sm:$0xff]
      %v2729 = vld [vmem:[#allocation2 + $0xcb] sm:$0xff]
      %v2730 = vld [vmem:[#allocation2 + $0xd3] sm:$0xff]
      %v2731 = vld [vmem:[#allocation2 + $0xdb] sm:$0xff]
      %v2732 = vld [vmem:[#allocation2 + $0xe3] sm:$0xff]
      %v2733 = vld [vmem:[#allocation2 + $0xeb] sm:$0xff]
      %v2734 = vld [vmem:[#allocation2 + $0xf3] sm:$0xff]
      %v2735 = vld [vmem:[#allocation2 + $0xfb] sm:$0xff]
      %v2736 = vld [vmem:[#allocation2 + $0x103] sm:$0xff]
      %v2737 = vld [vmem:[#allocation2 + $0x10b] sm:$0xff]
      %v2738 = vld [vmem:[#allocation2 + $0x113] sm:$0xff]
      %v2739 = vld [vmem:[#allocation2 + $0x11b] sm:$0xff]
      %v2740 = vld [vmem:[#allocation2 + $0x123] sm:$0xff]
      %v2741 = vld [vmem:[#allocation2 + $0x12b] sm:$0xff]
      %v2742 = vld [vmem:[#allocation2 + $0x133] sm:$0xff]
      %v2743 = vld [vmem:[#allocation2 + $0x13b] sm:$0xff]
      %v2744 = vld [vmem:[#allocation2 + $0x143] sm:$0xff]
      %v2745 = vpack.c.bf16 %v2710, %v2709
      %v2746 = vpack.c.bf16 %v2712, %v2711
      %v2747 = vpack.c.bf16 %v2714, %v2713
      %v2748 = vpack.c.bf16 %v2716, %v2715
      %v2749 = vpack.c.bf16 %v2718, %v2717
      %v2750 = vpack.c.bf16 %v2720, %v2719
      %v2751 = vpack.c.bf16 %v2722, %v2721
      %v2752 = vpack.c.bf16 %v2724, %v2723
      %v2753 = vpack.c.bf16 %v2726, %v2725
      %v2754 = vpack.c.bf16 %v2728, %v2727
      %v2755 = vpack.c.bf16 %v2730, %v2729
      %v2756 = vpack.c.bf16 %v2732, %v2731
      %v2757 = vpack.c.bf16 %v2734, %v2733
      %v2758 = vpack.c.bf16 %v2736, %v2735
      %v2759 = vpack.c.bf16 %v2738, %v2737
      %v2760 = vpack.c.bf16 %v2740, %v2739
      %v2761 = vpack.c.bf16 %v2742, %v2741
      %v2762 = vpack.c.bf16 %v2744, %v2743
      %s2763 = scalar_lea.vmem %s4, 24
      %v2764 = vld [vmem:[%s2763] sm:$0xf]
      %v2766 = vsel %vm779, %v2745, 0
      %v2769 = vsel %vm779, %v2746, 0
      %v2772 = vsel %vm779, %v2747, 0
      %v2775 = vsel %vm779, %v2748, 0
      %v2778 = vsel %vm779, %v2749, 0
      %v2781 = vsel %vm779, %v2750, 0
      %v2784 = vsel %vm779, %v2751, 0
      %v2787 = vsel %vm779, %v2752, 0
      %v2790 = vsel %vm779, %v2753, 0
      %v2793 = vsel %vm779, %v2754, 0
      %v2796 = vsel %vm779, %v2755, 0
      %v2799 = vsel %vm779, %v2756, 0
      %v2802 = vsel %vm779, %v2757, 0
      %v2805 = vsel %vm779, %v2758, 0
      %v2808 = vsel %vm779, %v2759, 0
      %v2811 = vsel %vm779, %v2760, 0
      %v2814 = vsel %vm779, %v2761, 0
      %v2817 = vsel %vm779, %v2762, 0
      %v2820 = vsel %vm990, %v2764, 0
      %2822 = vmatprep.subr.bf16.mxu0 0
      %2823 = vmatpush1.bf16.msra.mxu0 0
      %2824 = vmatprep.subr.bf16.mxu0 0
      %2825 = vmatpush1.bf16.msra.mxu0 0
      %2826 = vmatprep.subr.bf16.mxu0 0
      %2827 = vmatpush1.bf16.msra.mxu0 0
      %2828 = vmatprep.subr.bf16.mxu0 0
      %2829 = vmatpush1.bf16.msra.mxu0 0
      %2830 = vmatprep.subr.bf16.mxu0 0
      %2831 = vmatpush1.bf16.msra.mxu0 0
      %2832 = vmatprep.subr.bf16.mxu0 0
      %2833 = vmatpush1.bf16.msra.mxu0 0
      %2834 = vmatprep.subr.bf16.mxu0 0
      %2835 = vmatpush1.bf16.msra.mxu0 0
      %2836 = vmatprep.subr.bf16.mxu0 0
      %2837 = vmatpush1.bf16.msra.mxu0 %v2820
      %2838 = vmatprep.subr.bf16.mxu0 0
      %2839 = vmatpush2.bf16.msra.mxu0 0
      %2840 = vmatprep.subr.bf16.mxu0 0
      %2841 = vmatpush2.bf16.msra.mxu0 0
      %2842 = vmatprep.subr.bf16.mxu0 0
      %2843 = vmatpush2.bf16.msra.mxu0 0
      %2844 = vmatprep.subr.bf16.mxu0 0
      %2845 = vmatpush2.bf16.msra.mxu0 0
      %2846 = vmatprep.subr.bf16.mxu0 0
      %2847 = vmatpush2.bf16.msra.mxu0 0
      %2848 = vmatprep.subr.bf16.mxu0 0
      %2849 = vmatpush2.bf16.msra.mxu0 0
      %2850 = vmatprep.subr.bf16.mxu0 0
      %2851 = vmatpush2.bf16.msra.mxu0 0
      %2852 = vmatprep.subr.bf16.mxu0 0
      %2853 = vmatpush2.bf16.msra.mxu0 0
      %2854 = vmatprep.mubr.bf16.mxu0 0
      %2855 = vmatmul.mubr.bf16.gmra.mxu0 %v2766
      %v2856 = vpop.f32.mrf.mxu0
      %v2857 = vadd.f32 0.0, %v2856
      %v2858 = vpop.f32.mrf.mxu0
      %v2859 = vpop.f32.mrf.mxu0
      %v2860 = vadd.f32 0.0, %v2859
      %v2861 = vpop.f32.mrf.mxu0
      %2862 = vmatprep.mubr.bf16.mxu0 0
      %2863 = vmatmul.mubr.bf16.gmra.mxu0 %v2769
      %v2864 = vpop.f32.mrf.mxu0
      %v2865 = vadd.f32 0.0, %v2864
      %v2866 = vpop.f32.mrf.mxu0
      %v2867 = vpop.f32.mrf.mxu0
      %v2868 = vadd.f32 0.0, %v2867
      %v2869 = vpop.f32.mrf.mxu0
      %2870 = vmatprep.mubr.bf16.mxu0 0
      %2871 = vmatmul.mubr.bf16.gmra.mxu0 %v2772
      %v2872 = vpop.f32.mrf.mxu0
      %v2873 = vadd.f32 0.0, %v2872
      %v2874 = vpop.f32.mrf.mxu0
      %v2875 = vpop.f32.mrf.mxu0
      %v2876 = vadd.f32 0.0, %v2875
      %v2877 = vpop.f32.mrf.mxu0
      %2878 = vmatprep.mubr.bf16.mxu0 0
      %2879 = vmatmul.mubr.bf16.gmra.mxu0 %v2775
      %v2880 = vpop.f32.mrf.mxu0
      %v2881 = vadd.f32 0.0, %v2880
      %v2882 = vpop.f32.mrf.mxu0
      %v2883 = vpop.f32.mrf.mxu0
      %v2884 = vadd.f32 0.0, %v2883
      %v2885 = vpop.f32.mrf.mxu0
      %2886 = vmatprep.mubr.bf16.mxu0 0
      %2887 = vmatmul.mubr.bf16.gmra.mxu0 %v2778
      %v2888 = vpop.f32.mrf.mxu0
      %v2889 = vadd.f32 0.0, %v2888
      %v2890 = vpop.f32.mrf.mxu0
      %v2891 = vpop.f32.mrf.mxu0
      %v2892 = vadd.f32 0.0, %v2891
      %v2893 = vpop.f32.mrf.mxu0
      %2894 = vmatprep.mubr.bf16.mxu0 0
      %2895 = vmatmul.mubr.bf16.gmra.mxu0 %v2781
      %v2896 = vpop.f32.mrf.mxu0
      %v2897 = vadd.f32 0.0, %v2896
      %v2898 = vpop.f32.mrf.mxu0
      %v2899 = vpop.f32.mrf.mxu0
      %v2900 = vadd.f32 0.0, %v2899
      %v2901 = vpop.f32.mrf.mxu0
      %2902 = vmatprep.mubr.bf16.mxu0 0
      %2903 = vmatmul.mubr.bf16.gmra.mxu0 %v2784
      %v2904 = vpop.f32.mrf.mxu0
      %v2905 = vadd.f32 0.0, %v2904
      %v2906 = vpop.f32.mrf.mxu0
      %v2907 = vpop.f32.mrf.mxu0
      %v2908 = vadd.f32 0.0, %v2907
      %v2909 = vpop.f32.mrf.mxu0
      %2910 = vmatprep.mubr.bf16.mxu0 0
      %2911 = vmatmul.mubr.bf16.gmra.mxu0 %v2787
      %v2912 = vpop.f32.mrf.mxu0
      %v2913 = vadd.f32 0.0, %v2912
      %v2914 = vpop.f32.mrf.mxu0
      %v2915 = vpop.f32.mrf.mxu0
      %v2916 = vadd.f32 0.0, %v2915
      %v2917 = vpop.f32.mrf.mxu0
      %2918 = vmatprep.mubr.bf16.mxu0 0
      %2919 = vmatmul.mubr.bf16.gmra.mxu0 %v2790
      %v2920 = vpop.f32.mrf.mxu0
      %v2921 = vadd.f32 0.0, %v2920
      %v2922 = vpop.f32.mrf.mxu0
      %v2923 = vpop.f32.mrf.mxu0
      %v2924 = vadd.f32 0.0, %v2923
      %v2925 = vpop.f32.mrf.mxu0
      %2926 = vmatprep.mubr.bf16.mxu0 0
      %2927 = vmatmul.mubr.bf16.gmra.mxu0 %v2793
      %v2928 = vpop.f32.mrf.mxu0
      %v2929 = vadd.f32 0.0, %v2928
      %v2930 = vpop.f32.mrf.mxu0
      %v2931 = vpop.f32.mrf.mxu0
      %v2932 = vadd.f32 0.0, %v2931
      %v2933 = vpop.f32.mrf.mxu0
      %2934 = vmatprep.mubr.bf16.mxu0 0
      %2935 = vmatmul.mubr.bf16.gmra.mxu0 %v2796
      %v2936 = vpop.f32.mrf.mxu0
      %v2937 = vadd.f32 0.0, %v2936
      %v2938 = vpop.f32.mrf.mxu0
      %v2939 = vpop.f32.mrf.mxu0
      %v2940 = vadd.f32 0.0, %v2939
      %v2941 = vpop.f32.mrf.mxu0
      %2942 = vmatprep.mubr.bf16.mxu0 0
      %2943 = vmatmul.mubr.bf16.gmra.mxu0 %v2799
      %v2944 = vpop.f32.mrf.mxu0
      %v2945 = vadd.f32 0.0, %v2944
      %v2946 = vpop.f32.mrf.mxu0
      %v2947 = vpop.f32.mrf.mxu0
      %v2948 = vadd.f32 0.0, %v2947
      %v2949 = vpop.f32.mrf.mxu0
      %2950 = vmatprep.mubr.bf16.mxu0 0
      %2951 = vmatmul.mubr.bf16.gmra.mxu0 %v2802
      %v2952 = vpop.f32.mrf.mxu0
      %v2953 = vadd.f32 0.0, %v2952
      %v2954 = vpop.f32.mrf.mxu0
      %v2955 = vpop.f32.mrf.mxu0
      %v2956 = vadd.f32 0.0, %v2955
      %v2957 = vpop.f32.mrf.mxu0
      %2958 = vmatprep.mubr.bf16.mxu0 0
      %2959 = vmatmul.mubr.bf16.gmra.mxu0 %v2805
      %v2960 = vpop.f32.mrf.mxu0
      %v2961 = vadd.f32 0.0, %v2960
      %v2962 = vpop.f32.mrf.mxu0
      %v2963 = vpop.f32.mrf.mxu0
      %v2964 = vadd.f32 0.0, %v2963
      %v2965 = vpop.f32.mrf.mxu0
      %2966 = vmatprep.mubr.bf16.mxu0 0
      %2967 = vmatmul.mubr.bf16.gmra.mxu0 %v2808
      %v2968 = vpop.f32.mrf.mxu0
      %v2969 = vadd.f32 0.0, %v2968
      %v2970 = vpop.f32.mrf.mxu0
      %v2971 = vpop.f32.mrf.mxu0
      %v2972 = vadd.f32 0.0, %v2971
      %v2973 = vpop.f32.mrf.mxu0
      %2974 = vmatprep.mubr.bf16.mxu0 0
      %2975 = vmatmul.mubr.bf16.gmra.mxu0 %v2811
      %v2976 = vpop.f32.mrf.mxu0
      %v2977 = vadd.f32 0.0, %v2976
      %v2978 = vpop.f32.mrf.mxu0
      %v2979 = vpop.f32.mrf.mxu0
      %v2980 = vadd.f32 0.0, %v2979
      %v2981 = vpop.f32.mrf.mxu0
      %2982 = vmatprep.mubr.bf16.mxu0 0
      %2983 = vmatmul.mubr.bf16.gmra.mxu0 %v2814
      %v2984 = vpop.f32.mrf.mxu0
      %v2985 = vadd.f32 0.0, %v2984
      %v2986 = vpop.f32.mrf.mxu0
      %v2987 = vpop.f32.mrf.mxu0
      %v2988 = vadd.f32 0.0, %v2987
      %v2989 = vpop.f32.mrf.mxu0
      %2990 = vmatprep.mubr.bf16.mxu0 0
      %2991 = vmatmul.mubr.bf16.gmra.mxu0 %v2817
      %v2992 = vpop.f32.mrf.mxu0
      %v2993 = vadd.f32 0.0, %v2992
      %v2994 = vpop.f32.mrf.mxu0
      %v2995 = vpop.f32.mrf.mxu0
      %v2996 = vadd.f32 0.0, %v2995
      %v2997 = vpop.f32.mrf.mxu0
      %2998 = vdwg.mxu0
      %v2999 = vadd.f32 %v2673, %v2857
      %v3000 = vadd.f32 %v2674, %v2860
      %v3001 = vadd.f32 %v2675, %v2865
      %v3002 = vadd.f32 %v2676, %v2868
      %v3003 = vadd.f32 %v2677, %v2873
      %v3004 = vadd.f32 %v2678, %v2876
      %v3005 = vadd.f32 %v2679, %v2881
      %v3006 = vadd.f32 %v2680, %v2884
      %v3007 = vadd.f32 %v2681, %v2889
      %v3008 = vadd.f32 %v2682, %v2892
      %v3009 = vadd.f32 %v2683, %v2897
      %v3010 = vadd.f32 %v2684, %v2900
      %v3011 = vadd.f32 %v2685, %v2905
      %v3012 = vadd.f32 %v2686, %v2908
      %v3013 = vadd.f32 %v2687, %v2913
      %v3014 = vadd.f32 %v2688, %v2916
      %v3015 = vadd.f32 %v2689, %v2921
      %v3016 = vadd.f32 %v2690, %v2924
      %v3017 = vadd.f32 %v2691, %v2929
      %v3018 = vadd.f32 %v2692, %v2932
      %v3019 = vadd.f32 %v2693, %v2937
      %v3020 = vadd.f32 %v2694, %v2940
      %v3021 = vadd.f32 %v2695, %v2945
      %v3022 = vadd.f32 %v2696, %v2948
      %v3023 = vadd.f32 %v2697, %v2953
      %v3024 = vadd.f32 %v2698, %v2956
      %v3025 = vadd.f32 %v2699, %v2961
      %v3026 = vadd.f32 %v2700, %v2964
      %v3027 = vadd.f32 %v2701, %v2969
      %v3028 = vadd.f32 %v2702, %v2972
      %v3029 = vadd.f32 %v2703, %v2977
      %v3030 = vadd.f32 %v2704, %v2980
      %v3031 = vadd.f32 %v2705, %v2985
      %v3032 = vadd.f32 %v2706, %v2988
      %v3033 = vadd.f32 %v2707, %v2993
      %v3034 = vadd.f32 %v2708, %v2996
      %v3035 = vld [vmem:[#allocation2 + $0x2c] sm:$0xff]
      %v3036 = vld [vmem:[#allocation2 + $0x34] sm:$0xff]
      %v3037 = vld [vmem:[#allocation2 + $0x3c] sm:$0xff]
      %v3038 = vld [vmem:[#allocation2 + $0x44] sm:$0xff]
      %v3039 = vld [vmem:[#allocation2 + $0x4c] sm:$0xff]
      %v3040 = vld [vmem:[#allocation2 + $0x54] sm:$0xff]
      %v3041 = vld [vmem:[#allocation2 + $0x5c] sm:$0xff]
      %v3042 = vld [vmem:[#allocation2 + $0x64] sm:$0xff]
      %v3043 = vld [vmem:[#allocation2 + $0x6c] sm:$0xff]
      %v3044 = vld [vmem:[#allocation2 + $0x74] sm:$0xff]
      %v3045 = vld [vmem:[#allocation2 + $0x7c] sm:$0xff]
      %v3046 = vld [vmem:[#allocation2 + $0x84] sm:$0xff]
      %v3047 = vld [vmem:[#allocation2 + $0x8c] sm:$0xff]
      %v3048 = vld [vmem:[#allocation2 + $0x94] sm:$0xff]
      %v3049 = vld [vmem:[#allocation2 + $0x9c] sm:$0xff]
      %v3050 = vld [vmem:[#allocation2 + $0xa4] sm:$0xff]
      %v3051 = vld [vmem:[#allocation2 + $0xac] sm:$0xff]
      %v3052 = vld [vmem:[#allocation2 + $0xb4] sm:$0xff]
      %v3053 = vld [vmem:[#allocation2 + $0xbc] sm:$0xff]
      %v3054 = vld [vmem:[#allocation2 + $0xc4] sm:$0xff]
      %v3055 = vld [vmem:[#allocation2 + $0xcc] sm:$0xff]
      %v3056 = vld [vmem:[#allocation2 + $0xd4] sm:$0xff]
      %v3057 = vld [vmem:[#allocation2 + $0xdc] sm:$0xff]
      %v3058 = vld [vmem:[#allocation2 + $0xe4] sm:$0xff]
      %v3059 = vld [vmem:[#allocation2 + $0xec] sm:$0xff]
      %v3060 = vld [vmem:[#allocation2 + $0xf4] sm:$0xff]
      %v3061 = vld [vmem:[#allocation2 + $0xfc] sm:$0xff]
      %v3062 = vld [vmem:[#allocation2 + $0x104] sm:$0xff]
      %v3063 = vld [vmem:[#allocation2 + $0x10c] sm:$0xff]
      %v3064 = vld [vmem:[#allocation2 + $0x114] sm:$0xff]
      %v3065 = vld [vmem:[#allocation2 + $0x11c] sm:$0xff]
      %v3066 = vld [vmem:[#allocation2 + $0x124] sm:$0xff]
      %v3067 = vld [vmem:[#allocation2 + $0x12c] sm:$0xff]
      %v3068 = vld [vmem:[#allocation2 + $0x134] sm:$0xff]
      %v3069 = vld [vmem:[#allocation2 + $0x13c] sm:$0xff]
      %v3070 = vld [vmem:[#allocation2 + $0x144] sm:$0xff]
      %v3071 = vpack.c.bf16 %v3036, %v3035
      %v3072 = vpack.c.bf16 %v3038, %v3037
      %v3073 = vpack.c.bf16 %v3040, %v3039
      %v3074 = vpack.c.bf16 %v3042, %v3041
      %v3075 = vpack.c.bf16 %v3044, %v3043
      %v3076 = vpack.c.bf16 %v3046, %v3045
      %v3077 = vpack.c.bf16 %v3048, %v3047
      %v3078 = vpack.c.bf16 %v3050, %v3049
      %v3079 = vpack.c.bf16 %v3052, %v3051
      %v3080 = vpack.c.bf16 %v3054, %v3053
      %v3081 = vpack.c.bf16 %v3056, %v3055
      %v3082 = vpack.c.bf16 %v3058, %v3057
      %v3083 = vpack.c.bf16 %v3060, %v3059
      %v3084 = vpack.c.bf16 %v3062, %v3061
      %v3085 = vpack.c.bf16 %v3064, %v3063
      %v3086 = vpack.c.bf16 %v3066, %v3065
      %v3087 = vpack.c.bf16 %v3068, %v3067
      %v3088 = vpack.c.bf16 %v3070, %v3069
      %s3089 = scalar_lea.vmem %s4, 28
      %v3090 = vld [vmem:[%s3089] sm:$0xf]
      %v3092 = vsel %vm779, %v3071, 0
      %v3095 = vsel %vm779, %v3072, 0
      %v3098 = vsel %vm779, %v3073, 0
      %v3101 = vsel %vm779, %v3074, 0
      %v3104 = vsel %vm779, %v3075, 0
      %v3107 = vsel %vm779, %v3076, 0
      %v3110 = vsel %vm779, %v3077, 0
      %v3113 = vsel %vm779, %v3078, 0
      %v3116 = vsel %vm779, %v3079, 0
      %v3119 = vsel %vm779, %v3080, 0
      %v3122 = vsel %vm779, %v3081, 0
      %v3125 = vsel %vm779, %v3082, 0
      %v3128 = vsel %vm779, %v3083, 0
      %v3131 = vsel %vm779, %v3084, 0
      %v3134 = vsel %vm779, %v3085, 0
      %v3137 = vsel %vm779, %v3086, 0
      %v3140 = vsel %vm779, %v3087, 0
      %v3143 = vsel %vm779, %v3088, 0
      %v3146 = vsel %vm990, %v3090, 0
      %3148 = vmatprep.subr.bf16.mxu0 0
      %3149 = vmatpush1.bf16.msra.mxu0 0
      %3150 = vmatprep.subr.bf16.mxu0 0
      %3151 = vmatpush1.bf16.msra.mxu0 0
      %3152 = vmatprep.subr.bf16.mxu0 0
      %3153 = vmatpush1.bf16.msra.mxu0 0
      %3154 = vmatprep.subr.bf16.mxu0 0
      %3155 = vmatpush1.bf16.msra.mxu0 0
      %3156 = vmatprep.subr.bf16.mxu0 0
      %3157 = vmatpush1.bf16.msra.mxu0 0
      %3158 = vmatprep.subr.bf16.mxu0 0
      %3159 = vmatpush1.bf16.msra.mxu0 0
      %3160 = vmatprep.subr.bf16.mxu0 0
      %3161 = vmatpush1.bf16.msra.mxu0 0
      %3162 = vmatprep.subr.bf16.mxu0 0
      %3163 = vmatpush1.bf16.msra.mxu0 %v3146
      %3164 = vmatprep.subr.bf16.mxu0 0
      %3165 = vmatpush2.bf16.msra.mxu0 0
      %3166 = vmatprep.subr.bf16.mxu0 0
      %3167 = vmatpush2.bf16.msra.mxu0 0
      %3168 = vmatprep.subr.bf16.mxu0 0
      %3169 = vmatpush2.bf16.msra.mxu0 0
      %3170 = vmatprep.subr.bf16.mxu0 0
      %3171 = vmatpush2.bf16.msra.mxu0 0
      %3172 = vmatprep.subr.bf16.mxu0 0
      %3173 = vmatpush2.bf16.msra.mxu0 0
      %3174 = vmatprep.subr.bf16.mxu0 0
      %3175 = vmatpush2.bf16.msra.mxu0 0
      %3176 = vmatprep.subr.bf16.mxu0 0
      %3177 = vmatpush2.bf16.msra.mxu0 0
      %3178 = vmatprep.subr.bf16.mxu0 0
      %3179 = vmatpush2.bf16.msra.mxu0 0
      %3180 = vmatprep.mubr.bf16.mxu0 0
      %3181 = vmatmul.mubr.bf16.gmra.mxu0 %v3092
      %v3182 = vpop.f32.mrf.mxu0
      %v3183 = vadd.f32 0.0, %v3182
      %v3184 = vpop.f32.mrf.mxu0
      %v3185 = vpop.f32.mrf.mxu0
      %v3186 = vadd.f32 0.0, %v3185
      %v3187 = vpop.f32.mrf.mxu0
      %3188 = vmatprep.mubr.bf16.mxu0 0
      %3189 = vmatmul.mubr.bf16.gmra.mxu0 %v3095
      %v3190 = vpop.f32.mrf.mxu0
      %v3191 = vadd.f32 0.0, %v3190
      %v3192 = vpop.f32.mrf.mxu0
      %v3193 = vpop.f32.mrf.mxu0
      %v3194 = vadd.f32 0.0, %v3193
      %v3195 = vpop.f32.mrf.mxu0
      %3196 = vmatprep.mubr.bf16.mxu0 0
      %3197 = vmatmul.mubr.bf16.gmra.mxu0 %v3098
      %v3198 = vpop.f32.mrf.mxu0
      %v3199 = vadd.f32 0.0, %v3198
      %v3200 = vpop.f32.mrf.mxu0
      %v3201 = vpop.f32.mrf.mxu0
      %v3202 = vadd.f32 0.0, %v3201
      %v3203 = vpop.f32.mrf.mxu0
      %3204 = vmatprep.mubr.bf16.mxu0 0
      %3205 = vmatmul.mubr.bf16.gmra.mxu0 %v3101
      %v3206 = vpop.f32.mrf.mxu0
      %v3207 = vadd.f32 0.0, %v3206
      %v3208 = vpop.f32.mrf.mxu0
      %v3209 = vpop.f32.mrf.mxu0
      %v3210 = vadd.f32 0.0, %v3209
      %v3211 = vpop.f32.mrf.mxu0
      %3212 = vmatprep.mubr.bf16.mxu0 0
      %3213 = vmatmul.mubr.bf16.gmra.mxu0 %v3104
      %v3214 = vpop.f32.mrf.mxu0
      %v3215 = vadd.f32 0.0, %v3214
      %v3216 = vpop.f32.mrf.mxu0
      %v3217 = vpop.f32.mrf.mxu0
      %v3218 = vadd.f32 0.0, %v3217
      %v3219 = vpop.f32.mrf.mxu0
      %3220 = vmatprep.mubr.bf16.mxu0 0
      %3221 = vmatmul.mubr.bf16.gmra.mxu0 %v3107
      %v3222 = vpop.f32.mrf.mxu0
      %v3223 = vadd.f32 0.0, %v3222
      %v3224 = vpop.f32.mrf.mxu0
      %v3225 = vpop.f32.mrf.mxu0
      %v3226 = vadd.f32 0.0, %v3225
      %v3227 = vpop.f32.mrf.mxu0
      %3228 = vmatprep.mubr.bf16.mxu0 0
      %3229 = vmatmul.mubr.bf16.gmra.mxu0 %v3110
      %v3230 = vpop.f32.mrf.mxu0
      %v3231 = vadd.f32 0.0, %v3230
      %v3232 = vpop.f32.mrf.mxu0
      %v3233 = vpop.f32.mrf.mxu0
      %v3234 = vadd.f32 0.0, %v3233
      %v3235 = vpop.f32.mrf.mxu0
      %3236 = vmatprep.mubr.bf16.mxu0 0
      %3237 = vmatmul.mubr.bf16.gmra.mxu0 %v3113
      %v3238 = vpop.f32.mrf.mxu0
      %v3239 = vadd.f32 0.0, %v3238
      %v3240 = vpop.f32.mrf.mxu0
      %v3241 = vpop.f32.mrf.mxu0
      %v3242 = vadd.f32 0.0, %v3241
      %v3243 = vpop.f32.mrf.mxu0
      %3244 = vmatprep.mubr.bf16.mxu0 0
      %3245 = vmatmul.mubr.bf16.gmra.mxu0 %v3116
      %v3246 = vpop.f32.mrf.mxu0
      %v3247 = vadd.f32 0.0, %v3246
      %v3248 = vpop.f32.mrf.mxu0
      %v3249 = vpop.f32.mrf.mxu0
      %v3250 = vadd.f32 0.0, %v3249
      %v3251 = vpop.f32.mrf.mxu0
      %3252 = vmatprep.mubr.bf16.mxu0 0
      %3253 = vmatmul.mubr.bf16.gmra.mxu0 %v3119
      %v3254 = vpop.f32.mrf.mxu0
      %v3255 = vadd.f32 0.0, %v3254
      %v3256 = vpop.f32.mrf.mxu0
      %v3257 = vpop.f32.mrf.mxu0
      %v3258 = vadd.f32 0.0, %v3257
      %v3259 = vpop.f32.mrf.mxu0
      %3260 = vmatprep.mubr.bf16.mxu0 0
      %3261 = vmatmul.mubr.bf16.gmra.mxu0 %v3122
      %v3262 = vpop.f32.mrf.mxu0
      %v3263 = vadd.f32 0.0, %v3262
      %v3264 = vpop.f32.mrf.mxu0
      %v3265 = vpop.f32.mrf.mxu0
      %v3266 = vadd.f32 0.0, %v3265
      %v3267 = vpop.f32.mrf.mxu0
      %3268 = vmatprep.mubr.bf16.mxu0 0
      %3269 = vmatmul.mubr.bf16.gmra.mxu0 %v3125
      %v3270 = vpop.f32.mrf.mxu0
      %v3271 = vadd.f32 0.0, %v3270
      %v3272 = vpop.f32.mrf.mxu0
      %v3273 = vpop.f32.mrf.mxu0
      %v3274 = vadd.f32 0.0, %v3273
      %v3275 = vpop.f32.mrf.mxu0
      %3276 = vmatprep.mubr.bf16.mxu0 0
      %3277 = vmatmul.mubr.bf16.gmra.mxu0 %v3128
      %v3278 = vpop.f32.mrf.mxu0
      %v3279 = vadd.f32 0.0, %v3278
      %v3280 = vpop.f32.mrf.mxu0
      %v3281 = vpop.f32.mrf.mxu0
      %v3282 = vadd.f32 0.0, %v3281
      %v3283 = vpop.f32.mrf.mxu0
      %3284 = vmatprep.mubr.bf16.mxu0 0
      %3285 = vmatmul.mubr.bf16.gmra.mxu0 %v3131
      %v3286 = vpop.f32.mrf.mxu0
      %v3287 = vadd.f32 0.0, %v3286
      %v3288 = vpop.f32.mrf.mxu0
      %v3289 = vpop.f32.mrf.mxu0
      %v3290 = vadd.f32 0.0, %v3289
      %v3291 = vpop.f32.mrf.mxu0
      %3292 = vmatprep.mubr.bf16.mxu0 0
      %3293 = vmatmul.mubr.bf16.gmra.mxu0 %v3134
      %v3294 = vpop.f32.mrf.mxu0
      %v3295 = vadd.f32 0.0, %v3294
      %v3296 = vpop.f32.mrf.mxu0
      %v3297 = vpop.f32.mrf.mxu0
      %v3298 = vadd.f32 0.0, %v3297
      %v3299 = vpop.f32.mrf.mxu0
      %3300 = vmatprep.mubr.bf16.mxu0 0
      %3301 = vmatmul.mubr.bf16.gmra.mxu0 %v3137
      %v3302 = vpop.f32.mrf.mxu0
      %v3303 = vadd.f32 0.0, %v3302
      %v3304 = vpop.f32.mrf.mxu0
      %v3305 = vpop.f32.mrf.mxu0
      %v3306 = vadd.f32 0.0, %v3305
      %v3307 = vpop.f32.mrf.mxu0
      %3308 = vmatprep.mubr.bf16.mxu0 0
      %3309 = vmatmul.mubr.bf16.gmra.mxu0 %v3140
      %v3310 = vpop.f32.mrf.mxu0
      %v3311 = vadd.f32 0.0, %v3310
      %v3312 = vpop.f32.mrf.mxu0
      %v3313 = vpop.f32.mrf.mxu0
      %v3314 = vadd.f32 0.0, %v3313
      %v3315 = vpop.f32.mrf.mxu0
      %3316 = vmatprep.mubr.bf16.mxu0 0
      %3317 = vmatmul.mubr.bf16.gmra.mxu0 %v3143
      %v3318 = vpop.f32.mrf.mxu0
      %v3319 = vadd.f32 0.0, %v3318
      %v3320 = vpop.f32.mrf.mxu0
      %v3321 = vpop.f32.mrf.mxu0
      %v3322 = vadd.f32 0.0, %v3321
      %v3323 = vpop.f32.mrf.mxu0
      %3324 = vdwg.mxu0
      %v3325 = vadd.f32 %v2999, %v3183
      %v3326 = vadd.f32 %v3000, %v3186
      %v3327 = vadd.f32 %v3001, %v3191
      %v3328 = vadd.f32 %v3002, %v3194
      %v3329 = vadd.f32 %v3003, %v3199
      %v3330 = vadd.f32 %v3004, %v3202
      %v3331 = vadd.f32 %v3005, %v3207
      %v3332 = vadd.f32 %v3006, %v3210
      %v3333 = vadd.f32 %v3007, %v3215
      %v3334 = vadd.f32 %v3008, %v3218
      %v3335 = vadd.f32 %v3009, %v3223
      %v3336 = vadd.f32 %v3010, %v3226
      %v3337 = vadd.f32 %v3011, %v3231
      %v3338 = vadd.f32 %v3012, %v3234
      %v3339 = vadd.f32 %v3013, %v3239
      %v3340 = vadd.f32 %v3014, %v3242
      %v3341 = vadd.f32 %v3015, %v3247
      %v3342 = vadd.f32 %v3016, %v3250
      %v3343 = vadd.f32 %v3017, %v3255
      %v3344 = vadd.f32 %v3018, %v3258
      %v3345 = vadd.f32 %v3019, %v3263
      %v3346 = vadd.f32 %v3020, %v3266
      %v3347 = vadd.f32 %v3021, %v3271
      %v3348 = vadd.f32 %v3022, %v3274
      %v3349 = vadd.f32 %v3023, %v3279
      %v3350 = vadd.f32 %v3024, %v3282
      %v3351 = vadd.f32 %v3025, %v3287
      %v3352 = vadd.f32 %v3026, %v3290
      %v3353 = vadd.f32 %v3027, %v3295
      %v3354 = vadd.f32 %v3028, %v3298
      %v3355 = vadd.f32 %v3029, %v3303
      %v3356 = vadd.f32 %v3030, %v3306
      %v3357 = vadd.f32 %v3031, %v3311
      %v3358 = vadd.f32 %v3032, %v3314
      %v3359 = vadd.f32 %v3033, %v3319
      %v3360 = vadd.f32 %v3034, %v3322
      %v3361 = vld [vmem:[#allocation2 + $0x2d] sm:$0xff]
      %v3362 = vld [vmem:[#allocation2 + $0x35] sm:$0xff]
      %v3363 = vld [vmem:[#allocation2 + $0x3d] sm:$0xff]
      %v3364 = vld [vmem:[#allocation2 + $0x45] sm:$0xff]
      %v3365 = vld [vmem:[#allocation2 + $0x4d] sm:$0xff]
      %v3366 = vld [vmem:[#allocation2 + $0x55] sm:$0xff]
      %v3367 = vld [vmem:[#allocation2 + $0x5d] sm:$0xff]
      %v3368 = vld [vmem:[#allocation2 + $0x65] sm:$0xff]
      %v3369 = vld [vmem:[#allocation2 + $0x6d] sm:$0xff]
      %v3370 = vld [vmem:[#allocation2 + $0x75] sm:$0xff]
      %v3371 = vld [vmem:[#allocation2 + $0x7d] sm:$0xff]
      %v3372 = vld [vmem:[#allocation2 + $0x85] sm:$0xff]
      %v3373 = vld [vmem:[#allocation2 + $0x8d] sm:$0xff]
      %v3374 = vld [vmem:[#allocation2 + $0x95] sm:$0xff]
      %v3375 = vld [vmem:[#allocation2 + $0x9d] sm:$0xff]
      %v3376 = vld [vmem:[#allocation2 + $0xa5] sm:$0xff]
      %v3377 = vld [vmem:[#allocation2 + $0xad] sm:$0xff]
      %v3378 = vld [vmem:[#allocation2 + $0xb5] sm:$0xff]
      %v3379 = vld [vmem:[#allocation2 + $0xbd] sm:$0xff]
      %v3380 = vld [vmem:[#allocation2 + $0xc5] sm:$0xff]
      %v3381 = vld [vmem:[#allocation2 + $0xcd] sm:$0xff]
      %v3382 = vld [vmem:[#allocation2 + $0xd5] sm:$0xff]
      %v3383 = vld [vmem:[#allocation2 + $0xdd] sm:$0xff]
      %v3384 = vld [vmem:[#allocation2 + $0xe5] sm:$0xff]
      %v3385 = vld [vmem:[#allocation2 + $0xed] sm:$0xff]
      %v3386 = vld [vmem:[#allocation2 + $0xf5] sm:$0xff]
      %v3387 = vld [vmem:[#allocation2 + $0xfd] sm:$0xff]
      %v3388 = vld [vmem:[#allocation2 + $0x105] sm:$0xff]
      %v3389 = vld [vmem:[#allocation2 + $0x10d] sm:$0xff]
      %v3390 = vld [vmem:[#allocation2 + $0x115] sm:$0xff]
      %v3391 = vld [vmem:[#allocation2 + $0x11d] sm:$0xff]
      %v3392 = vld [vmem:[#allocation2 + $0x125] sm:$0xff]
      %v3393 = vld [vmem:[#allocation2 + $0x12d] sm:$0xff]
      %v3394 = vld [vmem:[#allocation2 + $0x135] sm:$0xff]
      %v3395 = vld [vmem:[#allocation2 + $0x13d] sm:$0xff]
      %v3396 = vld [vmem:[#allocation2 + $0x145] sm:$0xff]
      %v3397 = vpack.c.bf16 %v3362, %v3361
      %v3398 = vpack.c.bf16 %v3364, %v3363
      %v3399 = vpack.c.bf16 %v3366, %v3365
      %v3400 = vpack.c.bf16 %v3368, %v3367
      %v3401 = vpack.c.bf16 %v3370, %v3369
      %v3402 = vpack.c.bf16 %v3372, %v3371
      %v3403 = vpack.c.bf16 %v3374, %v3373
      %v3404 = vpack.c.bf16 %v3376, %v3375
      %v3405 = vpack.c.bf16 %v3378, %v3377
      %v3406 = vpack.c.bf16 %v3380, %v3379
      %v3407 = vpack.c.bf16 %v3382, %v3381
      %v3408 = vpack.c.bf16 %v3384, %v3383
      %v3409 = vpack.c.bf16 %v3386, %v3385
      %v3410 = vpack.c.bf16 %v3388, %v3387
      %v3411 = vpack.c.bf16 %v3390, %v3389
      %v3412 = vpack.c.bf16 %v3392, %v3391
      %v3413 = vpack.c.bf16 %v3394, %v3393
      %v3414 = vpack.c.bf16 %v3396, %v3395
      %s3415 = scalar_lea.vmem %s4, 32
      %v3416 = vld [vmem:[%s3415] sm:$0xf]
      %v3418 = vsel %vm779, %v3397, 0
      %v3421 = vsel %vm779, %v3398, 0
      %v3424 = vsel %vm779, %v3399, 0
      %v3427 = vsel %vm779, %v3400, 0
      %v3430 = vsel %vm779, %v3401, 0
      %v3433 = vsel %vm779, %v3402, 0
      %v3436 = vsel %vm779, %v3403, 0
      %v3439 = vsel %vm779, %v3404, 0
      %v3442 = vsel %vm779, %v3405, 0
      %v3445 = vsel %vm779, %v3406, 0
      %v3448 = vsel %vm779, %v3407, 0
      %v3451 = vsel %vm779, %v3408, 0
      %v3454 = vsel %vm779, %v3409, 0
      %v3457 = vsel %vm779, %v3410, 0
      %v3460 = vsel %vm779, %v3411, 0
      %v3463 = vsel %vm779, %v3412, 0
      %v3466 = vsel %vm779, %v3413, 0
      %v3469 = vsel %vm779, %v3414, 0
      %v3472 = vsel %vm990, %v3416, 0
      %3474 = vmatprep.subr.bf16.mxu0 0
      %3475 = vmatpush1.bf16.msra.mxu0 0
      %3476 = vmatprep.subr.bf16.mxu0 0
      %3477 = vmatpush1.bf16.msra.mxu0 0
      %3478 = vmatprep.subr.bf16.mxu0 0
      %3479 = vmatpush1.bf16.msra.mxu0 0
      %3480 = vmatprep.subr.bf16.mxu0 0
      %3481 = vmatpush1.bf16.msra.mxu0 0
      %3482 = vmatprep.subr.bf16.mxu0 0
      %3483 = vmatpush1.bf16.msra.mxu0 0
      %3484 = vmatprep.subr.bf16.mxu0 0
      %3485 = vmatpush1.bf16.msra.mxu0 0
      %3486 = vmatprep.subr.bf16.mxu0 0
      %3487 = vmatpush1.bf16.msra.mxu0 0
      %3488 = vmatprep.subr.bf16.mxu0 0
      %3489 = vmatpush1.bf16.msra.mxu0 %v3472
      %3490 = vmatprep.subr.bf16.mxu0 0
      %3491 = vmatpush2.bf16.msra.mxu0 0
      %3492 = vmatprep.subr.bf16.mxu0 0
      %3493 = vmatpush2.bf16.msra.mxu0 0
      %3494 = vmatprep.subr.bf16.mxu0 0
      %3495 = vmatpush2.bf16.msra.mxu0 0
      %3496 = vmatprep.subr.bf16.mxu0 0
      %3497 = vmatpush2.bf16.msra.mxu0 0
      %3498 = vmatprep.subr.bf16.mxu0 0
      %3499 = vmatpush2.bf16.msra.mxu0 0
      %3500 = vmatprep.subr.bf16.mxu0 0
      %3501 = vmatpush2.bf16.msra.mxu0 0
      %3502 = vmatprep.subr.bf16.mxu0 0
      %3503 = vmatpush2.bf16.msra.mxu0 0
      %3504 = vmatprep.subr.bf16.mxu0 0
      %3505 = vmatpush2.bf16.msra.mxu0 0
      %3506 = vmatprep.mubr.bf16.mxu0 0
      %3507 = vmatmul.mubr.bf16.gmra.mxu0 %v3418
      %v3508 = vpop.f32.mrf.mxu0
      %v3509 = vadd.f32 0.0, %v3508
      %v3510 = vpop.f32.mrf.mxu0
      %v3511 = vpop.f32.mrf.mxu0
      %v3512 = vadd.f32 0.0, %v3511
      %v3513 = vpop.f32.mrf.mxu0
      %3514 = vmatprep.mubr.bf16.mxu0 0
      %3515 = vmatmul.mubr.bf16.gmra.mxu0 %v3421
      %v3516 = vpop.f32.mrf.mxu0
      %v3517 = vadd.f32 0.0, %v3516
      %v3518 = vpop.f32.mrf.mxu0
      %v3519 = vpop.f32.mrf.mxu0
      %v3520 = vadd.f32 0.0, %v3519
      %v3521 = vpop.f32.mrf.mxu0
      %3522 = vmatprep.mubr.bf16.mxu0 0
      %3523 = vmatmul.mubr.bf16.gmra.mxu0 %v3424
      %v3524 = vpop.f32.mrf.mxu0
      %v3525 = vadd.f32 0.0, %v3524
      %v3526 = vpop.f32.mrf.mxu0
      %v3527 = vpop.f32.mrf.mxu0
      %v3528 = vadd.f32 0.0, %v3527
      %v3529 = vpop.f32.mrf.mxu0
      %3530 = vmatprep.mubr.bf16.mxu0 0
      %3531 = vmatmul.mubr.bf16.gmra.mxu0 %v3427
      %v3532 = vpop.f32.mrf.mxu0
      %v3533 = vadd.f32 0.0, %v3532
      %v3534 = vpop.f32.mrf.mxu0
      %v3535 = vpop.f32.mrf.mxu0
      %v3536 = vadd.f32 0.0, %v3535
      %v3537 = vpop.f32.mrf.mxu0
      %3538 = vmatprep.mubr.bf16.mxu0 0
      %3539 = vmatmul.mubr.bf16.gmra.mxu0 %v3430
      %v3540 = vpop.f32.mrf.mxu0
      %v3541 = vadd.f32 0.0, %v3540
      %v3542 = vpop.f32.mrf.mxu0
      %v3543 = vpop.f32.mrf.mxu0
      %v3544 = vadd.f32 0.0, %v3543
      %v3545 = vpop.f32.mrf.mxu0
      %3546 = vmatprep.mubr.bf16.mxu0 0
      %3547 = vmatmul.mubr.bf16.gmra.mxu0 %v3433
      %v3548 = vpop.f32.mrf.mxu0
      %v3549 = vadd.f32 0.0, %v3548
      %v3550 = vpop.f32.mrf.mxu0
      %v3551 = vpop.f32.mrf.mxu0
      %v3552 = vadd.f32 0.0, %v3551
      %v3553 = vpop.f32.mrf.mxu0
      %3554 = vmatprep.mubr.bf16.mxu0 0
      %3555 = vmatmul.mubr.bf16.gmra.mxu0 %v3436
      %v3556 = vpop.f32.mrf.mxu0
      %v3557 = vadd.f32 0.0, %v3556
      %v3558 = vpop.f32.mrf.mxu0
      %v3559 = vpop.f32.mrf.mxu0
      %v3560 = vadd.f32 0.0, %v3559
      %v3561 = vpop.f32.mrf.mxu0
      %3562 = vmatprep.mubr.bf16.mxu0 0
      %3563 = vmatmul.mubr.bf16.gmra.mxu0 %v3439
      %v3564 = vpop.f32.mrf.mxu0
      %v3565 = vadd.f32 0.0, %v3564
      %v3566 = vpop.f32.mrf.mxu0
      %v3567 = vpop.f32.mrf.mxu0
      %v3568 = vadd.f32 0.0, %v3567
      %v3569 = vpop.f32.mrf.mxu0
      %3570 = vmatprep.mubr.bf16.mxu0 0
      %3571 = vmatmul.mubr.bf16.gmra.mxu0 %v3442
      %v3572 = vpop.f32.mrf.mxu0
      %v3573 = vadd.f32 0.0, %v3572
      %v3574 = vpop.f32.mrf.mxu0
      %v3575 = vpop.f32.mrf.mxu0
      %v3576 = vadd.f32 0.0, %v3575
      %v3577 = vpop.f32.mrf.mxu0
      %3578 = vmatprep.mubr.bf16.mxu0 0
      %3579 = vmatmul.mubr.bf16.gmra.mxu0 %v3445
      %v3580 = vpop.f32.mrf.mxu0
      %v3581 = vadd.f32 0.0, %v3580
      %v3582 = vpop.f32.mrf.mxu0
      %v3583 = vpop.f32.mrf.mxu0
      %v3584 = vadd.f32 0.0, %v3583
      %v3585 = vpop.f32.mrf.mxu0
      %3586 = vmatprep.mubr.bf16.mxu0 0
      %3587 = vmatmul.mubr.bf16.gmra.mxu0 %v3448
      %v3588 = vpop.f32.mrf.mxu0
      %v3589 = vadd.f32 0.0, %v3588
      %v3590 = vpop.f32.mrf.mxu0
      %v3591 = vpop.f32.mrf.mxu0
      %v3592 = vadd.f32 0.0, %v3591
      %v3593 = vpop.f32.mrf.mxu0
      %3594 = vmatprep.mubr.bf16.mxu0 0
      %3595 = vmatmul.mubr.bf16.gmra.mxu0 %v3451
      %v3596 = vpop.f32.mrf.mxu0
      %v3597 = vadd.f32 0.0, %v3596
      %v3598 = vpop.f32.mrf.mxu0
      %v3599 = vpop.f32.mrf.mxu0
      %v3600 = vadd.f32 0.0, %v3599
      %v3601 = vpop.f32.mrf.mxu0
      %3602 = vmatprep.mubr.bf16.mxu0 0
      %3603 = vmatmul.mubr.bf16.gmra.mxu0 %v3454
      %v3604 = vpop.f32.mrf.mxu0
      %v3605 = vadd.f32 0.0, %v3604
      %v3606 = vpop.f32.mrf.mxu0
      %v3607 = vpop.f32.mrf.mxu0
      %v3608 = vadd.f32 0.0, %v3607
      %v3609 = vpop.f32.mrf.mxu0
      %3610 = vmatprep.mubr.bf16.mxu0 0
      %3611 = vmatmul.mubr.bf16.gmra.mxu0 %v3457
      %v3612 = vpop.f32.mrf.mxu0
      %v3613 = vadd.f32 0.0, %v3612
      %v3614 = vpop.f32.mrf.mxu0
      %v3615 = vpop.f32.mrf.mxu0
      %v3616 = vadd.f32 0.0, %v3615
      %v3617 = vpop.f32.mrf.mxu0
      %3618 = vmatprep.mubr.bf16.mxu0 0
      %3619 = vmatmul.mubr.bf16.gmra.mxu0 %v3460
      %v3620 = vpop.f32.mrf.mxu0
      %v3621 = vadd.f32 0.0, %v3620
      %v3622 = vpop.f32.mrf.mxu0
      %v3623 = vpop.f32.mrf.mxu0
      %v3624 = vadd.f32 0.0, %v3623
      %v3625 = vpop.f32.mrf.mxu0
      %3626 = vmatprep.mubr.bf16.mxu0 0
      %3627 = vmatmul.mubr.bf16.gmra.mxu0 %v3463
      %v3628 = vpop.f32.mrf.mxu0
      %v3629 = vadd.f32 0.0, %v3628
      %v3630 = vpop.f32.mrf.mxu0
      %v3631 = vpop.f32.mrf.mxu0
      %v3632 = vadd.f32 0.0, %v3631
      %v3633 = vpop.f32.mrf.mxu0
      %3634 = vmatprep.mubr.bf16.mxu0 0
      %3635 = vmatmul.mubr.bf16.gmra.mxu0 %v3466
      %v3636 = vpop.f32.mrf.mxu0
      %v3637 = vadd.f32 0.0, %v3636
      %v3638 = vpop.f32.mrf.mxu0
      %v3639 = vpop.f32.mrf.mxu0
      %v3640 = vadd.f32 0.0, %v3639
      %v3641 = vpop.f32.mrf.mxu0
      %3642 = vmatprep.mubr.bf16.mxu0 0
      %3643 = vmatmul.mubr.bf16.gmra.mxu0 %v3469
      %v3644 = vpop.f32.mrf.mxu0
      %v3645 = vadd.f32 0.0, %v3644
      %v3646 = vpop.f32.mrf.mxu0
      %v3647 = vpop.f32.mrf.mxu0
      %v3648 = vadd.f32 0.0, %v3647
      %v3649 = vpop.f32.mrf.mxu0
      %3650 = vdwg.mxu0
      %v3651 = vadd.f32 %v3325, %v3509
      %v3652 = vadd.f32 %v3326, %v3512
      %v3653 = vadd.f32 %v3327, %v3517
      %v3654 = vadd.f32 %v3328, %v3520
      %v3655 = vadd.f32 %v3329, %v3525
      %v3656 = vadd.f32 %v3330, %v3528
      %v3657 = vadd.f32 %v3331, %v3533
      %v3658 = vadd.f32 %v3332, %v3536
      %v3659 = vadd.f32 %v3333, %v3541
      %v3660 = vadd.f32 %v3334, %v3544
      %v3661 = vadd.f32 %v3335, %v3549
      %v3662 = vadd.f32 %v3336, %v3552
      %v3663 = vadd.f32 %v3337, %v3557
      %v3664 = vadd.f32 %v3338, %v3560
      %v3665 = vadd.f32 %v3339, %v3565
      %v3666 = vadd.f32 %v3340, %v3568
      %v3667 = vadd.f32 %v3341, %v3573
      %v3668 = vadd.f32 %v3342, %v3576
      %v3669 = vadd.f32 %v3343, %v3581
      %v3670 = vadd.f32 %v3344, %v3584
      %v3671 = vadd.f32 %v3345, %v3589
      %v3672 = vadd.f32 %v3346, %v3592
      %v3673 = vadd.f32 %v3347, %v3597
      %v3674 = vadd.f32 %v3348, %v3600
      %v3675 = vadd.f32 %v3349, %v3605
      %v3676 = vadd.f32 %v3350, %v3608
      %v3677 = vadd.f32 %v3351, %v3613
      %v3678 = vadd.f32 %v3352, %v3616
      %v3679 = vadd.f32 %v3353, %v3621
      %v3680 = vadd.f32 %v3354, %v3624
      %v3681 = vadd.f32 %v3355, %v3629
      %v3682 = vadd.f32 %v3356, %v3632
      %v3683 = vadd.f32 %v3357, %v3637
      %v3684 = vadd.f32 %v3358, %v3640
      %v3685 = vadd.f32 %v3359, %v3645
      %v3686 = vadd.f32 %v3360, %v3648
      %v3687 = vpack.c.bf16 %v3652, %v3651
      %v3688 = vpack.c.bf16 %v3654, %v3653
      %v3689 = vpack.c.bf16 %v3656, %v3655
      %v3690 = vpack.c.bf16 %v3658, %v3657
      %v3691 = vpack.c.bf16 %v3660, %v3659
      %v3692 = vpack.c.bf16 %v3662, %v3661
      %v3693 = vpack.c.bf16 %v3664, %v3663
      %v3694 = vpack.c.bf16 %v3666, %v3665
      %v3695 = vpack.c.bf16 %v3668, %v3667
      %v3696 = vpack.c.bf16 %v3670, %v3669
      %v3697 = vpack.c.bf16 %v3672, %v3671
      %v3698 = vpack.c.bf16 %v3674, %v3673
      %v3699 = vpack.c.bf16 %v3676, %v3675
      %v3700 = vpack.c.bf16 %v3678, %v3677
      %v3701 = vpack.c.bf16 %v3680, %v3679
      %v3702 = vpack.c.bf16 %v3682, %v3681
      %v3703 = vpack.c.bf16 %v3684, %v3683
      %v3704 = vpack.c.bf16 %v3686, %v3685
      %v3723 = vunpack.c.l.b16 %v3687
      %v3724 = vunpack.c.h.b16 %v3687
      %v3725 = vunpack.c.l.b16 %v3688
      %v3726 = vunpack.c.h.b16 %v3688
      %v3727 = vunpack.c.l.b16 %v3689
      %v3728 = vunpack.c.h.b16 %v3689
      %v3729 = vunpack.c.l.b16 %v3690
      %v3730 = vunpack.c.h.b16 %v3690
      %v3731 = vunpack.c.l.b16 %v3691
      %v3732 = vunpack.c.h.b16 %v3691
      %v3733 = vunpack.c.l.b16 %v3692
      %v3734 = vunpack.c.h.b16 %v3692
      %v3735 = vunpack.c.l.b16 %v3693
      %v3736 = vunpack.c.h.b16 %v3693
      %v3737 = vunpack.c.l.b16 %v3694
      %v3738 = vunpack.c.h.b16 %v3694
      %v3739 = vunpack.c.l.b16 %v3695
      %v3740 = vunpack.c.h.b16 %v3695
      %v3741 = vunpack.c.l.b16 %v3696
      %v3742 = vunpack.c.h.b16 %v3696
      %v3743 = vunpack.c.l.b16 %v3697
      %v3744 = vunpack.c.h.b16 %v3697
      %v3745 = vunpack.c.l.b16 %v3698
      %v3746 = vunpack.c.h.b16 %v3698
      %v3747 = vunpack.c.l.b16 %v3699
      %v3748 = vunpack.c.h.b16 %v3699
      %v3749 = vunpack.c.l.b16 %v3700
      %v3750 = vunpack.c.h.b16 %v3700
      %v3751 = vunpack.c.l.b16 %v3701
      %v3752 = vunpack.c.h.b16 %v3701
      %v3753 = vunpack.c.l.b16 %v3702
      %v3754 = vunpack.c.h.b16 %v3702
      %v3755 = vunpack.c.l.b16 %v3703
      %v3756 = vunpack.c.h.b16 %v3703
      %v3757 = vunpack.c.l.b16 %v3704
      %v3758 = vunpack.c.h.b16 %v3704
      %v3759 = vpack.c.b16 %v3723, %v3723
      %v3760 = vpack.c.b16 %v3724, %v3724
      %v3761 = vpack.c.b16 %v3725, %v3725
      %v3762 = vpack.c.b16 %v3726, %v3726
      %v3763 = vpack.c.b16 %v3727, %v3727
      %v3764 = vpack.c.b16 %v3728, %v3728
      %v3765 = vpack.c.b16 %v3729, %v3729
      %v3766 = vpack.c.b16 %v3730, %v3730
      %v3767 = vpack.c.b16 %v3731, %v3731
      %v3768 = vpack.c.b16 %v3732, %v3732
      %v3769 = vpack.c.b16 %v3733, %v3733
      %v3770 = vpack.c.b16 %v3734, %v3734
      %v3771 = vpack.c.b16 %v3735, %v3735
      %v3772 = vpack.c.b16 %v3736, %v3736
      %v3773 = vpack.c.b16 %v3737, %v3737
      %v3774 = vpack.c.b16 %v3738, %v3738
      %v3775 = vpack.c.b16 %v3739, %v3739
      %v3776 = vpack.c.b16 %v3740, %v3740
      %v3777 = vpack.c.b16 %v3741, %v3741
      %v3778 = vpack.c.b16 %v3742, %v3742
      %v3779 = vpack.c.b16 %v3743, %v3743
      %v3780 = vpack.c.b16 %v3744, %v3744
      %v3781 = vpack.c.b16 %v3745, %v3745
      %v3782 = vpack.c.b16 %v3746, %v3746
      %v3783 = vpack.c.b16 %v3747, %v3747
      %v3784 = vpack.c.b16 %v3748, %v3748
      %v3785 = vpack.c.b16 %v3749, %v3749
      %v3786 = vpack.c.b16 %v3750, %v3750
      %v3787 = vpack.c.b16 %v3751, %v3751
      %v3788 = vpack.c.b16 %v3752, %v3752
      %v3789 = vpack.c.b16 %v3753, %v3753
      %v3790 = vpack.c.b16 %v3754, %v3754
      %v3791 = vpack.c.b16 %v3755, %v3755
      %v3792 = vpack.c.b16 %v3756, %v3756
      %v3793 = vpack.c.b16 %v3757, %v3757
      %v3794 = vpack.c.b16 %v3758, %v3758
      %3831 = vst [vmem:[%s367] sm:$0xf] %v3759
      %3832 = vst [vmem:[%s367 + $0x4] sm:$0xf] %v3760
      %3833 = vst [vmem:[%s367 + $0x8] sm:$0xf] %v3761
      %3834 = vst [vmem:[%s367 + $0xc] sm:$0xf] %v3762
      %3835 = vst [vmem:[%s367 + $0x10] sm:$0xf] %v3763
      %3836 = vst [vmem:[%s367 + $0x14] sm:$0xf] %v3764
      %3837 = vst [vmem:[%s367 + $0x18] sm:$0xf] %v3765
      %3838 = vst [vmem:[%s367 + $0x1c] sm:$0xf] %v3766
      %3839 = vst [vmem:[%s367 + $0x20] sm:$0xf] %v3767
      %3840 = vst [vmem:[%s367 + $0x24] sm:$0xf] %v3768
      %3841 = vst [vmem:[%s367 + $0x28] sm:$0xf] %v3769
      %3842 = vst [vmem:[%s367 + $0x2c] sm:$0xf] %v3770
      %3843 = vst [vmem:[%s367 + $0x30] sm:$0xf] %v3771
      %3844 = vst [vmem:[%s367 + $0x34] sm:$0xf] %v3772
      %3845 = vst [vmem:[%s367 + $0x38] sm:$0xf] %v3773
      %3846 = vst [vmem:[%s367 + $0x3c] sm:$0xf] %v3774
      %3847 = vst [vmem:[%s367 + $0x40] sm:$0xf] %v3775
      %3848 = vst [vmem:[%s367 + $0x44] sm:$0xf] %v3776
      %3849 = vst [vmem:[%s367 + $0x48] sm:$0xf] %v3777
      %3850 = vst [vmem:[%s367 + $0x4c] sm:$0xf] %v3778
      %3851 = vst [vmem:[%s367 + $0x50] sm:$0xf] %v3779
      %3852 = vst [vmem:[%s367 + $0x54] sm:$0xf] %v3780
      %3853 = vst [vmem:[%s367 + $0x58] sm:$0xf] %v3781
      %3854 = vst [vmem:[%s367 + $0x5c] sm:$0xf] %v3782
      %3855 = vst [vmem:[%s367 + $0x60] sm:$0xf] %v3783
      %3856 = vst [vmem:[%s367 + $0x64] sm:$0xf] %v3784
      %3857 = vst [vmem:[%s367 + $0x68] sm:$0xf] %v3785
      %3858 = vst [vmem:[%s367 + $0x6c] sm:$0xf] %v3786
      %3859 = vst [vmem:[%s367 + $0x70] sm:$0xf] %v3787
      %3860 = vst [vmem:[%s367 + $0x74] sm:$0xf] %v3788
      %3861 = vst [vmem:[%s367 + $0x78] sm:$0xf] %v3789
      %3862 = vst [vmem:[%s367 + $0x7c] sm:$0xf] %v3790
      %3863 = vst [vmem:[%s367 + $0x80] sm:$0xf] %v3791
      %3864 = vst [vmem:[%s367 + $0x84] sm:$0xf] %v3792
      %3865 = vst [vmem:[%s367 + $0x88] sm:$0xf] %v3793
      %3866 = vst [vmem:[%s367 + $0x8c] sm:$0xf] %v3794
      %v3867 = vsel %vm707, %v3651, 0.0
      %v3868 = vsel %vm708, %v3652, 0.0
      %v3869 = vsel %vm709, %v3653, 0.0
      %v3870 = vsel %vm710, %v3654, 0.0
      %v3871 = vsel %vm711, %v3655, 0.0
      %v3872 = vsel %vm712, %v3656, 0.0
      %v3873 = vsel %vm713, %v3657, 0.0
      %v3874 = vsel %vm714, %v3658, 0.0
      %v3875 = vsel %vm715, %v3659, 0.0
      %v3876 = vsel %vm716, %v3660, 0.0
      %v3877 = vsel %vm717, %v3661, 0.0
      %v3878 = vsel %vm718, %v3662, 0.0
      %v3879 = vsel %vm719, %v3663, 0.0
      %v3880 = vsel %vm720, %v3664, 0.0
      %v3881 = vsel %vm721, %v3665, 0.0
      %v3882 = vsel %vm722, %v3666, 0.0
      %v3883 = vsel %vm723, %v3667, 0.0
      %v3884 = vsel %vm724, %v3668, 0.0
      %v3885 = vsel %vm725, %v3669, 0.0
      %v3886 = vsel %vm726, %v3670, 0.0
      %v3887 = vsel %vm727, %v3671, 0.0
      %v3888 = vsel %vm728, %v3672, 0.0
      %v3889 = vsel %vm729, %v3673, 0.0
      %v3890 = vsel %vm730, %v3674, 0.0
      %v3891 = vsel %vm731, %v3675, 0.0
      %v3892 = vsel %vm732, %v3676, 0.0
      %v3893 = vsel %vm733, %v3677, 0.0
      %v3894 = vsel %vm734, %v3678, 0.0
      %v3895 = vsel %vm735, %v3679, 0.0
      %v3896 = vsel %vm736, %v3680, 0.0
      %v3897 = vsel %vm737, %v3681, 0.0
      %v3898 = vsel %vm738, %v3682, 0.0
      %v3899 = vsel %vm739, %v3683, 0.0
      %v3900 = vsel %vm740, %v3684, 0.0
      %v3901 = vsel %vm741, %v3685, 0.0
      %v3902 = vsel %vm742, %v3686, 0.0
      %v3903 = vadd.f32 %v3867, %v3868
      %v3904 = vadd.f32 %v3903, %v3869
      %v3905 = vadd.f32 %v3904, %v3870
      %v3906 = vadd.f32 %v3905, %v3871
      %v3907 = vadd.f32 %v3906, %v3872
      %v3908 = vadd.f32 %v3907, %v3873
      %v3909 = vadd.f32 %v3908, %v3874
      %v3910 = vadd.f32 %v3909, %v3875
      %v3911 = vadd.f32 %v3910, %v3876
      %v3912 = vadd.f32 %v3911, %v3877
      %v3913 = vadd.f32 %v3912, %v3878
      %v3914 = vadd.f32 %v3913, %v3879
      %v3915 = vadd.f32 %v3914, %v3880
      %v3916 = vadd.f32 %v3915, %v3881
      %v3917 = vadd.f32 %v3916, %v3882
      %v3918 = vadd.f32 %v3917, %v3883
      %v3919 = vadd.f32 %v3918, %v3884
      %v3920 = vadd.f32 %v3919, %v3885
      %v3921 = vadd.f32 %v3920, %v3886
      %v3922 = vadd.f32 %v3921, %v3887
      %v3923 = vadd.f32 %v3922, %v3888
      %v3924 = vadd.f32 %v3923, %v3889
      %v3925 = vadd.f32 %v3924, %v3890
      %v3926 = vadd.f32 %v3925, %v3891
      %v3927 = vadd.f32 %v3926, %v3892
      %v3928 = vadd.f32 %v3927, %v3893
      %v3929 = vadd.f32 %v3928, %v3894
      %v3930 = vadd.f32 %v3929, %v3895
      %v3931 = vadd.f32 %v3930, %v3896
      %v3932 = vadd.f32 %v3931, %v3897
      %v3933 = vadd.f32 %v3932, %v3898
      %v3934 = vadd.f32 %v3933, %v3899
      %v3935 = vadd.f32 %v3934, %v3900
      %v3936 = vadd.f32 %v3935, %v3901
      %v3937 = vadd.f32 %v3936, %v3902
      %v3938 = vrot.slane %v3937, 4
      %v3939 = vadd.f32 %v3937, %v3938
      %v3940 = vrot.slane %v3939, 2
      %v3941 = vadd.f32 %v3939, %v3940
      %v3942 = vrot.slane %v3941, 1
      %v3943 = vadd.f32 %v3941, %v3942
      %3944 = vst [vmem:[%s374] sm:$0x1] %v3943
      %v3945 = vmul.f32 %v3867, %v3867
      %v3946 = vmul.f32 %v3868, %v3868
      %v3947 = vmul.f32 %v3869, %v3869
      %v3948 = vmul.f32 %v3870, %v3870
      %v3949 = vmul.f32 %v3871, %v3871
      %v3950 = vmul.f32 %v3872, %v3872
      %v3951 = vmul.f32 %v3873, %v3873
      %v3952 = vmul.f32 %v3874, %v3874
      %v3953 = vmul.f32 %v3875, %v3875
      %v3954 = vmul.f32 %v3876, %v3876
      %v3955 = vmul.f32 %v3877, %v3877
      %v3956 = vmul.f32 %v3878, %v3878
      %v3957 = vmul.f32 %v3879, %v3879
      %v3958 = vmul.f32 %v3880, %v3880
      %v3959 = vmul.f32 %v3881, %v3881
      %v3960 = vmul.f32 %v3882, %v3882
      %v3961 = vmul.f32 %v3883, %v3883
      %v3962 = vmul.f32 %v3884, %v3884
      %v3963 = vmul.f32 %v3885, %v3885
      %v3964 = vmul.f32 %v3886, %v3886
      %v3965 = vmul.f32 %v3887, %v3887
      %v3966 = vmul.f32 %v3888, %v3888
      %v3967 = vmul.f32 %v3889, %v3889
      %v3968 = vmul.f32 %v3890, %v3890
      %v3969 = vmul.f32 %v3891, %v3891
      %v3970 = vmul.f32 %v3892, %v3892
      %v3971 = vmul.f32 %v3893, %v3893
      %v3972 = vmul.f32 %v3894, %v3894
      %v3973 = vmul.f32 %v3895, %v3895
      %v3974 = vmul.f32 %v3896, %v3896
      %v3975 = vmul.f32 %v3897, %v3897
      %v3976 = vmul.f32 %v3898, %v3898
      %v3977 = vmul.f32 %v3899, %v3899
      %v3978 = vmul.f32 %v3900, %v3900
      %v3979 = vmul.f32 %v3901, %v3901
      %v3980 = vmul.f32 %v3902, %v3902
      %v3981 = vadd.f32 %v3945, %v3946
      %v3982 = vadd.f32 %v3981, %v3947
      %v3983 = vadd.f32 %v3982, %v3948
      %v3984 = vadd.f32 %v3983, %v3949
      %v3985 = vadd.f32 %v3984, %v3950
      %v3986 = vadd.f32 %v3985, %v3951
      %v3987 = vadd.f32 %v3986, %v3952
      %v3988 = vadd.f32 %v3987, %v3953
      %v3989 = vadd.f32 %v3988, %v3954
      %v3990 = vadd.f32 %v3989, %v3955
      %v3991 = vadd.f32 %v3990, %v3956
      %v3992 = vadd.f32 %v3991, %v3957
      %v3993 = vadd.f32 %v3992, %v3958
      %v3994 = vadd.f32 %v3993, %v3959
      %v3995 = vadd.f32 %v3994, %v3960
      %v3996 = vadd.f32 %v3995, %v3961
      %v3997 = vadd.f32 %v3996, %v3962
      %v3998 = vadd.f32 %v3997, %v3963
      %v3999 = vadd.f32 %v3998, %v3964
      %v4000 = vadd.f32 %v3999, %v3965
      %v4001 = vadd.f32 %v4000, %v3966
      %v4002 = vadd.f32 %v4001, %v3967
      %v4003 = vadd.f32 %v4002, %v3968
      %v4004 = vadd.f32 %v4003, %v3969
      %v4005 = vadd.f32 %v4004, %v3970
      %v4006 = vadd.f32 %v4005, %v3971
      %v4007 = vadd.f32 %v4006, %v3972
      %v4008 = vadd.f32 %v4007, %v3973
      %v4009 = vadd.f32 %v4008, %v3974
      %v4010 = vadd.f32 %v4009, %v3975
      %v4011 = vadd.f32 %v4010, %v3976
      %v4012 = vadd.f32 %v4011, %v3977
      %v4013 = vadd.f32 %v4012, %v3978
      %v4014 = vadd.f32 %v4013, %v3979
      %v4015 = vadd.f32 %v4014, %v3980
      %v4016 = vrot.slane %v4015, 4
      %v4017 = vadd.f32 %v4015, %v4016
      %v4018 = vrot.slane %v4017, 2
      %v4019 = vadd.f32 %v4017, %v4018
      %v4020 = vrot.slane %v4019, 1
      %v4021 = vadd.f32 %v4019, %v4020
      %4022 = vst [vmem:[%s374 + $0x1] sm:$0x1] %v4021
      %p4023 = scmp.lt.s32.totalorder %s22, 1
      %s4024 = scalar_select %p4023, %s22, 1
      %p4025 = scmp.lt.s32.totalorder %s23, 0
      %s4026 = scalar_select %p4025, %s23, 0
      %s4027 = smul.addr %s4026, 36
      %s4028 = smul.addr %s4024, 36
      %s4029 = sadd.s32 %s4027, %s4028
      %s4030 = smul.addr %s4029, 4
      %s4031 = scalar_lea.vmem %s5, %s4030
      %p4032 = scmp.lt.s32.totalorder %s22, 1
      %s4033 = scalar_select %p4032, %s22, 1
      %p4034 = scmp.lt.s32.totalorder %s23, 0
      %s4035 = scalar_select %p4034, %s23, 0
      %s4036 = sadd.s32 %s4035, %s4033
      %s4037 = smul.addr %s4036, 2
      %s4038 = scalar_lea.vmem %s6, %s4037
      // Predicated region
      $region41: #{up_forward.3} parent=39 // pred_check
        %p4039 = pneg %p176
      $region42: #{up_forward.3} parent=39 // pred_check_branch
        %4041 = sbr.rel (%p4039) target = $region44
      $region43: #{up_forward.3} parent=39 // pred_region
        _
      $region44: #{up_forward.3} parent=39 // pred_fallthru
        _
      // Predicated region
      $region45: #{up_forward.3} parent=39 // pred_check
        %p4042 = pneg %p204
      $region46: #{up_forward.3} parent=39 // pred_check_branch
        %4044 = sbr.rel (%p4042) target = $region48
      $region47: #{up_forward.3} parent=39 // pred_region
        _
      $region48: #{up_forward.3} parent=39 // pred_fallthru
        _
    $region40: #{up_forward.3} parent=5 // pred_fallthru
      _
    %p4045 = scmp.le.s32.totalorder 2, %s13
    // Predicated region
    $region49: #{up_forward.3} parent=5 // pred_check
      %p4046 = pneg %p4045
    $region50: #{up_forward.3} parent=5 // pred_check_branch
      %4048 = sbr.rel (%p4046) target = $region52
    $region51: #{up_forward.3} parent=5 // pred_region
      %s4049 = ssub.s32 %s13, 2
      // Predicated region
      $region53: #{up_forward.3} parent=51 // pred_check
        %p4050 = pneg %p182
      $region54: #{up_forward.3} parent=51 // pred_check_branch
        %4052 = sbr.rel (%p4050) target = $region56
      $region55: #{up_forward.3} parent=51 // pred_region
        %p4053 = scmp.lt.s32.totalorder %s24, 1
        %s4054 = scalar_select %p4053, %s24, 1
        %p4055 = scmp.lt.s32.totalorder %s25, 0
        %s4056 = scalar_select %p4055, %s25, 0
        %s4057 = smul.addr %s4056, 36
        %s4058 = smul.addr %s4054, 36
        %s4059 = sadd.s32 %s4057, %s4058
        %s4060 = smul.addr %s4059, 4
        %s4061 = scalar_lea.vmem %s5, %s4060
      $region56: #{up_forward.3} parent=51 // pred_fallthru
        _
      // Predicated region
      $region57: #{up_forward.3} parent=51 // pred_check
        %p4062 = pneg %p210
      $region58: #{up_forward.3} parent=51 // pred_check_branch
        %4064 = sbr.rel (%p4062) target = $region60
      $region59: #{up_forward.3} parent=51 // pred_region
        %p4065 = scmp.lt.s32.totalorder %s24, 1
        %s4066 = scalar_select %p4065, %s24, 1
        %p4067 = scmp.lt.s32.totalorder %s25, 0
        %s4068 = scalar_select %p4067, %s25, 0
        %s4069 = sadd.s32 %s4068, %s4066
        %s4070 = smul.addr %s4069, 2
        %s4071 = scalar_lea.vmem %s6, %s4070
      $region60: #{up_forward.3} parent=51 // pred_fallthru
        _
    $region52: #{up_forward.3} parent=5 // pred_fallthru
      _
  $region6: #{up_forward.3} parent=0 // loop_footer
    %s17 = sadd.s32 1, %s13
  $region7: #{up_forward.3} parent=0 // loop_footer_branch
    %12 = sbr.rel target = $region3
  $region8: #{up_forward.3} parent=0 // loop_exit
    _

// kernel: up_forward.4
$region0: #{up_forward.4}
  #allocation0 [shape = 'u32[]', space=smem, size = 0x4, offset = 0x4, fixed_abs, tag = 'smem constant byte address 0x4 - core index']
  #allocation1 [shape = 'u32[144,128]{1,0:T(1,128)}', space=vmem, size = 0x12000, scoped, tag = 'internal scratch']
  #allocation2 [shape = 'f32[340,128]{1,0:T(8,128)}', space=vmem, size = 0x2b000, scoped, tag = 'scratch operand']
  %s0 = inlined_call_operand.vmem [shape: f32[288,1], index: 0, kind: input, shape index: {}]
  %s1 = inlined_call_operand.vmem [shape: bf16[2,1,18,128], index: 1, kind: input, shape index: {}, may-alias: {1,3}]
  %s2 = inlined_call_operand.vmem [shape: bf16[2,1,288,128], index: 2, kind: input, shape index: {}]
  %s3 = inlined_call_operand.vmem [shape: bf16[2,1,18,128], index: 3, kind: input, shape index: {}, may-alias: {1,3}]
  %s4 = inlined_call_operand.vmem [shape: bf16[9,128,128], index: 4, kind: input, shape index: {}]
  %s5 = inlined_call_operand.vmem [shape: f32[1,128], index: 5, kind: input, shape index: {}]
  %s6 = inlined_call_operand.vmem [shape: f32[1,128], index: 6, kind: input, shape index: {}]
  %s7 = inlined_call_operand.vmem [shape: bf16[2,1,288,128], index: 7, kind: output, shape index: {0}]
  %s8 = inlined_call_operand.vmem [shape: f32[2,1,2,128], index: 8, kind: output, shape index: {1}]
  %9 = xla_tuple %s7, %s8
  %s10 = sld [smem:[#allocation0]]
  $region69: #{up_forward.4} parent=0
    _
  %s12 = ssub.s32 1, %s10
  %s13 = scalar_select 0, %s12, %s10
  loop: start=0, step=1, limit=4
  $region2: #{up_forward.4} parent=0 // loop_pre_header
    _
  $region3: #{up_forward.4} parent=0 // loop_header
    %s15 = sphi 0, %s19
    %p16 = scmp.ge.s32.totalorder %s15, 4
    %s22 = sphi 0, %s34
    %s23 = sphi 0, %s30
    %s24 = sphi 0, %s22
    %s25 = sphi 0, %s23
    %s26 = sphi 0, %s24
    %s27 = sphi 0, %s25
    %s35 = sphi 0, %s35
    %s37 = sphi 0, %s35
    %s38 = sphi 0, %s37
    %s52 = sphi 0, %s38
    %s60 = sphi 0, %s62
    %s63 = sphi 0, %s60
    %s64 = sphi 0, %s63
    %s80 = sphi 0, %s64
    %s88 = sphi 0, %s90
    %s91 = sphi 0, %s88
    %s92 = sphi 0, %s91
    %s108 = sphi 0, %s92
    %s116 = sphi 0, %s118
    %s119 = sphi 0, %s116
    %s120 = sphi 0, %s119
    %s136 = sphi 0, %s120
    %s140 = sphi 0, %s140
    %s142 = sphi 0, %s140
    %s143 = sphi 0, %s142
    %s157 = sphi 0, %s143
    %s161 = sphi 0, %s161
    %s163 = sphi 0, %s161
    %s164 = sphi 0, %s163
    %s178 = sphi 0, %s164
    %s182 = sphi 0, %s182
    %s184 = sphi 0, %s182
    %s185 = sphi 0, %s184
    %s199 = sphi 0, %s185
    %s207 = sphi 0, %s209
    %s210 = sphi 0, %s207
    %s211 = sphi 0, %s210
    %s227 = sphi 0, %s211
    %s235 = sphi 0, %s237
    %s238 = sphi 0, %s235
    %s239 = sphi 0, %s238
    %s255 = sphi 0, %s239
  $region4: #{up_forward.4} parent=0 // loop_header_branch
    %18 = sbr.rel (%p16) target = $region8
  $region5: #{up_forward.4} parent=0 // loop_body
    %s20 = ssub.s32 %s15, 1
    %s21 = ssub.s32 %s15, 2
    %s28 = sadd.s32 1, %s23
    %p29 = scmp.ge.s32.totalorder %s28, 1
    %s30 = scalar_select %p29, 0, %s28
    %s31 = sadd.s32 1, %s22
    %s32 = scalar_select %p29, %s31, %s22
    %p33 = scmp.ge.s32.totalorder %s32, 2
    %s34 = scalar_select %p33, 0, %s32
    %s36 = sadd.s32 %s35, 1
    %p39 = scmp.eq.s32.totalorder %s15, 1
    %p40 = scmp.ne.s32.totalorder %s35, %s37
    %p41 = scmp.eq.s32.totalorder %s15, 0
    %p42 = por %p40, %p41
    %p43 = scmp.ne.s32.totalorder %s35, %s37
    %p44 = scmp.eq.s32.totalorder %s20, 1
    %p45 = por %p43, %p44
    %p46 = scmp.ne.s32.totalorder %s37, %s38
    %p47 = scmp.eq.s32.totalorder %s20, 0
    %p48 = por %p46, %p47
    %p49 = scmp.ne.s32.totalorder %s37, %s38
    %p50 = scmp.eq.s32.totalorder %s21, 1
    %p51 = por %p49, %p50
    %p53 = scmp.ne.s32.totalorder %s38, %s52
    %p54 = scmp.eq.s32.totalorder %s21, 0
    %p55 = por %p53, %p54
    %s56 = ssub.s32 %s22, %s34
    %s57 = ssub.s32 %s23, %s30
    %s58 = sor.u32 %s56, %s57
    %p59 = scmp.eq.s32.totalorder %s58, 0
    %s61 = sadd.s32 %s60, 1
    %s62 = scalar_select %p59, %s60, %s61
    %p65 = pneg %p59
    %p66 = scmp.eq.s32.totalorder %s15, 1
    %p67 = por %p65, %p66
    %p68 = scmp.ne.s32.totalorder %s60, %s63
    %p69 = scmp.eq.s32.totalorder %s15, 0
    %p70 = por %p68, %p69
    %p71 = scmp.ne.s32.totalorder %s60, %s63
    %p72 = scmp.eq.s32.totalorder %s20, 1
    %p73 = por %p71, %p72
    %p74 = scmp.ne.s32.totalorder %s63, %s64
    %p75 = scmp.eq.s32.totalorder %s20, 0
    %p76 = por %p74, %p75
    %p77 = scmp.ne.s32.totalorder %s63, %s64
    %p78 = scmp.eq.s32.totalorder %s21, 1
    %p79 = por %p77, %p78
    %p81 = scmp.ne.s32.totalorder %s64, %s80
    %p82 = scmp.eq.s32.totalorder %s21, 0
    %p83 = por %p81, %p82
    %s84 = ssub.s32 %s22, %s34
    %s85 = ssub.s32 %s23, %s30
    %s86 = sor.u32 %s84, %s85
    %p87 = scmp.eq.s32.totalorder %s86, 0
    %s89 = sadd.s32 %s88, 1
    %s90 = scalar_select %p87, %s88, %s89
    %p93 = pneg %p87
    %p94 = scmp.eq.s32.totalorder %s15, 1
    %p95 = por %p93, %p94
    %p96 = scmp.ne.s32.totalorder %s88, %s91
    %p97 = scmp.eq.s32.totalorder %s15, 0
    %p98 = por %p96, %p97
    %p99 = scmp.ne.s32.totalorder %s88, %s91
    %p100 = scmp.eq.s32.totalorder %s20, 1
    %p101 = por %p99, %p100
    %p102 = scmp.ne.s32.totalorder %s91, %s92
    %p103 = scmp.eq.s32.totalorder %s20, 0
    %p104 = por %p102, %p103
    %p105 = scmp.ne.s32.totalorder %s91, %s92
    %p106 = scmp.eq.s32.totalorder %s21, 1
    %p107 = por %p105, %p106
    %p109 = scmp.ne.s32.totalorder %s92, %s108
    %p110 = scmp.eq.s32.totalorder %s21, 0
    %p111 = por %p109, %p110
    %s112 = ssub.s32 %s22, %s34
    %s113 = ssub.s32 %s23, %s30
    %s114 = sor.u32 %s112, %s113
    %p115 = scmp.eq.s32.totalorder %s114, 0
    %s117 = sadd.s32 %s116, 1
    %s118 = scalar_select %p115, %s116, %s117
    %p121 = pneg %p115
    %p122 = scmp.eq.s32.totalorder %s15, 1
    %p123 = por %p121, %p122
    %p124 = scmp.ne.s32.totalorder %s116, %s119
    %p125 = scmp.eq.s32.totalorder %s15, 0
    %p126 = por %p124, %p125
    %p127 = scmp.ne.s32.totalorder %s116, %s119
    %p128 = scmp.eq.s32.totalorder %s20, 1
    %p129 = por %p127, %p128
    %p130 = scmp.ne.s32.totalorder %s119, %s120
    %p131 = scmp.eq.s32.totalorder %s20, 0
    %p132 = por %p130, %p131
    %p133 = scmp.ne.s32.totalorder %s119, %s120
    %p134 = scmp.eq.s32.totalorder %s21, 1
    %p135 = por %p133, %p134
    %p137 = scmp.ne.s32.totalorder %s120, %s136
    %p138 = scmp.eq.s32.totalorder %s21, 0
    %p139 = por %p137, %p138
    %s141 = sadd.s32 %s140, 1
    %p144 = scmp.eq.s32.totalorder %s15, 1
    %p145 = scmp.ne.s32.totalorder %s140, %s142
    %p146 = scmp.eq.s32.totalorder %s15, 0
    %p147 = por %p145, %p146
    %p148 = scmp.ne.s32.totalorder %s140, %s142
    %p149 = scmp.eq.s32.totalorder %s20, 1
    %p150 = por %p148, %p149
    %p151 = scmp.ne.s32.totalorder %s142, %s143
    %p152 = scmp.eq.s32.totalorder %s20, 0
    %p153 = por %p151, %p152
    %p154 = scmp.ne.s32.totalorder %s142, %s143
    %p155 = scmp.eq.s32.totalorder %s21, 1
    %p156 = por %p154, %p155
    %p158 = scmp.ne.s32.totalorder %s143, %s157
    %p159 = scmp.eq.s32.totalorder %s21, 0
    %p160 = por %p158, %p159
    %s162 = sadd.s32 %s161, 1
    %p165 = scmp.eq.s32.totalorder %s15, 1
    %p166 = scmp.ne.s32.totalorder %s161, %s163
    %p167 = scmp.eq.s32.totalorder %s15, 0
    %p168 = por %p166, %p167
    %p169 = scmp.ne.s32.totalorder %s161, %s163
    %p170 = scmp.eq.s32.totalorder %s20, 1
    %p171 = por %p169, %p170
    %p172 = scmp.ne.s32.totalorder %s163, %s164
    %p173 = scmp.eq.s32.totalorder %s20, 0
    %p174 = por %p172, %p173
    %p175 = scmp.ne.s32.totalorder %s163, %s164
    %p176 = scmp.eq.s32.totalorder %s21, 1
    %p177 = por %p175, %p176
    %p179 = scmp.ne.s32.totalorder %s164, %s178
    %p180 = scmp.eq.s32.totalorder %s21, 0
    %p181 = por %p179, %p180
    %s183 = sadd.s32 %s182, 1
    %p186 = scmp.eq.s32.totalorder %s15, 1
    %p187 = scmp.ne.s32.totalorder %s182, %s184
    %p188 = scmp.eq.s32.totalorder %s15, 0
    %p189 = por %p187, %p188
    %p190 = scmp.ne.s32.totalorder %s182, %s184
    %p191 = scmp.eq.s32.totalorder %s20, 1
    %p192 = por %p190, %p191
    %p193 = scmp.ne.s32.totalorder %s184, %s185
    %p194 = scmp.eq.s32.totalorder %s20, 0
    %p195 = por %p193, %p194
    %p196 = scmp.ne.s32.totalorder %s184, %s185
    %p197 = scmp.eq.s32.totalorder %s21, 1
    %p198 = por %p196, %p197
    %p200 = scmp.ne.s32.totalorder %s185, %s199
    %p201 = scmp.eq.s32.totalorder %s21, 0
    %p202 = por %p200, %p201
    %s203 = ssub.s32 %s22, %s34
    %s204 = ssub.s32 %s23, %s30
    %s205 = sor.u32 %s203, %s204
    %p206 = scmp.eq.s32.totalorder %s205, 0
    %s208 = sadd.s32 %s207, 1
    %s209 = scalar_select %p206, %s207, %s208
    %p212 = pneg %p206
    %p213 = scmp.eq.s32.totalorder %s15, 1
    %p214 = por %p212, %p213
    %p215 = scmp.ne.s32.totalorder %s207, %s210
    %p216 = scmp.eq.s32.totalorder %s15, 0
    %p217 = por %p215, %p216
    %p218 = scmp.ne.s32.totalorder %s207, %s210
    %p219 = scmp.eq.s32.totalorder %s20, 1
    %p220 = por %p218, %p219
    %p221 = scmp.ne.s32.totalorder %s210, %s211
    %p222 = scmp.eq.s32.totalorder %s20, 0
    %p223 = por %p221, %p222
    %p224 = scmp.ne.s32.totalorder %s210, %s211
    %p225 = scmp.eq.s32.totalorder %s21, 1
    %p226 = por %p224, %p225
    %p228 = scmp.ne.s32.totalorder %s211, %s227
    %p229 = scmp.eq.s32.totalorder %s21, 0
    %p230 = por %p228, %p229
    %s231 = ssub.s32 %s22, %s34
    %s232 = ssub.s32 %s23, %s30
    %s233 = sor.u32 %s231, %s232
    %p234 = scmp.eq.s32.totalorder %s233, 0
    %s236 = sadd.s32 %s235, 1
    %s237 = scalar_select %p234, %s235, %s236
    %p240 = pneg %p234
    %p241 = scmp.eq.s32.totalorder %s15, 1
    %p242 = por %p240, %p241
    %p243 = scmp.ne.s32.totalorder %s235, %s238
    %p244 = scmp.eq.s32.totalorder %s15, 0
    %p245 = por %p243, %p244
    %p246 = scmp.ne.s32.totalorder %s235, %s238
    %p247 = scmp.eq.s32.totalorder %s20, 1
    %p248 = por %p246, %p247
    %p249 = scmp.ne.s32.totalorder %s238, %s239
    %p250 = scmp.eq.s32.totalorder %s20, 0
    %p251 = por %p249, %p250
    %p252 = scmp.ne.s32.totalorder %s238, %s239
    %p253 = scmp.eq.s32.totalorder %s21, 1
    %p254 = por %p252, %p253
    %p256 = scmp.ne.s32.totalorder %s239, %s255
    %p257 = scmp.eq.s32.totalorder %s21, 0
    %p258 = por %p256, %p257
    %p259 = scmp.le.s32.totalorder 1, %s15
    %p260 = scmp.lt.s32.totalorder %s15, 3
    %p261 = pnand %p259, %p260
    %p262 = pneg %p261
    // Predicated region
    $region9: #{up_forward.4} parent=5 // pred_check
      _
    $region10: #{up_forward.4} parent=5 // pred_check_branch
      %264 = sbr.rel (%p261) target = $region12
    $region11: #{up_forward.4} parent=5 // pred_region
      %s265 = ssub.s32 %s15, 1
      // Predicated region
      $region13: #{up_forward.4} parent=11 // pred_check
        %p266 = pneg %p48
      $region14: #{up_forward.4} parent=11 // pred_check_branch
        %268 = sbr.rel (%p266) target = $region16
      $region15: #{up_forward.4} parent=11 // pred_region
        _
      $region16: #{up_forward.4} parent=11 // pred_fallthru
        _
      // Predicated region
      $region17: #{up_forward.4} parent=11 // pred_check
        %p269 = pneg %p153
      $region18: #{up_forward.4} parent=11 // pred_check_branch
        %271 = sbr.rel (%p269) target = $region20
      $region19: #{up_forward.4} parent=11 // pred_region
        _
      $region20: #{up_forward.4} parent=11 // pred_fallthru
        _
      // Predicated region
      $region21: #{up_forward.4} parent=11 // pred_check
        %p272 = pneg %p174
      $region22: #{up_forward.4} parent=11 // pred_check_branch
        %274 = sbr.rel (%p272) target = $region24
      $region23: #{up_forward.4} parent=11 // pred_region
        _
      $region24: #{up_forward.4} parent=11 // pred_fallthru
        _
      // Predicated region
      $region25: #{up_forward.4} parent=11 // pred_check
        %p275 = pneg %p195
      $region26: #{up_forward.4} parent=11 // pred_check_branch
        %277 = sbr.rel (%p275) target = $region28
      $region27: #{up_forward.4} parent=11 // pred_region
        _
      $region28: #{up_forward.4} parent=11 // pred_fallthru
        _
    $region12: #{up_forward.4} parent=5 // pred_fallthru
      _
    %p278 = scmp.lt.s32.totalorder %s15, 2
    // Predicated region
    $region29: #{up_forward.4} parent=5 // pred_check
      %p279 = pneg %p278
    $region30: #{up_forward.4} parent=5 // pred_check_branch
      %281 = sbr.rel (%p279) target = $region32
    $region31: #{up_forward.4} parent=5 // pred_region
      // Predicated region
      $region33: #{up_forward.4} parent=31 // pred_check
        %p282 = pneg %p70
      $region34: #{up_forward.4} parent=31 // pred_check_branch
        %284 = sbr.rel (%p282) target = $region36
      $region35: #{up_forward.4} parent=31 // pred_region
        %p285 = scmp.lt.s32.totalorder %s22, 1
        %s286 = scalar_select %p285, %s22, 1
        %p287 = scmp.lt.s32.totalorder %s23, 0
        %s288 = scalar_select %p287, %s23, 0
        %s289 = smul.addr %s288, 3
        %s290 = smul.addr %s286, 3
        %s291 = sadd.s32 %s289, %s290
        %s292 = smul.addr %s291, 4
        %s293 = scalar_lea.vmem %s1, %s292
      $region36: #{up_forward.4} parent=31 // pred_fallthru
        _
      // Predicated region
      $region37: #{up_forward.4} parent=31 // pred_check
        %p294 = pneg %p98
      $region38: #{up_forward.4} parent=31 // pred_check_branch
        %296 = sbr.rel (%p294) target = $region40
      $region39: #{up_forward.4} parent=31 // pred_region
        %p297 = scmp.lt.s32.totalorder %s22, 1
        %s298 = scalar_select %p297, %s22, 1
        %p299 = scmp.lt.s32.totalorder %s23, 0
        %s300 = scalar_select %p299, %s23, 0
        %s301 = smul.addr %s300, 36
        %s302 = smul.addr %s298, 36
        %s303 = sadd.s32 %s301, %s302
        %s304 = smul.addr %s303, 4
        %s305 = scalar_lea.vmem %s2, %s304
      $region40: #{up_forward.4} parent=31 // pred_fallthru
        _
      // Predicated region
      $region41: #{up_forward.4} parent=31 // pred_check
        %p306 = pneg %p126
      $region42: #{up_forward.4} parent=31 // pred_check_branch
        %308 = sbr.rel (%p306) target = $region44
      $region43: #{up_forward.4} parent=31 // pred_region
        %p309 = scmp.lt.s32.totalorder %s22, 1
        %s310 = scalar_select %p309, %s22, 1
        %p311 = scmp.lt.s32.totalorder %s23, 0
        %s312 = scalar_select %p311, %s23, 0
        %s313 = smul.addr %s312, 3
        %s314 = smul.addr %s310, 3
        %s315 = sadd.s32 %s313, %s314
        %s316 = smul.addr %s315, 4
        %s317 = scalar_lea.vmem %s3, %s316
      $region44: #{up_forward.4} parent=31 // pred_fallthru
        _
    $region32: #{up_forward.4} parent=5 // pred_fallthru
      _
    %p318 = scmp.le.s32.totalorder 1, %s15
    %p319 = scmp.lt.s32.totalorder %s15, 3
    %p320 = pnand %p318, %p319
    %p321 = pneg %p320
    // Predicated region
    $region45: #{up_forward.4} parent=5 // pred_check
      _
    $region46: #{up_forward.4} parent=5 // pred_check_branch
      %323 = sbr.rel (%p320) target = $region48
    $region47: #{up_forward.4} parent=5 // pred_region
      %s324 = ssub.s32 %s15, 1
      %p325 = pneg %p48
      %p326 = pneg %p45
      %p327 = scmp.lt.s32.totalorder %s24, 1
      %s328 = scalar_select %p327, %s24, 1
      %p329 = scmp.lt.s32.totalorder %s25, 0
      %s330 = scalar_select %p329, %s25, 0
      %s331 = smul.addr %s330, 3
      %s332 = smul.addr %s328, 3
      %s333 = sadd.s32 %s331, %s332
      %s334 = smul.addr %s333, 4
      %s335 = scalar_lea.vmem %s1, %s334
      %p336 = pneg %p76
      %p337 = pneg %p73
      %p338 = scmp.lt.s32.totalorder %s24, 1
      %s339 = scalar_select %p338, %s24, 1
      %p340 = scmp.lt.s32.totalorder %s25, 0
      %s341 = scalar_select %p340, %s25, 0
      %s342 = smul.addr %s341, 36
      %s343 = smul.addr %s339, 36
      %s344 = sadd.s32 %s342, %s343
      %s345 = smul.addr %s344, 4
      %s346 = scalar_lea.vmem %s2, %s345
      %p347 = pneg %p104
      %p348 = pneg %p101
      %p349 = scmp.lt.s32.totalorder %s24, 1
      %s350 = scalar_select %p349, %s24, 1
      %p351 = scmp.lt.s32.totalorder %s25, 0
      %s352 = scalar_select %p351, %s25, 0
      %s353 = smul.addr %s352, 3
      %s354 = smul.addr %s350, 3
      %s355 = sadd.s32 %s353, %s354
      %s356 = smul.addr %s355, 4
      %s357 = scalar_lea.vmem %s3, %s356
      %p358 = pneg %p132
      %p359 = pneg %p129
      %p360 = pneg %p153
      %p361 = pneg %p150
      %p362 = pneg %p174
      %p363 = pneg %p171
      %p364 = pneg %p195
      %p365 = pneg %p192
      %p366 = pneg %p223
      %p367 = pneg %p220
      %p368 = scmp.lt.s32.totalorder %s24, 1
      %s369 = scalar_select %p368, %s24, 1
      %p370 = scmp.lt.s32.totalorder %s25, 0
      %s371 = scalar_select %p370, %s25, 0
      %s372 = smul.addr %s371, 36
      %s373 = smul.addr %s369, 36
      %s374 = sadd.s32 %s372, %s373
      %s375 = smul.addr %s374, 4
      %s376 = scalar_lea.vmem %s7, %s375
      %p377 = pneg %p251
      %p378 = pneg %p248
      %p379 = scmp.lt.s32.totalorder %s24, 1
      %s380 = scalar_select %p379, %s24, 1
      %p381 = scmp.lt.s32.totalorder %s25, 0
      %s382 = scalar_select %p381, %s25, 0
      %s383 = sadd.s32 %s382, %s380
      %s384 = smul.addr %s383, 2
      %s385 = scalar_lea.vmem %s8, %s384
      %p386 = scmp.lt.s32.totalorder %s24, 1
      %s387 = scalar_select %p386, %s24, 1
      %p388 = scmp.lt.s32.totalorder %s25, 0
      %s389 = scalar_select %p388, %s25, 0
      %s390 = smul.addr %s389, 3
      %s391 = smul.addr %s387, 3
      %s392 = sadd.s32 %s390, %s391
      %s393 = smul.addr %s392, 4
      %s394 = scalar_lea.vmem %s1, %s393
      %p395 = scmp.lt.s32.totalorder %s24, 1
      %s396 = scalar_select %p395, %s24, 1
      %p397 = scmp.lt.s32.totalorder %s25, 0
      %s398 = scalar_select %p397, %s25, 0
      %s399 = smul.addr %s398, 36
      %s400 = smul.addr %s396, 36
      %s401 = sadd.s32 %s399, %s400
      %s402 = smul.addr %s401, 4
      %s403 = scalar_lea.vmem %s2, %s402
      %p404 = scmp.lt.s32.totalorder %s24, 1
      %s405 = scalar_select %p404, %s24, 1
      %p406 = scmp.lt.s32.totalorder %s25, 0
      %s407 = scalar_select %p406, %s25, 0
      %s408 = smul.addr %s407, 3
      %s409 = smul.addr %s405, 3
      %s410 = sadd.s32 %s408, %s409
      %s411 = smul.addr %s410, 4
      %s412 = scalar_lea.vmem %s3, %s411
      %p413 = scmp.lt.s32.totalorder %s24, 1
      %s414 = scalar_select %p413, %s24, 1
      %p415 = scmp.lt.s32.totalorder %s25, 0
      %s416 = scalar_select %p415, %s25, 0
      %s417 = smul.addr %s416, 36
      %s418 = smul.addr %s414, 36
      %s419 = sadd.s32 %s417, %s418
      %s420 = smul.addr %s419, 4
      %s421 = scalar_lea.vmem %s7, %s420
      %p422 = scmp.lt.s32.totalorder %s24, 1
      %s423 = scalar_select %p422, %s24, 1
      %p424 = scmp.lt.s32.totalorder %s25, 0
      %s425 = scalar_select %p424, %s25, 0
      %s426 = sadd.s32 %s425, %s423
      %s427 = smul.addr %s426, 2
      %s428 = scalar_lea.vmem %s8, %s427
      %v430 = vld [vmem:[%s0] sm:$0xff]
      %v431 = vld [vmem:[%s0 + $0x8] sm:$0xff]
      %v432 = vld [vmem:[%s0 + $0x10] sm:$0xff]
      %v433 = vld [vmem:[%s0 + $0x18] sm:$0xff]
      %v434 = vld [vmem:[%s0 + $0x20] sm:$0xff]
      %v435 = vld [vmem:[%s0 + $0x28] sm:$0xff]
      %v436 = vld [vmem:[%s0 + $0x30] sm:$0xff]
      %v437 = vld [vmem:[%s0 + $0x38] sm:$0xff]
      %v438 = vld [vmem:[%s0 + $0x40] sm:$0xff]
      %v439 = vld [vmem:[%s0 + $0x48] sm:$0xff]
      %v440 = vld [vmem:[%s0 + $0x50] sm:$0xff]
      %v441 = vld [vmem:[%s0 + $0x58] sm:$0xff]
      %v442 = vld [vmem:[%s0 + $0x60] sm:$0xff]
      %v443 = vld [vmem:[%s0 + $0x68] sm:$0xff]
      %v444 = vld [vmem:[%s0 + $0x70] sm:$0xff]
      %v445 = vld [vmem:[%s0 + $0x78] sm:$0xff]
      %v446 = vld [vmem:[%s0 + $0x80] sm:$0xff]
      %v447 = vld [vmem:[%s0 + $0x88] sm:$0xff]
      %v448 = vld [vmem:[%s0 + $0x90] sm:$0xff]
      %v449 = vld [vmem:[%s0 + $0x98] sm:$0xff]
      %v450 = vld [vmem:[%s0 + $0xa0] sm:$0xff]
      %v451 = vld [vmem:[%s0 + $0xa8] sm:$0xff]
      %v452 = vld [vmem:[%s0 + $0xb0] sm:$0xff]
      %v453 = vld [vmem:[%s0 + $0xb8] sm:$0xff]
      %v454 = vld [vmem:[%s0 + $0xc0] sm:$0xff]
      %v455 = vld [vmem:[%s0 + $0xc8] sm:$0xff]
      %v456 = vld [vmem:[%s0 + $0xd0] sm:$0xff]
      %v457 = vld [vmem:[%s0 + $0xd8] sm:$0xff]
      %v458 = vld [vmem:[%s0 + $0xe0] sm:$0xff]
      %v459 = vld [vmem:[%s0 + $0xe8] sm:$0xff]
      %v460 = vld [vmem:[%s0 + $0xf0] sm:$0xff]
      %v461 = vld [vmem:[%s0 + $0xf8] sm:$0xff]
      %v462 = vld [vmem:[%s0 + $0x100] sm:$0xff]
      %v463 = vld [vmem:[%s0 + $0x108] sm:$0xff]
      %v464 = vld [vmem:[%s0 + $0x110] sm:$0xff]
      %v465 = vld [vmem:[%s0 + $0x118] sm:$0xff]
      %vm466 = vcmp.ne.f32.partialorder %v430, 0.0
      %vm467 = vcmp.ne.f32.partialorder %v431, 0.0
      %vm468 = vcmp.ne.f32.partialorder %v432, 0.0
      %vm469 = vcmp.ne.f32.partialorder %v433, 0.0
      %vm470 = vcmp.ne.f32.partialorder %v434, 0.0
      %vm471 = vcmp.ne.f32.partialorder %v435, 0.0
      %vm472 = vcmp.ne.f32.partialorder %v436, 0.0
      %vm473 = vcmp.ne.f32.partialorder %v437, 0.0
      %vm474 = vcmp.ne.f32.partialorder %v438, 0.0
      %vm475 = vcmp.ne.f32.partialorder %v439, 0.0
      %vm476 = vcmp.ne.f32.partialorder %v440, 0.0
      %vm477 = vcmp.ne.f32.partialorder %v441, 0.0
      %vm478 = vcmp.ne.f32.partialorder %v442, 0.0
      %vm479 = vcmp.ne.f32.partialorder %v443, 0.0
      %vm480 = vcmp.ne.f32.partialorder %v444, 0.0
      %vm481 = vcmp.ne.f32.partialorder %v445, 0.0
      %vm482 = vcmp.ne.f32.partialorder %v446, 0.0
      %vm483 = vcmp.ne.f32.partialorder %v447, 0.0
      %vm484 = vcmp.ne.f32.partialorder %v448, 0.0
      %vm485 = vcmp.ne.f32.partialorder %v449, 0.0
      %vm486 = vcmp.ne.f32.partialorder %v450, 0.0
      %vm487 = vcmp.ne.f32.partialorder %v451, 0.0
      %vm488 = vcmp.ne.f32.partialorder %v452, 0.0
      %vm489 = vcmp.ne.f32.partialorder %v453, 0.0
      %vm490 = vcmp.ne.f32.partialorder %v454, 0.0
      %vm491 = vcmp.ne.f32.partialorder %v455, 0.0
      %vm492 = vcmp.ne.f32.partialorder %v456, 0.0
      %vm493 = vcmp.ne.f32.partialorder %v457, 0.0
      %vm494 = vcmp.ne.f32.partialorder %v458, 0.0
      %vm495 = vcmp.ne.f32.partialorder %v459, 0.0
      %vm496 = vcmp.ne.f32.partialorder %v460, 0.0
      %vm497 = vcmp.ne.f32.partialorder %v461, 0.0
      %vm498 = vcmp.ne.f32.partialorder %v462, 0.0
      %vm499 = vcmp.ne.f32.partialorder %v463, 0.0
      %vm500 = vcmp.ne.f32.partialorder %v464, 0.0
      %vm501 = vcmp.ne.f32.partialorder %v465, 0.0
      %v502 = vld [vmem:[%s0 + $0x10] sm:$0x3]
      %vm503 = vcmp.ne.f32.partialorder %v502, 0.0
      %v504 = vld [vmem:[%s394] sm:$0xf]
      %v505 = vld [vmem:[%s394 + $0x4] sm:$0xf]
      %v506 = vld [vmem:[%s394 + $0x8] sm:$0x1]
      %v507 = vunpack.c.l.bf16 %v504
      %v508 = vunpack.c.l.bf16 %v505
      %v509 = vunpack.c.l.bf16 %v506
      %v510 = vld [vmem:[%s5] sm:$0x1]
      %v512 = vlaneseq
      %v513 = vshrl.u32 %v512, 7
      %v514 = vsub.s32 0, %v513
      %v515 = vrot.slane %v510, %v514
      %v517 = vmul.f32 %v507, %v515
      %v518 = vmul.f32 %v508, %v515
      %v519 = vmul.f32 %v509, %v515
      %v520 = vld [vmem:[%s6] sm:$0x1]
      %v522 = vlaneseq
      %v523 = vshrl.u32 %v522, 7
      %v524 = vsub.s32 0, %v523
      %v525 = vrot.slane %v520, %v524
      %v527 = vadd.f32 %v517, %v525
      %v528 = vadd.f32 %v518, %v525
      %v529 = vadd.f32 %v519, %v525
      %v530 = vmax.f32 %v527, 0.0
      %v531 = vmax.f32 %v528, 0.0
      %v532 = vmax.f32 %v529, 0.0
      %v533 = vsel %vm466, 1, 0
      %v534 = vsel %vm467, 1, 0
      %v535 = vsel %vm503, 1, 0
      %536 = vset.pattern.permute.xlu0 0
      %537 = vperm.xlu0 %536, %v533
      %v538 = vpop.permute.xlu0 %537
      %539 = vset.pattern.permute.xlu0 0
      %540 = vperm.xlu0 %539, %v534
      %v541 = vpop.permute.xlu0 %540
      %542 = vset.pattern.permute.xlu0 0
      %543 = vperm.xlu0 %542, %v535
      %v544 = vpop.permute.xlu0 %543
      %vm545 = vcmp.eq.s32.totalorder %v538, 1
      %vm546 = vcmp.eq.s32.totalorder %v541, 1
      %vm547 = vcmp.eq.s32.totalorder %v544, 1
      %v548 = vsel %vm545, %v530, 0.0
      %v549 = vsel %vm546, %v531, 0.0
      %v550 = vsel %vm547, %v532, 0.0
      %p551 = scmp.eq.s32.totalorder %s25, 0
      %s552 = scalar_select %p551, 1, 0
      %v553 = vstv %s552
      %vm554 = vcmp.eq.s32.totalorder %v553, 1
      %v555 = vsel %vm554, 0.0, %v548
      %v556 = vsel %vm554, 0.0, %v549
      %v557 = vsel %vm554, 0.0, %v550
      %v558 = vld [vmem:[%s412] sm:$0xf]
      %v559 = vld [vmem:[%s412 + $0x4] sm:$0xf]
      %v560 = vld [vmem:[%s412 + $0x8] sm:$0x1]
      %v561 = vunpack.c.l.bf16 %v558
      %v562 = vunpack.c.l.bf16 %v559
      %v563 = vunpack.c.l.bf16 %v560
      %v564 = vmul.f32 %v561, %v515
      %v565 = vmul.f32 %v562, %v515
      %v566 = vmul.f32 %v563, %v515
      %v567 = vadd.f32 %v564, %v525
      %v568 = vadd.f32 %v565, %v525
      %v569 = vadd.f32 %v566, %v525
      %v570 = vmax.f32 %v567, 0.0
      %v571 = vmax.f32 %v568, 0.0
      %v572 = vmax.f32 %v569, 0.0
      %v573 = vsel %vm545, %v570, 0.0
      %v574 = vsel %vm546, %v571, 0.0
      %v575 = vsel %vm547, %v572, 0.0
      %v576 = vsel %vm554, 0.0, %v573
      %v577 = vsel %vm554, 0.0, %v574
      %v578 = vsel %vm554, 0.0, %v575
      %v579 = vld [vmem:[%s403] sm:$0xf]
      %v580 = vld [vmem:[%s403 + $0x4] sm:$0xf]
      %v581 = vld [vmem:[%s403 + $0x8] sm:$0xf]
      %v582 = vld [vmem:[%s403 + $0xc] sm:$0xf]
      %v583 = vld [vmem:[%s403 + $0x10] sm:$0xf]
      %v584 = vld [vmem:[%s403 + $0x14] sm:$0xf]
      %v585 = vld [vmem:[%s403 + $0x18] sm:$0xf]
      %v586 = vld [vmem:[%s403 + $0x1c] sm:$0xf]
      %v587 = vld [vmem:[%s403 + $0x20] sm:$0xf]
      %v588 = vld [vmem:[%s403 + $0x24] sm:$0xf]
      %v589 = vld [vmem:[%s403 + $0x28] sm:$0xf]
      %v590 = vld [vmem:[%s403 + $0x2c] sm:$0xf]
      %v591 = vld [vmem:[%s403 + $0x30] sm:$0xf]
      %v592 = vld [vmem:[%s403 + $0x34] sm:$0xf]
      %v593 = vld [vmem:[%s403 + $0x38] sm:$0xf]
      %v594 = vld [vmem:[%s403 + $0x3c] sm:$0xf]
      %v595 = vld [vmem:[%s403 + $0x40] sm:$0xf]
      %v596 = vld [vmem:[%s403 + $0x44] sm:$0xf]
      %v597 = vld [vmem:[%s403 + $0x48] sm:$0xf]
      %v598 = vld [vmem:[%s403 + $0x4c] sm:$0xf]
      %v599 = vld [vmem:[%s403 + $0x50] sm:$0xf]
      %v600 = vld [vmem:[%s403 + $0x54] sm:$0xf]
      %v601 = vld [vmem:[%s403 + $0x58] sm:$0xf]
      %v602 = vld [vmem:[%s403 + $0x5c] sm:$0xf]
      %v603 = vld [vmem:[%s403 + $0x60] sm:$0xf]
      %v604 = vld [vmem:[%s403 + $0x64] sm:$0xf]
      %v605 = vld [vmem:[%s403 + $0x68] sm:$0xf]
      %v606 = vld [vmem:[%s403 + $0x6c] sm:$0xf]
      %v607 = vld [vmem:[%s403 + $0x70] sm:$0xf]
      %v608 = vld [vmem:[%s403 + $0x74] sm:$0xf]
      %v609 = vld [vmem:[%s403 + $0x78] sm:$0xf]
      %v610 = vld [vmem:[%s403 + $0x7c] sm:$0xf]
      %v611 = vld [vmem:[%s403 + $0x80] sm:$0xf]
      %v612 = vld [vmem:[%s403 + $0x84] sm:$0xf]
      %v613 = vld [vmem:[%s403 + $0x88] sm:$0xf]
      %v614 = vld [vmem:[%s403 + $0x8c] sm:$0xf]
      %v615 = vunpack.c.l.bf16 %v579
      %v616 = vunpack.c.l.bf16 %v580
      %v617 = vunpack.c.l.bf16 %v581
      %v618 = vunpack.c.l.bf16 %v582
      %v619 = vunpack.c.l.bf16 %v583
      %v620 = vunpack.c.l.bf16 %v584
      %v621 = vunpack.c.l.bf16 %v585
      %v622 = vunpack.c.l.bf16 %v586
      %v623 = vunpack.c.l.bf16 %v587
      %v624 = vunpack.c.l.bf16 %v588
      %v625 = vunpack.c.l.bf16 %v589
      %v626 = vunpack.c.l.bf16 %v590
      %v627 = vunpack.c.l.bf16 %v591
      %v628 = vunpack.c.l.bf16 %v592
      %v629 = vunpack.c.l.bf16 %v593
      %v630 = vunpack.c.l.bf16 %v594
      %v631 = vunpack.c.l.bf16 %v595
      %v632 = vunpack.c.l.bf16 %v596
      %v633 = vunpack.c.l.bf16 %v597
      %v634 = vunpack.c.l.bf16 %v598
      %v635 = vunpack.c.l.bf16 %v599
      %v636 = vunpack.c.l.bf16 %v600
      %v637 = vunpack.c.l.bf16 %v601
      %v638 = vunpack.c.l.bf16 %v602
      %v639 = vunpack.c.l.bf16 %v603
      %v640 = vunpack.c.l.bf16 %v604
      %v641 = vunpack.c.l.bf16 %v605
      %v642 = vunpack.c.l.bf16 %v606
      %v643 = vunpack.c.l.bf16 %v607
      %v644 = vunpack.c.l.bf16 %v608
      %v645 = vunpack.c.l.bf16 %v609
      %v646 = vunpack.c.l.bf16 %v610
      %v647 = vunpack.c.l.bf16 %v611
      %v648 = vunpack.c.l.bf16 %v612
      %v649 = vunpack.c.l.bf16 %v613
      %v650 = vunpack.c.l.bf16 %v614
      %v651 = vmul.f32 %v615, %v515
      %v652 = vmul.f32 %v616, %v515
      %v653 = vmul.f32 %v617, %v515
      %v654 = vmul.f32 %v618, %v515
      %v655 = vmul.f32 %v619, %v515
      %v656 = vmul.f32 %v620, %v515
      %v657 = vmul.f32 %v621, %v515
      %v658 = vmul.f32 %v622, %v515
      %v659 = vmul.f32 %v623, %v515
      %v660 = vmul.f32 %v624, %v515
      %v661 = vmul.f32 %v625, %v515
      %v662 = vmul.f32 %v626, %v515
      %v663 = vmul.f32 %v627, %v515
      %v664 = vmul.f32 %v628, %v515
      %v665 = vmul.f32 %v629, %v515
      %v666 = vmul.f32 %v630, %v515
      %v667 = vmul.f32 %v631, %v515
      %v668 = vmul.f32 %v632, %v515
      %v669 = vmul.f32 %v633, %v515
      %v670 = vmul.f32 %v634, %v515
      %v671 = vmul.f32 %v635, %v515
      %v672 = vmul.f32 %v636, %v515
      %v673 = vmul.f32 %v637, %v515
      %v674 = vmul.f32 %v638, %v515
      %v675 = vmul.f32 %v639, %v515
      %v676 = vmul.f32 %v640, %v515
      %v677 = vmul.f32 %v641, %v515
      %v678 = vmul.f32 %v642, %v515
      %v679 = vmul.f32 %v643, %v515
      %v680 = vmul.f32 %v644, %v515
      %v681 = vmul.f32 %v645, %v515
      %v682 = vmul.f32 %v646, %v515
      %v683 = vmul.f32 %v647, %v515
      %v684 = vmul.f32 %v648, %v515
      %v685 = vmul.f32 %v649, %v515
      %v686 = vmul.f32 %v650, %v515
      %v687 = vadd.f32 %v651, %v525
      %v688 = vadd.f32 %v652, %v525
      %v689 = vadd.f32 %v653, %v525
      %v690 = vadd.f32 %v654, %v525
      %v691 = vadd.f32 %v655, %v525
      %v692 = vadd.f32 %v656, %v525
      %v693 = vadd.f32 %v657, %v525
      %v694 = vadd.f32 %v658, %v525
      %v695 = vadd.f32 %v659, %v525
      %v696 = vadd.f32 %v660, %v525
      %v697 = vadd.f32 %v661, %v525
      %v698 = vadd.f32 %v662, %v525
      %v699 = vadd.f32 %v663, %v525
      %v700 = vadd.f32 %v664, %v525
      %v701 = vadd.f32 %v665, %v525
      %v702 = vadd.f32 %v666, %v525
      %v703 = vadd.f32 %v667, %v525
      %v704 = vadd.f32 %v668, %v525
      %v705 = vadd.f32 %v669, %v525
      %v706 = vadd.f32 %v670, %v525
      %v707 = vadd.f32 %v671, %v525
      %v708 = vadd.f32 %v672, %v525
      %v709 = vadd.f32 %v673, %v525
      %v710 = vadd.f32 %v674, %v525
      %v711 = vadd.f32 %v675, %v525
      %v712 = vadd.f32 %v676, %v525
      %v713 = vadd.f32 %v677, %v525
      %v714 = vadd.f32 %v678, %v525
      %v715 = vadd.f32 %v679, %v525
      %v716 = vadd.f32 %v680, %v525
      %v717 = vadd.f32 %v681, %v525
      %v718 = vadd.f32 %v682, %v525
      %v719 = vadd.f32 %v683, %v525
      %v720 = vadd.f32 %v684, %v525
      %v721 = vadd.f32 %v685, %v525
      %v722 = vadd.f32 %v686, %v525
      %v723 = vmax.f32 %v687, 0.0
      %v724 = vmax.f32 %v688, 0.0
      %v725 = vmax.f32 %v689, 0.0
      %v726 = vmax.f32 %v690, 0.0
      %v727 = vmax.f32 %v691, 0.0
      %v728 = vmax.f32 %v692, 0.0
      %v729 = vmax.f32 %v693, 0.0
      %v730 = vmax.f32 %v694, 0.0
      %v731 = vmax.f32 %v695, 0.0
      %v732 = vmax.f32 %v696, 0.0
      %v733 = vmax.f32 %v697, 0.0
      %v734 = vmax.f32 %v698, 0.0
      %v735 = vmax.f32 %v699, 0.0
      %v736 = vmax.f32 %v700, 0.0
      %v737 = vmax.f32 %v701, 0.0
      %v738 = vmax.f32 %v702, 0.0
      %v739 = vmax.f32 %v703, 0.0
      %v740 = vmax.f32 %v704, 0.0
      %v741 = vmax.f32 %v705, 0.0
      %v742 = vmax.f32 %v706, 0.0
      %v743 = vmax.f32 %v707, 0.0
      %v744 = vmax.f32 %v708, 0.0
      %v745 = vmax.f32 %v709, 0.0
      %v746 = vmax.f32 %v710, 0.0
      %v747 = vmax.f32 %v711, 0.0
      %v748 = vmax.f32 %v712, 0.0
      %v749 = vmax.f32 %v713, 0.0
      %v750 = vmax.f32 %v714, 0.0
      %v751 = vmax.f32 %v715, 0.0
      %v752 = vmax.f32 %v716, 0.0
      %v753 = vmax.f32 %v717, 0.0
      %v754 = vmax.f32 %v718, 0.0
      %v755 = vmax.f32 %v719, 0.0
      %v756 = vmax.f32 %v720, 0.0
      %v757 = vmax.f32 %v721, 0.0
      %v758 = vmax.f32 %v722, 0.0
      %v759 = vsel %vm468, 1, 0
      %v760 = vsel %vm469, 1, 0
      %v761 = vsel %vm470, 1, 0
      %v762 = vsel %vm471, 1, 0
      %v763 = vsel %vm472, 1, 0
      %v764 = vsel %vm473, 1, 0
      %v765 = vsel %vm474, 1, 0
      %v766 = vsel %vm475, 1, 0
      %v767 = vsel %vm476, 1, 0
      %v768 = vsel %vm477, 1, 0
      %v769 = vsel %vm478, 1, 0
      %v770 = vsel %vm479, 1, 0
      %v771 = vsel %vm480, 1, 0
      %v772 = vsel %vm481, 1, 0
      %v773 = vsel %vm482, 1, 0
      %v774 = vsel %vm483, 1, 0
      %v775 = vsel %vm484, 1, 0
      %v776 = vsel %vm485, 1, 0
      %v777 = vsel %vm486, 1, 0
      %v778 = vsel %vm487, 1, 0
      %v779 = vsel %vm488, 1, 0
      %v780 = vsel %vm489, 1, 0
      %v781 = vsel %vm490, 1, 0
      %v782 = vsel %vm491, 1, 0
      %v783 = vsel %vm492, 1, 0
      %v784 = vsel %vm493, 1, 0
      %v785 = vsel %vm494, 1, 0
      %v786 = vsel %vm495, 1, 0
      %v787 = vsel %vm496, 1, 0
      %v788 = vsel %vm497, 1, 0
      %v789 = vsel %vm498, 1, 0
      %v790 = vsel %vm499, 1, 0
      %v791 = vsel %vm500, 1, 0
      %v792 = vsel %vm501, 1, 0
      %793 = vset.pattern.permute.xlu0 0
      %794 = vperm.xlu0 %793, %v533
      %v795 = vpop.permute.xlu0 %794
      %796 = vset.pattern.permute.xlu0 0
      %797 = vperm.xlu0 %796, %v534
      %v798 = vpop.permute.xlu0 %797
      %799 = vset.pattern.permute.xlu0 0
      %800 = vperm.xlu0 %799, %v759
      %v801 = vpop.permute.xlu0 %800
      %802 = vset.pattern.permute.xlu0 0
      %803 = vperm.xlu0 %802, %v760
      %v804 = vpop.permute.xlu0 %803
      %805 = vset.pattern.permute.xlu0 0
      %806 = vperm.xlu0 %805, %v761
      %v807 = vpop.permute.xlu0 %806
      %808 = vset.pattern.permute.xlu0 0
      %809 = vperm.xlu0 %808, %v762
      %v810 = vpop.permute.xlu0 %809
      %811 = vset.pattern.permute.xlu0 0
      %812 = vperm.xlu0 %811, %v763
      %v813 = vpop.permute.xlu0 %812
      %814 = vset.pattern.permute.xlu0 0
      %815 = vperm.xlu0 %814, %v764
      %v816 = vpop.permute.xlu0 %815
      %817 = vset.pattern.permute.xlu0 0
      %818 = vperm.xlu0 %817, %v765
      %v819 = vpop.permute.xlu0 %818
      %820 = vset.pattern.permute.xlu0 0
      %821 = vperm.xlu0 %820, %v766
      %v822 = vpop.permute.xlu0 %821
      %823 = vset.pattern.permute.xlu0 0
      %824 = vperm.xlu0 %823, %v767
      %v825 = vpop.permute.xlu0 %824
      %826 = vset.pattern.permute.xlu0 0
      %827 = vperm.xlu0 %826, %v768
      %v828 = vpop.permute.xlu0 %827
      %829 = vset.pattern.permute.xlu0 0
      %830 = vperm.xlu0 %829, %v769
      %v831 = vpop.permute.xlu0 %830
      %832 = vset.pattern.permute.xlu0 0
      %833 = vperm.xlu0 %832, %v770
      %v834 = vpop.permute.xlu0 %833
      %835 = vset.pattern.permute.xlu0 0
      %836 = vperm.xlu0 %835, %v771
      %v837 = vpop.permute.xlu0 %836
      %838 = vset.pattern.permute.xlu0 0
      %839 = vperm.xlu0 %838, %v772
      %v840 = vpop.permute.xlu0 %839
      %841 = vset.pattern.permute.xlu0 0
      %842 = vperm.xlu0 %841, %v773
      %v843 = vpop.permute.xlu0 %842
      %844 = vset.pattern.permute.xlu0 0
      %845 = vperm.xlu0 %844, %v774
      %v846 = vpop.permute.xlu0 %845
      %847 = vset.pattern.permute.xlu0 0
      %848 = vperm.xlu0 %847, %v775
      %v849 = vpop.permute.xlu0 %848
      %850 = vset.pattern.permute.xlu0 0
      %851 = vperm.xlu0 %850, %v776
      %v852 = vpop.permute.xlu0 %851
      %853 = vset.pattern.permute.xlu0 0
      %854 = vperm.xlu0 %853, %v777
      %v855 = vpop.permute.xlu0 %854
      %856 = vset.pattern.permute.xlu0 0
      %857 = vperm.xlu0 %856, %v778
      %v858 = vpop.permute.xlu0 %857
      %859 = vset.pattern.permute.xlu0 0
      %860 = vperm.xlu0 %859, %v779
      %v861 = vpop.permute.xlu0 %860
      %862 = vset.pattern.permute.xlu0 0
      %863 = vperm.xlu0 %862, %v780
      %v864 = vpop.permute.xlu0 %863
      %865 = vset.pattern.permute.xlu0 0
      %866 = vperm.xlu0 %865, %v781
      %v867 = vpop.permute.xlu0 %866
      %868 = vset.pattern.permute.xlu0 0
      %869 = vperm.xlu0 %868, %v782
      %v870 = vpop.permute.xlu0 %869
      %871 = vset.pattern.permute.xlu0 0
      %872 = vperm.xlu0 %871, %v783
      %v873 = vpop.permute.xlu0 %872
      %874 = vset.pattern.permute.xlu0 0
      %875 = vperm.xlu0 %874, %v784
      %v876 = vpop.permute.xlu0 %875
      %877 = vset.pattern.permute.xlu0 0
      %878 = vperm.xlu0 %877, %v785
      %v879 = vpop.permute.xlu0 %878
      %880 = vset.pattern.permute.xlu0 0
      %881 = vperm.xlu0 %880, %v786
      %v882 = vpop.permute.xlu0 %881
      %883 = vset.pattern.permute.xlu0 0
      %884 = vperm.xlu0 %883, %v787
      %v885 = vpop.permute.xlu0 %884
      %886 = vset.pattern.permute.xlu0 0
      %887 = vperm.xlu0 %886, %v788
      %v888 = vpop.permute.xlu0 %887
      %889 = vset.pattern.permute.xlu0 0
      %890 = vperm.xlu0 %889, %v789
      %v891 = vpop.permute.xlu0 %890
      %892 = vset.pattern.permute.xlu0 0
      %893 = vperm.xlu0 %892, %v790
      %v894 = vpop.permute.xlu0 %893
      %895 = vset.pattern.permute.xlu0 0
      %896 = vperm.xlu0 %895, %v791
      %v897 = vpop.permute.xlu0 %896
      %898 = vset.pattern.permute.xlu0 0
      %899 = vperm.xlu0 %898, %v792
      %v900 = vpop.permute.xlu0 %899
      %vm901 = vcmp.eq.s32.totalorder %v795, 1
      %vm902 = vcmp.eq.s32.totalorder %v798, 1
      %vm903 = vcmp.eq.s32.totalorder %v801, 1
      %vm904 = vcmp.eq.s32.totalorder %v804, 1
      %vm905 = vcmp.eq.s32.totalorder %v807, 1
      %vm906 = vcmp.eq.s32.totalorder %v810, 1
      %vm907 = vcmp.eq.s32.totalorder %v813, 1
      %vm908 = vcmp.eq.s32.totalorder %v816, 1
      %vm909 = vcmp.eq.s32.totalorder %v819, 1
      %vm910 = vcmp.eq.s32.totalorder %v822, 1
      %vm911 = vcmp.eq.s32.totalorder %v825, 1
      %vm912 = vcmp.eq.s32.totalorder %v828, 1
      %vm913 = vcmp.eq.s32.totalorder %v831, 1
      %vm914 = vcmp.eq.s32.totalorder %v834, 1
      %vm915 = vcmp.eq.s32.totalorder %v837, 1
      %vm916 = vcmp.eq.s32.totalorder %v840, 1
      %vm917 = vcmp.eq.s32.totalorder %v843, 1
      %vm918 = vcmp.eq.s32.totalorder %v846, 1
      %vm919 = vcmp.eq.s32.totalorder %v849, 1
      %vm920 = vcmp.eq.s32.totalorder %v852, 1
      %vm921 = vcmp.eq.s32.totalorder %v855, 1
      %vm922 = vcmp.eq.s32.totalorder %v858, 1
      %vm923 = vcmp.eq.s32.totalorder %v861, 1
      %vm924 = vcmp.eq.s32.totalorder %v864, 1
      %vm925 = vcmp.eq.s32.totalorder %v867, 1
      %vm926 = vcmp.eq.s32.totalorder %v870, 1
      %vm927 = vcmp.eq.s32.totalorder %v873, 1
      %vm928 = vcmp.eq.s32.totalorder %v876, 1
      %vm929 = vcmp.eq.s32.totalorder %v879, 1
      %vm930 = vcmp.eq.s32.totalorder %v882, 1
      %vm931 = vcmp.eq.s32.totalorder %v885, 1
      %vm932 = vcmp.eq.s32.totalorder %v888, 1
      %vm933 = vcmp.eq.s32.totalorder %v891, 1
      %vm934 = vcmp.eq.s32.totalorder %v894, 1
      %vm935 = vcmp.eq.s32.totalorder %v897, 1
      %vm936 = vcmp.eq.s32.totalorder %v900, 1
      %v937 = vsel %vm901, %v723, 0.0
      %v938 = vsel %vm902, %v724, 0.0
      %v939 = vsel %vm903, %v725, 0.0
      %v940 = vsel %vm904, %v726, 0.0
      %v941 = vsel %vm905, %v727, 0.0
      %v942 = vsel %vm906, %v728, 0.0
      %v943 = vsel %vm907, %v729, 0.0
      %v944 = vsel %vm908, %v730, 0.0
      %v945 = vsel %vm909, %v731, 0.0
      %v946 = vsel %vm910, %v732, 0.0
      %v947 = vsel %vm911, %v733, 0.0
      %v948 = vsel %vm912, %v734, 0.0
      %v949 = vsel %vm913, %v735, 0.0
      %v950 = vsel %vm914, %v736, 0.0
      %v951 = vsel %vm915, %v737, 0.0
      %v952 = vsel %vm916, %v738, 0.0
      %v953 = vsel %vm917, %v739, 0.0
      %v954 = vsel %vm918, %v740, 0.0
      %v955 = vsel %vm919, %v741, 0.0
      %v956 = vsel %vm920, %v742, 0.0
      %v957 = vsel %vm921, %v743, 0.0
      %v958 = vsel %vm922, %v744, 0.0
      %v959 = vsel %vm923, %v745, 0.0
      %v960 = vsel %vm924, %v746, 0.0
      %v961 = vsel %vm925, %v747, 0.0
      %v962 = vsel %vm926, %v748, 0.0
      %v963 = vsel %vm927, %v749, 0.0
      %v964 = vsel %vm928, %v750, 0.0
      %v965 = vsel %vm929, %v751, 0.0
      %v966 = vsel %vm930, %v752, 0.0
      %v967 = vsel %vm931, %v753, 0.0
      %v968 = vsel %vm932, %v754, 0.0
      %v969 = vsel %vm933, %v755, 0.0
      %v970 = vsel %vm934, %v756, 0.0
      %v971 = vsel %vm935, %v757, 0.0
      %v972 = vsel %vm936, %v758, 0.0
      %973 = vst [vmem:[#allocation2] sm:$0xff] 0.0
      %974 = vst [vmem:[#allocation2 + $0x8] sm:$0xff] %v555
      %975 = vst [vmem:[#allocation2 + $0x10] sm:$0xff] %v556
      %976 = vst [vmem:[#allocation2 + $0x18] sm:$0x3] %v557
      %977 = vst [vmem:[#allocation2 + $0x1a] sm:$0xff] %v937
      %978 = vst [vmem:[#allocation2 + $0x22] sm:$0xff] %v938
      %979 = vst [vmem:[#allocation2 + $0x2a] sm:$0xff] %v939
      %980 = vst [vmem:[#allocation2 + $0x32] sm:$0xff] %v940
      %981 = vst [vmem:[#allocation2 + $0x3a] sm:$0xff] %v941
      %982 = vst [vmem:[#allocation2 + $0x42] sm:$0xff] %v942
      %983 = vst [vmem:[#allocation2 + $0x4a] sm:$0xff] %v943
      %984 = vst [vmem:[#allocation2 + $0x52] sm:$0xff] %v944
      %985 = vst [vmem:[#allocation2 + $0x5a] sm:$0xff] %v945
      %986 = vst [vmem:[#allocation2 + $0x62] sm:$0xff] %v946
      %987 = vst [vmem:[#allocation2 + $0x6a] sm:$0xff] %v947
      %988 = vst [vmem:[#allocation2 + $0x72] sm:$0xff] %v948
      %989 = vst [vmem:[#allocation2 + $0x7a] sm:$0xff] %v949
      %990 = vst [vmem:[#allocation2 + $0x82] sm:$0xff] %v950
      %991 = vst [vmem:[#allocation2 + $0x8a] sm:$0xff] %v951
      %992 = vst [vmem:[#allocation2 + $0x92] sm:$0xff] %v952
      %993 = vst [vmem:[#allocation2 + $0x9a] sm:$0xff] %v953
      %994 = vst [vmem:[#allocation2 + $0xa2] sm:$0xff] %v954
      %995 = vst [vmem:[#allocation2 + $0xaa] sm:$0xff] %v955
      %996 = vst [vmem:[#allocation2 + $0xb2] sm:$0xff] %v956
      %997 = vst [vmem:[#allocation2 + $0xba] sm:$0xff] %v957
      %998 = vst [vmem:[#allocation2 + $0xc2] sm:$0xff] %v958
      %999 = vst [vmem:[#allocation2 + $0xca] sm:$0xff] %v959
      %1000 = vst [vmem:[#allocation2 + $0xd2] sm:$0xff] %v960
      %1001 = vst [vmem:[#allocation2 + $0xda] sm:$0xff] %v961
      %1002 = vst [vmem:[#allocation2 + $0xe2] sm:$0xff] %v962
      %1003 = vst [vmem:[#allocation2 + $0xea] sm:$0xff] %v963
      %1004 = vst [vmem:[#allocation2 + $0xf2] sm:$0xff] %v964
      %1005 = vst [vmem:[#allocation2 + $0xfa] sm:$0xff] %v965
      %1006 = vst [vmem:[#allocation2 + $0x102] sm:$0xff] %v966
      %1007 = vst [vmem:[#allocation2 + $0x10a] sm:$0xff] %v967
      %1008 = vst [vmem:[#allocation2 + $0x112] sm:$0xff] %v968
      %1009 = vst [vmem:[#allocation2 + $0x11a] sm:$0xff] %v969
      %1010 = vst [vmem:[#allocation2 + $0x122] sm:$0xff] %v970
      %1011 = vst [vmem:[#allocation2 + $0x12a] sm:$0xff] %v971
      %1012 = vst [vmem:[#allocation2 + $0x132] sm:$0xff] %v972
      %1013 = vst [vmem:[#allocation2 + $0x13a] sm:$0xff] %v576
      %1014 = vst [vmem:[#allocation2 + $0x142] sm:$0xff] %v577
      %1015 = vst [vmem:[#allocation2 + $0x14a] sm:$0x3] %v578
      %1016 = vst [vmem:[#allocation2 + $0x14c] sm:$0xff] 0.0
      %v1017 = vld [vmem:[#allocation2 + $0x7] sm:$0xff]
      %v1018 = vld [vmem:[#allocation2 + $0xf] sm:$0xff]
      %v1019 = vld [vmem:[#allocation2 + $0x17] sm:$0xff]
      %v1020 = vld [vmem:[#allocation2 + $0x1f] sm:$0xff]
      %v1021 = vld [vmem:[#allocation2 + $0x27] sm:$0xff]
      %v1022 = vld [vmem:[#allocation2 + $0x2f] sm:$0xff]
      %v1023 = vld [vmem:[#allocation2 + $0x37] sm:$0xff]
      %v1024 = vld [vmem:[#allocation2 + $0x3f] sm:$0xff]
      %v1025 = vld [vmem:[#allocation2 + $0x47] sm:$0xff]
      %v1026 = vld [vmem:[#allocation2 + $0x4f] sm:$0xff]
      %v1027 = vld [vmem:[#allocation2 + $0x57] sm:$0xff]
      %v1028 = vld [vmem:[#allocation2 + $0x5f] sm:$0xff]
      %v1029 = vld [vmem:[#allocation2 + $0x67] sm:$0xff]
      %v1030 = vld [vmem:[#allocation2 + $0x6f] sm:$0xff]
      %v1031 = vld [vmem:[#allocation2 + $0x77] sm:$0xff]
      %v1032 = vld [vmem:[#allocation2 + $0x7f] sm:$0xff]
      %v1033 = vld [vmem:[#allocation2 + $0x87] sm:$0xff]
      %v1034 = vld [vmem:[#allocation2 + $0x8f] sm:$0xff]
      %v1035 = vld [vmem:[#allocation2 + $0x97] sm:$0xff]
      %v1036 = vld [vmem:[#allocation2 + $0x9f] sm:$0xff]
      %v1037 = vld [vmem:[#allocation2 + $0xa7] sm:$0xff]
      %v1038 = vld [vmem:[#allocation2 + $0xaf] sm:$0xff]
      %v1039 = vld [vmem:[#allocation2 + $0xb7] sm:$0xff]
      %v1040 = vld [vmem:[#allocation2 + $0xbf] sm:$0xff]
      %v1041 = vld [vmem:[#allocation2 + $0xc7] sm:$0xff]
      %v1042 = vld [vmem:[#allocation2 + $0xcf] sm:$0xff]
      %v1043 = vld [vmem:[#allocation2 + $0xd7] sm:$0xff]
      %v1044 = vld [vmem:[#allocation2 + $0xdf] sm:$0xff]
      %v1045 = vld [vmem:[#allocation2 + $0xe7] sm:$0xff]
      %v1046 = vld [vmem:[#allocation2 + $0xef] sm:$0xff]
      %v1047 = vld [vmem:[#allocation2 + $0xf7] sm:$0xff]
      %v1048 = vld [vmem:[#allocation2 + $0xff] sm:$0xff]
      %v1049 = vld [vmem:[#allocation2 + $0x107] sm:$0xff]
      %v1050 = vld [vmem:[#allocation2 + $0x10f] sm:$0xff]
      %v1051 = vld [vmem:[#allocation2 + $0x117] sm:$0xff]
      %v1052 = vld [vmem:[#allocation2 + $0x11f] sm:$0xff]
      %v1053 = vpack.c.bf16 %v1018, %v1017
      %v1054 = vpack.c.bf16 %v1020, %v1019
      %v1055 = vpack.c.bf16 %v1022, %v1021
      %v1056 = vpack.c.bf16 %v1024, %v1023
      %v1057 = vpack.c.bf16 %v1026, %v1025
      %v1058 = vpack.c.bf16 %v1028, %v1027
      %v1059 = vpack.c.bf16 %v1030, %v1029
      %v1060 = vpack.c.bf16 %v1032, %v1031
      %v1061 = vpack.c.bf16 %v1034, %v1033
      %v1062 = vpack.c.bf16 %v1036, %v1035
      %v1063 = vpack.c.bf16 %v1038, %v1037
      %v1064 = vpack.c.bf16 %v1040, %v1039
      %v1065 = vpack.c.bf16 %v1042, %v1041
      %v1066 = vpack.c.bf16 %v1044, %v1043
      %v1067 = vpack.c.bf16 %v1046, %v1045
      %v1068 = vpack.c.bf16 %v1048, %v1047
      %v1069 = vpack.c.bf16 %v1050, %v1049
      %v1070 = vpack.c.bf16 %v1052, %v1051
      %v1071 = vld [vmem:[%s4] sm:$0xf]
      %v1072 = vld [vmem:[%s4 + $0x4] sm:$0xf]
      %v1073 = vld [vmem:[%s4 + $0x8] sm:$0xf]
      %v1074 = vld [vmem:[%s4 + $0xc] sm:$0xf]
      %v1075 = vld [vmem:[%s4 + $0x10] sm:$0xf]
      %v1076 = vld [vmem:[%s4 + $0x14] sm:$0xf]
      %v1077 = vld [vmem:[%s4 + $0x18] sm:$0xf]
      %v1078 = vld [vmem:[%s4 + $0x1c] sm:$0xf]
      %v1079 = vld [vmem:[%s4 + $0x20] sm:$0xf]
      %v1080 = vld [vmem:[%s4 + $0x24] sm:$0xf]
      %v1081 = vld [vmem:[%s4 + $0x28] sm:$0xf]
      %v1082 = vld [vmem:[%s4 + $0x2c] sm:$0xf]
      %v1083 = vld [vmem:[%s4 + $0x30] sm:$0xf]
      %v1084 = vld [vmem:[%s4 + $0x34] sm:$0xf]
      %v1085 = vld [vmem:[%s4 + $0x38] sm:$0xf]
      %v1086 = vld [vmem:[%s4 + $0x3c] sm:$0xf]
      %v1087 = vld [vmem:[#allocation2 + $0x8] sm:$0xff]
      %v1088 = vld [vmem:[#allocation2 + $0x10] sm:$0xff]
      %v1089 = vld [vmem:[#allocation2 + $0x18] sm:$0xff]
      %v1090 = vld [vmem:[#allocation2 + $0x20] sm:$0xff]
      %v1091 = vld [vmem:[#allocation2 + $0x28] sm:$0xff]
      %v1092 = vld [vmem:[#allocation2 + $0x30] sm:$0xff]
      %v1093 = vld [vmem:[#allocation2 + $0x38] sm:$0xff]
      %v1094 = vld [vmem:[#allocation2 + $0x40] sm:$0xff]
      %v1095 = vld [vmem:[#allocation2 + $0x48] sm:$0xff]
      %v1096 = vld [vmem:[#allocation2 + $0x50] sm:$0xff]
      %v1097 = vld [vmem:[#allocation2 + $0x58] sm:$0xff]
      %v1098 = vld [vmem:[#allocation2 + $0x60] sm:$0xff]
      %v1099 = vld [vmem:[#allocation2 + $0x68] sm:$0xff]
      %v1100 = vld [vmem:[#allocation2 + $0x70] sm:$0xff]
      %v1101 = vld [vmem:[#allocation2 + $0x78] sm:$0xff]
      %v1102 = vld [vmem:[#allocation2 + $0x80] sm:$0xff]
      %v1103 = vld [vmem:[#allocation2 + $0x88] sm:$0xff]
      %v1104 = vld [vmem:[#allocation2 + $0x90] sm:$0xff]
      %v1105 = vld [vmem:[#allocation2 + $0x98] sm:$0xff]
      %v1106 = vld [vmem:[#allocation2 + $0xa0] sm:$0xff]
      %v1107 = vld [vmem:[#allocation2 + $0xa8] sm:$0xff]
      %v1108 = vld [vmem:[#allocation2 + $0xb0] sm:$0xff]
      %v1109 = vld [vmem:[#allocation2 + $0xb8] sm:$0xff]
      %v1110 = vld [vmem:[#allocation2 + $0xc0] sm:$0xff]
      %v1111 = vld [vmem:[#allocation2 + $0xc8] sm:$0xff]
      %v1112 = vld [vmem:[#allocation2 + $0xd0] sm:$0xff]
      %v1113 = vld [vmem:[#allocation2 + $0xd8] sm:$0xff]
      %v1114 = vld [vmem:[#allocation2 + $0xe0] sm:$0xff]
      %v1115 = vld [vmem:[#allocation2 + $0xe8] sm:$0xff]
      %v1116 = vld [vmem:[#allocation2 + $0xf0] sm:$0xff]
      %v1117 = vld [vmem:[#allocation2 + $0xf8] sm:$0xff]
      %v1118 = vld [vmem:[#allocation2 + $0x100] sm:$0xff]
      %v1119 = vld [vmem:[#allocation2 + $0x108] sm:$0xff]
      %v1120 = vld [vmem:[#allocation2 + $0x110] sm:$0xff]
      %v1121 = vld [vmem:[#allocation2 + $0x118] sm:$0xff]
      %v1122 = vld [vmem:[#allocation2 + $0x120] sm:$0xff]
      %v1123 = vpack.c.bf16 %v1088, %v1087
      %v1124 = vpack.c.bf16 %v1090, %v1089
      %v1125 = vpack.c.bf16 %v1092, %v1091
      %v1126 = vpack.c.bf16 %v1094, %v1093
      %v1127 = vpack.c.bf16 %v1096, %v1095
      %v1128 = vpack.c.bf16 %v1098, %v1097
      %v1129 = vpack.c.bf16 %v1100, %v1099
      %v1130 = vpack.c.bf16 %v1102, %v1101
      %v1131 = vpack.c.bf16 %v1104, %v1103
      %v1132 = vpack.c.bf16 %v1106, %v1105
      %v1133 = vpack.c.bf16 %v1108, %v1107
      %v1134 = vpack.c.bf16 %v1110, %v1109
      %v1135 = vpack.c.bf16 %v1112, %v1111
      %v1136 = vpack.c.bf16 %v1114, %v1113
      %v1137 = vpack.c.bf16 %v1116, %v1115
      %v1138 = vpack.c.bf16 %v1118, %v1117
      %v1139 = vpack.c.bf16 %v1120, %v1119
      %v1140 = vpack.c.bf16 %v1122, %v1121
      %s1141 = scalar_lea.vmem %s4, 64
      %v1142 = vld [vmem:[%s1141] sm:$0xf]
      %v1143 = vld [vmem:[%s1141 + $0x4] sm:$0xf]
      %v1144 = vld [vmem:[%s1141 + $0x8] sm:$0xf]
      %v1145 = vld [vmem:[%s1141 + $0xc] sm:$0xf]
      %v1146 = vld [vmem:[%s1141 + $0x10] sm:$0xf]
      %v1147 = vld [vmem:[%s1141 + $0x14] sm:$0xf]
      %v1148 = vld [vmem:[%s1141 + $0x18] sm:$0xf]
      %v1149 = vld [vmem:[%s1141 + $0x1c] sm:$0xf]
      %v1150 = vld [vmem:[%s1141 + $0x20] sm:$0xf]
      %v1151 = vld [vmem:[%s1141 + $0x24] sm:$0xf]
      %v1152 = vld [vmem:[%s1141 + $0x28] sm:$0xf]
      %v1153 = vld [vmem:[%s1141 + $0x2c] sm:$0xf]
      %v1154 = vld [vmem:[%s1141 + $0x30] sm:$0xf]
      %v1155 = vld [vmem:[%s1141 + $0x34] sm:$0xf]
      %v1156 = vld [vmem:[%s1141 + $0x38] sm:$0xf]
      %v1157 = vld [vmem:[%s1141 + $0x3c] sm:$0xf]
      %v1174 = vunpack.c.l.b16 %v1142
      %v1175 = vunpack.c.l.b16 %v1143
      %v1176 = vunpack.c.l.b16 %v1144
      %v1177 = vunpack.c.l.b16 %v1145
      %v1178 = vunpack.c.l.b16 %v1146
      %v1179 = vunpack.c.l.b16 %v1147
      %v1180 = vunpack.c.l.b16 %v1148
      %v1181 = vunpack.c.l.b16 %v1149
      %v1182 = vunpack.c.l.b16 %v1150
      %v1183 = vunpack.c.l.b16 %v1151
      %v1184 = vunpack.c.l.b16 %v1152
      %v1185 = vunpack.c.l.b16 %v1153
      %v1186 = vunpack.c.l.b16 %v1154
      %v1187 = vunpack.c.l.b16 %v1155
      %v1188 = vunpack.c.l.b16 %v1156
      %v1189 = vunpack.c.l.b16 %v1157
      %v1190 = vpack.c.b16 %v1175, %v1174
      %v1191 = vpack.c.b16 %v1177, %v1176
      %v1192 = vpack.c.b16 %v1179, %v1178
      %v1193 = vpack.c.b16 %v1181, %v1180
      %v1194 = vpack.c.b16 %v1183, %v1182
      %v1195 = vpack.c.b16 %v1185, %v1184
      %v1196 = vpack.c.b16 %v1187, %v1186
      %v1197 = vpack.c.b16 %v1189, %v1188
      %1206 = vmatprep.subr.bf16.mxu0 0
      %1207 = vmatpush1.bf16.msra.mxu0 %v1197
      %1208 = vmatprep.subr.bf16.mxu0 0
      %1209 = vmatpush1.bf16.msra.mxu0 %v1196
      %1210 = vmatprep.subr.bf16.mxu0 0
      %1211 = vmatpush1.bf16.msra.mxu0 %v1195
      %1212 = vmatprep.subr.bf16.mxu0 0
      %1213 = vmatpush1.bf16.msra.mxu0 %v1194
      %1214 = vmatprep.subr.bf16.mxu0 0
      %1215 = vmatpush1.bf16.msra.mxu0 %v1193
      %1216 = vmatprep.subr.bf16.mxu0 0
      %1217 = vmatpush1.bf16.msra.mxu0 %v1192
      %1218 = vmatprep.subr.bf16.mxu0 0
      %1219 = vmatpush1.bf16.msra.mxu0 %v1191
      %1220 = vmatprep.subr.bf16.mxu0 0
      %1221 = vmatpush1.bf16.msra.mxu0 %v1190
      %1222 = vmatprep.subr.bf16.mxu0 0
      %1223 = vmatpush2.bf16.msra.mxu0 0
      %1224 = vmatprep.subr.bf16.mxu0 0
      %1225 = vmatpush2.bf16.msra.mxu0 0
      %1226 = vmatprep.subr.bf16.mxu0 0
      %1227 = vmatpush2.bf16.msra.mxu0 0
      %1228 = vmatprep.subr.bf16.mxu0 0
      %1229 = vmatpush2.bf16.msra.mxu0 0
      %1230 = vmatprep.subr.bf16.mxu0 0
      %1231 = vmatpush2.bf16.msra.mxu0 0
      %1232 = vmatprep.subr.bf16.mxu0 0
      %1233 = vmatpush2.bf16.msra.mxu0 0
      %1234 = vmatprep.subr.bf16.mxu0 0
      %1235 = vmatpush2.bf16.msra.mxu0 0
      %1236 = vmatprep.subr.bf16.mxu0 0
      %1237 = vmatpush2.bf16.msra.mxu0 0
      %1238 = vmatprep.mubr.bf16.mxu0 0
      %1239 = vmatmul.mubr.bf16.gmra.mxu0 %v1123
      %v1240 = vpop.f32.mrf.mxu0
      %v1241 = vadd.f32 0.0, %v1240
      %v1242 = vpop.f32.mrf.mxu0
      %v1243 = vpop.f32.mrf.mxu0
      %v1244 = vadd.f32 0.0, %v1243
      %v1245 = vpop.f32.mrf.mxu0
      %1246 = vmatprep.mubr.bf16.mxu0 0
      %1247 = vmatmul.mubr.bf16.gmra.mxu0 %v1124
      %v1248 = vpop.f32.mrf.mxu0
      %v1249 = vadd.f32 0.0, %v1248
      %v1250 = vpop.f32.mrf.mxu0
      %v1251 = vpop.f32.mrf.mxu0
      %v1252 = vadd.f32 0.0, %v1251
      %v1253 = vpop.f32.mrf.mxu0
      %1254 = vmatprep.mubr.bf16.mxu0 0
      %1255 = vmatmul.mubr.bf16.gmra.mxu0 %v1125
      %v1256 = vpop.f32.mrf.mxu0
      %v1257 = vadd.f32 0.0, %v1256
      %v1258 = vpop.f32.mrf.mxu0
      %v1259 = vpop.f32.mrf.mxu0
      %v1260 = vadd.f32 0.0, %v1259
      %v1261 = vpop.f32.mrf.mxu0
      %1262 = vmatprep.mubr.bf16.mxu0 0
      %1263 = vmatmul.mubr.bf16.gmra.mxu0 %v1126
      %v1264 = vpop.f32.mrf.mxu0
      %v1265 = vadd.f32 0.0, %v1264
      %v1266 = vpop.f32.mrf.mxu0
      %v1267 = vpop.f32.mrf.mxu0
      %v1268 = vadd.f32 0.0, %v1267
      %v1269 = vpop.f32.mrf.mxu0
      %1270 = vmatprep.mubr.bf16.mxu0 0
      %1271 = vmatmul.mubr.bf16.gmra.mxu0 %v1127
      %v1272 = vpop.f32.mrf.mxu0
      %v1273 = vadd.f32 0.0, %v1272
      %v1274 = vpop.f32.mrf.mxu0
      %v1275 = vpop.f32.mrf.mxu0
      %v1276 = vadd.f32 0.0, %v1275
      %v1277 = vpop.f32.mrf.mxu0
      %1278 = vmatprep.mubr.bf16.mxu0 0
      %1279 = vmatmul.mubr.bf16.gmra.mxu0 %v1128
      %v1280 = vpop.f32.mrf.mxu0
      %v1281 = vadd.f32 0.0, %v1280
      %v1282 = vpop.f32.mrf.mxu0
      %v1283 = vpop.f32.mrf.mxu0
      %v1284 = vadd.f32 0.0, %v1283
      %v1285 = vpop.f32.mrf.mxu0
      %1286 = vmatprep.mubr.bf16.mxu0 0
      %1287 = vmatmul.mubr.bf16.gmra.mxu0 %v1129
      %v1288 = vpop.f32.mrf.mxu0
      %v1289 = vadd.f32 0.0, %v1288
      %v1290 = vpop.f32.mrf.mxu0
      %v1291 = vpop.f32.mrf.mxu0
      %v1292 = vadd.f32 0.0, %v1291
      %v1293 = vpop.f32.mrf.mxu0
      %1294 = vmatprep.mubr.bf16.mxu0 0
      %1295 = vmatmul.mubr.bf16.gmra.mxu0 %v1130
      %v1296 = vpop.f32.mrf.mxu0
      %v1297 = vadd.f32 0.0, %v1296
      %v1298 = vpop.f32.mrf.mxu0
      %v1299 = vpop.f32.mrf.mxu0
      %v1300 = vadd.f32 0.0, %v1299
      %v1301 = vpop.f32.mrf.mxu0
      %1302 = vmatprep.mubr.bf16.mxu0 0
      %1303 = vmatmul.mubr.bf16.gmra.mxu0 %v1131
      %v1304 = vpop.f32.mrf.mxu0
      %v1305 = vadd.f32 0.0, %v1304
      %v1306 = vpop.f32.mrf.mxu0
      %v1307 = vpop.f32.mrf.mxu0
      %v1308 = vadd.f32 0.0, %v1307
      %v1309 = vpop.f32.mrf.mxu0
      %1310 = vmatprep.mubr.bf16.mxu0 0
      %1311 = vmatmul.mubr.bf16.gmra.mxu0 %v1132
      %v1312 = vpop.f32.mrf.mxu0
      %v1313 = vadd.f32 0.0, %v1312
      %v1314 = vpop.f32.mrf.mxu0
      %v1315 = vpop.f32.mrf.mxu0
      %v1316 = vadd.f32 0.0, %v1315
      %v1317 = vpop.f32.mrf.mxu0
      %1318 = vmatprep.mubr.bf16.mxu0 0
      %1319 = vmatmul.mubr.bf16.gmra.mxu0 %v1133
      %v1320 = vpop.f32.mrf.mxu0
      %v1321 = vadd.f32 0.0, %v1320
      %v1322 = vpop.f32.mrf.mxu0
      %v1323 = vpop.f32.mrf.mxu0
      %v1324 = vadd.f32 0.0, %v1323
      %v1325 = vpop.f32.mrf.mxu0
      %1326 = vmatprep.mubr.bf16.mxu0 0
      %1327 = vmatmul.mubr.bf16.gmra.mxu0 %v1134
      %v1328 = vpop.f32.mrf.mxu0
      %v1329 = vadd.f32 0.0, %v1328
      %v1330 = vpop.f32.mrf.mxu0
      %v1331 = vpop.f32.mrf.mxu0
      %v1332 = vadd.f32 0.0, %v1331
      %v1333 = vpop.f32.mrf.mxu0
      %1334 = vmatprep.mubr.bf16.mxu0 0
      %1335 = vmatmul.mubr.bf16.gmra.mxu0 %v1135
      %v1336 = vpop.f32.mrf.mxu0
      %v1337 = vadd.f32 0.0, %v1336
      %v1338 = vpop.f32.mrf.mxu0
      %v1339 = vpop.f32.mrf.mxu0
      %v1340 = vadd.f32 0.0, %v1339
      %v1341 = vpop.f32.mrf.mxu0
      %1342 = vmatprep.mubr.bf16.mxu0 0
      %1343 = vmatmul.mubr.bf16.gmra.mxu0 %v1136
      %v1344 = vpop.f32.mrf.mxu0
      %v1345 = vadd.f32 0.0, %v1344
      %v1346 = vpop.f32.mrf.mxu0
      %v1347 = vpop.f32.mrf.mxu0
      %v1348 = vadd.f32 0.0, %v1347
      %v1349 = vpop.f32.mrf.mxu0
      %1350 = vmatprep.mubr.bf16.mxu0 0
      %1351 = vmatmul.mubr.bf16.gmra.mxu0 %v1137
      %v1352 = vpop.f32.mrf.mxu0
      %v1353 = vadd.f32 0.0, %v1352
      %v1354 = vpop.f32.mrf.mxu0
      %v1355 = vpop.f32.mrf.mxu0
      %v1356 = vadd.f32 0.0, %v1355
      %v1357 = vpop.f32.mrf.mxu0
      %1358 = vmatprep.mubr.bf16.mxu0 0
      %1359 = vmatmul.mubr.bf16.gmra.mxu0 %v1138
      %v1360 = vpop.f32.mrf.mxu0
      %v1361 = vadd.f32 0.0, %v1360
      %v1362 = vpop.f32.mrf.mxu0
      %v1363 = vpop.f32.mrf.mxu0
      %v1364 = vadd.f32 0.0, %v1363
      %v1365 = vpop.f32.mrf.mxu0
      %1366 = vmatprep.mubr.bf16.mxu0 0
      %1367 = vmatmul.mubr.bf16.gmra.mxu0 %v1139
      %v1368 = vpop.f32.mrf.mxu0
      %v1369 = vadd.f32 0.0, %v1368
      %v1370 = vpop.f32.mrf.mxu0
      %v1371 = vpop.f32.mrf.mxu0
      %v1372 = vadd.f32 0.0, %v1371
      %v1373 = vpop.f32.mrf.mxu0
      %1374 = vmatprep.mubr.bf16.mxu0 0
      %1375 = vmatmul.mubr.bf16.gmra.mxu0 %v1140
      %v1376 = vpop.f32.mrf.mxu0
      %v1377 = vadd.f32 0.0, %v1376
      %v1378 = vpop.f32.mrf.mxu0
      %v1379 = vpop.f32.mrf.mxu0
      %v1380 = vadd.f32 0.0, %v1379
      %v1381 = vpop.f32.mrf.mxu0
      %1382 = vdwg.mxu0
      %v1399 = vunpack.c.l.b16 %v1071
      %v1400 = vunpack.c.l.b16 %v1072
      %v1401 = vunpack.c.l.b16 %v1073
      %v1402 = vunpack.c.l.b16 %v1074
      %v1403 = vunpack.c.l.b16 %v1075
      %v1404 = vunpack.c.l.b16 %v1076
      %v1405 = vunpack.c.l.b16 %v1077
      %v1406 = vunpack.c.l.b16 %v1078
      %v1407 = vunpack.c.l.b16 %v1079
      %v1408 = vunpack.c.l.b16 %v1080
      %v1409 = vunpack.c.l.b16 %v1081
      %v1410 = vunpack.c.l.b16 %v1082
      %v1411 = vunpack.c.l.b16 %v1083
      %v1412 = vunpack.c.l.b16 %v1084
      %v1413 = vunpack.c.l.b16 %v1085
      %v1414 = vunpack.c.l.b16 %v1086
      %v1415 = vpack.c.b16 %v1400, %v1399
      %v1416 = vpack.c.b16 %v1402, %v1401
      %v1417 = vpack.c.b16 %v1404, %v1403
      %v1418 = vpack.c.b16 %v1406, %v1405
      %v1419 = vpack.c.b16 %v1408, %v1407
      %v1420 = vpack.c.b16 %v1410, %v1409
      %v1421 = vpack.c.b16 %v1412, %v1411
      %v1422 = vpack.c.b16 %v1414, %v1413
      %1431 = vmatprep.subr.bf16.mxu0 0
      %1432 = vmatpush1.bf16.msra.mxu0 %v1422
      %1433 = vmatprep.subr.bf16.mxu0 0
      %1434 = vmatpush1.bf16.msra.mxu0 %v1421
      %1435 = vmatprep.subr.bf16.mxu0 0
      %1436 = vmatpush1.bf16.msra.mxu0 %v1420
      %1437 = vmatprep.subr.bf16.mxu0 0
      %1438 = vmatpush1.bf16.msra.mxu0 %v1419
      %1439 = vmatprep.subr.bf16.mxu0 0
      %1440 = vmatpush1.bf16.msra.mxu0 %v1418
      %1441 = vmatprep.subr.bf16.mxu0 0
      %1442 = vmatpush1.bf16.msra.mxu0 %v1417
      %1443 = vmatprep.subr.bf16.mxu0 0
      %1444 = vmatpush1.bf16.msra.mxu0 %v1416
      %1445 = vmatprep.subr.bf16.mxu0 0
      %1446 = vmatpush1.bf16.msra.mxu0 %v1415
      %1447 = vmatprep.subr.bf16.mxu0 0
      %1448 = vmatpush2.bf16.msra.mxu0 0
      %1449 = vmatprep.subr.bf16.mxu0 0
      %1450 = vmatpush2.bf16.msra.mxu0 0
      %1451 = vmatprep.subr.bf16.mxu0 0
      %1452 = vmatpush2.bf16.msra.mxu0 0
      %1453 = vmatprep.subr.bf16.mxu0 0
      %1454 = vmatpush2.bf16.msra.mxu0 0
      %1455 = vmatprep.subr.bf16.mxu0 0
      %1456 = vmatpush2.bf16.msra.mxu0 0
      %1457 = vmatprep.subr.bf16.mxu0 0
      %1458 = vmatpush2.bf16.msra.mxu0 0
      %1459 = vmatprep.subr.bf16.mxu0 0
      %1460 = vmatpush2.bf16.msra.mxu0 0
      %1461 = vmatprep.subr.bf16.mxu0 0
      %1462 = vmatpush2.bf16.msra.mxu0 0
      %1463 = vmatprep.mubr.bf16.mxu0 0
      %1464 = vmatmul.mubr.bf16.gmra.mxu0 %v1053
      %v1465 = vpop.f32.mrf.mxu0
      %v1466 = vadd.f32 %v1241, %v1465
      %v1467 = vpop.f32.mrf.mxu0
      %v1468 = vpop.f32.mrf.mxu0
      %v1469 = vadd.f32 %v1244, %v1468
      %v1470 = vpop.f32.mrf.mxu0
      %1471 = vmatprep.mubr.bf16.mxu0 0
      %1472 = vmatmul.mubr.bf16.gmra.mxu0 %v1054
      %v1473 = vpop.f32.mrf.mxu0
      %v1474 = vadd.f32 %v1249, %v1473
      %v1475 = vpop.f32.mrf.mxu0
      %v1476 = vpop.f32.mrf.mxu0
      %v1477 = vadd.f32 %v1252, %v1476
      %v1478 = vpop.f32.mrf.mxu0
      %1479 = vmatprep.mubr.bf16.mxu0 0
      %1480 = vmatmul.mubr.bf16.gmra.mxu0 %v1055
      %v1481 = vpop.f32.mrf.mxu0
      %v1482 = vadd.f32 %v1257, %v1481
      %v1483 = vpop.f32.mrf.mxu0
      %v1484 = vpop.f32.mrf.mxu0
      %v1485 = vadd.f32 %v1260, %v1484
      %v1486 = vpop.f32.mrf.mxu0
      %1487 = vmatprep.mubr.bf16.mxu0 0
      %1488 = vmatmul.mubr.bf16.gmra.mxu0 %v1056
      %v1489 = vpop.f32.mrf.mxu0
      %v1490 = vadd.f32 %v1265, %v1489
      %v1491 = vpop.f32.mrf.mxu0
      %v1492 = vpop.f32.mrf.mxu0
      %v1493 = vadd.f32 %v1268, %v1492
      %v1494 = vpop.f32.mrf.mxu0
      %1495 = vmatprep.mubr.bf16.mxu0 0
      %1496 = vmatmul.mubr.bf16.gmra.mxu0 %v1057
      %v1497 = vpop.f32.mrf.mxu0
      %v1498 = vadd.f32 %v1273, %v1497
      %v1499 = vpop.f32.mrf.mxu0
      %v1500 = vpop.f32.mrf.mxu0
      %v1501 = vadd.f32 %v1276, %v1500
      %v1502 = vpop.f32.mrf.mxu0
      %1503 = vmatprep.mubr.bf16.mxu0 0
      %1504 = vmatmul.mubr.bf16.gmra.mxu0 %v1058
      %v1505 = vpop.f32.mrf.mxu0
      %v1506 = vadd.f32 %v1281, %v1505
      %v1507 = vpop.f32.mrf.mxu0
      %v1508 = vpop.f32.mrf.mxu0
      %v1509 = vadd.f32 %v1284, %v1508
      %v1510 = vpop.f32.mrf.mxu0
      %1511 = vmatprep.mubr.bf16.mxu0 0
      %1512 = vmatmul.mubr.bf16.gmra.mxu0 %v1059
      %v1513 = vpop.f32.mrf.mxu0
      %v1514 = vadd.f32 %v1289, %v1513
      %v1515 = vpop.f32.mrf.mxu0
      %v1516 = vpop.f32.mrf.mxu0
      %v1517 = vadd.f32 %v1292, %v1516
      %v1518 = vpop.f32.mrf.mxu0
      %1519 = vmatprep.mubr.bf16.mxu0 0
      %1520 = vmatmul.mubr.bf16.gmra.mxu0 %v1060
      %v1521 = vpop.f32.mrf.mxu0
      %v1522 = vadd.f32 %v1297, %v1521
      %v1523 = vpop.f32.mrf.mxu0
      %v1524 = vpop.f32.mrf.mxu0
      %v1525 = vadd.f32 %v1300, %v1524
      %v1526 = vpop.f32.mrf.mxu0
      %1527 = vmatprep.mubr.bf16.mxu0 0
      %1528 = vmatmul.mubr.bf16.gmra.mxu0 %v1061
      %v1529 = vpop.f32.mrf.mxu0
      %v1530 = vadd.f32 %v1305, %v1529
      %v1531 = vpop.f32.mrf.mxu0
      %v1532 = vpop.f32.mrf.mxu0
      %v1533 = vadd.f32 %v1308, %v1532
      %v1534 = vpop.f32.mrf.mxu0
      %1535 = vmatprep.mubr.bf16.mxu0 0
      %1536 = vmatmul.mubr.bf16.gmra.mxu0 %v1062
      %v1537 = vpop.f32.mrf.mxu0
      %v1538 = vadd.f32 %v1313, %v1537
      %v1539 = vpop.f32.mrf.mxu0
      %v1540 = vpop.f32.mrf.mxu0
      %v1541 = vadd.f32 %v1316, %v1540
      %v1542 = vpop.f32.mrf.mxu0
      %1543 = vmatprep.mubr.bf16.mxu0 0
      %1544 = vmatmul.mubr.bf16.gmra.mxu0 %v1063
      %v1545 = vpop.f32.mrf.mxu0
      %v1546 = vadd.f32 %v1321, %v1545
      %v1547 = vpop.f32.mrf.mxu0
      %v1548 = vpop.f32.mrf.mxu0
      %v1549 = vadd.f32 %v1324, %v1548
      %v1550 = vpop.f32.mrf.mxu0
      %1551 = vmatprep.mubr.bf16.mxu0 0
      %1552 = vmatmul.mubr.bf16.gmra.mxu0 %v1064
      %v1553 = vpop.f32.mrf.mxu0
      %v1554 = vadd.f32 %v1329, %v1553
      %v1555 = vpop.f32.mrf.mxu0
      %v1556 = vpop.f32.mrf.mxu0
      %v1557 = vadd.f32 %v1332, %v1556
      %v1558 = vpop.f32.mrf.mxu0
      %1559 = vmatprep.mubr.bf16.mxu0 0
      %1560 = vmatmul.mubr.bf16.gmra.mxu0 %v1065
      %v1561 = vpop.f32.mrf.mxu0
      %v1562 = vadd.f32 %v1337, %v1561
      %v1563 = vpop.f32.mrf.mxu0
      %v1564 = vpop.f32.mrf.mxu0
      %v1565 = vadd.f32 %v1340, %v1564
      %v1566 = vpop.f32.mrf.mxu0
      %1567 = vmatprep.mubr.bf16.mxu0 0
      %1568 = vmatmul.mubr.bf16.gmra.mxu0 %v1066
      %v1569 = vpop.f32.mrf.mxu0
      %v1570 = vadd.f32 %v1345, %v1569
      %v1571 = vpop.f32.mrf.mxu0
      %v1572 = vpop.f32.mrf.mxu0
      %v1573 = vadd.f32 %v1348, %v1572
      %v1574 = vpop.f32.mrf.mxu0
      %1575 = vmatprep.mubr.bf16.mxu0 0
      %1576 = vmatmul.mubr.bf16.gmra.mxu0 %v1067
      %v1577 = vpop.f32.mrf.mxu0
      %v1578 = vadd.f32 %v1353, %v1577
      %v1579 = vpop.f32.mrf.mxu0
      %v1580 = vpop.f32.mrf.mxu0
      %v1581 = vadd.f32 %v1356, %v1580
      %v1582 = vpop.f32.mrf.mxu0
      %1583 = vmatprep.mubr.bf16.mxu0 0
      %1584 = vmatmul.mubr.bf16.gmra.mxu0 %v1068
      %v1585 = vpop.f32.mrf.mxu0
      %v1586 = vadd.f32 %v1361, %v1585
      %v1587 = vpop.f32.mrf.mxu0
      %v1588 = vpop.f32.mrf.mxu0
      %v1589 = vadd.f32 %v1364, %v1588
      %v1590 = vpop.f32.mrf.mxu0
      %1591 = vmatprep.mubr.bf16.mxu0 0
      %1592 = vmatmul.mubr.bf16.gmra.mxu0 %v1069
      %v1593 = vpop.f32.mrf.mxu0
      %v1594 = vadd.f32 %v1369, %v1593
      %v1595 = vpop.f32.mrf.mxu0
      %v1596 = vpop.f32.mrf.mxu0
      %v1597 = vadd.f32 %v1372, %v1596
      %v1598 = vpop.f32.mrf.mxu0
      %1599 = vmatprep.mubr.bf16.mxu0 0
      %1600 = vmatmul.mubr.bf16.gmra.mxu0 %v1070
      %v1601 = vpop.f32.mrf.mxu0
      %v1602 = vadd.f32 %v1377, %v1601
      %v1603 = vpop.f32.mrf.mxu0
      %v1604 = vpop.f32.mrf.mxu0
      %v1605 = vadd.f32 %v1380, %v1604
      %v1606 = vpop.f32.mrf.mxu0
      %1607 = vdwg.mxu0
      %v1608 = vld [vmem:[#allocation2 + $0x9] sm:$0xff]
      %v1609 = vld [vmem:[#allocation2 + $0x11] sm:$0xff]
      %v1610 = vld [vmem:[#allocation2 + $0x19] sm:$0xff]
      %v1611 = vld [vmem:[#allocation2 + $0x21] sm:$0xff]
      %v1612 = vld [vmem:[#allocation2 + $0x29] sm:$0xff]
      %v1613 = vld [vmem:[#allocation2 + $0x31] sm:$0xff]
      %v1614 = vld [vmem:[#allocation2 + $0x39] sm:$0xff]
      %v1615 = vld [vmem:[#allocation2 + $0x41] sm:$0xff]
      %v1616 = vld [vmem:[#allocation2 + $0x49] sm:$0xff]
      %v1617 = vld [vmem:[#allocation2 + $0x51] sm:$0xff]
      %v1618 = vld [vmem:[#allocation2 + $0x59] sm:$0xff]
      %v1619 = vld [vmem:[#allocation2 + $0x61] sm:$0xff]
      %v1620 = vld [vmem:[#allocation2 + $0x69] sm:$0xff]
      %v1621 = vld [vmem:[#allocation2 + $0x71] sm:$0xff]
      %v1622 = vld [vmem:[#allocation2 + $0x79] sm:$0xff]
      %v1623 = vld [vmem:[#allocation2 + $0x81] sm:$0xff]
      %v1624 = vld [vmem:[#allocation2 + $0x89] sm:$0xff]
      %v1625 = vld [vmem:[#allocation2 + $0x91] sm:$0xff]
      %v1626 = vld [vmem:[#allocation2 + $0x99] sm:$0xff]
      %v1627 = vld [vmem:[#allocation2 + $0xa1] sm:$0xff]
      %v1628 = vld [vmem:[#allocation2 + $0xa9] sm:$0xff]
      %v1629 = vld [vmem:[#allocation2 + $0xb1] sm:$0xff]
      %v1630 = vld [vmem:[#allocation2 + $0xb9] sm:$0xff]
      %v1631 = vld [vmem:[#allocation2 + $0xc1] sm:$0xff]
      %v1632 = vld [vmem:[#allocation2 + $0xc9] sm:$0xff]
      %v1633 = vld [vmem:[#allocation2 + $0xd1] sm:$0xff]
      %v1634 = vld [vmem:[#allocation2 + $0xd9] sm:$0xff]
      %v1635 = vld [vmem:[#allocation2 + $0xe1] sm:$0xff]
      %v1636 = vld [vmem:[#allocation2 + $0xe9] sm:$0xff]
      %v1637 = vld [vmem:[#allocation2 + $0xf1] sm:$0xff]
      %v1638 = vld [vmem:[#allocation2 + $0xf9] sm:$0xff]
      %v1639 = vld [vmem:[#allocation2 + $0x101] sm:$0xff]
      %v1640 = vld [vmem:[#allocation2 + $0x109] sm:$0xff]
      %v1641 = vld [vmem:[#allocation2 + $0x111] sm:$0xff]
      %v1642 = vld [vmem:[#allocation2 + $0x119] sm:$0xff]
      %v1643 = vld [vmem:[#allocation2 + $0x121] sm:$0xff]
      %v1644 = vpack.c.bf16 %v1609, %v1608
      %v1645 = vpack.c.bf16 %v1611, %v1610
      %v1646 = vpack.c.bf16 %v1613, %v1612
      %v1647 = vpack.c.bf16 %v1615, %v1614
      %v1648 = vpack.c.bf16 %v1617, %v1616
      %v1649 = vpack.c.bf16 %v1619, %v1618
      %v1650 = vpack.c.bf16 %v1621, %v1620
      %v1651 = vpack.c.bf16 %v1623, %v1622
      %v1652 = vpack.c.bf16 %v1625, %v1624
      %v1653 = vpack.c.bf16 %v1627, %v1626
      %v1654 = vpack.c.bf16 %v1629, %v1628
      %v1655 = vpack.c.bf16 %v1631, %v1630
      %v1656 = vpack.c.bf16 %v1633, %v1632
      %v1657 = vpack.c.bf16 %v1635, %v1634
      %v1658 = vpack.c.bf16 %v1637, %v1636
      %v1659 = vpack.c.bf16 %v1639, %v1638
      %v1660 = vpack.c.bf16 %v1641, %v1640
      %v1661 = vpack.c.bf16 %v1643, %v1642
      %s1662 = scalar_lea.vmem %s4, 128
      %v1663 = vld [vmem:[%s1662] sm:$0xf]
      %v1664 = vld [vmem:[%s1662 + $0x4] sm:$0xf]
      %v1665 = vld [vmem:[%s1662 + $0x8] sm:$0xf]
      %v1666 = vld [vmem:[%s1662 + $0xc] sm:$0xf]
      %v1667 = vld [vmem:[%s1662 + $0x10] sm:$0xf]
      %v1668 = vld [vmem:[%s1662 + $0x14] sm:$0xf]
      %v1669 = vld [vmem:[%s1662 + $0x18] sm:$0xf]
      %v1670 = vld [vmem:[%s1662 + $0x1c] sm:$0xf]
      %v1671 = vld [vmem:[%s1662 + $0x20] sm:$0xf]
      %v1672 = vld [vmem:[%s1662 + $0x24] sm:$0xf]
      %v1673 = vld [vmem:[%s1662 + $0x28] sm:$0xf]
      %v1674 = vld [vmem:[%s1662 + $0x2c] sm:$0xf]
      %v1675 = vld [vmem:[%s1662 + $0x30] sm:$0xf]
      %v1676 = vld [vmem:[%s1662 + $0x34] sm:$0xf]
      %v1677 = vld [vmem:[%s1662 + $0x38] sm:$0xf]
      %v1678 = vld [vmem:[%s1662 + $0x3c] sm:$0xf]
      %v1695 = vunpack.c.l.b16 %v1663
      %v1696 = vunpack.c.l.b16 %v1664
      %v1697 = vunpack.c.l.b16 %v1665
      %v1698 = vunpack.c.l.b16 %v1666
      %v1699 = vunpack.c.l.b16 %v1667
      %v1700 = vunpack.c.l.b16 %v1668
      %v1701 = vunpack.c.l.b16 %v1669
      %v1702 = vunpack.c.l.b16 %v1670
      %v1703 = vunpack.c.l.b16 %v1671
      %v1704 = vunpack.c.l.b16 %v1672
      %v1705 = vunpack.c.l.b16 %v1673
      %v1706 = vunpack.c.l.b16 %v1674
      %v1707 = vunpack.c.l.b16 %v1675
      %v1708 = vunpack.c.l.b16 %v1676
      %v1709 = vunpack.c.l.b16 %v1677
      %v1710 = vunpack.c.l.b16 %v1678
      %v1711 = vpack.c.b16 %v1696, %v1695
      %v1712 = vpack.c.b16 %v1698, %v1697
      %v1713 = vpack.c.b16 %v1700, %v1699
      %v1714 = vpack.c.b16 %v1702, %v1701
      %v1715 = vpack.c.b16 %v1704, %v1703
      %v1716 = vpack.c.b16 %v1706, %v1705
      %v1717 = vpack.c.b16 %v1708, %v1707
      %v1718 = vpack.c.b16 %v1710, %v1709
      %1727 = vmatprep.subr.bf16.mxu0 0
      %1728 = vmatpush1.bf16.msra.mxu0 %v1718
      %1729 = vmatprep.subr.bf16.mxu0 0
      %1730 = vmatpush1.bf16.msra.mxu0 %v1717
      %1731 = vmatprep.subr.bf16.mxu0 0
      %1732 = vmatpush1.bf16.msra.mxu0 %v1716
      %1733 = vmatprep.subr.bf16.mxu0 0
      %1734 = vmatpush1.bf16.msra.mxu0 %v1715
      %1735 = vmatprep.subr.bf16.mxu0 0
      %1736 = vmatpush1.bf16.msra.mxu0 %v1714
      %1737 = vmatprep.subr.bf16.mxu0 0
      %1738 = vmatpush1.bf16.msra.mxu0 %v1713
      %1739 = vmatprep.subr.bf16.mxu0 0
      %1740 = vmatpush1.bf16.msra.mxu0 %v1712
      %1741 = vmatprep.subr.bf16.mxu0 0
      %1742 = vmatpush1.bf16.msra.mxu0 %v1711
      %1743 = vmatprep.subr.bf16.mxu0 0
      %1744 = vmatpush2.bf16.msra.mxu0 0
      %1745 = vmatprep.subr.bf16.mxu0 0
      %1746 = vmatpush2.bf16.msra.mxu0 0
      %1747 = vmatprep.subr.bf16.mxu0 0
      %1748 = vmatpush2.bf16.msra.mxu0 0
      %1749 = vmatprep.subr.bf16.mxu0 0
      %1750 = vmatpush2.bf16.msra.mxu0 0
      %1751 = vmatprep.subr.bf16.mxu0 0
      %1752 = vmatpush2.bf16.msra.mxu0 0
      %1753 = vmatprep.subr.bf16.mxu0 0
      %1754 = vmatpush2.bf16.msra.mxu0 0
      %1755 = vmatprep.subr.bf16.mxu0 0
      %1756 = vmatpush2.bf16.msra.mxu0 0
      %1757 = vmatprep.subr.bf16.mxu0 0
      %1758 = vmatpush2.bf16.msra.mxu0 0
      %1759 = vmatprep.mubr.bf16.mxu0 0
      %1760 = vmatmul.mubr.bf16.gmra.mxu0 %v1644
      %v1761 = vpop.f32.mrf.mxu0
      %v1762 = vadd.f32 0.0, %v1761
      %v1763 = vpop.f32.mrf.mxu0
      %v1764 = vpop.f32.mrf.mxu0
      %v1765 = vadd.f32 0.0, %v1764
      %v1766 = vpop.f32.mrf.mxu0
      %1767 = vmatprep.mubr.bf16.mxu0 0
      %1768 = vmatmul.mubr.bf16.gmra.mxu0 %v1645
      %v1769 = vpop.f32.mrf.mxu0
      %v1770 = vadd.f32 0.0, %v1769
      %v1771 = vpop.f32.mrf.mxu0
      %v1772 = vpop.f32.mrf.mxu0
      %v1773 = vadd.f32 0.0, %v1772
      %v1774 = vpop.f32.mrf.mxu0
      %1775 = vmatprep.mubr.bf16.mxu0 0
      %1776 = vmatmul.mubr.bf16.gmra.mxu0 %v1646
      %v1777 = vpop.f32.mrf.mxu0
      %v1778 = vadd.f32 0.0, %v1777
      %v1779 = vpop.f32.mrf.mxu0
      %v1780 = vpop.f32.mrf.mxu0
      %v1781 = vadd.f32 0.0, %v1780
      %v1782 = vpop.f32.mrf.mxu0
      %1783 = vmatprep.mubr.bf16.mxu0 0
      %1784 = vmatmul.mubr.bf16.gmra.mxu0 %v1647
      %v1785 = vpop.f32.mrf.mxu0
      %v1786 = vadd.f32 0.0, %v1785
      %v1787 = vpop.f32.mrf.mxu0
      %v1788 = vpop.f32.mrf.mxu0
      %v1789 = vadd.f32 0.0, %v1788
      %v1790 = vpop.f32.mrf.mxu0
      %1791 = vmatprep.mubr.bf16.mxu0 0
      %1792 = vmatmul.mubr.bf16.gmra.mxu0 %v1648
      %v1793 = vpop.f32.mrf.mxu0
      %v1794 = vadd.f32 0.0, %v1793
      %v1795 = vpop.f32.mrf.mxu0
      %v1796 = vpop.f32.mrf.mxu0
      %v1797 = vadd.f32 0.0, %v1796
      %v1798 = vpop.f32.mrf.mxu0
      %1799 = vmatprep.mubr.bf16.mxu0 0
      %1800 = vmatmul.mubr.bf16.gmra.mxu0 %v1649
      %v1801 = vpop.f32.mrf.mxu0
      %v1802 = vadd.f32 0.0, %v1801
      %v1803 = vpop.f32.mrf.mxu0
      %v1804 = vpop.f32.mrf.mxu0
      %v1805 = vadd.f32 0.0, %v1804
      %v1806 = vpop.f32.mrf.mxu0
      %1807 = vmatprep.mubr.bf16.mxu0 0
      %1808 = vmatmul.mubr.bf16.gmra.mxu0 %v1650
      %v1809 = vpop.f32.mrf.mxu0
      %v1810 = vadd.f32 0.0, %v1809
      %v1811 = vpop.f32.mrf.mxu0
      %v1812 = vpop.f32.mrf.mxu0
      %v1813 = vadd.f32 0.0, %v1812
      %v1814 = vpop.f32.mrf.mxu0
      %1815 = vmatprep.mubr.bf16.mxu0 0
      %1816 = vmatmul.mubr.bf16.gmra.mxu0 %v1651
      %v1817 = vpop.f32.mrf.mxu0
      %v1818 = vadd.f32 0.0, %v1817
      %v1819 = vpop.f32.mrf.mxu0
      %v1820 = vpop.f32.mrf.mxu0
      %v1821 = vadd.f32 0.0, %v1820
      %v1822 = vpop.f32.mrf.mxu0
      %1823 = vmatprep.mubr.bf16.mxu0 0
      %1824 = vmatmul.mubr.bf16.gmra.mxu0 %v1652
      %v1825 = vpop.f32.mrf.mxu0
      %v1826 = vadd.f32 0.0, %v1825
      %v1827 = vpop.f32.mrf.mxu0
      %v1828 = vpop.f32.mrf.mxu0
      %v1829 = vadd.f32 0.0, %v1828
      %v1830 = vpop.f32.mrf.mxu0
      %1831 = vmatprep.mubr.bf16.mxu0 0
      %1832 = vmatmul.mubr.bf16.gmra.mxu0 %v1653
      %v1833 = vpop.f32.mrf.mxu0
      %v1834 = vadd.f32 0.0, %v1833
      %v1835 = vpop.f32.mrf.mxu0
      %v1836 = vpop.f32.mrf.mxu0
      %v1837 = vadd.f32 0.0, %v1836
      %v1838 = vpop.f32.mrf.mxu0
      %1839 = vmatprep.mubr.bf16.mxu0 0
      %1840 = vmatmul.mubr.bf16.gmra.mxu0 %v1654
      %v1841 = vpop.f32.mrf.mxu0
      %v1842 = vadd.f32 0.0, %v1841
      %v1843 = vpop.f32.mrf.mxu0
      %v1844 = vpop.f32.mrf.mxu0
      %v1845 = vadd.f32 0.0, %v1844
      %v1846 = vpop.f32.mrf.mxu0
      %1847 = vmatprep.mubr.bf16.mxu0 0
      %1848 = vmatmul.mubr.bf16.gmra.mxu0 %v1655
      %v1849 = vpop.f32.mrf.mxu0
      %v1850 = vadd.f32 0.0, %v1849
      %v1851 = vpop.f32.mrf.mxu0
      %v1852 = vpop.f32.mrf.mxu0
      %v1853 = vadd.f32 0.0, %v1852
      %v1854 = vpop.f32.mrf.mxu0
      %1855 = vmatprep.mubr.bf16.mxu0 0
      %1856 = vmatmul.mubr.bf16.gmra.mxu0 %v1656
      %v1857 = vpop.f32.mrf.mxu0
      %v1858 = vadd.f32 0.0, %v1857
      %v1859 = vpop.f32.mrf.mxu0
      %v1860 = vpop.f32.mrf.mxu0
      %v1861 = vadd.f32 0.0, %v1860
      %v1862 = vpop.f32.mrf.mxu0
      %1863 = vmatprep.mubr.bf16.mxu0 0
      %1864 = vmatmul.mubr.bf16.gmra.mxu0 %v1657
      %v1865 = vpop.f32.mrf.mxu0
      %v1866 = vadd.f32 0.0, %v1865
      %v1867 = vpop.f32.mrf.mxu0
      %v1868 = vpop.f32.mrf.mxu0
      %v1869 = vadd.f32 0.0, %v1868
      %v1870 = vpop.f32.mrf.mxu0
      %1871 = vmatprep.mubr.bf16.mxu0 0
      %1872 = vmatmul.mubr.bf16.gmra.mxu0 %v1658
      %v1873 = vpop.f32.mrf.mxu0
      %v1874 = vadd.f32 0.0, %v1873
      %v1875 = vpop.f32.mrf.mxu0
      %v1876 = vpop.f32.mrf.mxu0
      %v1877 = vadd.f32 0.0, %v1876
      %v1878 = vpop.f32.mrf.mxu0
      %1879 = vmatprep.mubr.bf16.mxu0 0
      %1880 = vmatmul.mubr.bf16.gmra.mxu0 %v1659
      %v1881 = vpop.f32.mrf.mxu0
      %v1882 = vadd.f32 0.0, %v1881
      %v1883 = vpop.f32.mrf.mxu0
      %v1884 = vpop.f32.mrf.mxu0
      %v1885 = vadd.f32 0.0, %v1884
      %v1886 = vpop.f32.mrf.mxu0
      %1887 = vmatprep.mubr.bf16.mxu0 0
      %1888 = vmatmul.mubr.bf16.gmra.mxu0 %v1660
      %v1889 = vpop.f32.mrf.mxu0
      %v1890 = vadd.f32 0.0, %v1889
      %v1891 = vpop.f32.mrf.mxu0
      %v1892 = vpop.f32.mrf.mxu0
      %v1893 = vadd.f32 0.0, %v1892
      %v1894 = vpop.f32.mrf.mxu0
      %1895 = vmatprep.mubr.bf16.mxu0 0
      %1896 = vmatmul.mubr.bf16.gmra.mxu0 %v1661
      %v1897 = vpop.f32.mrf.mxu0
      %v1898 = vadd.f32 0.0, %v1897
      %v1899 = vpop.f32.mrf.mxu0
      %v1900 = vpop.f32.mrf.mxu0
      %v1901 = vadd.f32 0.0, %v1900
      %v1902 = vpop.f32.mrf.mxu0
      %1903 = vdwg.mxu0
      %v1904 = vadd.f32 %v1466, %v1762
      %v1905 = vadd.f32 %v1469, %v1765
      %v1906 = vadd.f32 %v1474, %v1770
      %v1907 = vadd.f32 %v1477, %v1773
      %v1908 = vadd.f32 %v1482, %v1778
      %v1909 = vadd.f32 %v1485, %v1781
      %v1910 = vadd.f32 %v1490, %v1786
      %v1911 = vadd.f32 %v1493, %v1789
      %v1912 = vadd.f32 %v1498, %v1794
      %v1913 = vadd.f32 %v1501, %v1797
      %v1914 = vadd.f32 %v1506, %v1802
      %v1915 = vadd.f32 %v1509, %v1805
      %v1916 = vadd.f32 %v1514, %v1810
      %v1917 = vadd.f32 %v1517, %v1813
      %v1918 = vadd.f32 %v1522, %v1818
      %v1919 = vadd.f32 %v1525, %v1821
      %v1920 = vadd.f32 %v1530, %v1826
      %v1921 = vadd.f32 %v1533, %v1829
      %v1922 = vadd.f32 %v1538, %v1834
      %v1923 = vadd.f32 %v1541, %v1837
      %v1924 = vadd.f32 %v1546, %v1842
      %v1925 = vadd.f32 %v1549, %v1845
      %v1926 = vadd.f32 %v1554, %v1850
      %v1927 = vadd.f32 %v1557, %v1853
      %v1928 = vadd.f32 %v1562, %v1858
      %v1929 = vadd.f32 %v1565, %v1861
      %v1930 = vadd.f32 %v1570, %v1866
      %v1931 = vadd.f32 %v1573, %v1869
      %v1932 = vadd.f32 %v1578, %v1874
      %v1933 = vadd.f32 %v1581, %v1877
      %v1934 = vadd.f32 %v1586, %v1882
      %v1935 = vadd.f32 %v1589, %v1885
      %v1936 = vadd.f32 %v1594, %v1890
      %v1937 = vadd.f32 %v1597, %v1893
      %v1938 = vadd.f32 %v1602, %v1898
      %v1939 = vadd.f32 %v1605, %v1901
      %v1940 = vld [vmem:[#allocation2 + $0x19] sm:$0xff]
      %v1941 = vld [vmem:[#allocation2 + $0x21] sm:$0xff]
      %v1942 = vld [vmem:[#allocation2 + $0x29] sm:$0xff]
      %v1943 = vld [vmem:[#allocation2 + $0x31] sm:$0xff]
      %v1944 = vld [vmem:[#allocation2 + $0x39] sm:$0xff]
      %v1945 = vld [vmem:[#allocation2 + $0x41] sm:$0xff]
      %v1946 = vld [vmem:[#allocation2 + $0x49] sm:$0xff]
      %v1947 = vld [vmem:[#allocation2 + $0x51] sm:$0xff]
      %v1948 = vld [vmem:[#allocation2 + $0x59] sm:$0xff]
      %v1949 = vld [vmem:[#allocation2 + $0x61] sm:$0xff]
      %v1950 = vld [vmem:[#allocation2 + $0x69] sm:$0xff]
      %v1951 = vld [vmem:[#allocation2 + $0x71] sm:$0xff]
      %v1952 = vld [vmem:[#allocation2 + $0x79] sm:$0xff]
      %v1953 = vld [vmem:[#allocation2 + $0x81] sm:$0xff]
      %v1954 = vld [vmem:[#allocation2 + $0x89] sm:$0xff]
      %v1955 = vld [vmem:[#allocation2 + $0x91] sm:$0xff]
      %v1956 = vld [vmem:[#allocation2 + $0x99] sm:$0xff]
      %v1957 = vld [vmem:[#allocation2 + $0xa1] sm:$0xff]
      %v1958 = vld [vmem:[#allocation2 + $0xa9] sm:$0xff]
      %v1959 = vld [vmem:[#allocation2 + $0xb1] sm:$0xff]
      %v1960 = vld [vmem:[#allocation2 + $0xb9] sm:$0xff]
      %v1961 = vld [vmem:[#allocation2 + $0xc1] sm:$0xff]
      %v1962 = vld [vmem:[#allocation2 + $0xc9] sm:$0xff]
      %v1963 = vld [vmem:[#allocation2 + $0xd1] sm:$0xff]
      %v1964 = vld [vmem:[#allocation2 + $0xd9] sm:$0xff]
      %v1965 = vld [vmem:[#allocation2 + $0xe1] sm:$0xff]
      %v1966 = vld [vmem:[#allocation2 + $0xe9] sm:$0xff]
      %v1967 = vld [vmem:[#allocation2 + $0xf1] sm:$0xff]
      %v1968 = vld [vmem:[#allocation2 + $0xf9] sm:$0xff]
      %v1969 = vld [vmem:[#allocation2 + $0x101] sm:$0xff]
      %v1970 = vld [vmem:[#allocation2 + $0x109] sm:$0xff]
      %v1971 = vld [vmem:[#allocation2 + $0x111] sm:$0xff]
      %v1972 = vld [vmem:[#allocation2 + $0x119] sm:$0xff]
      %v1973 = vld [vmem:[#allocation2 + $0x121] sm:$0xff]
      %v1974 = vld [vmem:[#allocation2 + $0x129] sm:$0xff]
      %v1975 = vld [vmem:[#allocation2 + $0x131] sm:$0xff]
      %v1976 = vpack.c.bf16 %v1941, %v1940
      %v1977 = vpack.c.bf16 %v1943, %v1942
      %v1978 = vpack.c.bf16 %v1945, %v1944
      %v1979 = vpack.c.bf16 %v1947, %v1946
      %v1980 = vpack.c.bf16 %v1949, %v1948
      %v1981 = vpack.c.bf16 %v1951, %v1950
      %v1982 = vpack.c.bf16 %v1953, %v1952
      %v1983 = vpack.c.bf16 %v1955, %v1954
      %v1984 = vpack.c.bf16 %v1957, %v1956
      %v1985 = vpack.c.bf16 %v1959, %v1958
      %v1986 = vpack.c.bf16 %v1961, %v1960
      %v1987 = vpack.c.bf16 %v1963, %v1962
      %v1988 = vpack.c.bf16 %v1965, %v1964
      %v1989 = vpack.c.bf16 %v1967, %v1966
      %v1990 = vpack.c.bf16 %v1969, %v1968
      %v1991 = vpack.c.bf16 %v1971, %v1970
      %v1992 = vpack.c.bf16 %v1973, %v1972
      %v1993 = vpack.c.bf16 %v1975, %v1974
      %s1994 = scalar_lea.vmem %s4, 192
      %v1995 = vld [vmem:[%s1994] sm:$0xf]
      %v1996 = vld [vmem:[%s1994 + $0x4] sm:$0xf]
      %v1997 = vld [vmem:[%s1994 + $0x8] sm:$0xf]
      %v1998 = vld [vmem:[%s1994 + $0xc] sm:$0xf]
      %v1999 = vld [vmem:[%s1994 + $0x10] sm:$0xf]
      %v2000 = vld [vmem:[%s1994 + $0x14] sm:$0xf]
      %v2001 = vld [vmem:[%s1994 + $0x18] sm:$0xf]
      %v2002 = vld [vmem:[%s1994 + $0x1c] sm:$0xf]
      %v2003 = vld [vmem:[%s1994 + $0x20] sm:$0xf]
      %v2004 = vld [vmem:[%s1994 + $0x24] sm:$0xf]
      %v2005 = vld [vmem:[%s1994 + $0x28] sm:$0xf]
      %v2006 = vld [vmem:[%s1994 + $0x2c] sm:$0xf]
      %v2007 = vld [vmem:[%s1994 + $0x30] sm:$0xf]
      %v2008 = vld [vmem:[%s1994 + $0x34] sm:$0xf]
      %v2009 = vld [vmem:[%s1994 + $0x38] sm:$0xf]
      %v2010 = vld [vmem:[%s1994 + $0x3c] sm:$0xf]
      %v2027 = vunpack.c.l.b16 %v1995
      %v2028 = vunpack.c.l.b16 %v1996
      %v2029 = vunpack.c.l.b16 %v1997
      %v2030 = vunpack.c.l.b16 %v1998
      %v2031 = vunpack.c.l.b16 %v1999
      %v2032 = vunpack.c.l.b16 %v2000
      %v2033 = vunpack.c.l.b16 %v2001
      %v2034 = vunpack.c.l.b16 %v2002
      %v2035 = vunpack.c.l.b16 %v2003
      %v2036 = vunpack.c.l.b16 %v2004
      %v2037 = vunpack.c.l.b16 %v2005
      %v2038 = vunpack.c.l.b16 %v2006
      %v2039 = vunpack.c.l.b16 %v2007
      %v2040 = vunpack.c.l.b16 %v2008
      %v2041 = vunpack.c.l.b16 %v2009
      %v2042 = vunpack.c.l.b16 %v2010
      %v2043 = vpack.c.b16 %v2028, %v2027
      %v2044 = vpack.c.b16 %v2030, %v2029
      %v2045 = vpack.c.b16 %v2032, %v2031
      %v2046 = vpack.c.b16 %v2034, %v2033
      %v2047 = vpack.c.b16 %v2036, %v2035
      %v2048 = vpack.c.b16 %v2038, %v2037
      %v2049 = vpack.c.b16 %v2040, %v2039
      %v2050 = vpack.c.b16 %v2042, %v2041
      %2059 = vmatprep.subr.bf16.mxu0 0
      %2060 = vmatpush1.bf16.msra.mxu0 %v2050
      %2061 = vmatprep.subr.bf16.mxu0 0
      %2062 = vmatpush1.bf16.msra.mxu0 %v2049
      %2063 = vmatprep.subr.bf16.mxu0 0
      %2064 = vmatpush1.bf16.msra.mxu0 %v2048
      %2065 = vmatprep.subr.bf16.mxu0 0
      %2066 = vmatpush1.bf16.msra.mxu0 %v2047
      %2067 = vmatprep.subr.bf16.mxu0 0
      %2068 = vmatpush1.bf16.msra.mxu0 %v2046
      %2069 = vmatprep.subr.bf16.mxu0 0
      %2070 = vmatpush1.bf16.msra.mxu0 %v2045
      %2071 = vmatprep.subr.bf16.mxu0 0
      %2072 = vmatpush1.bf16.msra.mxu0 %v2044
      %2073 = vmatprep.subr.bf16.mxu0 0
      %2074 = vmatpush1.bf16.msra.mxu0 %v2043
      %2075 = vmatprep.subr.bf16.mxu0 0
      %2076 = vmatpush2.bf16.msra.mxu0 0
      %2077 = vmatprep.subr.bf16.mxu0 0
      %2078 = vmatpush2.bf16.msra.mxu0 0
      %2079 = vmatprep.subr.bf16.mxu0 0
      %2080 = vmatpush2.bf16.msra.mxu0 0
      %2081 = vmatprep.subr.bf16.mxu0 0
      %2082 = vmatpush2.bf16.msra.mxu0 0
      %2083 = vmatprep.subr.bf16.mxu0 0
      %2084 = vmatpush2.bf16.msra.mxu0 0
      %2085 = vmatprep.subr.bf16.mxu0 0
      %2086 = vmatpush2.bf16.msra.mxu0 0
      %2087 = vmatprep.subr.bf16.mxu0 0
      %2088 = vmatpush2.bf16.msra.mxu0 0
      %2089 = vmatprep.subr.bf16.mxu0 0
      %2090 = vmatpush2.bf16.msra.mxu0 0
      %2091 = vmatprep.mubr.bf16.mxu0 0
      %2092 = vmatmul.mubr.bf16.gmra.mxu0 %v1976
      %v2093 = vpop.f32.mrf.mxu0
      %v2094 = vadd.f32 0.0, %v2093
      %v2095 = vpop.f32.mrf.mxu0
      %v2096 = vpop.f32.mrf.mxu0
      %v2097 = vadd.f32 0.0, %v2096
      %v2098 = vpop.f32.mrf.mxu0
      %2099 = vmatprep.mubr.bf16.mxu0 0
      %2100 = vmatmul.mubr.bf16.gmra.mxu0 %v1977
      %v2101 = vpop.f32.mrf.mxu0
      %v2102 = vadd.f32 0.0, %v2101
      %v2103 = vpop.f32.mrf.mxu0
      %v2104 = vpop.f32.mrf.mxu0
      %v2105 = vadd.f32 0.0, %v2104
      %v2106 = vpop.f32.mrf.mxu0
      %2107 = vmatprep.mubr.bf16.mxu0 0
      %2108 = vmatmul.mubr.bf16.gmra.mxu0 %v1978
      %v2109 = vpop.f32.mrf.mxu0
      %v2110 = vadd.f32 0.0, %v2109
      %v2111 = vpop.f32.mrf.mxu0
      %v2112 = vpop.f32.mrf.mxu0
      %v2113 = vadd.f32 0.0, %v2112
      %v2114 = vpop.f32.mrf.mxu0
      %2115 = vmatprep.mubr.bf16.mxu0 0
      %2116 = vmatmul.mubr.bf16.gmra.mxu0 %v1979
      %v2117 = vpop.f32.mrf.mxu0
      %v2118 = vadd.f32 0.0, %v2117
      %v2119 = vpop.f32.mrf.mxu0
      %v2120 = vpop.f32.mrf.mxu0
      %v2121 = vadd.f32 0.0, %v2120
      %v2122 = vpop.f32.mrf.mxu0
      %2123 = vmatprep.mubr.bf16.mxu0 0
      %2124 = vmatmul.mubr.bf16.gmra.mxu0 %v1980
      %v2125 = vpop.f32.mrf.mxu0
      %v2126 = vadd.f32 0.0, %v2125
      %v2127 = vpop.f32.mrf.mxu0
      %v2128 = vpop.f32.mrf.mxu0
      %v2129 = vadd.f32 0.0, %v2128
      %v2130 = vpop.f32.mrf.mxu0
      %2131 = vmatprep.mubr.bf16.mxu0 0
      %2132 = vmatmul.mubr.bf16.gmra.mxu0 %v1981
      %v2133 = vpop.f32.mrf.mxu0
      %v2134 = vadd.f32 0.0, %v2133
      %v2135 = vpop.f32.mrf.mxu0
      %v2136 = vpop.f32.mrf.mxu0
      %v2137 = vadd.f32 0.0, %v2136
      %v2138 = vpop.f32.mrf.mxu0
      %2139 = vmatprep.mubr.bf16.mxu0 0
      %2140 = vmatmul.mubr.bf16.gmra.mxu0 %v1982
      %v2141 = vpop.f32.mrf.mxu0
      %v2142 = vadd.f32 0.0, %v2141
      %v2143 = vpop.f32.mrf.mxu0
      %v2144 = vpop.f32.mrf.mxu0
      %v2145 = vadd.f32 0.0, %v2144
      %v2146 = vpop.f32.mrf.mxu0
      %2147 = vmatprep.mubr.bf16.mxu0 0
      %2148 = vmatmul.mubr.bf16.gmra.mxu0 %v1983
      %v2149 = vpop.f32.mrf.mxu0
      %v2150 = vadd.f32 0.0, %v2149
      %v2151 = vpop.f32.mrf.mxu0
      %v2152 = vpop.f32.mrf.mxu0
      %v2153 = vadd.f32 0.0, %v2152
      %v2154 = vpop.f32.mrf.mxu0
      %2155 = vmatprep.mubr.bf16.mxu0 0
      %2156 = vmatmul.mubr.bf16.gmra.mxu0 %v1984
      %v2157 = vpop.f32.mrf.mxu0
      %v2158 = vadd.f32 0.0, %v2157
      %v2159 = vpop.f32.mrf.mxu0
      %v2160 = vpop.f32.mrf.mxu0
      %v2161 = vadd.f32 0.0, %v2160
      %v2162 = vpop.f32.mrf.mxu0
      %2163 = vmatprep.mubr.bf16.mxu0 0
      %2164 = vmatmul.mubr.bf16.gmra.mxu0 %v1985
      %v2165 = vpop.f32.mrf.mxu0
      %v2166 = vadd.f32 0.0, %v2165
      %v2167 = vpop.f32.mrf.mxu0
      %v2168 = vpop.f32.mrf.mxu0
      %v2169 = vadd.f32 0.0, %v2168
      %v2170 = vpop.f32.mrf.mxu0
      %2171 = vmatprep.mubr.bf16.mxu0 0
      %2172 = vmatmul.mubr.bf16.gmra.mxu0 %v1986
      %v2173 = vpop.f32.mrf.mxu0
      %v2174 = vadd.f32 0.0, %v2173
      %v2175 = vpop.f32.mrf.mxu0
      %v2176 = vpop.f32.mrf.mxu0
      %v2177 = vadd.f32 0.0, %v2176
      %v2178 = vpop.f32.mrf.mxu0
      %2179 = vmatprep.mubr.bf16.mxu0 0
      %2180 = vmatmul.mubr.bf16.gmra.mxu0 %v1987
      %v2181 = vpop.f32.mrf.mxu0
      %v2182 = vadd.f32 0.0, %v2181
      %v2183 = vpop.f32.mrf.mxu0
      %v2184 = vpop.f32.mrf.mxu0
      %v2185 = vadd.f32 0.0, %v2184
      %v2186 = vpop.f32.mrf.mxu0
      %2187 = vmatprep.mubr.bf16.mxu0 0
      %2188 = vmatmul.mubr.bf16.gmra.mxu0 %v1988
      %v2189 = vpop.f32.mrf.mxu0
      %v2190 = vadd.f32 0.0, %v2189
      %v2191 = vpop.f32.mrf.mxu0
      %v2192 = vpop.f32.mrf.mxu0
      %v2193 = vadd.f32 0.0, %v2192
      %v2194 = vpop.f32.mrf.mxu0
      %2195 = vmatprep.mubr.bf16.mxu0 0
      %2196 = vmatmul.mubr.bf16.gmra.mxu0 %v1989
      %v2197 = vpop.f32.mrf.mxu0
      %v2198 = vadd.f32 0.0, %v2197
      %v2199 = vpop.f32.mrf.mxu0
      %v2200 = vpop.f32.mrf.mxu0
      %v2201 = vadd.f32 0.0, %v2200
      %v2202 = vpop.f32.mrf.mxu0
      %2203 = vmatprep.mubr.bf16.mxu0 0
      %2204 = vmatmul.mubr.bf16.gmra.mxu0 %v1990
      %v2205 = vpop.f32.mrf.mxu0
      %v2206 = vadd.f32 0.0, %v2205
      %v2207 = vpop.f32.mrf.mxu0
      %v2208 = vpop.f32.mrf.mxu0
      %v2209 = vadd.f32 0.0, %v2208
      %v2210 = vpop.f32.mrf.mxu0
      %2211 = vmatprep.mubr.bf16.mxu0 0
      %2212 = vmatmul.mubr.bf16.gmra.mxu0 %v1991
      %v2213 = vpop.f32.mrf.mxu0
      %v2214 = vadd.f32 0.0, %v2213
      %v2215 = vpop.f32.mrf.mxu0
      %v2216 = vpop.f32.mrf.mxu0
      %v2217 = vadd.f32 0.0, %v2216
      %v2218 = vpop.f32.mrf.mxu0
      %2219 = vmatprep.mubr.bf16.mxu0 0
      %2220 = vmatmul.mubr.bf16.gmra.mxu0 %v1992
      %v2221 = vpop.f32.mrf.mxu0
      %v2222 = vadd.f32 0.0, %v2221
      %v2223 = vpop.f32.mrf.mxu0
      %v2224 = vpop.f32.mrf.mxu0
      %v2225 = vadd.f32 0.0, %v2224
      %v2226 = vpop.f32.mrf.mxu0
      %2227 = vmatprep.mubr.bf16.mxu0 0
      %2228 = vmatmul.mubr.bf16.gmra.mxu0 %v1993
      %v2229 = vpop.f32.mrf.mxu0
      %v2230 = vadd.f32 0.0, %v2229
      %v2231 = vpop.f32.mrf.mxu0
      %v2232 = vpop.f32.mrf.mxu0
      %v2233 = vadd.f32 0.0, %v2232
      %v2234 = vpop.f32.mrf.mxu0
      %2235 = vdwg.mxu0
      %v2236 = vadd.f32 %v1904, %v2094
      %v2237 = vadd.f32 %v1905, %v2097
      %v2238 = vadd.f32 %v1906, %v2102
      %v2239 = vadd.f32 %v1907, %v2105
      %v2240 = vadd.f32 %v1908, %v2110
      %v2241 = vadd.f32 %v1909, %v2113
      %v2242 = vadd.f32 %v1910, %v2118
      %v2243 = vadd.f32 %v1911, %v2121
      %v2244 = vadd.f32 %v1912, %v2126
      %v2245 = vadd.f32 %v1913, %v2129
      %v2246 = vadd.f32 %v1914, %v2134
      %v2247 = vadd.f32 %v1915, %v2137
      %v2248 = vadd.f32 %v1916, %v2142
      %v2249 = vadd.f32 %v1917, %v2145
      %v2250 = vadd.f32 %v1918, %v2150
      %v2251 = vadd.f32 %v1919, %v2153
      %v2252 = vadd.f32 %v1920, %v2158
      %v2253 = vadd.f32 %v1921, %v2161
      %v2254 = vadd.f32 %v1922, %v2166
      %v2255 = vadd.f32 %v1923, %v2169
      %v2256 = vadd.f32 %v1924, %v2174
      %v2257 = vadd.f32 %v1925, %v2177
      %v2258 = vadd.f32 %v1926, %v2182
      %v2259 = vadd.f32 %v1927, %v2185
      %v2260 = vadd.f32 %v1928, %v2190
      %v2261 = vadd.f32 %v1929, %v2193
      %v2262 = vadd.f32 %v1930, %v2198
      %v2263 = vadd.f32 %v1931, %v2201
      %v2264 = vadd.f32 %v1932, %v2206
      %v2265 = vadd.f32 %v1933, %v2209
      %v2266 = vadd.f32 %v1934, %v2214
      %v2267 = vadd.f32 %v1935, %v2217
      %v2268 = vadd.f32 %v1936, %v2222
      %v2269 = vadd.f32 %v1937, %v2225
      %v2270 = vadd.f32 %v1938, %v2230
      %v2271 = vadd.f32 %v1939, %v2233
      %v2272 = vld [vmem:[#allocation2 + $0x1a] sm:$0xff]
      %v2273 = vld [vmem:[#allocation2 + $0x22] sm:$0xff]
      %v2274 = vld [vmem:[#allocation2 + $0x2a] sm:$0xff]
      %v2275 = vld [vmem:[#allocation2 + $0x32] sm:$0xff]
      %v2276 = vld [vmem:[#allocation2 + $0x3a] sm:$0xff]
      %v2277 = vld [vmem:[#allocation2 + $0x42] sm:$0xff]
      %v2278 = vld [vmem:[#allocation2 + $0x4a] sm:$0xff]
      %v2279 = vld [vmem:[#allocation2 + $0x52] sm:$0xff]
      %v2280 = vld [vmem:[#allocation2 + $0x5a] sm:$0xff]
      %v2281 = vld [vmem:[#allocation2 + $0x62] sm:$0xff]
      %v2282 = vld [vmem:[#allocation2 + $0x6a] sm:$0xff]
      %v2283 = vld [vmem:[#allocation2 + $0x72] sm:$0xff]
      %v2284 = vld [vmem:[#allocation2 + $0x7a] sm:$0xff]
      %v2285 = vld [vmem:[#allocation2 + $0x82] sm:$0xff]
      %v2286 = vld [vmem:[#allocation2 + $0x8a] sm:$0xff]
      %v2287 = vld [vmem:[#allocation2 + $0x92] sm:$0xff]
      %v2288 = vld [vmem:[#allocation2 + $0x9a] sm:$0xff]
      %v2289 = vld [vmem:[#allocation2 + $0xa2] sm:$0xff]
      %v2290 = vld [vmem:[#allocation2 + $0xaa] sm:$0xff]
      %v2291 = vld [vmem:[#allocation2 + $0xb2] sm:$0xff]
      %v2292 = vld [vmem:[#allocation2 + $0xba] sm:$0xff]
      %v2293 = vld [vmem:[#allocation2 + $0xc2] sm:$0xff]
      %v2294 = vld [vmem:[#allocation2 + $0xca] sm:$0xff]
      %v2295 = vld [vmem:[#allocation2 + $0xd2] sm:$0xff]
      %v2296 = vld [vmem:[#allocation2 + $0xda] sm:$0xff]
      %v2297 = vld [vmem:[#allocation2 + $0xe2] sm:$0xff]
      %v2298 = vld [vmem:[#allocation2 + $0xea] sm:$0xff]
      %v2299 = vld [vmem:[#allocation2 + $0xf2] sm:$0xff]
      %v2300 = vld [vmem:[#allocation2 + $0xfa] sm:$0xff]
      %v2301 = vld [vmem:[#allocation2 + $0x102] sm:$0xff]
      %v2302 = vld [vmem:[#allocation2 + $0x10a] sm:$0xff]
      %v2303 = vld [vmem:[#allocation2 + $0x112] sm:$0xff]
      %v2304 = vld [vmem:[#allocation2 + $0x11a] sm:$0xff]
      %v2305 = vld [vmem:[#allocation2 + $0x122] sm:$0xff]
      %v2306 = vld [vmem:[#allocation2 + $0x12a] sm:$0xff]
      %v2307 = vld [vmem:[#allocation2 + $0x132] sm:$0xff]
      %v2308 = vpack.c.bf16 %v2273, %v2272
      %v2309 = vpack.c.bf16 %v2275, %v2274
      %v2310 = vpack.c.bf16 %v2277, %v2276
      %v2311 = vpack.c.bf16 %v2279, %v2278
      %v2312 = vpack.c.bf16 %v2281, %v2280
      %v2313 = vpack.c.bf16 %v2283, %v2282
      %v2314 = vpack.c.bf16 %v2285, %v2284
      %v2315 = vpack.c.bf16 %v2287, %v2286
      %v2316 = vpack.c.bf16 %v2289, %v2288
      %v2317 = vpack.c.bf16 %v2291, %v2290
      %v2318 = vpack.c.bf16 %v2293, %v2292
      %v2319 = vpack.c.bf16 %v2295, %v2294
      %v2320 = vpack.c.bf16 %v2297, %v2296
      %v2321 = vpack.c.bf16 %v2299, %v2298
      %v2322 = vpack.c.bf16 %v2301, %v2300
      %v2323 = vpack.c.bf16 %v2303, %v2302
      %v2324 = vpack.c.bf16 %v2305, %v2304
      %v2325 = vpack.c.bf16 %v2307, %v2306
      %s2326 = scalar_lea.vmem %s4, 256
      %v2327 = vld [vmem:[%s2326] sm:$0xf]
      %v2328 = vld [vmem:[%s2326 + $0x4] sm:$0xf]
      %v2329 = vld [vmem:[%s2326 + $0x8] sm:$0xf]
      %v2330 = vld [vmem:[%s2326 + $0xc] sm:$0xf]
      %v2331 = vld [vmem:[%s2326 + $0x10] sm:$0xf]
      %v2332 = vld [vmem:[%s2326 + $0x14] sm:$0xf]
      %v2333 = vld [vmem:[%s2326 + $0x18] sm:$0xf]
      %v2334 = vld [vmem:[%s2326 + $0x1c] sm:$0xf]
      %v2335 = vld [vmem:[%s2326 + $0x20] sm:$0xf]
      %v2336 = vld [vmem:[%s2326 + $0x24] sm:$0xf]
      %v2337 = vld [vmem:[%s2326 + $0x28] sm:$0xf]
      %v2338 = vld [vmem:[%s2326 + $0x2c] sm:$0xf]
      %v2339 = vld [vmem:[%s2326 + $0x30] sm:$0xf]
      %v2340 = vld [vmem:[%s2326 + $0x34] sm:$0xf]
      %v2341 = vld [vmem:[%s2326 + $0x38] sm:$0xf]
      %v2342 = vld [vmem:[%s2326 + $0x3c] sm:$0xf]
      %v2359 = vunpack.c.l.b16 %v2327
      %v2360 = vunpack.c.l.b16 %v2328
      %v2361 = vunpack.c.l.b16 %v2329
      %v2362 = vunpack.c.l.b16 %v2330
      %v2363 = vunpack.c.l.b16 %v2331
      %v2364 = vunpack.c.l.b16 %v2332
      %v2365 = vunpack.c.l.b16 %v2333
      %v2366 = vunpack.c.l.b16 %v2334
      %v2367 = vunpack.c.l.b16 %v2335
      %v2368 = vunpack.c.l.b16 %v2336
      %v2369 = vunpack.c.l.b16 %v2337
      %v2370 = vunpack.c.l.b16 %v2338
      %v2371 = vunpack.c.l.b16 %v2339
      %v2372 = vunpack.c.l.b16 %v2340
      %v2373 = vunpack.c.l.b16 %v2341
      %v2374 = vunpack.c.l.b16 %v2342
      %v2375 = vpack.c.b16 %v2360, %v2359
      %v2376 = vpack.c.b16 %v2362, %v2361
      %v2377 = vpack.c.b16 %v2364, %v2363
      %v2378 = vpack.c.b16 %v2366, %v2365
      %v2379 = vpack.c.b16 %v2368, %v2367
      %v2380 = vpack.c.b16 %v2370, %v2369
      %v2381 = vpack.c.b16 %v2372, %v2371
      %v2382 = vpack.c.b16 %v2374, %v2373
      %2391 = vmatprep.subr.bf16.mxu0 0
      %2392 = vmatpush1.bf16.msra.mxu0 %v2382
      %2393 = vmatprep.subr.bf16.mxu0 0
      %2394 = vmatpush1.bf16.msra.mxu0 %v2381
      %2395 = vmatprep.subr.bf16.mxu0 0
      %2396 = vmatpush1.bf16.msra.mxu0 %v2380
      %2397 = vmatprep.subr.bf16.mxu0 0
      %2398 = vmatpush1.bf16.msra.mxu0 %v2379
      %2399 = vmatprep.subr.bf16.mxu0 0
      %2400 = vmatpush1.bf16.msra.mxu0 %v2378
      %2401 = vmatprep.subr.bf16.mxu0 0
      %2402 = vmatpush1.bf16.msra.mxu0 %v2377
      %2403 = vmatprep.subr.bf16.mxu0 0
      %2404 = vmatpush1.bf16.msra.mxu0 %v2376
      %2405 = vmatprep.subr.bf16.mxu0 0
      %2406 = vmatpush1.bf16.msra.mxu0 %v2375
      %2407 = vmatprep.subr.bf16.mxu0 0
      %2408 = vmatpush2.bf16.msra.mxu0 0
      %2409 = vmatprep.subr.bf16.mxu0 0
      %2410 = vmatpush2.bf16.msra.mxu0 0
      %2411 = vmatprep.subr.bf16.mxu0 0
      %2412 = vmatpush2.bf16.msra.mxu0 0
      %2413 = vmatprep.subr.bf16.mxu0 0
      %2414 = vmatpush2.bf16.msra.mxu0 0
      %2415 = vmatprep.subr.bf16.mxu0 0
      %2416 = vmatpush2.bf16.msra.mxu0 0
      %2417 = vmatprep.subr.bf16.mxu0 0
      %2418 = vmatpush2.bf16.msra.mxu0 0
      %2419 = vmatprep.subr.bf16.mxu0 0
      %2420 = vmatpush2.bf16.msra.mxu0 0
      %2421 = vmatprep.subr.bf16.mxu0 0
      %2422 = vmatpush2.bf16.msra.mxu0 0
      %2423 = vmatprep.mubr.bf16.mxu0 0
      %2424 = vmatmul.mubr.bf16.gmra.mxu0 %v2308
      %v2425 = vpop.f32.mrf.mxu0
      %v2426 = vadd.f32 0.0, %v2425
      %v2427 = vpop.f32.mrf.mxu0
      %v2428 = vpop.f32.mrf.mxu0
      %v2429 = vadd.f32 0.0, %v2428
      %v2430 = vpop.f32.mrf.mxu0
      %2431 = vmatprep.mubr.bf16.mxu0 0
      %2432 = vmatmul.mubr.bf16.gmra.mxu0 %v2309
      %v2433 = vpop.f32.mrf.mxu0
      %v2434 = vadd.f32 0.0, %v2433
      %v2435 = vpop.f32.mrf.mxu0
      %v2436 = vpop.f32.mrf.mxu0
      %v2437 = vadd.f32 0.0, %v2436
      %v2438 = vpop.f32.mrf.mxu0
      %2439 = vmatprep.mubr.bf16.mxu0 0
      %2440 = vmatmul.mubr.bf16.gmra.mxu0 %v2310
      %v2441 = vpop.f32.mrf.mxu0
      %v2442 = vadd.f32 0.0, %v2441
      %v2443 = vpop.f32.mrf.mxu0
      %v2444 = vpop.f32.mrf.mxu0
      %v2445 = vadd.f32 0.0, %v2444
      %v2446 = vpop.f32.mrf.mxu0
      %2447 = vmatprep.mubr.bf16.mxu0 0
      %2448 = vmatmul.mubr.bf16.gmra.mxu0 %v2311
      %v2449 = vpop.f32.mrf.mxu0
      %v2450 = vadd.f32 0.0, %v2449
      %v2451 = vpop.f32.mrf.mxu0
      %v2452 = vpop.f32.mrf.mxu0
      %v2453 = vadd.f32 0.0, %v2452
      %v2454 = vpop.f32.mrf.mxu0
      %2455 = vmatprep.mubr.bf16.mxu0 0
      %2456 = vmatmul.mubr.bf16.gmra.mxu0 %v2312
      %v2457 = vpop.f32.mrf.mxu0
      %v2458 = vadd.f32 0.0, %v2457
      %v2459 = vpop.f32.mrf.mxu0
      %v2460 = vpop.f32.mrf.mxu0
      %v2461 = vadd.f32 0.0, %v2460
      %v2462 = vpop.f32.mrf.mxu0
      %2463 = vmatprep.mubr.bf16.mxu0 0
      %2464 = vmatmul.mubr.bf16.gmra.mxu0 %v2313
      %v2465 = vpop.f32.mrf.mxu0
      %v2466 = vadd.f32 0.0, %v2465
      %v2467 = vpop.f32.mrf.mxu0
      %v2468 = vpop.f32.mrf.mxu0
      %v2469 = vadd.f32 0.0, %v2468
      %v2470 = vpop.f32.mrf.mxu0
      %2471 = vmatprep.mubr.bf16.mxu0 0
      %2472 = vmatmul.mubr.bf16.gmra.mxu0 %v2314
      %v2473 = vpop.f32.mrf.mxu0
      %v2474 = vadd.f32 0.0, %v2473
      %v2475 = vpop.f32.mrf.mxu0
      %v2476 = vpop.f32.mrf.mxu0
      %v2477 = vadd.f32 0.0, %v2476
      %v2478 = vpop.f32.mrf.mxu0
      %2479 = vmatprep.mubr.bf16.mxu0 0
      %2480 = vmatmul.mubr.bf16.gmra.mxu0 %v2315
      %v2481 = vpop.f32.mrf.mxu0
      %v2482 = vadd.f32 0.0, %v2481
      %v2483 = vpop.f32.mrf.mxu0
      %v2484 = vpop.f32.mrf.mxu0
      %v2485 = vadd.f32 0.0, %v2484
      %v2486 = vpop.f32.mrf.mxu0
      %2487 = vmatprep.mubr.bf16.mxu0 0
      %2488 = vmatmul.mubr.bf16.gmra.mxu0 %v2316
      %v2489 = vpop.f32.mrf.mxu0
      %v2490 = vadd.f32 0.0, %v2489
      %v2491 = vpop.f32.mrf.mxu0
      %v2492 = vpop.f32.mrf.mxu0
      %v2493 = vadd.f32 0.0, %v2492
      %v2494 = vpop.f32.mrf.mxu0
      %2495 = vmatprep.mubr.bf16.mxu0 0
      %2496 = vmatmul.mubr.bf16.gmra.mxu0 %v2317
      %v2497 = vpop.f32.mrf.mxu0
      %v2498 = vadd.f32 0.0, %v2497
      %v2499 = vpop.f32.mrf.mxu0
      %v2500 = vpop.f32.mrf.mxu0
      %v2501 = vadd.f32 0.0, %v2500
      %v2502 = vpop.f32.mrf.mxu0
      %2503 = vmatprep.mubr.bf16.mxu0 0
      %2504 = vmatmul.mubr.bf16.gmra.mxu0 %v2318
      %v2505 = vpop.f32.mrf.mxu0
      %v2506 = vadd.f32 0.0, %v2505
      %v2507 = vpop.f32.mrf.mxu0
      %v2508 = vpop.f32.mrf.mxu0
      %v2509 = vadd.f32 0.0, %v2508
      %v2510 = vpop.f32.mrf.mxu0
      %2511 = vmatprep.mubr.bf16.mxu0 0
      %2512 = vmatmul.mubr.bf16.gmra.mxu0 %v2319
      %v2513 = vpop.f32.mrf.mxu0
      %v2514 = vadd.f32 0.0, %v2513
      %v2515 = vpop.f32.mrf.mxu0
      %v2516 = vpop.f32.mrf.mxu0
      %v2517 = vadd.f32 0.0, %v2516
      %v2518 = vpop.f32.mrf.mxu0
      %2519 = vmatprep.mubr.bf16.mxu0 0
      %2520 = vmatmul.mubr.bf16.gmra.mxu0 %v2320
      %v2521 = vpop.f32.mrf.mxu0
      %v2522 = vadd.f32 0.0, %v2521
      %v2523 = vpop.f32.mrf.mxu0
      %v2524 = vpop.f32.mrf.mxu0
      %v2525 = vadd.f32 0.0, %v2524
      %v2526 = vpop.f32.mrf.mxu0
      %2527 = vmatprep.mubr.bf16.mxu0 0
      %2528 = vmatmul.mubr.bf16.gmra.mxu0 %v2321
      %v2529 = vpop.f32.mrf.mxu0
      %v2530 = vadd.f32 0.0, %v2529
      %v2531 = vpop.f32.mrf.mxu0
      %v2532 = vpop.f32.mrf.mxu0
      %v2533 = vadd.f32 0.0, %v2532
      %v2534 = vpop.f32.mrf.mxu0
      %2535 = vmatprep.mubr.bf16.mxu0 0
      %2536 = vmatmul.mubr.bf16.gmra.mxu0 %v2322
      %v2537 = vpop.f32.mrf.mxu0
      %v2538 = vadd.f32 0.0, %v2537
      %v2539 = vpop.f32.mrf.mxu0
      %v2540 = vpop.f32.mrf.mxu0
      %v2541 = vadd.f32 0.0, %v2540
      %v2542 = vpop.f32.mrf.mxu0
      %2543 = vmatprep.mubr.bf16.mxu0 0
      %2544 = vmatmul.mubr.bf16.gmra.mxu0 %v2323
      %v2545 = vpop.f32.mrf.mxu0
      %v2546 = vadd.f32 0.0, %v2545
      %v2547 = vpop.f32.mrf.mxu0
      %v2548 = vpop.f32.mrf.mxu0
      %v2549 = vadd.f32 0.0, %v2548
      %v2550 = vpop.f32.mrf.mxu0
      %2551 = vmatprep.mubr.bf16.mxu0 0
      %2552 = vmatmul.mubr.bf16.gmra.mxu0 %v2324
      %v2553 = vpop.f32.mrf.mxu0
      %v2554 = vadd.f32 0.0, %v2553
      %v2555 = vpop.f32.mrf.mxu0
      %v2556 = vpop.f32.mrf.mxu0
      %v2557 = vadd.f32 0.0, %v2556
      %v2558 = vpop.f32.mrf.mxu0
      %2559 = vmatprep.mubr.bf16.mxu0 0
      %2560 = vmatmul.mubr.bf16.gmra.mxu0 %v2325
      %v2561 = vpop.f32.mrf.mxu0
      %v2562 = vadd.f32 0.0, %v2561
      %v2563 = vpop.f32.mrf.mxu0
      %v2564 = vpop.f32.mrf.mxu0
      %v2565 = vadd.f32 0.0, %v2564
      %v2566 = vpop.f32.mrf.mxu0
      %2567 = vdwg.mxu0
      %v2568 = vadd.f32 %v2236, %v2426
      %v2569 = vadd.f32 %v2237, %v2429
      %v2570 = vadd.f32 %v2238, %v2434
      %v2571 = vadd.f32 %v2239, %v2437
      %v2572 = vadd.f32 %v2240, %v2442
      %v2573 = vadd.f32 %v2241, %v2445
      %v2574 = vadd.f32 %v2242, %v2450
      %v2575 = vadd.f32 %v2243, %v2453
      %v2576 = vadd.f32 %v2244, %v2458
      %v2577 = vadd.f32 %v2245, %v2461
      %v2578 = vadd.f32 %v2246, %v2466
      %v2579 = vadd.f32 %v2247, %v2469
      %v2580 = vadd.f32 %v2248, %v2474
      %v2581 = vadd.f32 %v2249, %v2477
      %v2582 = vadd.f32 %v2250, %v2482
      %v2583 = vadd.f32 %v2251, %v2485
      %v2584 = vadd.f32 %v2252, %v2490
      %v2585 = vadd.f32 %v2253, %v2493
      %v2586 = vadd.f32 %v2254, %v2498
      %v2587 = vadd.f32 %v2255, %v2501
      %v2588 = vadd.f32 %v2256, %v2506
      %v2589 = vadd.f32 %v2257, %v2509
      %v2590 = vadd.f32 %v2258, %v2514
      %v2591 = vadd.f32 %v2259, %v2517
      %v2592 = vadd.f32 %v2260, %v2522
      %v2593 = vadd.f32 %v2261, %v2525
      %v2594 = vadd.f32 %v2262, %v2530
      %v2595 = vadd.f32 %v2263, %v2533
      %v2596 = vadd.f32 %v2264, %v2538
      %v2597 = vadd.f32 %v2265, %v2541
      %v2598 = vadd.f32 %v2266, %v2546
      %v2599 = vadd.f32 %v2267, %v2549
      %v2600 = vadd.f32 %v2268, %v2554
      %v2601 = vadd.f32 %v2269, %v2557
      %v2602 = vadd.f32 %v2270, %v2562
      %v2603 = vadd.f32 %v2271, %v2565
      %v2604 = vld [vmem:[#allocation2 + $0x1b] sm:$0xff]
      %v2605 = vld [vmem:[#allocation2 + $0x23] sm:$0xff]
      %v2606 = vld [vmem:[#allocation2 + $0x2b] sm:$0xff]
      %v2607 = vld [vmem:[#allocation2 + $0x33] sm:$0xff]
      %v2608 = vld [vmem:[#allocation2 + $0x3b] sm:$0xff]
      %v2609 = vld [vmem:[#allocation2 + $0x43] sm:$0xff]
      %v2610 = vld [vmem:[#allocation2 + $0x4b] sm:$0xff]
      %v2611 = vld [vmem:[#allocation2 + $0x53] sm:$0xff]
      %v2612 = vld [vmem:[#allocation2 + $0x5b] sm:$0xff]
      %v2613 = vld [vmem:[#allocation2 + $0x63] sm:$0xff]
      %v2614 = vld [vmem:[#allocation2 + $0x6b] sm:$0xff]
      %v2615 = vld [vmem:[#allocation2 + $0x73] sm:$0xff]
      %v2616 = vld [vmem:[#allocation2 + $0x7b] sm:$0xff]
      %v2617 = vld [vmem:[#allocation2 + $0x83] sm:$0xff]
      %v2618 = vld [vmem:[#allocation2 + $0x8b] sm:$0xff]
      %v2619 = vld [vmem:[#allocation2 + $0x93] sm:$0xff]
      %v2620 = vld [vmem:[#allocation2 + $0x9b] sm:$0xff]
      %v2621 = vld [vmem:[#allocation2 + $0xa3] sm:$0xff]
      %v2622 = vld [vmem:[#allocation2 + $0xab] sm:$0xff]
      %v2623 = vld [vmem:[#allocation2 + $0xb3] sm:$0xff]
      %v2624 = vld [vmem:[#allocation2 + $0xbb] sm:$0xff]
      %v2625 = vld [vmem:[#allocation2 + $0xc3] sm:$0xff]
      %v2626 = vld [vmem:[#allocation2 + $0xcb] sm:$0xff]
      %v2627 = vld [vmem:[#allocation2 + $0xd3] sm:$0xff]
      %v2628 = vld [vmem:[#allocation2 + $0xdb] sm:$0xff]
      %v2629 = vld [vmem:[#allocation2 + $0xe3] sm:$0xff]
      %v2630 = vld [vmem:[#allocation2 + $0xeb] sm:$0xff]
      %v2631 = vld [vmem:[#allocation2 + $0xf3] sm:$0xff]
      %v2632 = vld [vmem:[#allocation2 + $0xfb] sm:$0xff]
      %v2633 = vld [vmem:[#allocation2 + $0x103] sm:$0xff]
      %v2634 = vld [vmem:[#allocation2 + $0x10b] sm:$0xff]
      %v2635 = vld [vmem:[#allocation2 + $0x113] sm:$0xff]
      %v2636 = vld [vmem:[#allocation2 + $0x11b] sm:$0xff]
      %v2637 = vld [vmem:[#allocation2 + $0x123] sm:$0xff]
      %v2638 = vld [vmem:[#allocation2 + $0x12b] sm:$0xff]
      %v2639 = vld [vmem:[#allocation2 + $0x133] sm:$0xff]
      %v2640 = vpack.c.bf16 %v2605, %v2604
      %v2641 = vpack.c.bf16 %v2607, %v2606
      %v2642 = vpack.c.bf16 %v2609, %v2608
      %v2643 = vpack.c.bf16 %v2611, %v2610
      %v2644 = vpack.c.bf16 %v2613, %v2612
      %v2645 = vpack.c.bf16 %v2615, %v2614
      %v2646 = vpack.c.bf16 %v2617, %v2616
      %v2647 = vpack.c.bf16 %v2619, %v2618
      %v2648 = vpack.c.bf16 %v2621, %v2620
      %v2649 = vpack.c.bf16 %v2623, %v2622
      %v2650 = vpack.c.bf16 %v2625, %v2624
      %v2651 = vpack.c.bf16 %v2627, %v2626
      %v2652 = vpack.c.bf16 %v2629, %v2628
      %v2653 = vpack.c.bf16 %v2631, %v2630
      %v2654 = vpack.c.bf16 %v2633, %v2632
      %v2655 = vpack.c.bf16 %v2635, %v2634
      %v2656 = vpack.c.bf16 %v2637, %v2636
      %v2657 = vpack.c.bf16 %v2639, %v2638
      %s2658 = scalar_lea.vmem %s4, 320
      %v2659 = vld [vmem:[%s2658] sm:$0xf]
      %v2660 = vld [vmem:[%s2658 + $0x4] sm:$0xf]
      %v2661 = vld [vmem:[%s2658 + $0x8] sm:$0xf]
      %v2662 = vld [vmem:[%s2658 + $0xc] sm:$0xf]
      %v2663 = vld [vmem:[%s2658 + $0x10] sm:$0xf]
      %v2664 = vld [vmem:[%s2658 + $0x14] sm:$0xf]
      %v2665 = vld [vmem:[%s2658 + $0x18] sm:$0xf]
      %v2666 = vld [vmem:[%s2658 + $0x1c] sm:$0xf]
      %v2667 = vld [vmem:[%s2658 + $0x20] sm:$0xf]
      %v2668 = vld [vmem:[%s2658 + $0x24] sm:$0xf]
      %v2669 = vld [vmem:[%s2658 + $0x28] sm:$0xf]
      %v2670 = vld [vmem:[%s2658 + $0x2c] sm:$0xf]
      %v2671 = vld [vmem:[%s2658 + $0x30] sm:$0xf]
      %v2672 = vld [vmem:[%s2658 + $0x34] sm:$0xf]
      %v2673 = vld [vmem:[%s2658 + $0x38] sm:$0xf]
      %v2674 = vld [vmem:[%s2658 + $0x3c] sm:$0xf]
      %v2691 = vunpack.c.l.b16 %v2659
      %v2692 = vunpack.c.l.b16 %v2660
      %v2693 = vunpack.c.l.b16 %v2661
      %v2694 = vunpack.c.l.b16 %v2662
      %v2695 = vunpack.c.l.b16 %v2663
      %v2696 = vunpack.c.l.b16 %v2664
      %v2697 = vunpack.c.l.b16 %v2665
      %v2698 = vunpack.c.l.b16 %v2666
      %v2699 = vunpack.c.l.b16 %v2667
      %v2700 = vunpack.c.l.b16 %v2668
      %v2701 = vunpack.c.l.b16 %v2669
      %v2702 = vunpack.c.l.b16 %v2670
      %v2703 = vunpack.c.l.b16 %v2671
      %v2704 = vunpack.c.l.b16 %v2672
      %v2705 = vunpack.c.l.b16 %v2673
      %v2706 = vunpack.c.l.b16 %v2674
      %v2707 = vpack.c.b16 %v2692, %v2691
      %v2708 = vpack.c.b16 %v2694, %v2693
      %v2709 = vpack.c.b16 %v2696, %v2695
      %v2710 = vpack.c.b16 %v2698, %v2697
      %v2711 = vpack.c.b16 %v2700, %v2699
      %v2712 = vpack.c.b16 %v2702, %v2701
      %v2713 = vpack.c.b16 %v2704, %v2703
      %v2714 = vpack.c.b16 %v2706, %v2705
      %2723 = vmatprep.subr.bf16.mxu0 0
      %2724 = vmatpush1.bf16.msra.mxu0 %v2714
      %2725 = vmatprep.subr.bf16.mxu0 0
      %2726 = vmatpush1.bf16.msra.mxu0 %v2713
      %2727 = vmatprep.subr.bf16.mxu0 0
      %2728 = vmatpush1.bf16.msra.mxu0 %v2712
      %2729 = vmatprep.subr.bf16.mxu0 0
      %2730 = vmatpush1.bf16.msra.mxu0 %v2711
      %2731 = vmatprep.subr.bf16.mxu0 0
      %2732 = vmatpush1.bf16.msra.mxu0 %v2710
      %2733 = vmatprep.subr.bf16.mxu0 0
      %2734 = vmatpush1.bf16.msra.mxu0 %v2709
      %2735 = vmatprep.subr.bf16.mxu0 0
      %2736 = vmatpush1.bf16.msra.mxu0 %v2708
      %2737 = vmatprep.subr.bf16.mxu0 0
      %2738 = vmatpush1.bf16.msra.mxu0 %v2707
      %2739 = vmatprep.subr.bf16.mxu0 0
      %2740 = vmatpush2.bf16.msra.mxu0 0
      %2741 = vmatprep.subr.bf16.mxu0 0
      %2742 = vmatpush2.bf16.msra.mxu0 0
      %2743 = vmatprep.subr.bf16.mxu0 0
      %2744 = vmatpush2.bf16.msra.mxu0 0
      %2745 = vmatprep.subr.bf16.mxu0 0
      %2746 = vmatpush2.bf16.msra.mxu0 0
      %2747 = vmatprep.subr.bf16.mxu0 0
      %2748 = vmatpush2.bf16.msra.mxu0 0
      %2749 = vmatprep.subr.bf16.mxu0 0
      %2750 = vmatpush2.bf16.msra.mxu0 0
      %2751 = vmatprep.subr.bf16.mxu0 0
      %2752 = vmatpush2.bf16.msra.mxu0 0
      %2753 = vmatprep.subr.bf16.mxu0 0
      %2754 = vmatpush2.bf16.msra.mxu0 0
      %2755 = vmatprep.mubr.bf16.mxu0 0
      %2756 = vmatmul.mubr.bf16.gmra.mxu0 %v2640
      %v2757 = vpop.f32.mrf.mxu0
      %v2758 = vadd.f32 0.0, %v2757
      %v2759 = vpop.f32.mrf.mxu0
      %v2760 = vpop.f32.mrf.mxu0
      %v2761 = vadd.f32 0.0, %v2760
      %v2762 = vpop.f32.mrf.mxu0
      %2763 = vmatprep.mubr.bf16.mxu0 0
      %2764 = vmatmul.mubr.bf16.gmra.mxu0 %v2641
      %v2765 = vpop.f32.mrf.mxu0
      %v2766 = vadd.f32 0.0, %v2765
      %v2767 = vpop.f32.mrf.mxu0
      %v2768 = vpop.f32.mrf.mxu0
      %v2769 = vadd.f32 0.0, %v2768
      %v2770 = vpop.f32.mrf.mxu0
      %2771 = vmatprep.mubr.bf16.mxu0 0
      %2772 = vmatmul.mubr.bf16.gmra.mxu0 %v2642
      %v2773 = vpop.f32.mrf.mxu0
      %v2774 = vadd.f32 0.0, %v2773
      %v2775 = vpop.f32.mrf.mxu0
      %v2776 = vpop.f32.mrf.mxu0
      %v2777 = vadd.f32 0.0, %v2776
      %v2778 = vpop.f32.mrf.mxu0
      %2779 = vmatprep.mubr.bf16.mxu0 0
      %2780 = vmatmul.mubr.bf16.gmra.mxu0 %v2643
      %v2781 = vpop.f32.mrf.mxu0
      %v2782 = vadd.f32 0.0, %v2781
      %v2783 = vpop.f32.mrf.mxu0
      %v2784 = vpop.f32.mrf.mxu0
      %v2785 = vadd.f32 0.0, %v2784
      %v2786 = vpop.f32.mrf.mxu0
      %2787 = vmatprep.mubr.bf16.mxu0 0
      %2788 = vmatmul.mubr.bf16.gmra.mxu0 %v2644
      %v2789 = vpop.f32.mrf.mxu0
      %v2790 = vadd.f32 0.0, %v2789
      %v2791 = vpop.f32.mrf.mxu0
      %v2792 = vpop.f32.mrf.mxu0
      %v2793 = vadd.f32 0.0, %v2792
      %v2794 = vpop.f32.mrf.mxu0
      %2795 = vmatprep.mubr.bf16.mxu0 0
      %2796 = vmatmul.mubr.bf16.gmra.mxu0 %v2645
      %v2797 = vpop.f32.mrf.mxu0
      %v2798 = vadd.f32 0.0, %v2797
      %v2799 = vpop.f32.mrf.mxu0
      %v2800 = vpop.f32.mrf.mxu0
      %v2801 = vadd.f32 0.0, %v2800
      %v2802 = vpop.f32.mrf.mxu0
      %2803 = vmatprep.mubr.bf16.mxu0 0
      %2804 = vmatmul.mubr.bf16.gmra.mxu0 %v2646
      %v2805 = vpop.f32.mrf.mxu0
      %v2806 = vadd.f32 0.0, %v2805
      %v2807 = vpop.f32.mrf.mxu0
      %v2808 = vpop.f32.mrf.mxu0
      %v2809 = vadd.f32 0.0, %v2808
      %v2810 = vpop.f32.mrf.mxu0
      %2811 = vmatprep.mubr.bf16.mxu0 0
      %2812 = vmatmul.mubr.bf16.gmra.mxu0 %v2647
      %v2813 = vpop.f32.mrf.mxu0
      %v2814 = vadd.f32 0.0, %v2813
      %v2815 = vpop.f32.mrf.mxu0
      %v2816 = vpop.f32.mrf.mxu0
      %v2817 = vadd.f32 0.0, %v2816
      %v2818 = vpop.f32.mrf.mxu0
      %2819 = vmatprep.mubr.bf16.mxu0 0
      %2820 = vmatmul.mubr.bf16.gmra.mxu0 %v2648
      %v2821 = vpop.f32.mrf.mxu0
      %v2822 = vadd.f32 0.0, %v2821
      %v2823 = vpop.f32.mrf.mxu0
      %v2824 = vpop.f32.mrf.mxu0
      %v2825 = vadd.f32 0.0, %v2824
      %v2826 = vpop.f32.mrf.mxu0
      %2827 = vmatprep.mubr.bf16.mxu0 0
      %2828 = vmatmul.mubr.bf16.gmra.mxu0 %v2649
      %v2829 = vpop.f32.mrf.mxu0
      %v2830 = vadd.f32 0.0, %v2829
      %v2831 = vpop.f32.mrf.mxu0
      %v2832 = vpop.f32.mrf.mxu0
      %v2833 = vadd.f32 0.0, %v2832
      %v2834 = vpop.f32.mrf.mxu0
      %2835 = vmatprep.mubr.bf16.mxu0 0
      %2836 = vmatmul.mubr.bf16.gmra.mxu0 %v2650
      %v2837 = vpop.f32.mrf.mxu0
      %v2838 = vadd.f32 0.0, %v2837
      %v2839 = vpop.f32.mrf.mxu0
      %v2840 = vpop.f32.mrf.mxu0
      %v2841 = vadd.f32 0.0, %v2840
      %v2842 = vpop.f32.mrf.mxu0
      %2843 = vmatprep.mubr.bf16.mxu0 0
      %2844 = vmatmul.mubr.bf16.gmra.mxu0 %v2651
      %v2845 = vpop.f32.mrf.mxu0
      %v2846 = vadd.f32 0.0, %v2845
      %v2847 = vpop.f32.mrf.mxu0
      %v2848 = vpop.f32.mrf.mxu0
      %v2849 = vadd.f32 0.0, %v2848
      %v2850 = vpop.f32.mrf.mxu0
      %2851 = vmatprep.mubr.bf16.mxu0 0
      %2852 = vmatmul.mubr.bf16.gmra.mxu0 %v2652
      %v2853 = vpop.f32.mrf.mxu0
      %v2854 = vadd.f32 0.0, %v2853
      %v2855 = vpop.f32.mrf.mxu0
      %v2856 = vpop.f32.mrf.mxu0
      %v2857 = vadd.f32 0.0, %v2856
      %v2858 = vpop.f32.mrf.mxu0
      %2859 = vmatprep.mubr.bf16.mxu0 0
      %2860 = vmatmul.mubr.bf16.gmra.mxu0 %v2653
      %v2861 = vpop.f32.mrf.mxu0
      %v2862 = vadd.f32 0.0, %v2861
      %v2863 = vpop.f32.mrf.mxu0
      %v2864 = vpop.f32.mrf.mxu0
      %v2865 = vadd.f32 0.0, %v2864
      %v2866 = vpop.f32.mrf.mxu0
      %2867 = vmatprep.mubr.bf16.mxu0 0
      %2868 = vmatmul.mubr.bf16.gmra.mxu0 %v2654
      %v2869 = vpop.f32.mrf.mxu0
      %v2870 = vadd.f32 0.0, %v2869
      %v2871 = vpop.f32.mrf.mxu0
      %v2872 = vpop.f32.mrf.mxu0
      %v2873 = vadd.f32 0.0, %v2872
      %v2874 = vpop.f32.mrf.mxu0
      %2875 = vmatprep.mubr.bf16.mxu0 0
      %2876 = vmatmul.mubr.bf16.gmra.mxu0 %v2655
      %v2877 = vpop.f32.mrf.mxu0
      %v2878 = vadd.f32 0.0, %v2877
      %v2879 = vpop.f32.mrf.mxu0
      %v2880 = vpop.f32.mrf.mxu0
      %v2881 = vadd.f32 0.0, %v2880
      %v2882 = vpop.f32.mrf.mxu0
      %2883 = vmatprep.mubr.bf16.mxu0 0
      %2884 = vmatmul.mubr.bf16.gmra.mxu0 %v2656
      %v2885 = vpop.f32.mrf.mxu0
      %v2886 = vadd.f32 0.0, %v2885
      %v2887 = vpop.f32.mrf.mxu0
      %v2888 = vpop.f32.mrf.mxu0
      %v2889 = vadd.f32 0.0, %v2888
      %v2890 = vpop.f32.mrf.mxu0
      %2891 = vmatprep.mubr.bf16.mxu0 0
      %2892 = vmatmul.mubr.bf16.gmra.mxu0 %v2657
      %v2893 = vpop.f32.mrf.mxu0
      %v2894 = vadd.f32 0.0, %v2893
      %v2895 = vpop.f32.mrf.mxu0
      %v2896 = vpop.f32.mrf.mxu0
      %v2897 = vadd.f32 0.0, %v2896
      %v2898 = vpop.f32.mrf.mxu0
      %2899 = vdwg.mxu0
      %v2900 = vadd.f32 %v2568, %v2758
      %v2901 = vadd.f32 %v2569, %v2761
      %v2902 = vadd.f32 %v2570, %v2766
      %v2903 = vadd.f32 %v2571, %v2769
      %v2904 = vadd.f32 %v2572, %v2774
      %v2905 = vadd.f32 %v2573, %v2777
      %v2906 = vadd.f32 %v2574, %v2782
      %v2907 = vadd.f32 %v2575, %v2785
      %v2908 = vadd.f32 %v2576, %v2790
      %v2909 = vadd.f32 %v2577, %v2793
      %v2910 = vadd.f32 %v2578, %v2798
      %v2911 = vadd.f32 %v2579, %v2801
      %v2912 = vadd.f32 %v2580, %v2806
      %v2913 = vadd.f32 %v2581, %v2809
      %v2914 = vadd.f32 %v2582, %v2814
      %v2915 = vadd.f32 %v2583, %v2817
      %v2916 = vadd.f32 %v2584, %v2822
      %v2917 = vadd.f32 %v2585, %v2825
      %v2918 = vadd.f32 %v2586, %v2830
      %v2919 = vadd.f32 %v2587, %v2833
      %v2920 = vadd.f32 %v2588, %v2838
      %v2921 = vadd.f32 %v2589, %v2841
      %v2922 = vadd.f32 %v2590, %v2846
      %v2923 = vadd.f32 %v2591, %v2849
      %v2924 = vadd.f32 %v2592, %v2854
      %v2925 = vadd.f32 %v2593, %v2857
      %v2926 = vadd.f32 %v2594, %v2862
      %v2927 = vadd.f32 %v2595, %v2865
      %v2928 = vadd.f32 %v2596, %v2870
      %v2929 = vadd.f32 %v2597, %v2873
      %v2930 = vadd.f32 %v2598, %v2878
      %v2931 = vadd.f32 %v2599, %v2881
      %v2932 = vadd.f32 %v2600, %v2886
      %v2933 = vadd.f32 %v2601, %v2889
      %v2934 = vadd.f32 %v2602, %v2894
      %v2935 = vadd.f32 %v2603, %v2897
      %v2936 = vld [vmem:[#allocation2 + $0x2b] sm:$0xff]
      %v2937 = vld [vmem:[#allocation2 + $0x33] sm:$0xff]
      %v2938 = vld [vmem:[#allocation2 + $0x3b] sm:$0xff]
      %v2939 = vld [vmem:[#allocation2 + $0x43] sm:$0xff]
      %v2940 = vld [vmem:[#allocation2 + $0x4b] sm:$0xff]
      %v2941 = vld [vmem:[#allocation2 + $0x53] sm:$0xff]
      %v2942 = vld [vmem:[#allocation2 + $0x5b] sm:$0xff]
      %v2943 = vld [vmem:[#allocation2 + $0x63] sm:$0xff]
      %v2944 = vld [vmem:[#allocation2 + $0x6b] sm:$0xff]
      %v2945 = vld [vmem:[#allocation2 + $0x73] sm:$0xff]
      %v2946 = vld [vmem:[#allocation2 + $0x7b] sm:$0xff]
      %v2947 = vld [vmem:[#allocation2 + $0x83] sm:$0xff]
      %v2948 = vld [vmem:[#allocation2 + $0x8b] sm:$0xff]
      %v2949 = vld [vmem:[#allocation2 + $0x93] sm:$0xff]
      %v2950 = vld [vmem:[#allocation2 + $0x9b] sm:$0xff]
      %v2951 = vld [vmem:[#allocation2 + $0xa3] sm:$0xff]
      %v2952 = vld [vmem:[#allocation2 + $0xab] sm:$0xff]
      %v2953 = vld [vmem:[#allocation2 + $0xb3] sm:$0xff]
      %v2954 = vld [vmem:[#allocation2 + $0xbb] sm:$0xff]
      %v2955 = vld [vmem:[#allocation2 + $0xc3] sm:$0xff]
      %v2956 = vld [vmem:[#allocation2 + $0xcb] sm:$0xff]
      %v2957 = vld [vmem:[#allocation2 + $0xd3] sm:$0xff]
      %v2958 = vld [vmem:[#allocation2 + $0xdb] sm:$0xff]
      %v2959 = vld [vmem:[#allocation2 + $0xe3] sm:$0xff]
      %v2960 = vld [vmem:[#allocation2 + $0xeb] sm:$0xff]
      %v2961 = vld [vmem:[#allocation2 + $0xf3] sm:$0xff]
      %v2962 = vld [vmem:[#allocation2 + $0xfb] sm:$0xff]
      %v2963 = vld [vmem:[#allocation2 + $0x103] sm:$0xff]
      %v2964 = vld [vmem:[#allocation2 + $0x10b] sm:$0xff]
      %v2965 = vld [vmem:[#allocation2 + $0x113] sm:$0xff]
      %v2966 = vld [vmem:[#allocation2 + $0x11b] sm:$0xff]
      %v2967 = vld [vmem:[#allocation2 + $0x123] sm:$0xff]
      %v2968 = vld [vmem:[#allocation2 + $0x12b] sm:$0xff]
      %v2969 = vld [vmem:[#allocation2 + $0x133] sm:$0xff]
      %v2970 = vld [vmem:[#allocation2 + $0x13b] sm:$0xff]
      %v2971 = vld [vmem:[#allocation2 + $0x143] sm:$0xff]
      %v2972 = vpack.c.bf16 %v2937, %v2936
      %v2973 = vpack.c.bf16 %v2939, %v2938
      %v2974 = vpack.c.bf16 %v2941, %v2940
      %v2975 = vpack.c.bf16 %v2943, %v2942
      %v2976 = vpack.c.bf16 %v2945, %v2944
      %v2977 = vpack.c.bf16 %v2947, %v2946
      %v2978 = vpack.c.bf16 %v2949, %v2948
      %v2979 = vpack.c.bf16 %v2951, %v2950
      %v2980 = vpack.c.bf16 %v2953, %v2952
      %v2981 = vpack.c.bf16 %v2955, %v2954
      %v2982 = vpack.c.bf16 %v2957, %v2956
      %v2983 = vpack.c.bf16 %v2959, %v2958
      %v2984 = vpack.c.bf16 %v2961, %v2960
      %v2985 = vpack.c.bf16 %v2963, %v2962
      %v2986 = vpack.c.bf16 %v2965, %v2964
      %v2987 = vpack.c.bf16 %v2967, %v2966
      %v2988 = vpack.c.bf16 %v2969, %v2968
      %v2989 = vpack.c.bf16 %v2971, %v2970
      %s2990 = scalar_lea.vmem %s4, 384
      %v2991 = vld [vmem:[%s2990] sm:$0xf]
      %v2992 = vld [vmem:[%s2990 + $0x4] sm:$0xf]
      %v2993 = vld [vmem:[%s2990 + $0x8] sm:$0xf]
      %v2994 = vld [vmem:[%s2990 + $0xc] sm:$0xf]
      %v2995 = vld [vmem:[%s2990 + $0x10] sm:$0xf]
      %v2996 = vld [vmem:[%s2990 + $0x14] sm:$0xf]
      %v2997 = vld [vmem:[%s2990 + $0x18] sm:$0xf]
      %v2998 = vld [vmem:[%s2990 + $0x1c] sm:$0xf]
      %v2999 = vld [vmem:[%s2990 + $0x20] sm:$0xf]
      %v3000 = vld [vmem:[%s2990 + $0x24] sm:$0xf]
      %v3001 = vld [vmem:[%s2990 + $0x28] sm:$0xf]
      %v3002 = vld [vmem:[%s2990 + $0x2c] sm:$0xf]
      %v3003 = vld [vmem:[%s2990 + $0x30] sm:$0xf]
      %v3004 = vld [vmem:[%s2990 + $0x34] sm:$0xf]
      %v3005 = vld [vmem:[%s2990 + $0x38] sm:$0xf]
      %v3006 = vld [vmem:[%s2990 + $0x3c] sm:$0xf]
      %v3023 = vunpack.c.l.b16 %v2991
      %v3024 = vunpack.c.l.b16 %v2992
      %v3025 = vunpack.c.l.b16 %v2993
      %v3026 = vunpack.c.l.b16 %v2994
      %v3027 = vunpack.c.l.b16 %v2995
      %v3028 = vunpack.c.l.b16 %v2996
      %v3029 = vunpack.c.l.b16 %v2997
      %v3030 = vunpack.c.l.b16 %v2998
      %v3031 = vunpack.c.l.b16 %v2999
      %v3032 = vunpack.c.l.b16 %v3000
      %v3033 = vunpack.c.l.b16 %v3001
      %v3034 = vunpack.c.l.b16 %v3002
      %v3035 = vunpack.c.l.b16 %v3003
      %v3036 = vunpack.c.l.b16 %v3004
      %v3037 = vunpack.c.l.b16 %v3005
      %v3038 = vunpack.c.l.b16 %v3006
      %v3039 = vpack.c.b16 %v3024, %v3023
      %v3040 = vpack.c.b16 %v3026, %v3025
      %v3041 = vpack.c.b16 %v3028, %v3027
      %v3042 = vpack.c.b16 %v3030, %v3029
      %v3043 = vpack.c.b16 %v3032, %v3031
      %v3044 = vpack.c.b16 %v3034, %v3033
      %v3045 = vpack.c.b16 %v3036, %v3035
      %v3046 = vpack.c.b16 %v3038, %v3037
      %3055 = vmatprep.subr.bf16.mxu0 0
      %3056 = vmatpush1.bf16.msra.mxu0 %v3046
      %3057 = vmatprep.subr.bf16.mxu0 0
      %3058 = vmatpush1.bf16.msra.mxu0 %v3045
      %3059 = vmatprep.subr.bf16.mxu0 0
      %3060 = vmatpush1.bf16.msra.mxu0 %v3044
      %3061 = vmatprep.subr.bf16.mxu0 0
      %3062 = vmatpush1.bf16.msra.mxu0 %v3043
      %3063 = vmatprep.subr.bf16.mxu0 0
      %3064 = vmatpush1.bf16.msra.mxu0 %v3042
      %3065 = vmatprep.subr.bf16.mxu0 0
      %3066 = vmatpush1.bf16.msra.mxu0 %v3041
      %3067 = vmatprep.subr.bf16.mxu0 0
      %3068 = vmatpush1.bf16.msra.mxu0 %v3040
      %3069 = vmatprep.subr.bf16.mxu0 0
      %3070 = vmatpush1.bf16.msra.mxu0 %v3039
      %3071 = vmatprep.subr.bf16.mxu0 0
      %3072 = vmatpush2.bf16.msra.mxu0 0
      %3073 = vmatprep.subr.bf16.mxu0 0
      %3074 = vmatpush2.bf16.msra.mxu0 0
      %3075 = vmatprep.subr.bf16.mxu0 0
      %3076 = vmatpush2.bf16.msra.mxu0 0
      %3077 = vmatprep.subr.bf16.mxu0 0
      %3078 = vmatpush2.bf16.msra.mxu0 0
      %3079 = vmatprep.subr.bf16.mxu0 0
      %3080 = vmatpush2.bf16.msra.mxu0 0
      %3081 = vmatprep.subr.bf16.mxu0 0
      %3082 = vmatpush2.bf16.msra.mxu0 0
      %3083 = vmatprep.subr.bf16.mxu0 0
      %3084 = vmatpush2.bf16.msra.mxu0 0
      %3085 = vmatprep.subr.bf16.mxu0 0
      %3086 = vmatpush2.bf16.msra.mxu0 0
      %3087 = vmatprep.mubr.bf16.mxu0 0
      %3088 = vmatmul.mubr.bf16.gmra.mxu0 %v2972
      %v3089 = vpop.f32.mrf.mxu0
      %v3090 = vadd.f32 0.0, %v3089
      %v3091 = vpop.f32.mrf.mxu0
      %v3092 = vpop.f32.mrf.mxu0
      %v3093 = vadd.f32 0.0, %v3092
      %v3094 = vpop.f32.mrf.mxu0
      %3095 = vmatprep.mubr.bf16.mxu0 0
      %3096 = vmatmul.mubr.bf16.gmra.mxu0 %v2973
      %v3097 = vpop.f32.mrf.mxu0
      %v3098 = vadd.f32 0.0, %v3097
      %v3099 = vpop.f32.mrf.mxu0
      %v3100 = vpop.f32.mrf.mxu0
      %v3101 = vadd.f32 0.0, %v3100
      %v3102 = vpop.f32.mrf.mxu0
      %3103 = vmatprep.mubr.bf16.mxu0 0
      %3104 = vmatmul.mubr.bf16.gmra.mxu0 %v2974
      %v3105 = vpop.f32.mrf.mxu0
      %v3106 = vadd.f32 0.0, %v3105
      %v3107 = vpop.f32.mrf.mxu0
      %v3108 = vpop.f32.mrf.mxu0
      %v3109 = vadd.f32 0.0, %v3108
      %v3110 = vpop.f32.mrf.mxu0
      %3111 = vmatprep.mubr.bf16.mxu0 0
      %3112 = vmatmul.mubr.bf16.gmra.mxu0 %v2975
      %v3113 = vpop.f32.mrf.mxu0
      %v3114 = vadd.f32 0.0, %v3113
      %v3115 = vpop.f32.mrf.mxu0
      %v3116 = vpop.f32.mrf.mxu0
      %v3117 = vadd.f32 0.0, %v3116
      %v3118 = vpop.f32.mrf.mxu0
      %3119 = vmatprep.mubr.bf16.mxu0 0
      %3120 = vmatmul.mubr.bf16.gmra.mxu0 %v2976
      %v3121 = vpop.f32.mrf.mxu0
      %v3122 = vadd.f32 0.0, %v3121
      %v3123 = vpop.f32.mrf.mxu0
      %v3124 = vpop.f32.mrf.mxu0
      %v3125 = vadd.f32 0.0, %v3124
      %v3126 = vpop.f32.mrf.mxu0
      %3127 = vmatprep.mubr.bf16.mxu0 0
      %3128 = vmatmul.mubr.bf16.gmra.mxu0 %v2977
      %v3129 = vpop.f32.mrf.mxu0
      %v3130 = vadd.f32 0.0, %v3129
      %v3131 = vpop.f32.mrf.mxu0
      %v3132 = vpop.f32.mrf.mxu0
      %v3133 = vadd.f32 0.0, %v3132
      %v3134 = vpop.f32.mrf.mxu0
      %3135 = vmatprep.mubr.bf16.mxu0 0
      %3136 = vmatmul.mubr.bf16.gmra.mxu0 %v2978
      %v3137 = vpop.f32.mrf.mxu0
      %v3138 = vadd.f32 0.0, %v3137
      %v3139 = vpop.f32.mrf.mxu0
      %v3140 = vpop.f32.mrf.mxu0
      %v3141 = vadd.f32 0.0, %v3140
      %v3142 = vpop.f32.mrf.mxu0
      %3143 = vmatprep.mubr.bf16.mxu0 0
      %3144 = vmatmul.mubr.bf16.gmra.mxu0 %v2979
      %v3145 = vpop.f32.mrf.mxu0
      %v3146 = vadd.f32 0.0, %v3145
      %v3147 = vpop.f32.mrf.mxu0
      %v3148 = vpop.f32.mrf.mxu0
      %v3149 = vadd.f32 0.0, %v3148
      %v3150 = vpop.f32.mrf.mxu0
      %3151 = vmatprep.mubr.bf16.mxu0 0
      %3152 = vmatmul.mubr.bf16.gmra.mxu0 %v2980
      %v3153 = vpop.f32.mrf.mxu0
      %v3154 = vadd.f32 0.0, %v3153
      %v3155 = vpop.f32.mrf.mxu0
      %v3156 = vpop.f32.mrf.mxu0
      %v3157 = vadd.f32 0.0, %v3156
      %v3158 = vpop.f32.mrf.mxu0
      %3159 = vmatprep.mubr.bf16.mxu0 0
      %3160 = vmatmul.mubr.bf16.gmra.mxu0 %v2981
      %v3161 = vpop.f32.mrf.mxu0
      %v3162 = vadd.f32 0.0, %v3161
      %v3163 = vpop.f32.mrf.mxu0
      %v3164 = vpop.f32.mrf.mxu0
      %v3165 = vadd.f32 0.0, %v3164
      %v3166 = vpop.f32.mrf.mxu0
      %3167 = vmatprep.mubr.bf16.mxu0 0
      %3168 = vmatmul.mubr.bf16.gmra.mxu0 %v2982
      %v3169 = vpop.f32.mrf.mxu0
      %v3170 = vadd.f32 0.0, %v3169
      %v3171 = vpop.f32.mrf.mxu0
      %v3172 = vpop.f32.mrf.mxu0
      %v3173 = vadd.f32 0.0, %v3172
      %v3174 = vpop.f32.mrf.mxu0
      %3175 = vmatprep.mubr.bf16.mxu0 0
      %3176 = vmatmul.mubr.bf16.gmra.mxu0 %v2983
      %v3177 = vpop.f32.mrf.mxu0
      %v3178 = vadd.f32 0.0, %v3177
      %v3179 = vpop.f32.mrf.mxu0
      %v3180 = vpop.f32.mrf.mxu0
      %v3181 = vadd.f32 0.0, %v3180
      %v3182 = vpop.f32.mrf.mxu0
      %3183 = vmatprep.mubr.bf16.mxu0 0
      %3184 = vmatmul.mubr.bf16.gmra.mxu0 %v2984
      %v3185 = vpop.f32.mrf.mxu0
      %v3186 = vadd.f32 0.0, %v3185
      %v3187 = vpop.f32.mrf.mxu0
      %v3188 = vpop.f32.mrf.mxu0
      %v3189 = vadd.f32 0.0, %v3188
      %v3190 = vpop.f32.mrf.mxu0
      %3191 = vmatprep.mubr.bf16.mxu0 0
      %3192 = vmatmul.mubr.bf16.gmra.mxu0 %v2985
      %v3193 = vpop.f32.mrf.mxu0
      %v3194 = vadd.f32 0.0, %v3193
      %v3195 = vpop.f32.mrf.mxu0
      %v3196 = vpop.f32.mrf.mxu0
      %v3197 = vadd.f32 0.0, %v3196
      %v3198 = vpop.f32.mrf.mxu0
      %3199 = vmatprep.mubr.bf16.mxu0 0
      %3200 = vmatmul.mubr.bf16.gmra.mxu0 %v2986
      %v3201 = vpop.f32.mrf.mxu0
      %v3202 = vadd.f32 0.0, %v3201
      %v3203 = vpop.f32.mrf.mxu0
      %v3204 = vpop.f32.mrf.mxu0
      %v3205 = vadd.f32 0.0, %v3204
      %v3206 = vpop.f32.mrf.mxu0
      %3207 = vmatprep.mubr.bf16.mxu0 0
      %3208 = vmatmul.mubr.bf16.gmra.mxu0 %v2987
      %v3209 = vpop.f32.mrf.mxu0
      %v3210 = vadd.f32 0.0, %v3209
      %v3211 = vpop.f32.mrf.mxu0
      %v3212 = vpop.f32.mrf.mxu0
      %v3213 = vadd.f32 0.0, %v3212
      %v3214 = vpop.f32.mrf.mxu0
      %3215 = vmatprep.mubr.bf16.mxu0 0
      %3216 = vmatmul.mubr.bf16.gmra.mxu0 %v2988
      %v3217 = vpop.f32.mrf.mxu0
      %v3218 = vadd.f32 0.0, %v3217
      %v3219 = vpop.f32.mrf.mxu0
      %v3220 = vpop.f32.mrf.mxu0
      %v3221 = vadd.f32 0.0, %v3220
      %v3222 = vpop.f32.mrf.mxu0
      %3223 = vmatprep.mubr.bf16.mxu0 0
      %3224 = vmatmul.mubr.bf16.gmra.mxu0 %v2989
      %v3225 = vpop.f32.mrf.mxu0
      %v3226 = vadd.f32 0.0, %v3225
      %v3227 = vpop.f32.mrf.mxu0
      %v3228 = vpop.f32.mrf.mxu0
      %v3229 = vadd.f32 0.0, %v3228
      %v3230 = vpop.f32.mrf.mxu0
      %3231 = vdwg.mxu0
      %v3232 = vadd.f32 %v2900, %v3090
      %v3233 = vadd.f32 %v2901, %v3093
      %v3234 = vadd.f32 %v2902, %v3098
      %v3235 = vadd.f32 %v2903, %v3101
      %v3236 = vadd.f32 %v2904, %v3106
      %v3237 = vadd.f32 %v2905, %v3109
      %v3238 = vadd.f32 %v2906, %v3114
      %v3239 = vadd.f32 %v2907, %v3117
      %v3240 = vadd.f32 %v2908, %v3122
      %v3241 = vadd.f32 %v2909, %v3125
      %v3242 = vadd.f32 %v2910, %v3130
      %v3243 = vadd.f32 %v2911, %v3133
      %v3244 = vadd.f32 %v2912, %v3138
      %v3245 = vadd.f32 %v2913, %v3141
      %v3246 = vadd.f32 %v2914, %v3146
      %v3247 = vadd.f32 %v2915, %v3149
      %v3248 = vadd.f32 %v2916, %v3154
      %v3249 = vadd.f32 %v2917, %v3157
      %v3250 = vadd.f32 %v2918, %v3162
      %v3251 = vadd.f32 %v2919, %v3165
      %v3252 = vadd.f32 %v2920, %v3170
      %v3253 = vadd.f32 %v2921, %v3173
      %v3254 = vadd.f32 %v2922, %v3178
      %v3255 = vadd.f32 %v2923, %v3181
      %v3256 = vadd.f32 %v2924, %v3186
      %v3257 = vadd.f32 %v2925, %v3189
      %v3258 = vadd.f32 %v2926, %v3194
      %v3259 = vadd.f32 %v2927, %v3197
      %v3260 = vadd.f32 %v2928, %v3202
      %v3261 = vadd.f32 %v2929, %v3205
      %v3262 = vadd.f32 %v2930, %v3210
      %v3263 = vadd.f32 %v2931, %v3213
      %v3264 = vadd.f32 %v2932, %v3218
      %v3265 = vadd.f32 %v2933, %v3221
      %v3266 = vadd.f32 %v2934, %v3226
      %v3267 = vadd.f32 %v2935, %v3229
      %v3268 = vld [vmem:[#allocation2 + $0x2c] sm:$0xff]
      %v3269 = vld [vmem:[#allocation2 + $0x34] sm:$0xff]
      %v3270 = vld [vmem:[#allocation2 + $0x3c] sm:$0xff]
      %v3271 = vld [vmem:[#allocation2 + $0x44] sm:$0xff]
      %v3272 = vld [vmem:[#allocation2 + $0x4c] sm:$0xff]
      %v3273 = vld [vmem:[#allocation2 + $0x54] sm:$0xff]
      %v3274 = vld [vmem:[#allocation2 + $0x5c] sm:$0xff]
      %v3275 = vld [vmem:[#allocation2 + $0x64] sm:$0xff]
      %v3276 = vld [vmem:[#allocation2 + $0x6c] sm:$0xff]
      %v3277 = vld [vmem:[#allocation2 + $0x74] sm:$0xff]
      %v3278 = vld [vmem:[#allocation2 + $0x7c] sm:$0xff]
      %v3279 = vld [vmem:[#allocation2 + $0x84] sm:$0xff]
      %v3280 = vld [vmem:[#allocation2 + $0x8c] sm:$0xff]
      %v3281 = vld [vmem:[#allocation2 + $0x94] sm:$0xff]
      %v3282 = vld [vmem:[#allocation2 + $0x9c] sm:$0xff]
      %v3283 = vld [vmem:[#allocation2 + $0xa4] sm:$0xff]
      %v3284 = vld [vmem:[#allocation2 + $0xac] sm:$0xff]
      %v3285 = vld [vmem:[#allocation2 + $0xb4] sm:$0xff]
      %v3286 = vld [vmem:[#allocation2 + $0xbc] sm:$0xff]
      %v3287 = vld [vmem:[#allocation2 + $0xc4] sm:$0xff]
      %v3288 = vld [vmem:[#allocation2 + $0xcc] sm:$0xff]
      %v3289 = vld [vmem:[#allocation2 + $0xd4] sm:$0xff]
      %v3290 = vld [vmem:[#allocation2 + $0xdc] sm:$0xff]
      %v3291 = vld [vmem:[#allocation2 + $0xe4] sm:$0xff]
      %v3292 = vld [vmem:[#allocation2 + $0xec] sm:$0xff]
      %v3293 = vld [vmem:[#allocation2 + $0xf4] sm:$0xff]
      %v3294 = vld [vmem:[#allocation2 + $0xfc] sm:$0xff]
      %v3295 = vld [vmem:[#allocation2 + $0x104] sm:$0xff]
      %v3296 = vld [vmem:[#allocation2 + $0x10c] sm:$0xff]
      %v3297 = vld [vmem:[#allocation2 + $0x114] sm:$0xff]
      %v3298 = vld [vmem:[#allocation2 + $0x11c] sm:$0xff]
      %v3299 = vld [vmem:[#allocation2 + $0x124] sm:$0xff]
      %v3300 = vld [vmem:[#allocation2 + $0x12c] sm:$0xff]
      %v3301 = vld [vmem:[#allocation2 + $0x134] sm:$0xff]
      %v3302 = vld [vmem:[#allocation2 + $0x13c] sm:$0xff]
      %v3303 = vld [vmem:[#allocation2 + $0x144] sm:$0xff]
      %v3304 = vpack.c.bf16 %v3269, %v3268
      %v3305 = vpack.c.bf16 %v3271, %v3270
      %v3306 = vpack.c.bf16 %v3273, %v3272
      %v3307 = vpack.c.bf16 %v3275, %v3274
      %v3308 = vpack.c.bf16 %v3277, %v3276
      %v3309 = vpack.c.bf16 %v3279, %v3278
      %v3310 = vpack.c.bf16 %v3281, %v3280
      %v3311 = vpack.c.bf16 %v3283, %v3282
      %v3312 = vpack.c.bf16 %v3285, %v3284
      %v3313 = vpack.c.bf16 %v3287, %v3286
      %v3314 = vpack.c.bf16 %v3289, %v3288
      %v3315 = vpack.c.bf16 %v3291, %v3290
      %v3316 = vpack.c.bf16 %v3293, %v3292
      %v3317 = vpack.c.bf16 %v3295, %v3294
      %v3318 = vpack.c.bf16 %v3297, %v3296
      %v3319 = vpack.c.bf16 %v3299, %v3298
      %v3320 = vpack.c.bf16 %v3301, %v3300
      %v3321 = vpack.c.bf16 %v3303, %v3302
      %s3322 = scalar_lea.vmem %s4, 448
      %v3323 = vld [vmem:[%s3322] sm:$0xf]
      %v3324 = vld [vmem:[%s3322 + $0x4] sm:$0xf]
      %v3325 = vld [vmem:[%s3322 + $0x8] sm:$0xf]
      %v3326 = vld [vmem:[%s3322 + $0xc] sm:$0xf]
      %v3327 = vld [vmem:[%s3322 + $0x10] sm:$0xf]
      %v3328 = vld [vmem:[%s3322 + $0x14] sm:$0xf]
      %v3329 = vld [vmem:[%s3322 + $0x18] sm:$0xf]
      %v3330 = vld [vmem:[%s3322 + $0x1c] sm:$0xf]
      %v3331 = vld [vmem:[%s3322 + $0x20] sm:$0xf]
      %v3332 = vld [vmem:[%s3322 + $0x24] sm:$0xf]
      %v3333 = vld [vmem:[%s3322 + $0x28] sm:$0xf]
      %v3334 = vld [vmem:[%s3322 + $0x2c] sm:$0xf]
      %v3335 = vld [vmem:[%s3322 + $0x30] sm:$0xf]
      %v3336 = vld [vmem:[%s3322 + $0x34] sm:$0xf]
      %v3337 = vld [vmem:[%s3322 + $0x38] sm:$0xf]
      %v3338 = vld [vmem:[%s3322 + $0x3c] sm:$0xf]
      %v3355 = vunpack.c.l.b16 %v3323
      %v3356 = vunpack.c.l.b16 %v3324
      %v3357 = vunpack.c.l.b16 %v3325
      %v3358 = vunpack.c.l.b16 %v3326
      %v3359 = vunpack.c.l.b16 %v3327
      %v3360 = vunpack.c.l.b16 %v3328
      %v3361 = vunpack.c.l.b16 %v3329
      %v3362 = vunpack.c.l.b16 %v3330
      %v3363 = vunpack.c.l.b16 %v3331
      %v3364 = vunpack.c.l.b16 %v3332
      %v3365 = vunpack.c.l.b16 %v3333
      %v3366 = vunpack.c.l.b16 %v3334
      %v3367 = vunpack.c.l.b16 %v3335
      %v3368 = vunpack.c.l.b16 %v3336
      %v3369 = vunpack.c.l.b16 %v3337
      %v3370 = vunpack.c.l.b16 %v3338
      %v3371 = vpack.c.b16 %v3356, %v3355
      %v3372 = vpack.c.b16 %v3358, %v3357
      %v3373 = vpack.c.b16 %v3360, %v3359
      %v3374 = vpack.c.b16 %v3362, %v3361
      %v3375 = vpack.c.b16 %v3364, %v3363
      %v3376 = vpack.c.b16 %v3366, %v3365
      %v3377 = vpack.c.b16 %v3368, %v3367
      %v3378 = vpack.c.b16 %v3370, %v3369
      %3387 = vmatprep.subr.bf16.mxu0 0
      %3388 = vmatpush1.bf16.msra.mxu0 %v3378
      %3389 = vmatprep.subr.bf16.mxu0 0
      %3390 = vmatpush1.bf16.msra.mxu0 %v3377
      %3391 = vmatprep.subr.bf16.mxu0 0
      %3392 = vmatpush1.bf16.msra.mxu0 %v3376
      %3393 = vmatprep.subr.bf16.mxu0 0
      %3394 = vmatpush1.bf16.msra.mxu0 %v3375
      %3395 = vmatprep.subr.bf16.mxu0 0
      %3396 = vmatpush1.bf16.msra.mxu0 %v3374
      %3397 = vmatprep.subr.bf16.mxu0 0
      %3398 = vmatpush1.bf16.msra.mxu0 %v3373
      %3399 = vmatprep.subr.bf16.mxu0 0
      %3400 = vmatpush1.bf16.msra.mxu0 %v3372
      %3401 = vmatprep.subr.bf16.mxu0 0
      %3402 = vmatpush1.bf16.msra.mxu0 %v3371
      %3403 = vmatprep.subr.bf16.mxu0 0
      %3404 = vmatpush2.bf16.msra.mxu0 0
      %3405 = vmatprep.subr.bf16.mxu0 0
      %3406 = vmatpush2.bf16.msra.mxu0 0
      %3407 = vmatprep.subr.bf16.mxu0 0
      %3408 = vmatpush2.bf16.msra.mxu0 0
      %3409 = vmatprep.subr.bf16.mxu0 0
      %3410 = vmatpush2.bf16.msra.mxu0 0
      %3411 = vmatprep.subr.bf16.mxu0 0
      %3412 = vmatpush2.bf16.msra.mxu0 0
      %3413 = vmatprep.subr.bf16.mxu0 0
      %3414 = vmatpush2.bf16.msra.mxu0 0
      %3415 = vmatprep.subr.bf16.mxu0 0
      %3416 = vmatpush2.bf16.msra.mxu0 0
      %3417 = vmatprep.subr.bf16.mxu0 0
      %3418 = vmatpush2.bf16.msra.mxu0 0
      %3419 = vmatprep.mubr.bf16.mxu0 0
      %3420 = vmatmul.mubr.bf16.gmra.mxu0 %v3304
      %v3421 = vpop.f32.mrf.mxu0
      %v3422 = vadd.f32 0.0, %v3421
      %v3423 = vpop.f32.mrf.mxu0
      %v3424 = vpop.f32.mrf.mxu0
      %v3425 = vadd.f32 0.0, %v3424
      %v3426 = vpop.f32.mrf.mxu0
      %3427 = vmatprep.mubr.bf16.mxu0 0
      %3428 = vmatmul.mubr.bf16.gmra.mxu0 %v3305
      %v3429 = vpop.f32.mrf.mxu0
      %v3430 = vadd.f32 0.0, %v3429
      %v3431 = vpop.f32.mrf.mxu0
      %v3432 = vpop.f32.mrf.mxu0
      %v3433 = vadd.f32 0.0, %v3432
      %v3434 = vpop.f32.mrf.mxu0
      %3435 = vmatprep.mubr.bf16.mxu0 0
      %3436 = vmatmul.mubr.bf16.gmra.mxu0 %v3306
      %v3437 = vpop.f32.mrf.mxu0
      %v3438 = vadd.f32 0.0, %v3437
      %v3439 = vpop.f32.mrf.mxu0
      %v3440 = vpop.f32.mrf.mxu0
      %v3441 = vadd.f32 0.0, %v3440
      %v3442 = vpop.f32.mrf.mxu0
      %3443 = vmatprep.mubr.bf16.mxu0 0
      %3444 = vmatmul.mubr.bf16.gmra.mxu0 %v3307
      %v3445 = vpop.f32.mrf.mxu0
      %v3446 = vadd.f32 0.0, %v3445
      %v3447 = vpop.f32.mrf.mxu0
      %v3448 = vpop.f32.mrf.mxu0
      %v3449 = vadd.f32 0.0, %v3448
      %v3450 = vpop.f32.mrf.mxu0
      %3451 = vmatprep.mubr.bf16.mxu0 0
      %3452 = vmatmul.mubr.bf16.gmra.mxu0 %v3308
      %v3453 = vpop.f32.mrf.mxu0
      %v3454 = vadd.f32 0.0, %v3453
      %v3455 = vpop.f32.mrf.mxu0
      %v3456 = vpop.f32.mrf.mxu0
      %v3457 = vadd.f32 0.0, %v3456
      %v3458 = vpop.f32.mrf.mxu0
      %3459 = vmatprep.mubr.bf16.mxu0 0
      %3460 = vmatmul.mubr.bf16.gmra.mxu0 %v3309
      %v3461 = vpop.f32.mrf.mxu0
      %v3462 = vadd.f32 0.0, %v3461
      %v3463 = vpop.f32.mrf.mxu0
      %v3464 = vpop.f32.mrf.mxu0
      %v3465 = vadd.f32 0.0, %v3464
      %v3466 = vpop.f32.mrf.mxu0
      %3467 = vmatprep.mubr.bf16.mxu0 0
      %3468 = vmatmul.mubr.bf16.gmra.mxu0 %v3310
      %v3469 = vpop.f32.mrf.mxu0
      %v3470 = vadd.f32 0.0, %v3469
      %v3471 = vpop.f32.mrf.mxu0
      %v3472 = vpop.f32.mrf.mxu0
      %v3473 = vadd.f32 0.0, %v3472
      %v3474 = vpop.f32.mrf.mxu0
      %3475 = vmatprep.mubr.bf16.mxu0 0
      %3476 = vmatmul.mubr.bf16.gmra.mxu0 %v3311
      %v3477 = vpop.f32.mrf.mxu0
      %v3478 = vadd.f32 0.0, %v3477
      %v3479 = vpop.f32.mrf.mxu0
      %v3480 = vpop.f32.mrf.mxu0
      %v3481 = vadd.f32 0.0, %v3480
      %v3482 = vpop.f32.mrf.mxu0
      %3483 = vmatprep.mubr.bf16.mxu0 0
      %3484 = vmatmul.mubr.bf16.gmra.mxu0 %v3312
      %v3485 = vpop.f32.mrf.mxu0
      %v3486 = vadd.f32 0.0, %v3485
      %v3487 = vpop.f32.mrf.mxu0
      %v3488 = vpop.f32.mrf.mxu0
      %v3489 = vadd.f32 0.0, %v3488
      %v3490 = vpop.f32.mrf.mxu0
      %3491 = vmatprep.mubr.bf16.mxu0 0
      %3492 = vmatmul.mubr.bf16.gmra.mxu0 %v3313
      %v3493 = vpop.f32.mrf.mxu0
      %v3494 = vadd.f32 0.0, %v3493
      %v3495 = vpop.f32.mrf.mxu0
      %v3496 = vpop.f32.mrf.mxu0
      %v3497 = vadd.f32 0.0, %v3496
      %v3498 = vpop.f32.mrf.mxu0
      %3499 = vmatprep.mubr.bf16.mxu0 0
      %3500 = vmatmul.mubr.bf16.gmra.mxu0 %v3314
      %v3501 = vpop.f32.mrf.mxu0
      %v3502 = vadd.f32 0.0, %v3501
      %v3503 = vpop.f32.mrf.mxu0
      %v3504 = vpop.f32.mrf.mxu0
      %v3505 = vadd.f32 0.0, %v3504
      %v3506 = vpop.f32.mrf.mxu0
      %3507 = vmatprep.mubr.bf16.mxu0 0
      %3508 = vmatmul.mubr.bf16.gmra.mxu0 %v3315
      %v3509 = vpop.f32.mrf.mxu0
      %v3510 = vadd.f32 0.0, %v3509
      %v3511 = vpop.f32.mrf.mxu0
      %v3512 = vpop.f32.mrf.mxu0
      %v3513 = vadd.f32 0.0, %v3512
      %v3514 = vpop.f32.mrf.mxu0
      %3515 = vmatprep.mubr.bf16.mxu0 0
      %3516 = vmatmul.mubr.bf16.gmra.mxu0 %v3316
      %v3517 = vpop.f32.mrf.mxu0
      %v3518 = vadd.f32 0.0, %v3517
      %v3519 = vpop.f32.mrf.mxu0
      %v3520 = vpop.f32.mrf.mxu0
      %v3521 = vadd.f32 0.0, %v3520
      %v3522 = vpop.f32.mrf.mxu0
      %3523 = vmatprep.mubr.bf16.mxu0 0
      %3524 = vmatmul.mubr.bf16.gmra.mxu0 %v3317
      %v3525 = vpop.f32.mrf.mxu0
      %v3526 = vadd.f32 0.0, %v3525
      %v3527 = vpop.f32.mrf.mxu0
      %v3528 = vpop.f32.mrf.mxu0
      %v3529 = vadd.f32 0.0, %v3528
      %v3530 = vpop.f32.mrf.mxu0
      %3531 = vmatprep.mubr.bf16.mxu0 0
      %3532 = vmatmul.mubr.bf16.gmra.mxu0 %v3318
      %v3533 = vpop.f32.mrf.mxu0
      %v3534 = vadd.f32 0.0, %v3533
      %v3535 = vpop.f32.mrf.mxu0
      %v3536 = vpop.f32.mrf.mxu0
      %v3537 = vadd.f32 0.0, %v3536
      %v3538 = vpop.f32.mrf.mxu0
      %3539 = vmatprep.mubr.bf16.mxu0 0
      %3540 = vmatmul.mubr.bf16.gmra.mxu0 %v3319
      %v3541 = vpop.f32.mrf.mxu0
      %v3542 = vadd.f32 0.0, %v3541
      %v3543 = vpop.f32.mrf.mxu0
      %v3544 = vpop.f32.mrf.mxu0
      %v3545 = vadd.f32 0.0, %v3544
      %v3546 = vpop.f32.mrf.mxu0
      %3547 = vmatprep.mubr.bf16.mxu0 0
      %3548 = vmatmul.mubr.bf16.gmra.mxu0 %v3320
      %v3549 = vpop.f32.mrf.mxu0
      %v3550 = vadd.f32 0.0, %v3549
      %v3551 = vpop.f32.mrf.mxu0
      %v3552 = vpop.f32.mrf.mxu0
      %v3553 = vadd.f32 0.0, %v3552
      %v3554 = vpop.f32.mrf.mxu0
      %3555 = vmatprep.mubr.bf16.mxu0 0
      %3556 = vmatmul.mubr.bf16.gmra.mxu0 %v3321
      %v3557 = vpop.f32.mrf.mxu0
      %v3558 = vadd.f32 0.0, %v3557
      %v3559 = vpop.f32.mrf.mxu0
      %v3560 = vpop.f32.mrf.mxu0
      %v3561 = vadd.f32 0.0, %v3560
      %v3562 = vpop.f32.mrf.mxu0
      %3563 = vdwg.mxu0
      %v3564 = vadd.f32 %v3232, %v3422
      %v3565 = vadd.f32 %v3233, %v3425
      %v3566 = vadd.f32 %v3234, %v3430
      %v3567 = vadd.f32 %v3235, %v3433
      %v3568 = vadd.f32 %v3236, %v3438
      %v3569 = vadd.f32 %v3237, %v3441
      %v3570 = vadd.f32 %v3238, %v3446
      %v3571 = vadd.f32 %v3239, %v3449
      %v3572 = vadd.f32 %v3240, %v3454
      %v3573 = vadd.f32 %v3241, %v3457
      %v3574 = vadd.f32 %v3242, %v3462
      %v3575 = vadd.f32 %v3243, %v3465
      %v3576 = vadd.f32 %v3244, %v3470
      %v3577 = vadd.f32 %v3245, %v3473
      %v3578 = vadd.f32 %v3246, %v3478
      %v3579 = vadd.f32 %v3247, %v3481
      %v3580 = vadd.f32 %v3248, %v3486
      %v3581 = vadd.f32 %v3249, %v3489
      %v3582 = vadd.f32 %v3250, %v3494
      %v3583 = vadd.f32 %v3251, %v3497
      %v3584 = vadd.f32 %v3252, %v3502
      %v3585 = vadd.f32 %v3253, %v3505
      %v3586 = vadd.f32 %v3254, %v3510
      %v3587 = vadd.f32 %v3255, %v3513
      %v3588 = vadd.f32 %v3256, %v3518
      %v3589 = vadd.f32 %v3257, %v3521
      %v3590 = vadd.f32 %v3258, %v3526
      %v3591 = vadd.f32 %v3259, %v3529
      %v3592 = vadd.f32 %v3260, %v3534
      %v3593 = vadd.f32 %v3261, %v3537
      %v3594 = vadd.f32 %v3262, %v3542
      %v3595 = vadd.f32 %v3263, %v3545
      %v3596 = vadd.f32 %v3264, %v3550
      %v3597 = vadd.f32 %v3265, %v3553
      %v3598 = vadd.f32 %v3266, %v3558
      %v3599 = vadd.f32 %v3267, %v3561
      %v3600 = vld [vmem:[#allocation2 + $0x2d] sm:$0xff]
      %v3601 = vld [vmem:[#allocation2 + $0x35] sm:$0xff]
      %v3602 = vld [vmem:[#allocation2 + $0x3d] sm:$0xff]
      %v3603 = vld [vmem:[#allocation2 + $0x45] sm:$0xff]
      %v3604 = vld [vmem:[#allocation2 + $0x4d] sm:$0xff]
      %v3605 = vld [vmem:[#allocation2 + $0x55] sm:$0xff]
      %v3606 = vld [vmem:[#allocation2 + $0x5d] sm:$0xff]
      %v3607 = vld [vmem:[#allocation2 + $0x65] sm:$0xff]
      %v3608 = vld [vmem:[#allocation2 + $0x6d] sm:$0xff]
      %v3609 = vld [vmem:[#allocation2 + $0x75] sm:$0xff]
      %v3610 = vld [vmem:[#allocation2 + $0x7d] sm:$0xff]
      %v3611 = vld [vmem:[#allocation2 + $0x85] sm:$0xff]
      %v3612 = vld [vmem:[#allocation2 + $0x8d] sm:$0xff]
      %v3613 = vld [vmem:[#allocation2 + $0x95] sm:$0xff]
      %v3614 = vld [vmem:[#allocation2 + $0x9d] sm:$0xff]
      %v3615 = vld [vmem:[#allocation2 + $0xa5] sm:$0xff]
      %v3616 = vld [vmem:[#allocation2 + $0xad] sm:$0xff]
      %v3617 = vld [vmem:[#allocation2 + $0xb5] sm:$0xff]
      %v3618 = vld [vmem:[#allocation2 + $0xbd] sm:$0xff]
      %v3619 = vld [vmem:[#allocation2 + $0xc5] sm:$0xff]
      %v3620 = vld [vmem:[#allocation2 + $0xcd] sm:$0xff]
      %v3621 = vld [vmem:[#allocation2 + $0xd5] sm:$0xff]
      %v3622 = vld [vmem:[#allocation2 + $0xdd] sm:$0xff]
      %v3623 = vld [vmem:[#allocation2 + $0xe5] sm:$0xff]
      %v3624 = vld [vmem:[#allocation2 + $0xed] sm:$0xff]
      %v3625 = vld [vmem:[#allocation2 + $0xf5] sm:$0xff]
      %v3626 = vld [vmem:[#allocation2 + $0xfd] sm:$0xff]
      %v3627 = vld [vmem:[#allocation2 + $0x105] sm:$0xff]
      %v3628 = vld [vmem:[#allocation2 + $0x10d] sm:$0xff]
      %v3629 = vld [vmem:[#allocation2 + $0x115] sm:$0xff]
      %v3630 = vld [vmem:[#allocation2 + $0x11d] sm:$0xff]
      %v3631 = vld [vmem:[#allocation2 + $0x125] sm:$0xff]
      %v3632 = vld [vmem:[#allocation2 + $0x12d] sm:$0xff]
      %v3633 = vld [vmem:[#allocation2 + $0x135] sm:$0xff]
      %v3634 = vld [vmem:[#allocation2 + $0x13d] sm:$0xff]
      %v3635 = vld [vmem:[#allocation2 + $0x145] sm:$0xff]
      %v3636 = vpack.c.bf16 %v3601, %v3600
      %v3637 = vpack.c.bf16 %v3603, %v3602
      %v3638 = vpack.c.bf16 %v3605, %v3604
      %v3639 = vpack.c.bf16 %v3607, %v3606
      %v3640 = vpack.c.bf16 %v3609, %v3608
      %v3641 = vpack.c.bf16 %v3611, %v3610
      %v3642 = vpack.c.bf16 %v3613, %v3612
      %v3643 = vpack.c.bf16 %v3615, %v3614
      %v3644 = vpack.c.bf16 %v3617, %v3616
      %v3645 = vpack.c.bf16 %v3619, %v3618
      %v3646 = vpack.c.bf16 %v3621, %v3620
      %v3647 = vpack.c.bf16 %v3623, %v3622
      %v3648 = vpack.c.bf16 %v3625, %v3624
      %v3649 = vpack.c.bf16 %v3627, %v3626
      %v3650 = vpack.c.bf16 %v3629, %v3628
      %v3651 = vpack.c.bf16 %v3631, %v3630
      %v3652 = vpack.c.bf16 %v3633, %v3632
      %v3653 = vpack.c.bf16 %v3635, %v3634
      %s3654 = scalar_lea.vmem %s4, 512
      %v3655 = vld [vmem:[%s3654] sm:$0xf]
      %v3656 = vld [vmem:[%s3654 + $0x4] sm:$0xf]
      %v3657 = vld [vmem:[%s3654 + $0x8] sm:$0xf]
      %v3658 = vld [vmem:[%s3654 + $0xc] sm:$0xf]
      %v3659 = vld [vmem:[%s3654 + $0x10] sm:$0xf]
      %v3660 = vld [vmem:[%s3654 + $0x14] sm:$0xf]
      %v3661 = vld [vmem:[%s3654 + $0x18] sm:$0xf]
      %v3662 = vld [vmem:[%s3654 + $0x1c] sm:$0xf]
      %v3663 = vld [vmem:[%s3654 + $0x20] sm:$0xf]
      %v3664 = vld [vmem:[%s3654 + $0x24] sm:$0xf]
      %v3665 = vld [vmem:[%s3654 + $0x28] sm:$0xf]
      %v3666 = vld [vmem:[%s3654 + $0x2c] sm:$0xf]
      %v3667 = vld [vmem:[%s3654 + $0x30] sm:$0xf]
      %v3668 = vld [vmem:[%s3654 + $0x34] sm:$0xf]
      %v3669 = vld [vmem:[%s3654 + $0x38] sm:$0xf]
      %v3670 = vld [vmem:[%s3654 + $0x3c] sm:$0xf]
      %v3687 = vunpack.c.l.b16 %v3655
      %v3688 = vunpack.c.l.b16 %v3656
      %v3689 = vunpack.c.l.b16 %v3657
      %v3690 = vunpack.c.l.b16 %v3658
      %v3691 = vunpack.c.l.b16 %v3659
      %v3692 = vunpack.c.l.b16 %v3660
      %v3693 = vunpack.c.l.b16 %v3661
      %v3694 = vunpack.c.l.b16 %v3662
      %v3695 = vunpack.c.l.b16 %v3663
      %v3696 = vunpack.c.l.b16 %v3664
      %v3697 = vunpack.c.l.b16 %v3665
      %v3698 = vunpack.c.l.b16 %v3666
      %v3699 = vunpack.c.l.b16 %v3667
      %v3700 = vunpack.c.l.b16 %v3668
      %v3701 = vunpack.c.l.b16 %v3669
      %v3702 = vunpack.c.l.b16 %v3670
      %v3703 = vpack.c.b16 %v3688, %v3687
      %v3704 = vpack.c.b16 %v3690, %v3689
      %v3705 = vpack.c.b16 %v3692, %v3691
      %v3706 = vpack.c.b16 %v3694, %v3693
      %v3707 = vpack.c.b16 %v3696, %v3695
      %v3708 = vpack.c.b16 %v3698, %v3697
      %v3709 = vpack.c.b16 %v3700, %v3699
      %v3710 = vpack.c.b16 %v3702, %v3701
      %3719 = vmatprep.subr.bf16.mxu0 0
      %3720 = vmatpush1.bf16.msra.mxu0 %v3710
      %3721 = vmatprep.subr.bf16.mxu0 0
      %3722 = vmatpush1.bf16.msra.mxu0 %v3709
      %3723 = vmatprep.subr.bf16.mxu0 0
      %3724 = vmatpush1.bf16.msra.mxu0 %v3708
      %3725 = vmatprep.subr.bf16.mxu0 0
      %3726 = vmatpush1.bf16.msra.mxu0 %v3707
      %3727 = vmatprep.subr.bf16.mxu0 0
      %3728 = vmatpush1.bf16.msra.mxu0 %v3706
      %3729 = vmatprep.subr.bf16.mxu0 0
      %3730 = vmatpush1.bf16.msra.mxu0 %v3705
      %3731 = vmatprep.subr.bf16.mxu0 0
      %3732 = vmatpush1.bf16.msra.mxu0 %v3704
      %3733 = vmatprep.subr.bf16.mxu0 0
      %3734 = vmatpush1.bf16.msra.mxu0 %v3703
      %3735 = vmatprep.subr.bf16.mxu0 0
      %3736 = vmatpush2.bf16.msra.mxu0 0
      %3737 = vmatprep.subr.bf16.mxu0 0
      %3738 = vmatpush2.bf16.msra.mxu0 0
      %3739 = vmatprep.subr.bf16.mxu0 0
      %3740 = vmatpush2.bf16.msra.mxu0 0
      %3741 = vmatprep.subr.bf16.mxu0 0
      %3742 = vmatpush2.bf16.msra.mxu0 0
      %3743 = vmatprep.subr.bf16.mxu0 0
      %3744 = vmatpush2.bf16.msra.mxu0 0
      %3745 = vmatprep.subr.bf16.mxu0 0
      %3746 = vmatpush2.bf16.msra.mxu0 0
      %3747 = vmatprep.subr.bf16.mxu0 0
      %3748 = vmatpush2.bf16.msra.mxu0 0
      %3749 = vmatprep.subr.bf16.mxu0 0
      %3750 = vmatpush2.bf16.msra.mxu0 0
      %3751 = vmatprep.mubr.bf16.mxu0 0
      %3752 = vmatmul.mubr.bf16.gmra.mxu0 %v3636
      %v3753 = vpop.f32.mrf.mxu0
      %v3754 = vadd.f32 0.0, %v3753
      %v3755 = vpop.f32.mrf.mxu0
      %v3756 = vpop.f32.mrf.mxu0
      %v3757 = vadd.f32 0.0, %v3756
      %v3758 = vpop.f32.mrf.mxu0
      %3759 = vmatprep.mubr.bf16.mxu0 0
      %3760 = vmatmul.mubr.bf16.gmra.mxu0 %v3637
      %v3761 = vpop.f32.mrf.mxu0
      %v3762 = vadd.f32 0.0, %v3761
      %v3763 = vpop.f32.mrf.mxu0
      %v3764 = vpop.f32.mrf.mxu0
      %v3765 = vadd.f32 0.0, %v3764
      %v3766 = vpop.f32.mrf.mxu0
      %3767 = vmatprep.mubr.bf16.mxu0 0
      %3768 = vmatmul.mubr.bf16.gmra.mxu0 %v3638
      %v3769 = vpop.f32.mrf.mxu0
      %v3770 = vadd.f32 0.0, %v3769
      %v3771 = vpop.f32.mrf.mxu0
      %v3772 = vpop.f32.mrf.mxu0
      %v3773 = vadd.f32 0.0, %v3772
      %v3774 = vpop.f32.mrf.mxu0
      %3775 = vmatprep.mubr.bf16.mxu0 0
      %3776 = vmatmul.mubr.bf16.gmra.mxu0 %v3639
      %v3777 = vpop.f32.mrf.mxu0
      %v3778 = vadd.f32 0.0, %v3777
      %v3779 = vpop.f32.mrf.mxu0
      %v3780 = vpop.f32.mrf.mxu0
      %v3781 = vadd.f32 0.0, %v3780
      %v3782 = vpop.f32.mrf.mxu0
      %3783 = vmatprep.mubr.bf16.mxu0 0
      %3784 = vmatmul.mubr.bf16.gmra.mxu0 %v3640
      %v3785 = vpop.f32.mrf.mxu0
      %v3786 = vadd.f32 0.0, %v3785
      %v3787 = vpop.f32.mrf.mxu0
      %v3788 = vpop.f32.mrf.mxu0
      %v3789 = vadd.f32 0.0, %v3788
      %v3790 = vpop.f32.mrf.mxu0
      %3791 = vmatprep.mubr.bf16.mxu0 0
      %3792 = vmatmul.mubr.bf16.gmra.mxu0 %v3641
      %v3793 = vpop.f32.mrf.mxu0
      %v3794 = vadd.f32 0.0, %v3793
      %v3795 = vpop.f32.mrf.mxu0
      %v3796 = vpop.f32.mrf.mxu0
      %v3797 = vadd.f32 0.0, %v3796
      %v3798 = vpop.f32.mrf.mxu0
      %3799 = vmatprep.mubr.bf16.mxu0 0
      %3800 = vmatmul.mubr.bf16.gmra.mxu0 %v3642
      %v3801 = vpop.f32.mrf.mxu0
      %v3802 = vadd.f32 0.0, %v3801
      %v3803 = vpop.f32.mrf.mxu0
      %v3804 = vpop.f32.mrf.mxu0
      %v3805 = vadd.f32 0.0, %v3804
      %v3806 = vpop.f32.mrf.mxu0
      %3807 = vmatprep.mubr.bf16.mxu0 0
      %3808 = vmatmul.mubr.bf16.gmra.mxu0 %v3643
      %v3809 = vpop.f32.mrf.mxu0
      %v3810 = vadd.f32 0.0, %v3809
      %v3811 = vpop.f32.mrf.mxu0
      %v3812 = vpop.f32.mrf.mxu0
      %v3813 = vadd.f32 0.0, %v3812
      %v3814 = vpop.f32.mrf.mxu0
      %3815 = vmatprep.mubr.bf16.mxu0 0
      %3816 = vmatmul.mubr.bf16.gmra.mxu0 %v3644
      %v3817 = vpop.f32.mrf.mxu0
      %v3818 = vadd.f32 0.0, %v3817
      %v3819 = vpop.f32.mrf.mxu0
      %v3820 = vpop.f32.mrf.mxu0
      %v3821 = vadd.f32 0.0, %v3820
      %v3822 = vpop.f32.mrf.mxu0
      %3823 = vmatprep.mubr.bf16.mxu0 0
      %3824 = vmatmul.mubr.bf16.gmra.mxu0 %v3645
      %v3825 = vpop.f32.mrf.mxu0
      %v3826 = vadd.f32 0.0, %v3825
      %v3827 = vpop.f32.mrf.mxu0
      %v3828 = vpop.f32.mrf.mxu0
      %v3829 = vadd.f32 0.0, %v3828
      %v3830 = vpop.f32.mrf.mxu0
      %3831 = vmatprep.mubr.bf16.mxu0 0
      %3832 = vmatmul.mubr.bf16.gmra.mxu0 %v3646
      %v3833 = vpop.f32.mrf.mxu0
      %v3834 = vadd.f32 0.0, %v3833
      %v3835 = vpop.f32.mrf.mxu0
      %v3836 = vpop.f32.mrf.mxu0
      %v3837 = vadd.f32 0.0, %v3836
      %v3838 = vpop.f32.mrf.mxu0
      %3839 = vmatprep.mubr.bf16.mxu0 0
      %3840 = vmatmul.mubr.bf16.gmra.mxu0 %v3647
      %v3841 = vpop.f32.mrf.mxu0
      %v3842 = vadd.f32 0.0, %v3841
      %v3843 = vpop.f32.mrf.mxu0
      %v3844 = vpop.f32.mrf.mxu0
      %v3845 = vadd.f32 0.0, %v3844
      %v3846 = vpop.f32.mrf.mxu0
      %3847 = vmatprep.mubr.bf16.mxu0 0
      %3848 = vmatmul.mubr.bf16.gmra.mxu0 %v3648
      %v3849 = vpop.f32.mrf.mxu0
      %v3850 = vadd.f32 0.0, %v3849
      %v3851 = vpop.f32.mrf.mxu0
      %v3852 = vpop.f32.mrf.mxu0
      %v3853 = vadd.f32 0.0, %v3852
      %v3854 = vpop.f32.mrf.mxu0
      %3855 = vmatprep.mubr.bf16.mxu0 0
      %3856 = vmatmul.mubr.bf16.gmra.mxu0 %v3649
      %v3857 = vpop.f32.mrf.mxu0
      %v3858 = vadd.f32 0.0, %v3857
      %v3859 = vpop.f32.mrf.mxu0
      %v3860 = vpop.f32.mrf.mxu0
      %v3861 = vadd.f32 0.0, %v3860
      %v3862 = vpop.f32.mrf.mxu0
      %3863 = vmatprep.mubr.bf16.mxu0 0
      %3864 = vmatmul.mubr.bf16.gmra.mxu0 %v3650
      %v3865 = vpop.f32.mrf.mxu0
      %v3866 = vadd.f32 0.0, %v3865
      %v3867 = vpop.f32.mrf.mxu0
      %v3868 = vpop.f32.mrf.mxu0
      %v3869 = vadd.f32 0.0, %v3868
      %v3870 = vpop.f32.mrf.mxu0
      %3871 = vmatprep.mubr.bf16.mxu0 0
      %3872 = vmatmul.mubr.bf16.gmra.mxu0 %v3651
      %v3873 = vpop.f32.mrf.mxu0
      %v3874 = vadd.f32 0.0, %v3873
      %v3875 = vpop.f32.mrf.mxu0
      %v3876 = vpop.f32.mrf.mxu0
      %v3877 = vadd.f32 0.0, %v3876
      %v3878 = vpop.f32.mrf.mxu0
      %3879 = vmatprep.mubr.bf16.mxu0 0
      %3880 = vmatmul.mubr.bf16.gmra.mxu0 %v3652
      %v3881 = vpop.f32.mrf.mxu0
      %v3882 = vadd.f32 0.0, %v3881
      %v3883 = vpop.f32.mrf.mxu0
      %v3884 = vpop.f32.mrf.mxu0
      %v3885 = vadd.f32 0.0, %v3884
      %v3886 = vpop.f32.mrf.mxu0
      %3887 = vmatprep.mubr.bf16.mxu0 0
      %3888 = vmatmul.mubr.bf16.gmra.mxu0 %v3653
      %v3889 = vpop.f32.mrf.mxu0
      %v3890 = vadd.f32 0.0, %v3889
      %v3891 = vpop.f32.mrf.mxu0
      %v3892 = vpop.f32.mrf.mxu0
      %v3893 = vadd.f32 0.0, %v3892
      %v3894 = vpop.f32.mrf.mxu0
      %3895 = vdwg.mxu0
      %v3896 = vadd.f32 %v3564, %v3754
      %v3897 = vadd.f32 %v3565, %v3757
      %v3898 = vadd.f32 %v3566, %v3762
      %v3899 = vadd.f32 %v3567, %v3765
      %v3900 = vadd.f32 %v3568, %v3770
      %v3901 = vadd.f32 %v3569, %v3773
      %v3902 = vadd.f32 %v3570, %v3778
      %v3903 = vadd.f32 %v3571, %v3781
      %v3904 = vadd.f32 %v3572, %v3786
      %v3905 = vadd.f32 %v3573, %v3789
      %v3906 = vadd.f32 %v3574, %v3794
      %v3907 = vadd.f32 %v3575, %v3797
      %v3908 = vadd.f32 %v3576, %v3802
      %v3909 = vadd.f32 %v3577, %v3805
      %v3910 = vadd.f32 %v3578, %v3810
      %v3911 = vadd.f32 %v3579, %v3813
      %v3912 = vadd.f32 %v3580, %v3818
      %v3913 = vadd.f32 %v3581, %v3821
      %v3914 = vadd.f32 %v3582, %v3826
      %v3915 = vadd.f32 %v3583, %v3829
      %v3916 = vadd.f32 %v3584, %v3834
      %v3917 = vadd.f32 %v3585, %v3837
      %v3918 = vadd.f32 %v3586, %v3842
      %v3919 = vadd.f32 %v3587, %v3845
      %v3920 = vadd.f32 %v3588, %v3850
      %v3921 = vadd.f32 %v3589, %v3853
      %v3922 = vadd.f32 %v3590, %v3858
      %v3923 = vadd.f32 %v3591, %v3861
      %v3924 = vadd.f32 %v3592, %v3866
      %v3925 = vadd.f32 %v3593, %v3869
      %v3926 = vadd.f32 %v3594, %v3874
      %v3927 = vadd.f32 %v3595, %v3877
      %v3928 = vadd.f32 %v3596, %v3882
      %v3929 = vadd.f32 %v3597, %v3885
      %v3930 = vadd.f32 %v3598, %v3890
      %v3931 = vadd.f32 %v3599, %v3893
      %v3932 = vpack.c.bf16 %v3897, %v3896
      %v3933 = vpack.c.bf16 %v3899, %v3898
      %v3934 = vpack.c.bf16 %v3901, %v3900
      %v3935 = vpack.c.bf16 %v3903, %v3902
      %v3936 = vpack.c.bf16 %v3905, %v3904
      %v3937 = vpack.c.bf16 %v3907, %v3906
      %v3938 = vpack.c.bf16 %v3909, %v3908
      %v3939 = vpack.c.bf16 %v3911, %v3910
      %v3940 = vpack.c.bf16 %v3913, %v3912
      %v3941 = vpack.c.bf16 %v3915, %v3914
      %v3942 = vpack.c.bf16 %v3917, %v3916
      %v3943 = vpack.c.bf16 %v3919, %v3918
      %v3944 = vpack.c.bf16 %v3921, %v3920
      %v3945 = vpack.c.bf16 %v3923, %v3922
      %v3946 = vpack.c.bf16 %v3925, %v3924
      %v3947 = vpack.c.bf16 %v3927, %v3926
      %v3948 = vpack.c.bf16 %v3929, %v3928
      %v3949 = vpack.c.bf16 %v3931, %v3930
      %v3968 = vunpack.c.l.b16 %v3932
      %v3969 = vunpack.c.h.b16 %v3932
      %v3970 = vunpack.c.l.b16 %v3933
      %v3971 = vunpack.c.h.b16 %v3933
      %v3972 = vunpack.c.l.b16 %v3934
      %v3973 = vunpack.c.h.b16 %v3934
      %v3974 = vunpack.c.l.b16 %v3935
      %v3975 = vunpack.c.h.b16 %v3935
      %v3976 = vunpack.c.l.b16 %v3936
      %v3977 = vunpack.c.h.b16 %v3936
      %v3978 = vunpack.c.l.b16 %v3937
      %v3979 = vunpack.c.h.b16 %v3937
      %v3980 = vunpack.c.l.b16 %v3938
      %v3981 = vunpack.c.h.b16 %v3938
      %v3982 = vunpack.c.l.b16 %v3939
      %v3983 = vunpack.c.h.b16 %v3939
      %v3984 = vunpack.c.l.b16 %v3940
      %v3985 = vunpack.c.h.b16 %v3940
      %v3986 = vunpack.c.l.b16 %v3941
      %v3987 = vunpack.c.h.b16 %v3941
      %v3988 = vunpack.c.l.b16 %v3942
      %v3989 = vunpack.c.h.b16 %v3942
      %v3990 = vunpack.c.l.b16 %v3943
      %v3991 = vunpack.c.h.b16 %v3943
      %v3992 = vunpack.c.l.b16 %v3944
      %v3993 = vunpack.c.h.b16 %v3944
      %v3994 = vunpack.c.l.b16 %v3945
      %v3995 = vunpack.c.h.b16 %v3945
      %v3996 = vunpack.c.l.b16 %v3946
      %v3997 = vunpack.c.h.b16 %v3946
      %v3998 = vunpack.c.l.b16 %v3947
      %v3999 = vunpack.c.h.b16 %v3947
      %v4000 = vunpack.c.l.b16 %v3948
      %v4001 = vunpack.c.h.b16 %v3948
      %v4002 = vunpack.c.l.b16 %v3949
      %v4003 = vunpack.c.h.b16 %v3949
      %v4004 = vpack.c.b16 %v3968, %v3968
      %v4005 = vpack.c.b16 %v3969, %v3969
      %v4006 = vpack.c.b16 %v3970, %v3970
      %v4007 = vpack.c.b16 %v3971, %v3971
      %v4008 = vpack.c.b16 %v3972, %v3972
      %v4009 = vpack.c.b16 %v3973, %v3973
      %v4010 = vpack.c.b16 %v3974, %v3974
      %v4011 = vpack.c.b16 %v3975, %v3975
      %v4012 = vpack.c.b16 %v3976, %v3976
      %v4013 = vpack.c.b16 %v3977, %v3977
      %v4014 = vpack.c.b16 %v3978, %v3978
      %v4015 = vpack.c.b16 %v3979, %v3979
      %v4016 = vpack.c.b16 %v3980, %v3980
      %v4017 = vpack.c.b16 %v3981, %v3981
      %v4018 = vpack.c.b16 %v3982, %v3982
      %v4019 = vpack.c.b16 %v3983, %v3983
      %v4020 = vpack.c.b16 %v3984, %v3984
      %v4021 = vpack.c.b16 %v3985, %v3985
      %v4022 = vpack.c.b16 %v3986, %v3986
      %v4023 = vpack.c.b16 %v3987, %v3987
      %v4024 = vpack.c.b16 %v3988, %v3988
      %v4025 = vpack.c.b16 %v3989, %v3989
      %v4026 = vpack.c.b16 %v3990, %v3990
      %v4027 = vpack.c.b16 %v3991, %v3991
      %v4028 = vpack.c.b16 %v3992, %v3992
      %v4029 = vpack.c.b16 %v3993, %v3993
      %v4030 = vpack.c.b16 %v3994, %v3994
      %v4031 = vpack.c.b16 %v3995, %v3995
      %v4032 = vpack.c.b16 %v3996, %v3996
      %v4033 = vpack.c.b16 %v3997, %v3997
      %v4034 = vpack.c.b16 %v3998, %v3998
      %v4035 = vpack.c.b16 %v3999, %v3999
      %v4036 = vpack.c.b16 %v4000, %v4000
      %v4037 = vpack.c.b16 %v4001, %v4001
      %v4038 = vpack.c.b16 %v4002, %v4002
      %v4039 = vpack.c.b16 %v4003, %v4003
      %4076 = vst [vmem:[%s421] sm:$0xf] %v4004
      %4077 = vst [vmem:[%s421 + $0x4] sm:$0xf] %v4005
      %4078 = vst [vmem:[%s421 + $0x8] sm:$0xf] %v4006
      %4079 = vst [vmem:[%s421 + $0xc] sm:$0xf] %v4007
      %4080 = vst [vmem:[%s421 + $0x10] sm:$0xf] %v4008
      %4081 = vst [vmem:[%s421 + $0x14] sm:$0xf] %v4009
      %4082 = vst [vmem:[%s421 + $0x18] sm:$0xf] %v4010
      %4083 = vst [vmem:[%s421 + $0x1c] sm:$0xf] %v4011
      %4084 = vst [vmem:[%s421 + $0x20] sm:$0xf] %v4012
      %4085 = vst [vmem:[%s421 + $0x24] sm:$0xf] %v4013
      %4086 = vst [vmem:[%s421 + $0x28] sm:$0xf] %v4014
      %4087 = vst [vmem:[%s421 + $0x2c] sm:$0xf] %v4015
      %4088 = vst [vmem:[%s421 + $0x30] sm:$0xf] %v4016
      %4089 = vst [vmem:[%s421 + $0x34] sm:$0xf] %v4017
      %4090 = vst [vmem:[%s421 + $0x38] sm:$0xf] %v4018
      %4091 = vst [vmem:[%s421 + $0x3c] sm:$0xf] %v4019
      %4092 = vst [vmem:[%s421 + $0x40] sm:$0xf] %v4020
      %4093 = vst [vmem:[%s421 + $0x44] sm:$0xf] %v4021
      %4094 = vst [vmem:[%s421 + $0x48] sm:$0xf] %v4022
      %4095 = vst [vmem:[%s421 + $0x4c] sm:$0xf] %v4023
      %4096 = vst [vmem:[%s421 + $0x50] sm:$0xf] %v4024
      %4097 = vst [vmem:[%s421 + $0x54] sm:$0xf] %v4025
      %4098 = vst [vmem:[%s421 + $0x58] sm:$0xf] %v4026
      %4099 = vst [vmem:[%s421 + $0x5c] sm:$0xf] %v4027
      %4100 = vst [vmem:[%s421 + $0x60] sm:$0xf] %v4028
      %4101 = vst [vmem:[%s421 + $0x64] sm:$0xf] %v4029
      %4102 = vst [vmem:[%s421 + $0x68] sm:$0xf] %v4030
      %4103 = vst [vmem:[%s421 + $0x6c] sm:$0xf] %v4031
      %4104 = vst [vmem:[%s421 + $0x70] sm:$0xf] %v4032
      %4105 = vst [vmem:[%s421 + $0x74] sm:$0xf] %v4033
      %4106 = vst [vmem:[%s421 + $0x78] sm:$0xf] %v4034
      %4107 = vst [vmem:[%s421 + $0x7c] sm:$0xf] %v4035
      %4108 = vst [vmem:[%s421 + $0x80] sm:$0xf] %v4036
      %4109 = vst [vmem:[%s421 + $0x84] sm:$0xf] %v4037
      %4110 = vst [vmem:[%s421 + $0x88] sm:$0xf] %v4038
      %4111 = vst [vmem:[%s421 + $0x8c] sm:$0xf] %v4039
      %v4112 = vsel %vm901, %v3896, 0.0
      %v4113 = vsel %vm902, %v3897, 0.0
      %v4114 = vsel %vm903, %v3898, 0.0
      %v4115 = vsel %vm904, %v3899, 0.0
      %v4116 = vsel %vm905, %v3900, 0.0
      %v4117 = vsel %vm906, %v3901, 0.0
      %v4118 = vsel %vm907, %v3902, 0.0
      %v4119 = vsel %vm908, %v3903, 0.0
      %v4120 = vsel %vm909, %v3904, 0.0
      %v4121 = vsel %vm910, %v3905, 0.0
      %v4122 = vsel %vm911, %v3906, 0.0
      %v4123 = vsel %vm912, %v3907, 0.0
      %v4124 = vsel %vm913, %v3908, 0.0
      %v4125 = vsel %vm914, %v3909, 0.0
      %v4126 = vsel %vm915, %v3910, 0.0
      %v4127 = vsel %vm916, %v3911, 0.0
      %v4128 = vsel %vm917, %v3912, 0.0
      %v4129 = vsel %vm918, %v3913, 0.0
      %v4130 = vsel %vm919, %v3914, 0.0
      %v4131 = vsel %vm920, %v3915, 0.0
      %v4132 = vsel %vm921, %v3916, 0.0
      %v4133 = vsel %vm922, %v3917, 0.0
      %v4134 = vsel %vm923, %v3918, 0.0
      %v4135 = vsel %vm924, %v3919, 0.0
      %v4136 = vsel %vm925, %v3920, 0.0
      %v4137 = vsel %vm926, %v3921, 0.0
      %v4138 = vsel %vm927, %v3922, 0.0
      %v4139 = vsel %vm928, %v3923, 0.0
      %v4140 = vsel %vm929, %v3924, 0.0
      %v4141 = vsel %vm930, %v3925, 0.0
      %v4142 = vsel %vm931, %v3926, 0.0
      %v4143 = vsel %vm932, %v3927, 0.0
      %v4144 = vsel %vm933, %v3928, 0.0
      %v4145 = vsel %vm934, %v3929, 0.0
      %v4146 = vsel %vm935, %v3930, 0.0
      %v4147 = vsel %vm936, %v3931, 0.0
      %v4148 = vadd.f32 %v4112, %v4113
      %v4149 = vadd.f32 %v4148, %v4114
      %v4150 = vadd.f32 %v4149, %v4115
      %v4151 = vadd.f32 %v4150, %v4116
      %v4152 = vadd.f32 %v4151, %v4117
      %v4153 = vadd.f32 %v4152, %v4118
      %v4154 = vadd.f32 %v4153, %v4119
      %v4155 = vadd.f32 %v4154, %v4120
      %v4156 = vadd.f32 %v4155, %v4121
      %v4157 = vadd.f32 %v4156, %v4122
      %v4158 = vadd.f32 %v4157, %v4123
      %v4159 = vadd.f32 %v4158, %v4124
      %v4160 = vadd.f32 %v4159, %v4125
      %v4161 = vadd.f32 %v4160, %v4126
      %v4162 = vadd.f32 %v4161, %v4127
      %v4163 = vadd.f32 %v4162, %v4128
      %v4164 = vadd.f32 %v4163, %v4129
      %v4165 = vadd.f32 %v4164, %v4130
      %v4166 = vadd.f32 %v4165, %v4131
      %v4167 = vadd.f32 %v4166, %v4132
      %v4168 = vadd.f32 %v4167, %v4133
      %v4169 = vadd.f32 %v4168, %v4134
      %v4170 = vadd.f32 %v4169, %v4135
      %v4171 = vadd.f32 %v4170, %v4136
      %v4172 = vadd.f32 %v4171, %v4137
      %v4173 = vadd.f32 %v4172, %v4138
      %v4174 = vadd.f32 %v4173, %v4139
      %v4175 = vadd.f32 %v4174, %v4140
      %v4176 = vadd.f32 %v4175, %v4141
      %v4177 = vadd.f32 %v4176, %v4142
      %v4178 = vadd.f32 %v4177, %v4143
      %v4179 = vadd.f32 %v4178, %v4144
      %v4180 = vadd.f32 %v4179, %v4145
      %v4181 = vadd.f32 %v4180, %v4146
      %v4182 = vadd.f32 %v4181, %v4147
      %v4183 = vrot.slane %v4182, 4
      %v4184 = vadd.f32 %v4182, %v4183
      %v4185 = vrot.slane %v4184, 2
      %v4186 = vadd.f32 %v4184, %v4185
      %v4187 = vrot.slane %v4186, 1
      %v4188 = vadd.f32 %v4186, %v4187
      %4189 = vst [vmem:[%s428] sm:$0x1] %v4188
      %v4190 = vmul.f32 %v4112, %v4112
      %v4191 = vmul.f32 %v4113, %v4113
      %v4192 = vmul.f32 %v4114, %v4114
      %v4193 = vmul.f32 %v4115, %v4115
      %v4194 = vmul.f32 %v4116, %v4116
      %v4195 = vmul.f32 %v4117, %v4117
      %v4196 = vmul.f32 %v4118, %v4118
      %v4197 = vmul.f32 %v4119, %v4119
      %v4198 = vmul.f32 %v4120, %v4120
      %v4199 = vmul.f32 %v4121, %v4121
      %v4200 = vmul.f32 %v4122, %v4122
      %v4201 = vmul.f32 %v4123, %v4123
      %v4202 = vmul.f32 %v4124, %v4124
      %v4203 = vmul.f32 %v4125, %v4125
      %v4204 = vmul.f32 %v4126, %v4126
      %v4205 = vmul.f32 %v4127, %v4127
      %v4206 = vmul.f32 %v4128, %v4128
      %v4207 = vmul.f32 %v4129, %v4129
      %v4208 = vmul.f32 %v4130, %v4130
      %v4209 = vmul.f32 %v4131, %v4131
      %v4210 = vmul.f32 %v4132, %v4132
      %v4211 = vmul.f32 %v4133, %v4133
      %v4212 = vmul.f32 %v4134, %v4134
      %v4213 = vmul.f32 %v4135, %v4135
      %v4214 = vmul.f32 %v4136, %v4136
      %v4215 = vmul.f32 %v4137, %v4137
      %v4216 = vmul.f32 %v4138, %v4138
      %v4217 = vmul.f32 %v4139, %v4139
      %v4218 = vmul.f32 %v4140, %v4140
      %v4219 = vmul.f32 %v4141, %v4141
      %v4220 = vmul.f32 %v4142, %v4142
      %v4221 = vmul.f32 %v4143, %v4143
      %v4222 = vmul.f32 %v4144, %v4144
      %v4223 = vmul.f32 %v4145, %v4145
      %v4224 = vmul.f32 %v4146, %v4146
      %v4225 = vmul.f32 %v4147, %v4147
      %v4226 = vadd.f32 %v4190, %v4191
      %v4227 = vadd.f32 %v4226, %v4192
      %v4228 = vadd.f32 %v4227, %v4193
      %v4229 = vadd.f32 %v4228, %v4194
      %v4230 = vadd.f32 %v4229, %v4195
      %v4231 = vadd.f32 %v4230, %v4196
      %v4232 = vadd.f32 %v4231, %v4197
      %v4233 = vadd.f32 %v4232, %v4198
      %v4234 = vadd.f32 %v4233, %v4199
      %v4235 = vadd.f32 %v4234, %v4200
      %v4236 = vadd.f32 %v4235, %v4201
      %v4237 = vadd.f32 %v4236, %v4202
      %v4238 = vadd.f32 %v4237, %v4203
      %v4239 = vadd.f32 %v4238, %v4204
      %v4240 = vadd.f32 %v4239, %v4205
      %v4241 = vadd.f32 %v4240, %v4206
      %v4242 = vadd.f32 %v4241, %v4207
      %v4243 = vadd.f32 %v4242, %v4208
      %v4244 = vadd.f32 %v4243, %v4209
      %v4245 = vadd.f32 %v4244, %v4210
      %v4246 = vadd.f32 %v4245, %v4211
      %v4247 = vadd.f32 %v4246, %v4212
      %v4248 = vadd.f32 %v4247, %v4213
      %v4249 = vadd.f32 %v4248, %v4214
      %v4250 = vadd.f32 %v4249, %v4215
      %v4251 = vadd.f32 %v4250, %v4216
      %v4252 = vadd.f32 %v4251, %v4217
      %v4253 = vadd.f32 %v4252, %v4218
      %v4254 = vadd.f32 %v4253, %v4219
      %v4255 = vadd.f32 %v4254, %v4220
      %v4256 = vadd.f32 %v4255, %v4221
      %v4257 = vadd.f32 %v4256, %v4222
      %v4258 = vadd.f32 %v4257, %v4223
      %v4259 = vadd.f32 %v4258, %v4224
      %v4260 = vadd.f32 %v4259, %v4225
      %v4261 = vrot.slane %v4260, 4
      %v4262 = vadd.f32 %v4260, %v4261
      %v4263 = vrot.slane %v4262, 2
      %v4264 = vadd.f32 %v4262, %v4263
      %v4265 = vrot.slane %v4264, 1
      %v4266 = vadd.f32 %v4264, %v4265
      %4267 = vst [vmem:[%s428 + $0x1] sm:$0x1] %v4266
      %p4268 = scmp.lt.s32.totalorder %s24, 1
      %s4269 = scalar_select %p4268, %s24, 1
      %p4270 = scmp.lt.s32.totalorder %s25, 0
      %s4271 = scalar_select %p4270, %s25, 0
      %s4272 = smul.addr %s4271, 36
      %s4273 = smul.addr %s4269, 36
      %s4274 = sadd.s32 %s4272, %s4273
      %s4275 = smul.addr %s4274, 4
      %s4276 = scalar_lea.vmem %s7, %s4275
      %p4277 = scmp.lt.s32.totalorder %s24, 1
      %s4278 = scalar_select %p4277, %s24, 1
      %p4279 = scmp.lt.s32.totalorder %s25, 0
      %s4280 = scalar_select %p4279, %s25, 0
      %s4281 = sadd.s32 %s4280, %s4278
      %s4282 = smul.addr %s4281, 2
      %s4283 = scalar_lea.vmem %s8, %s4282
      // Predicated region
      $region49: #{up_forward.4} parent=47 // pred_check
        %p4284 = pneg %p220
      $region50: #{up_forward.4} parent=47 // pred_check_branch
        %4286 = sbr.rel (%p4284) target = $region52
      $region51: #{up_forward.4} parent=47 // pred_region
        _
      $region52: #{up_forward.4} parent=47 // pred_fallthru
        _
      // Predicated region
      $region53: #{up_forward.4} parent=47 // pred_check
        %p4287 = pneg %p248
      $region54: #{up_forward.4} parent=47 // pred_check_branch
        %4289 = sbr.rel (%p4287) target = $region56
      $region55: #{up_forward.4} parent=47 // pred_region
        _
      $region56: #{up_forward.4} parent=47 // pred_fallthru
        _
    $region48: #{up_forward.4} parent=5 // pred_fallthru
      _
    %p4290 = scmp.le.s32.totalorder 2, %s15
    // Predicated region
    $region57: #{up_forward.4} parent=5 // pred_check
      %p4291 = pneg %p4290
    $region58: #{up_forward.4} parent=5 // pred_check_branch
      %4293 = sbr.rel (%p4291) target = $region60
    $region59: #{up_forward.4} parent=5 // pred_region
      %s4294 = ssub.s32 %s15, 2
      // Predicated region
      $region61: #{up_forward.4} parent=59 // pred_check
        %p4295 = pneg %p226
      $region62: #{up_forward.4} parent=59 // pred_check_branch
        %4297 = sbr.rel (%p4295) target = $region64
      $region63: #{up_forward.4} parent=59 // pred_region
        %p4298 = scmp.lt.s32.totalorder %s26, 1
        %s4299 = scalar_select %p4298, %s26, 1
        %p4300 = scmp.lt.s32.totalorder %s27, 0
        %s4301 = scalar_select %p4300, %s27, 0
        %s4302 = smul.addr %s4301, 36
        %s4303 = smul.addr %s4299, 36
        %s4304 = sadd.s32 %s4302, %s4303
        %s4305 = smul.addr %s4304, 4
        %s4306 = scalar_lea.vmem %s7, %s4305
      $region64: #{up_forward.4} parent=59 // pred_fallthru
        _
      // Predicated region
      $region65: #{up_forward.4} parent=59 // pred_check
        %p4307 = pneg %p254
      $region66: #{up_forward.4} parent=59 // pred_check_branch
        %4309 = sbr.rel (%p4307) target = $region68
      $region67: #{up_forward.4} parent=59 // pred_region
        %p4310 = scmp.lt.s32.totalorder %s26, 1
        %s4311 = scalar_select %p4310, %s26, 1
        %p4312 = scmp.lt.s32.totalorder %s27, 0
        %s4313 = scalar_select %p4312, %s27, 0
        %s4314 = sadd.s32 %s4313, %s4311
        %s4315 = smul.addr %s4314, 2
        %s4316 = scalar_lea.vmem %s8, %s4315
      $region68: #{up_forward.4} parent=59 // pred_fallthru
        _
    $region60: #{up_forward.4} parent=5 // pred_fallthru
      _
  $region6: #{up_forward.4} parent=0 // loop_footer
    %s19 = sadd.s32 1, %s15
  $region7: #{up_forward.4} parent=0 // loop_footer_branch
    %14 = sbr.rel target = $region3
  $region8: #{up_forward.4} parent=0 // loop_exit
    _

</llo_original>
